<compile_context>
chip_gen: v7x
topology: tpu7x:2x2x1
jax: 0.10.0
libtpu: 0.0.40
codegen_flags: <defaults>
</compile_context>

<pallas_src>
import functools

import jax
import jax.numpy as jnp
from jax.experimental import pallas as pl
from jax.experimental.pallas import tpu as pltpu


# ----------------------------- helpers (in-kernel) ---------------------------

def _erf_poly(x):
  """erf via Abramowitz & Stegun 7.1.26 (max abs err ~1.5e-7), f32."""
  ax = jnp.maximum(x, -x)
  t = 1.0 / (1.0 + 0.3275911 * ax)
  poly = ((((1.061405429 * t - 1.453152027) * t + 1.421413741) * t
           - 0.284496736) * t + 0.254829592) * t
  y = 1.0 - poly * jnp.exp(-ax * ax)
  return jnp.where(x < 0.0, -y, y)


def _gelu_exact(x):
  return 0.5 * x * (1.0 + _erf_poly(x * 0.7071067811865476))


# --------------------------- fused whole-stack kernel ------------------------

def _stack_kernel(
    q_ref, kv_ref,
    n1g_ref, n1b_ref,
    sa_wq_ref, sa_wk_ref, sa_wv_ref, sa_wo_ref, sa_bo_ref,
    n2qg_ref, n2qb_ref, n2kg_ref, n2kb_ref,
    ca_wq_ref, ca_wk_ref, ca_wv_ref, ca_wo_ref, ca_bo_ref,
    n3g_ref, n3b_ref,
    mlp_w1_ref, mlp_b1_ref, mlp_w2_ref, mlp_b2_ref,
    o_ref,
    x_sc,
    *, heads, head_dim, bq, lq, lkv):
  f32 = jnp.float32
  bf16 = jnp.bfloat16
  C = heads * head_dim
  scale = 1.0 / (head_dim ** 0.5)
  d = pl.program_id(1)

  # ---- init the f32 residual carrier at the first layer of this batch tile --
  @pl.when(d == 0)
  def _():
    x_sc[...] = q_ref[...].reshape(bq * lq, C).astype(f32)

  x = x_sc[...]                                          # (bq*lq, C) f32
  kv = kv_ref[...].reshape(bq * lkv, C).astype(f32)      # (bq*lkv, C) f32

  def layer_norm(t, g_ref, b_ref):
    mu = jnp.mean(t, axis=-1, keepdims=True)
    var = jnp.mean(jnp.square(t - mu), axis=-1, keepdims=True)
    return ((t - mu) * jax.lax.rsqrt(var + 1e-5)
            * g_ref[0].astype(f32) + b_ref[0].astype(f32))

  # Per-head channel masks, hoisted to kernel scope (built once, reused for
  # self- and cross-attention, for the q-mask and the output select).
  lane = jax.lax.broadcasted_iota(jnp.int32, (1, C), 1)
  head_masks = [(lane >= h * head_dim) & (lane < (h + 1) * head_dim)
                for h in range(heads)]

  def mh_attention(q_tok, k_tok, v_tok):
    # q_tok: (lq, C); k_tok, v_tok: (lk, C), merged-head layout, f32.
    q_s = q_tok * scale                       # fold 1/sqrt(hd) into q once
    k_b = k_tok.astype(bf16)                  # loop-invariant MXU operand
    v_b = v_tok.astype(bf16)                  # loop-invariant MXU operand
    out = jnp.zeros((q_tok.shape[0], C), f32)
    for h in range(heads):                    # static unroll, H small
      m = head_masks[h]
      # Mask Q (not K): only head h's channels of q survive, so the lane-dense
      # contraction over C is restricted to head h while K keeps a single,
      # hoisted layout conversion for all heads.
      q_h = jnp.where(m, q_s, 0.0).astype(bf16)
      s = jax.lax.dot_general(q_h, k_b, (((1,), (1,)), ((), ())),
                              preferred_element_type=f32)     # (lq, lk)
      s = s - jnp.max(s, axis=-1, keepdims=True)
      p = jnp.exp(s)
      p = p / jnp.sum(p, axis=-1, keepdims=True)               # exact divide
      pv = jnp.dot(p.astype(bf16), v_b, preferred_element_type=f32)  # (lq, C)
      # Head h's channel slice of pv equals p @ v_h exactly; select it.
      out = jnp.where(m, pv, out)
    return out

  def mh_attention_batched(qq, kk, vv, lk):
    outs = []
    for bi in range(bq):                      # static loop over examples
      outs.append(mh_attention(qq[bi * lq:(bi + 1) * lq],
                               kk[bi * lk:(bi + 1) * lk],
                               vv[bi * lk:(bi + 1) * lk]))
    return outs[0] if bq == 1 else jnp.concatenate(outs, axis=0)

  def proj(t, w_ref):                         # bf16 MXU, f32 accumulation
    return jnp.dot(t.astype(bf16), w_ref[0], preferred_element_type=f32)

  # ---------------- self attention (pre-LN, residual fused) ----------------
  xl = layer_norm(x, n1g_ref, n1b_ref)
  qq = proj(xl, sa_wq_ref)                                   # bias=False
  kk = proj(xl, sa_wk_ref)
  vv = proj(xl, sa_wv_ref)
  att = mh_attention_batched(qq, kk, vv, lq)
  att = proj(att, sa_wo_ref) + sa_bo_ref[0].astype(f32)
  x = x + att

  # ---------------- cross attention (pre-LN on q & kv) ---------------------
  xq = layer_norm(x, n2qg_ref, n2qb_ref)
  xkv = layer_norm(kv, n2kg_ref, n2kb_ref)
  qq = proj(xq, ca_wq_ref)                                   # bias=False
  kk = proj(xkv, ca_wk_ref)
  vv = proj(xkv, ca_wv_ref)
  att = mh_attention_batched(qq, kk, vv, lkv)
  att = proj(att, ca_wo_ref) + ca_bo_ref[0].astype(f32)
  x = x + att

  # ---------------- MLP: Linear -> GELU(exact) -> Linear -------------------
  xl = layer_norm(x, n3g_ref, n3b_ref)
  hid = proj(xl, mlp_w1_ref) + mlp_b1_ref[0].astype(f32)
  hid = _gelu_exact(hid)
  hid = proj(hid, mlp_w2_ref) + mlp_b2_ref[0].astype(f32)
  x = x + hid

  x_sc[...] = x                               # carry residual to layer d+1

  # ---- write the output block after the last layer -------------------------
  @pl.when(d == pl.num_programs(1) - 1)
  def _():
    o_ref[...] = x.reshape(bq, lq, C).astype(o_ref.dtype)


# --------------------------------- wrapper -----------------------------------

def stacked_cross_attention_fwd(q, kv, layer_params, heads, *, block_b=None):
  """Whole StackedCrossAttention forward = ONE pallas_call."""
  B, Lq, C = q.shape
  Lkv = kv.shape[1]
  assert C % heads == 0
  hd = C // heads
  depth = len(layer_params)
  Hd = layer_params[0]["mlp_w1"].shape[1]
  bq = B if block_b is None else block_b
  assert B % bq == 0

  bf16 = jnp.bfloat16
  f32 = jnp.float32

  def stack_w(name):                     # matmul weights -> bf16, (D, ...)
    return jnp.stack([p[name] for p in layer_params]).astype(bf16)

  def stack_v(name):                     # biases / norm params -> f32, (D,1,n)
    return jnp.stack([p[name].reshape(1, -1) for p in layer_params]).astype(f32)

  # Split fused projection weights outside the kernel (weight-side only) so the
  # kernel never slices the lane axis of activations.
  sa_wq, sa_wk, sa_wv = jnp.split(stack_w("sa_qkv_w"), 3, axis=2)
  ca_wk, ca_wv = jnp.split(stack_w("ca_kv_w"), 2, axis=2)

  args = (
      q, kv,
      stack_v("norm1_g"), stack_v("norm1_b"),
      sa_wq, sa_wk, sa_wv, stack_w("sa_out_w"), stack_v("sa_out_b"),
      stack_v("norm2q_g"), stack_v("norm2q_b"),
      stack_v("norm2kv_g"), stack_v("norm2kv_b"),
      stack_w("ca_q_w"), ca_wk, ca_wv, stack_w("ca_out_w"), stack_v("ca_out_b"),
      stack_v("norm3_g"), stack_v("norm3_b"),
      stack_w("mlp_w1"), stack_v("mlp_b1"), stack_w("mlp_w2"), stack_v("mlp_b2"),
  )

  def w_spec(shape):                     # depth-stacked weight block
    nd = len(shape)
    return pl.BlockSpec((1,) + shape, lambda bt, d, _nd=nd: (d,) + (0,) * _nd)

  in_specs = [
      pl.BlockSpec((bq, Lq, C), lambda bt, d: (bt, 0, 0)),    # q (read at d=0)
      pl.BlockSpec((bq, Lkv, C), lambda bt, d: (bt, 0, 0)),   # kv (resident)
      w_spec((1, C)), w_spec((1, C)),                         # norm1
      w_spec((C, C)), w_spec((C, C)), w_spec((C, C)),         # sa q/k/v
      w_spec((C, C)), w_spec((1, C)),                         # sa out
      w_spec((1, C)), w_spec((1, C)),                         # norm2q
      w_spec((1, C)), w_spec((1, C)),                         # norm2kv
      w_spec((C, C)), w_spec((C, C)), w_spec((C, C)),         # ca q/k/v
      w_spec((C, C)), w_spec((1, C)),                         # ca out
      w_spec((1, C)), w_spec((1, C)),                         # norm3
      w_spec((C, Hd)), w_spec((1, Hd)),                       # mlp w1/b1
      w_spec((Hd, C)), w_spec((1, C)),                        # mlp w2/b2
  ]

  kern = functools.partial(_stack_kernel, heads=heads, head_dim=hd,
                           bq=bq, lq=Lq, lkv=Lkv)
  return pl.pallas_call(
      kern,
      out_shape=jax.ShapeDtypeStruct((B, Lq, C), q.dtype),
      grid=(B // bq, depth),
      in_specs=in_specs,
      out_specs=pl.BlockSpec((bq, Lq, C), lambda bt, d: (bt, 0, 0)),
      scratch_shapes=[pltpu.VMEM((bq * Lq, C), jnp.float32)],  # residual carrier
      compiler_params=pltpu.CompilerParams(
          dimension_semantics=("parallel", "arbitrary")),
  )(*args)


# ----------------------------- parameter init -------------------------------

def init_layer_params(key, dim, mlp_ratio=4.0, dtype=jnp.float32):
  hidden = int(dim * mlp_ratio)
  ks = jax.random.split(key, 8)

  def w(k, shape):
    return (jax.random.normal(k, shape, dtype) * 0.02).astype(dtype)

  ones = jnp.ones((dim,), dtype)
  zeros = jnp.zeros((dim,), dtype)
  return {
      "norm1_g": ones, "norm1_b": zeros,
      "sa_qkv_w": w(ks[0], (dim, 3 * dim)),          # bias=False
      "sa_out_w": w(ks[1], (dim, dim)),
      "sa_out_b": jnp.zeros((dim,), dtype),
      "norm2q_g": ones, "norm2q_b": zeros,
      "norm2kv_g": ones, "norm2kv_b": zeros,
      "ca_q_w": w(ks[2], (dim, dim)),                # bias=False
      "ca_kv_w": w(ks[3], (dim, 2 * dim)),           # bias=False
      "ca_out_w": w(ks[4], (dim, dim)),
      "ca_out_b": jnp.zeros((dim,), dtype),
      "norm3_g": ones, "norm3_b": zeros,
      "mlp_w1": w(ks[5], (dim, hidden)),
      "mlp_b1": jnp.zeros((hidden,), dtype),
      "mlp_w2": w(ks[6], (hidden, dim)),
      "mlp_b2": jnp.zeros((dim,), dtype),
  }


# --------------------------- pure-JAX reference ------------------------------

def _reference_forward(q, kv, layer_params, heads):
  hp = jax.lax.Precision.HIGHEST

  def ln(x, g, b):
    mu = x.mean(-1, keepdims=True)
    var = ((x - mu) ** 2).mean(-1, keepdims=True)
    return (x - mu) / jnp.sqrt(var + 1e-5) * g + b

  def attn(qx, kx, vx):
    B, Lq, C = qx.shape
    Lkv = kx.shape[1]
    hd = C // heads
    qh = qx.reshape(B, Lq, heads, hd).transpose(0, 2, 1, 3)
    kh = kx.reshape(B, Lkv, heads, hd).transpose(0, 2, 1, 3)
    vh = vx.reshape(B, Lkv, heads, hd).transpose(0, 2, 1, 3)
    s = jnp.einsum("bhqd,bhkd->bhqk", qh, kh, precision=hp) / jnp.sqrt(hd)
    p = jax.nn.softmax(s, axis=-1)
    o = jnp.einsum("bhqk,bhkd->bhqd", p, vh, precision=hp)
    return o.transpose(0, 2, 1, 3).reshape(B, Lq, C)

  x = q
  C = q.shape[-1]
  for p in layer_params:
    xl = ln(x, p["norm1_g"], p["norm1_b"])
    qkv = jnp.einsum("blc,cd->bld", xl, p["sa_qkv_w"], precision=hp)
    o = attn(qkv[..., :C], qkv[..., C:2 * C], qkv[..., 2 * C:])
    o = jnp.einsum("blc,cd->bld", o, p["sa_out_w"], precision=hp) + p["sa_out_b"]
    x = x + o

    xq = ln(x, p["norm2q_g"], p["norm2q_b"])
    xkv = ln(kv, p["norm2kv_g"], p["norm2kv_b"])
    qq = jnp.einsum("blc,cd->bld", xq, p["ca_q_w"], precision=hp)
    kvp = jnp.einsum("blc,cd->bld", xkv, p["ca_kv_w"], precision=hp)
    o = attn(qq, kvp[..., :C], kvp[..., C:])
    o = jnp.einsum("blc,cd->bld", o, p["ca_out_w"], precision=hp) + p["ca_out_b"]
    x = x + o

    xl = ln(x, p["norm3_g"], p["norm3_b"])
    h = jnp.einsum("blc,ch->blh", xl, p["mlp_w1"], precision=hp) + p["mlp_b1"]
    h = jax.nn.gelu(h, approximate=False)
    h = jnp.einsum("blh,hc->blc", h, p["mlp_w2"], precision=hp) + p["mlp_b2"]
    x = x + h
  return x


# --------------------------------- main --------------------------------------

if __name__ == "__main__":
  # Lane-dense toy config: C = 128 (one full lane tile), head_dim = 16.
  dim, heads, depth = 128, 8, 2
  B, Lq, Lkv = 2, 8, 16

  root = jax.random.PRNGKey(0)
  k_q, k_kv, k_params = jax.random.split(root, 3)
  q_in = jax.random.normal(k_q, (B, Lq, dim), jnp.float32)
  kv_in = jax.random.normal(k_kv, (B, Lkv, dim), jnp.float32)

  layer_keys = jax.random.split(k_params, depth)
  params = [init_layer_params(layer_keys[i], dim) for i in range(depth)]

  fwd = jax.jit(functools.partial(stacked_cross_attention_fwd, heads=heads))
  out = fwd(q_in, kv_in, params)
  out = jax.block_until_ready(out)

  assert out.shape == (B, Lq, dim), out.shape
  assert bool(jnp.all(jnp.isfinite(out)))

  ref = jax.jit(functools.partial(_reference_forward, heads=heads))(
      q_in, kv_in, params)
  ref = jax.block_until_ready(ref)
  # bf16 MXU operands in the kernel vs f32 HIGHEST reference -> modest tol.
  assert bool(jnp.allclose(out, ref, atol=2e-2, rtol=2e-2)), float(
      jnp.max(jnp.abs(out - ref)))

  print("KERNEL_OK")
</pallas_src>

<mosaic_0001>
module attributes {stable_mosaic.version = 11 : i64} {
  func.func @_stack_kernel(%arg0: i32, %arg1: i32, %arg2: memref<2x8x128xf32, #tpu.memory_space<vmem>>, %arg3: memref<2x16x128xf32, #tpu.memory_space<vmem>>, %arg4: memref<1x1x128xf32, #tpu.memory_space<vmem>>, %arg5: memref<1x1x128xf32, #tpu.memory_space<vmem>>, %arg6: memref<1x128x128xbf16, #tpu.memory_space<vmem>>, %arg7: memref<1x128x128xbf16, #tpu.memory_space<vmem>>, %arg8: memref<1x128x128xbf16, #tpu.memory_space<vmem>>, %arg9: memref<1x128x128xbf16, #tpu.memory_space<vmem>>, %arg10: memref<1x1x128xf32, #tpu.memory_space<vmem>>, %arg11: memref<1x1x128xf32, #tpu.memory_space<vmem>>, %arg12: memref<1x1x128xf32, #tpu.memory_space<vmem>>, %arg13: memref<1x1x128xf32, #tpu.memory_space<vmem>>, %arg14: memref<1x1x128xf32, #tpu.memory_space<vmem>>, %arg15: memref<1x128x128xbf16, #tpu.memory_space<vmem>>, %arg16: memref<1x128x128xbf16, #tpu.memory_space<vmem>>, %arg17: memref<1x128x128xbf16, #tpu.memory_space<vmem>>, %arg18: memref<1x128x128xbf16, #tpu.memory_space<vmem>>, %arg19: memref<1x1x128xf32, #tpu.memory_space<vmem>>, %arg20: memref<1x1x128xf32, #tpu.memory_space<vmem>>, %arg21: memref<1x1x128xf32, #tpu.memory_space<vmem>>, %arg22: memref<1x128x512xbf16, #tpu.memory_space<vmem>>, %arg23: memref<1x1x512xf32, #tpu.memory_space<vmem>>, %arg24: memref<1x512x128xbf16, #tpu.memory_space<vmem>>, %arg25: memref<1x1x128xf32, #tpu.memory_space<vmem>>, %arg26: memref<2x8x128xf32, #tpu.memory_space<vmem>>, %arg27: memref<16x128xf32, #tpu.memory_space<vmem>>) attributes {dimension_semantics = [#tpu.dimension_semantics<parallel>, #tpu.dimension_semantics<arbitrary>], iteration_bounds = array<i64: 1, 2>, scalar_prefetch = 0 : i64, scratch_operands = 1 : i64, tpu.core_type = #tpu.core_type<tc>, window_params = [{transform_indices = @transform_0, window_bounds = array<i64: 2, 8, 128>}, {transform_indices = @transform_1, window_bounds = array<i64: 2, 16, 128>}, {transform_indices = @transform_2, window_bounds = array<i64: 1, 1, 128>}, {transform_indices = @transform_3, window_bounds = array<i64: 1, 1, 128>}, {transform_indices = @transform_4, window_bounds = array<i64: 1, 128, 128>}, {transform_indices = @transform_5, window_bounds = array<i64: 1, 128, 128>}, {transform_indices = @transform_6, window_bounds = array<i64: 1, 128, 128>}, {transform_indices = @transform_7, window_bounds = array<i64: 1, 128, 128>}, {transform_indices = @transform_8, window_bounds = array<i64: 1, 1, 128>}, {transform_indices = @transform_9, window_bounds = array<i64: 1, 1, 128>}, {transform_indices = @transform_10, window_bounds = array<i64: 1, 1, 128>}, {transform_indices = @transform_11, window_bounds = array<i64: 1, 1, 128>}, {transform_indices = @transform_12, window_bounds = array<i64: 1, 1, 128>}, {transform_indices = @transform_13, window_bounds = array<i64: 1, 128, 128>}, {transform_indices = @transform_14, window_bounds = array<i64: 1, 128, 128>}, {transform_indices = @transform_15, window_bounds = array<i64: 1, 128, 128>}, {transform_indices = @transform_16, window_bounds = array<i64: 1, 128, 128>}, {transform_indices = @transform_17, window_bounds = array<i64: 1, 1, 128>}, {transform_indices = @transform_18, window_bounds = array<i64: 1, 1, 128>}, {transform_indices = @transform_19, window_bounds = array<i64: 1, 1, 128>}, {transform_indices = @transform_20, window_bounds = array<i64: 1, 128, 512>}, {transform_indices = @transform_21, window_bounds = array<i64: 1, 1, 512>}, {transform_indices = @transform_22, window_bounds = array<i64: 1, 512, 128>}, {transform_indices = @transform_23, window_bounds = array<i64: 1, 1, 128>}, {transform_indices = @transform_24, window_bounds = array<i64: 2, 8, 128>}]} {
    %c0_i32 = arith.constant 0 : i32
    %0 = arith.cmpi eq, %arg1, %c0_i32 : i32
    %1 = arith.extui %0 : i1 to i32
    %c0_i32_0 = arith.constant 0 : i32
    %2 = arith.cmpi ne, %1, %c0_i32_0 : i32
    scf.if %2 {
      %c0_295 = arith.constant 0 : index
      %c0_296 = arith.constant 0 : index
      %c0_297 = arith.constant 0 : index
      %930 = vector.load %arg2[%c0_295, %c0_296, %c0_297] : memref<2x8x128xf32, #tpu.memory_space<vmem>>, vector<2x8x128xf32>
      %931 = vector.shape_cast %930 : vector<2x8x128xf32> to vector<16x128xf32>
      %c0_298 = arith.constant 0 : index
      %c0_299 = arith.constant 0 : index
      %932 = vector.load %arg27[%c0_298, %c0_299] : memref<16x128xf32, #tpu.memory_space<vmem>>, vector<16x128xf32>
      tpu.vector_store %arg27[%c0_298, %c0_299], %931 {strides = array<i32>} : memref<16x128xf32, #tpu.memory_space<vmem>>, vector<16x128xf32>,
    } else {
    }
    %c0 = arith.constant 0 : index
    %c0_1 = arith.constant 0 : index
    %3 = vector.load %arg27[%c0, %c0_1] : memref<16x128xf32, #tpu.memory_space<vmem>>, vector<16x128xf32>
    %c0_2 = arith.constant 0 : index
    %c0_3 = arith.constant 0 : index
    %c0_4 = arith.constant 0 : index
    %4 = vector.load %arg3[%c0_2, %c0_3, %c0_4] : memref<2x16x128xf32, #tpu.memory_space<vmem>>, vector<2x16x128xf32>
    %5 = vector.shape_cast %4 : vector<2x16x128xf32> to vector<32x128xf32>
    %6 = tpu.iota {dimensions = array<i32: 1>} : vector<1x128xi32>
    %c0_i32_5 = arith.constant 0 : i32
    %7 = vector.broadcast %c0_i32_5 : i32 to vector<1x128xi32>
    %8 = arith.cmpi sge, %6, %7 : vector<1x128xi32>
    %c16_i32 = arith.constant 16 : i32
    %9 = vector.broadcast %c16_i32 : i32 to vector<1x128xi32>
    %10 = arith.cmpi slt, %6, %9 : vector<1x128xi32>
    %11 = arith.andi %8, %10 : vector<1x128xi1>
    %c16_i32_6 = arith.constant 16 : i32
    %12 = vector.broadcast %c16_i32_6 : i32 to vector<1x128xi32>
    %13 = arith.cmpi sge, %6, %12 : vector<1x128xi32>
    %c32_i32 = arith.constant 32 : i32
    %14 = vector.broadcast %c32_i32 : i32 to vector<1x128xi32>
    %15 = arith.cmpi slt, %6, %14 : vector<1x128xi32>
    %16 = arith.andi %13, %15 : vector<1x128xi1>
    %c32_i32_7 = arith.constant 32 : i32
    %17 = vector.broadcast %c32_i32_7 : i32 to vector<1x128xi32>
    %18 = arith.cmpi sge, %6, %17 : vector<1x128xi32>
    %c48_i32 = arith.constant 48 : i32
    %19 = vector.broadcast %c48_i32 : i32 to vector<1x128xi32>
    %20 = arith.cmpi slt, %6, %19 : vector<1x128xi32>
    %21 = arith.andi %18, %20 : vector<1x128xi1>
    %c48_i32_8 = arith.constant 48 : i32
    %22 = vector.broadcast %c48_i32_8 : i32 to vector<1x128xi32>
    %23 = arith.cmpi sge, %6, %22 : vector<1x128xi32>
    %c64_i32 = arith.constant 64 : i32
    %24 = vector.broadcast %c64_i32 : i32 to vector<1x128xi32>
    %25 = arith.cmpi slt, %6, %24 : vector<1x128xi32>
    %26 = arith.andi %23, %25 : vector<1x128xi1>
    %c64_i32_9 = arith.constant 64 : i32
    %27 = vector.broadcast %c64_i32_9 : i32 to vector<1x128xi32>
    %28 = arith.cmpi sge, %6, %27 : vector<1x128xi32>
    %c80_i32 = arith.constant 80 : i32
    %29 = vector.broadcast %c80_i32 : i32 to vector<1x128xi32>
    %30 = arith.cmpi slt, %6, %29 : vector<1x128xi32>
    %31 = arith.andi %28, %30 : vector<1x128xi1>
    %c80_i32_10 = arith.constant 80 : i32
    %32 = vector.broadcast %c80_i32_10 : i32 to vector<1x128xi32>
    %33 = arith.cmpi sge, %6, %32 : vector<1x128xi32>
    %c96_i32 = arith.constant 96 : i32
    %34 = vector.broadcast %c96_i32 : i32 to vector<1x128xi32>
    %35 = arith.cmpi slt, %6, %34 : vector<1x128xi32>
    %36 = arith.andi %33, %35 : vector<1x128xi1>
    %c96_i32_11 = arith.constant 96 : i32
    %37 = vector.broadcast %c96_i32_11 : i32 to vector<1x128xi32>
    %38 = arith.cmpi sge, %6, %37 : vector<1x128xi32>
    %c112_i32 = arith.constant 112 : i32
    %39 = vector.broadcast %c112_i32 : i32 to vector<1x128xi32>
    %40 = arith.cmpi slt, %6, %39 : vector<1x128xi32>
    %41 = arith.andi %38, %40 : vector<1x128xi1>
    %c112_i32_12 = arith.constant 112 : i32
    %42 = vector.broadcast %c112_i32_12 : i32 to vector<1x128xi32>
    %43 = arith.cmpi sge, %6, %42 : vector<1x128xi32>
    %c128_i32 = arith.constant 128 : i32
    %44 = vector.broadcast %c128_i32 : i32 to vector<1x128xi32>
    %45 = arith.cmpi slt, %6, %44 : vector<1x128xi32>
    %46 = arith.andi %43, %45 : vector<1x128xi1>
    %cst = arith.constant dense<0.000000e+00> : vector<16xf32>
    %47 = vector.multi_reduction <add>, %3, %cst [1] : vector<16x128xf32> to vector<16xf32>
    %48 = vector.shape_cast %47 : vector<16xf32> to vector<16x1xf32>
    %cst_13 = arith.constant 1.280000e+02 : f32
    %49 = vector.broadcast %cst_13 : f32 to vector<16x1xf32>
    %50 = arith.divf %48, %49 : vector<16x1xf32>
    %51 = vector.broadcast %50 : vector<16x1xf32> to vector<16x128xf32>
    %52 = arith.subf %3, %51 : vector<16x128xf32>
    %53 = arith.mulf %52, %52 : vector<16x128xf32>
    %cst_14 = arith.constant dense<0.000000e+00> : vector<16xf32>
    %54 = vector.multi_reduction <add>, %53, %cst_14 [1] : vector<16x128xf32> to vector<16xf32>
    %55 = vector.shape_cast %54 : vector<16xf32> to vector<16x1xf32>
    %cst_15 = arith.constant 1.280000e+02 : f32
    %56 = vector.broadcast %cst_15 : f32 to vector<16x1xf32>
    %57 = arith.divf %55, %56 : vector<16x1xf32>
    %58 = vector.broadcast %50 : vector<16x1xf32> to vector<16x128xf32>
    %59 = arith.subf %3, %58 : vector<16x128xf32>
    %cst_16 = arith.constant 9.99999974E-6 : f32
    %60 = vector.broadcast %cst_16 : f32 to vector<16x1xf32>
    %61 = arith.addf %57, %60 : vector<16x1xf32>
    %62 = math.rsqrt %61 : vector<16x1xf32>
    %63 = vector.broadcast %62 : vector<16x1xf32> to vector<16x128xf32>
    %64 = arith.mulf %59, %63 : vector<16x128xf32>
    %c0_17 = arith.constant 0 : index
    %c0_18 = arith.constant 0 : index
    %c0_19 = arith.constant 0 : index
    %65 = vector.load %arg4[%c0_17, %c0_18, %c0_19] : memref<1x1x128xf32, #tpu.memory_space<vmem>>, vector<1x1x128xf32>
    %66 = vector.shape_cast %65 : vector<1x1x128xf32> to vector<1x128xf32>
    %67 = vector.broadcast %66 : vector<1x128xf32> to vector<16x128xf32>
    %68 = arith.mulf %64, %67 : vector<16x128xf32>
    %c0_20 = arith.constant 0 : index
    %c0_21 = arith.constant 0 : index
    %c0_22 = arith.constant 0 : index
    %69 = vector.load %arg5[%c0_20, %c0_21, %c0_22] : memref<1x1x128xf32, #tpu.memory_space<vmem>>, vector<1x1x128xf32>
    %70 = vector.shape_cast %69 : vector<1x1x128xf32> to vector<1x128xf32>
    %71 = vector.broadcast %70 : vector<1x128xf32> to vector<16x128xf32>
    %72 = arith.addf %68, %71 : vector<16x128xf32>
    %73 = arith.truncf %72 : vector<16x128xf32> to vector<16x128xbf16>
    %c0_23 = arith.constant 0 : index
    %c0_24 = arith.constant 0 : index
    %c0_25 = arith.constant 0 : index
    %74 = vector.load %arg6[%c0_23, %c0_24, %c0_25] : memref<1x128x128xbf16, #tpu.memory_space<vmem>>, vector<1x128x128xbf16>
    %75 = vector.shape_cast %74 : vector<1x128x128xbf16> to vector<128x128xbf16>
    %cst_26 = arith.constant dense<0.000000e+00> : vector<16x128xf32>
    %76 = tpu.matmul %73, %75, %cst_26 {dimension_numbers = #tpu.dot_dimension_numbers<[1], [0], [0], [1], [0, 0, 1, 1], [], []>} : vector<16x128xbf16>, vector<128x128xbf16>, vector<16x128xf32> -> vector<16x128xf32>
    %77 = arith.truncf %72 : vector<16x128xf32> to vector<16x128xbf16>
    %c0_27 = arith.constant 0 : index
    %c0_28 = arith.constant 0 : index
    %c0_29 = arith.constant 0 : index
    %78 = vector.load %arg7[%c0_27, %c0_28, %c0_29] : memref<1x128x128xbf16, #tpu.memory_space<vmem>>, vector<1x128x128xbf16>
    %79 = vector.shape_cast %78 : vector<1x128x128xbf16> to vector<128x128xbf16>
    %cst_30 = arith.constant dense<0.000000e+00> : vector<16x128xf32>
    %80 = tpu.matmul %77, %79, %cst_30 {dimension_numbers = #tpu.dot_dimension_numbers<[1], [0], [0], [1], [0, 0, 1, 1], [], []>} : vector<16x128xbf16>, vector<128x128xbf16>, vector<16x128xf32> -> vector<16x128xf32>
    %81 = arith.truncf %72 : vector<16x128xf32> to vector<16x128xbf16>
    %c0_31 = arith.constant 0 : index
    %c0_32 = arith.constant 0 : index
    %c0_33 = arith.constant 0 : index
    %82 = vector.load %arg8[%c0_31, %c0_32, %c0_33] : memref<1x128x128xbf16, #tpu.memory_space<vmem>>, vector<1x128x128xbf16>
    %83 = vector.shape_cast %82 : vector<1x128x128xbf16> to vector<128x128xbf16>
    %cst_34 = arith.constant dense<0.000000e+00> : vector<16x128xf32>
    %84 = tpu.matmul %81, %83, %cst_34 {dimension_numbers = #tpu.dot_dimension_numbers<[1], [0], [0], [1], [0, 0, 1, 1], [], []>} : vector<16x128xbf16>, vector<128x128xbf16>, vector<16x128xf32> -> vector<16x128xf32>
    %85 = vector.extract_strided_slice %76 {offsets = [0, 0], sizes = [8, 128], strides = [1, 1]} : vector<16x128xf32> to vector<8x128xf32>
    %86 = vector.extract_strided_slice %80 {offsets = [0, 0], sizes = [8, 128], strides = [1, 1]} : vector<16x128xf32> to vector<8x128xf32>
    %87 = vector.extract_strided_slice %84 {offsets = [0, 0], sizes = [8, 128], strides = [1, 1]} : vector<16x128xf32> to vector<8x128xf32>
    %cst_35 = arith.constant 2.500000e-01 : f32
    %88 = vector.broadcast %cst_35 : f32 to vector<8x128xf32>
    %89 = arith.mulf %85, %88 : vector<8x128xf32>
    %90 = arith.truncf %86 : vector<8x128xf32> to vector<8x128xbf16>
    %91 = arith.truncf %87 : vector<8x128xf32> to vector<8x128xbf16>
    %cst_36 = arith.constant 0.000000e+00 : f32
    %92 = vector.broadcast %cst_36 : f32 to vector<8x128xf32>
    %cst_37 = arith.constant 0.000000e+00 : f32
    %93 = vector.shape_cast %11 : vector<1x128xi1> to vector<1x128xi1>
    %94 = vector.broadcast %93 : vector<1x128xi1> to vector<8x128xi1>
    %95 = vector.broadcast %cst_37 : f32 to vector<8x128xf32>
    %96 = arith.select %94, %89, %95 : vector<8x128xi1>, vector<8x128xf32>
    %97 = arith.truncf %96 : vector<8x128xf32> to vector<8x128xbf16>
    %cst_38 = arith.constant dense<0.000000e+00> : vector<8x8xf32>
    %98 = tpu.matmul %97, %90, %cst_38 {dimension_numbers = #tpu.dot_dimension_numbers<[1], [1], [0], [0], [0, 0, 1, 0], [], []>} : vector<8x128xbf16>, vector<8x128xbf16>, vector<8x8xf32> -> vector<8x8xf32>
    %cst_39 = arith.constant dense<0xFF800000> : vector<8xf32>
    %99 = vector.multi_reduction <maximumf>, %98, %cst_39 [1] : vector<8x8xf32> to vector<8xf32>
    %100 = vector.shape_cast %99 : vector<8xf32> to vector<8x1xf32>
    %101 = vector.broadcast %100 : vector<8x1xf32> to vector<8x8xf32>
    %102 = arith.subf %98, %101 : vector<8x8xf32>
    %103 = math.exp %102 : vector<8x8xf32>
    %cst_40 = arith.constant dense<0.000000e+00> : vector<8xf32>
    %104 = vector.multi_reduction <add>, %103, %cst_40 [1] : vector<8x8xf32> to vector<8xf32>
    %105 = vector.shape_cast %104 : vector<8xf32> to vector<8x1xf32>
    %106 = vector.broadcast %105 : vector<8x1xf32> to vector<8x8xf32>
    %107 = arith.divf %103, %106 : vector<8x8xf32>
    %108 = arith.truncf %107 : vector<8x8xf32> to vector<8x8xbf16>
    %cst_41 = arith.constant dense<0.000000e+00> : vector<8x128xf32>
    %109 = tpu.matmul %108, %91, %cst_41 {dimension_numbers = #tpu.dot_dimension_numbers<[1], [0], [0], [1], [0, 0, 1, 1], [], []>} : vector<8x8xbf16>, vector<8x128xbf16>, vector<8x128xf32> -> vector<8x128xf32>
    %110 = vector.shape_cast %11 : vector<1x128xi1> to vector<1x128xi1>
    %111 = vector.broadcast %110 : vector<1x128xi1> to vector<8x128xi1>
    %112 = arith.select %111, %109, %92 : vector<8x128xi1>, vector<8x128xf32>
    %cst_42 = arith.constant 0.000000e+00 : f32
    %113 = vector.shape_cast %16 : vector<1x128xi1> to vector<1x128xi1>
    %114 = vector.broadcast %113 : vector<1x128xi1> to vector<8x128xi1>
    %115 = vector.broadcast %cst_42 : f32 to vector<8x128xf32>
    %116 = arith.select %114, %89, %115 : vector<8x128xi1>, vector<8x128xf32>
    %117 = arith.truncf %116 : vector<8x128xf32> to vector<8x128xbf16>
    %cst_43 = arith.constant dense<0.000000e+00> : vector<8x8xf32>
    %118 = tpu.matmul %117, %90, %cst_43 {dimension_numbers = #tpu.dot_dimension_numbers<[1], [1], [0], [0], [0, 0, 1, 0], [], []>} : vector<8x128xbf16>, vector<8x128xbf16>, vector<8x8xf32> -> vector<8x8xf32>
    %cst_44 = arith.constant dense<0xFF800000> : vector<8xf32>
    %119 = vector.multi_reduction <maximumf>, %118, %cst_44 [1] : vector<8x8xf32> to vector<8xf32>
    %120 = vector.shape_cast %119 : vector<8xf32> to vector<8x1xf32>
    %121 = vector.broadcast %120 : vector<8x1xf32> to vector<8x8xf32>
    %122 = arith.subf %118, %121 : vector<8x8xf32>
    %123 = math.exp %122 : vector<8x8xf32>
    %cst_45 = arith.constant dense<0.000000e+00> : vector<8xf32>
    %124 = vector.multi_reduction <add>, %123, %cst_45 [1] : vector<8x8xf32> to vector<8xf32>
    %125 = vector.shape_cast %124 : vector<8xf32> to vector<8x1xf32>
    %126 = vector.broadcast %125 : vector<8x1xf32> to vector<8x8xf32>
    %127 = arith.divf %123, %126 : vector<8x8xf32>
    %128 = arith.truncf %127 : vector<8x8xf32> to vector<8x8xbf16>
    %cst_46 = arith.constant dense<0.000000e+00> : vector<8x128xf32>
    %129 = tpu.matmul %128, %91, %cst_46 {dimension_numbers = #tpu.dot_dimension_numbers<[1], [0], [0], [1], [0, 0, 1, 1], [], []>} : vector<8x8xbf16>, vector<8x128xbf16>, vector<8x128xf32> -> vector<8x128xf32>
    %130 = vector.shape_cast %16 : vector<1x128xi1> to vector<1x128xi1>
    %131 = vector.broadcast %130 : vector<1x128xi1> to vector<8x128xi1>
    %132 = arith.select %131, %129, %112 : vector<8x128xi1>, vector<8x128xf32>
    %cst_47 = arith.constant 0.000000e+00 : f32
    %133 = vector.shape_cast %21 : vector<1x128xi1> to vector<1x128xi1>
    %134 = vector.broadcast %133 : vector<1x128xi1> to vector<8x128xi1>
    %135 = vector.broadcast %cst_47 : f32 to vector<8x128xf32>
    %136 = arith.select %134, %89, %135 : vector<8x128xi1>, vector<8x128xf32>
    %137 = arith.truncf %136 : vector<8x128xf32> to vector<8x128xbf16>
    %cst_48 = arith.constant dense<0.000000e+00> : vector<8x8xf32>
    %138 = tpu.matmul %137, %90, %cst_48 {dimension_numbers = #tpu.dot_dimension_numbers<[1], [1], [0], [0], [0, 0, 1, 0], [], []>} : vector<8x128xbf16>, vector<8x128xbf16>, vector<8x8xf32> -> vector<8x8xf32>
    %cst_49 = arith.constant dense<0xFF800000> : vector<8xf32>
    %139 = vector.multi_reduction <maximumf>, %138, %cst_49 [1] : vector<8x8xf32> to vector<8xf32>
    %140 = vector.shape_cast %139 : vector<8xf32> to vector<8x1xf32>
    %141 = vector.broadcast %140 : vector<8x1xf32> to vector<8x8xf32>
    %142 = arith.subf %138, %141 : vector<8x8xf32>
    %143 = math.exp %142 : vector<8x8xf32>
    %cst_50 = arith.constant dense<0.000000e+00> : vector<8xf32>
    %144 = vector.multi_reduction <add>, %143, %cst_50 [1] : vector<8x8xf32> to vector<8xf32>
    %145 = vector.shape_cast %144 : vector<8xf32> to vector<8x1xf32>
    %146 = vector.broadcast %145 : vector<8x1xf32> to vector<8x8xf32>
    %147 = arith.divf %143, %146 : vector<8x8xf32>
    %148 = arith.truncf %147 : vector<8x8xf32> to vector<8x8xbf16>
    %cst_51 = arith.constant dense<0.000000e+00> : vector<8x128xf32>
    %149 = tpu.matmul %148, %91, %cst_51 {dimension_numbers = #tpu.dot_dimension_numbers<[1], [0], [0], [1], [0, 0, 1, 1], [], []>} : vector<8x8xbf16>, vector<8x128xbf16>, vector<8x128xf32> -> vector<8x128xf32>
    %150 = vector.shape_cast %21 : vector<1x128xi1> to vector<1x128xi1>
    %151 = vector.broadcast %150 : vector<1x128xi1> to vector<8x128xi1>
    %152 = arith.select %151, %149, %132 : vector<8x128xi1>, vector<8x128xf32>
    %cst_52 = arith.constant 0.000000e+00 : f32
    %153 = vector.shape_cast %26 : vector<1x128xi1> to vector<1x128xi1>
    %154 = vector.broadcast %153 : vector<1x128xi1> to vector<8x128xi1>
    %155 = vector.broadcast %cst_52 : f32 to vector<8x128xf32>
    %156 = arith.select %154, %89, %155 : vector<8x128xi1>, vector<8x128xf32>
    %157 = arith.truncf %156 : vector<8x128xf32> to vector<8x128xbf16>
    %cst_53 = arith.constant dense<0.000000e+00> : vector<8x8xf32>
    %158 = tpu.matmul %157, %90, %cst_53 {dimension_numbers = #tpu.dot_dimension_numbers<[1], [1], [0], [0], [0, 0, 1, 0], [], []>} : vector<8x128xbf16>, vector<8x128xbf16>, vector<8x8xf32> -> vector<8x8xf32>
    %cst_54 = arith.constant dense<0xFF800000> : vector<8xf32>
    %159 = vector.multi_reduction <maximumf>, %158, %cst_54 [1] : vector<8x8xf32> to vector<8xf32>
    %160 = vector.shape_cast %159 : vector<8xf32> to vector<8x1xf32>
    %161 = vector.broadcast %160 : vector<8x1xf32> to vector<8x8xf32>
    %162 = arith.subf %158, %161 : vector<8x8xf32>
    %163 = math.exp %162 : vector<8x8xf32>
    %cst_55 = arith.constant dense<0.000000e+00> : vector<8xf32>
    %164 = vector.multi_reduction <add>, %163, %cst_55 [1] : vector<8x8xf32> to vector<8xf32>
    %165 = vector.shape_cast %164 : vector<8xf32> to vector<8x1xf32>
    %166 = vector.broadcast %165 : vector<8x1xf32> to vector<8x8xf32>
    %167 = arith.divf %163, %166 : vector<8x8xf32>
    %168 = arith.truncf %167 : vector<8x8xf32> to vector<8x8xbf16>
    %cst_56 = arith.constant dense<0.000000e+00> : vector<8x128xf32>
    %169 = tpu.matmul %168, %91, %cst_56 {dimension_numbers = #tpu.dot_dimension_numbers<[1], [0], [0], [1], [0, 0, 1, 1], [], []>} : vector<8x8xbf16>, vector<8x128xbf16>, vector<8x128xf32> -> vector<8x128xf32>
    %170 = vector.shape_cast %26 : vector<1x128xi1> to vector<1x128xi1>
    %171 = vector.broadcast %170 : vector<1x128xi1> to vector<8x128xi1>
    %172 = arith.select %171, %169, %152 : vector<8x128xi1>, vector<8x128xf32>
    %cst_57 = arith.constant 0.000000e+00 : f32
    %173 = vector.shape_cast %31 : vector<1x128xi1> to vector<1x128xi1>
    %174 = vector.broadcast %173 : vector<1x128xi1> to vector<8x128xi1>
    %175 = vector.broadcast %cst_57 : f32 to vector<8x128xf32>
    %176 = arith.select %174, %89, %175 : vector<8x128xi1>, vector<8x128xf32>
    %177 = arith.truncf %176 : vector<8x128xf32> to vector<8x128xbf16>
    %cst_58 = arith.constant dense<0.000000e+00> : vector<8x8xf32>
    %178 = tpu.matmul %177, %90, %cst_58 {dimension_numbers = #tpu.dot_dimension_numbers<[1], [1], [0], [0], [0, 0, 1, 0], [], []>} : vector<8x128xbf16>, vector<8x128xbf16>, vector<8x8xf32> -> vector<8x8xf32>
    %cst_59 = arith.constant dense<0xFF800000> : vector<8xf32>
    %179 = vector.multi_reduction <maximumf>, %178, %cst_59 [1] : vector<8x8xf32> to vector<8xf32>
    %180 = vector.shape_cast %179 : vector<8xf32> to vector<8x1xf32>
    %181 = vector.broadcast %180 : vector<8x1xf32> to vector<8x8xf32>
    %182 = arith.subf %178, %181 : vector<8x8xf32>
    %183 = math.exp %182 : vector<8x8xf32>
    %cst_60 = arith.constant dense<0.000000e+00> : vector<8xf32>
    %184 = vector.multi_reduction <add>, %183, %cst_60 [1] : vector<8x8xf32> to vector<8xf32>
    %185 = vector.shape_cast %184 : vector<8xf32> to vector<8x1xf32>
    %186 = vector.broadcast %185 : vector<8x1xf32> to vector<8x8xf32>
    %187 = arith.divf %183, %186 : vector<8x8xf32>
    %188 = arith.truncf %187 : vector<8x8xf32> to vector<8x8xbf16>
    %cst_61 = arith.constant dense<0.000000e+00> : vector<8x128xf32>
    %189 = tpu.matmul %188, %91, %cst_61 {dimension_numbers = #tpu.dot_dimension_numbers<[1], [0], [0], [1], [0, 0, 1, 1], [], []>} : vector<8x8xbf16>, vector<8x128xbf16>, vector<8x128xf32> -> vector<8x128xf32>
    %190 = vector.shape_cast %31 : vector<1x128xi1> to vector<1x128xi1>
    %191 = vector.broadcast %190 : vector<1x128xi1> to vector<8x128xi1>
    %192 = arith.select %191, %189, %172 : vector<8x128xi1>, vector<8x128xf32>
    %cst_62 = arith.constant 0.000000e+00 : f32
    %193 = vector.shape_cast %36 : vector<1x128xi1> to vector<1x128xi1>
    %194 = vector.broadcast %193 : vector<1x128xi1> to vector<8x128xi1>
    %195 = vector.broadcast %cst_62 : f32 to vector<8x128xf32>
    %196 = arith.select %194, %89, %195 : vector<8x128xi1>, vector<8x128xf32>
    %197 = arith.truncf %196 : vector<8x128xf32> to vector<8x128xbf16>
    %cst_63 = arith.constant dense<0.000000e+00> : vector<8x8xf32>
    %198 = tpu.matmul %197, %90, %cst_63 {dimension_numbers = #tpu.dot_dimension_numbers<[1], [1], [0], [0], [0, 0, 1, 0], [], []>} : vector<8x128xbf16>, vector<8x128xbf16>, vector<8x8xf32> -> vector<8x8xf32>
    %cst_64 = arith.constant dense<0xFF800000> : vector<8xf32>
    %199 = vector.multi_reduction <maximumf>, %198, %cst_64 [1] : vector<8x8xf32> to vector<8xf32>
    %200 = vector.shape_cast %199 : vector<8xf32> to vector<8x1xf32>
    %201 = vector.broadcast %200 : vector<8x1xf32> to vector<8x8xf32>
    %202 = arith.subf %198, %201 : vector<8x8xf32>
    %203 = math.exp %202 : vector<8x8xf32>
    %cst_65 = arith.constant dense<0.000000e+00> : vector<8xf32>
    %204 = vector.multi_reduction <add>, %203, %cst_65 [1] : vector<8x8xf32> to vector<8xf32>
    %205 = vector.shape_cast %204 : vector<8xf32> to vector<8x1xf32>
    %206 = vector.broadcast %205 : vector<8x1xf32> to vector<8x8xf32>
    %207 = arith.divf %203, %206 : vector<8x8xf32>
    %208 = arith.truncf %207 : vector<8x8xf32> to vector<8x8xbf16>
    %cst_66 = arith.constant dense<0.000000e+00> : vector<8x128xf32>
    %209 = tpu.matmul %208, %91, %cst_66 {dimension_numbers = #tpu.dot_dimension_numbers<[1], [0], [0], [1], [0, 0, 1, 1], [], []>} : vector<8x8xbf16>, vector<8x128xbf16>, vector<8x128xf32> -> vector<8x128xf32>
    %210 = vector.shape_cast %36 : vector<1x128xi1> to vector<1x128xi1>
    %211 = vector.broadcast %210 : vector<1x128xi1> to vector<8x128xi1>
    %212 = arith.select %211, %209, %192 : vector<8x128xi1>, vector<8x128xf32>
    %cst_67 = arith.constant 0.000000e+00 : f32
    %213 = vector.shape_cast %41 : vector<1x128xi1> to vector<1x128xi1>
    %214 = vector.broadcast %213 : vector<1x128xi1> to vector<8x128xi1>
    %215 = vector.broadcast %cst_67 : f32 to vector<8x128xf32>
    %216 = arith.select %214, %89, %215 : vector<8x128xi1>, vector<8x128xf32>
    %217 = arith.truncf %216 : vector<8x128xf32> to vector<8x128xbf16>
    %cst_68 = arith.constant dense<0.000000e+00> : vector<8x8xf32>
    %218 = tpu.matmul %217, %90, %cst_68 {dimension_numbers = #tpu.dot_dimension_numbers<[1], [1], [0], [0], [0, 0, 1, 0], [], []>} : vector<8x128xbf16>, vector<8x128xbf16>, vector<8x8xf32> -> vector<8x8xf32>
    %cst_69 = arith.constant dense<0xFF800000> : vector<8xf32>
    %219 = vector.multi_reduction <maximumf>, %218, %cst_69 [1] : vector<8x8xf32> to vector<8xf32>
    %220 = vector.shape_cast %219 : vector<8xf32> to vector<8x1xf32>
    %221 = vector.broadcast %220 : vector<8x1xf32> to vector<8x8xf32>
    %222 = arith.subf %218, %221 : vector<8x8xf32>
    %223 = math.exp %222 : vector<8x8xf32>
    %cst_70 = arith.constant dense<0.000000e+00> : vector<8xf32>
    %224 = vector.multi_reduction <add>, %223, %cst_70 [1] : vector<8x8xf32> to vector<8xf32>
    %225 = vector.shape_cast %224 : vector<8xf32> to vector<8x1xf32>
    %226 = vector.broadcast %225 : vector<8x1xf32> to vector<8x8xf32>
    %227 = arith.divf %223, %226 : vector<8x8xf32>
    %228 = arith.truncf %227 : vector<8x8xf32> to vector<8x8xbf16>
    %cst_71 = arith.constant dense<0.000000e+00> : vector<8x128xf32>
    %229 = tpu.matmul %228, %91, %cst_71 {dimension_numbers = #tpu.dot_dimension_numbers<[1], [0], [0], [1], [0, 0, 1, 1], [], []>} : vector<8x8xbf16>, vector<8x128xbf16>, vector<8x128xf32> -> vector<8x128xf32>
    %230 = vector.shape_cast %41 : vector<1x128xi1> to vector<1x128xi1>
    %231 = vector.broadcast %230 : vector<1x128xi1> to vector<8x128xi1>
    %232 = arith.select %231, %229, %212 : vector<8x128xi1>, vector<8x128xf32>
    %cst_72 = arith.constant 0.000000e+00 : f32
    %233 = vector.shape_cast %46 : vector<1x128xi1> to vector<1x128xi1>
    %234 = vector.broadcast %233 : vector<1x128xi1> to vector<8x128xi1>
    %235 = vector.broadcast %cst_72 : f32 to vector<8x128xf32>
    %236 = arith.select %234, %89, %235 : vector<8x128xi1>, vector<8x128xf32>
    %237 = arith.truncf %236 : vector<8x128xf32> to vector<8x128xbf16>
    %cst_73 = arith.constant dense<0.000000e+00> : vector<8x8xf32>
    %238 = tpu.matmul %237, %90, %cst_73 {dimension_numbers = #tpu.dot_dimension_numbers<[1], [1], [0], [0], [0, 0, 1, 0], [], []>} : vector<8x128xbf16>, vector<8x128xbf16>, vector<8x8xf32> -> vector<8x8xf32>
    %cst_74 = arith.constant dense<0xFF800000> : vector<8xf32>
    %239 = vector.multi_reduction <maximumf>, %238, %cst_74 [1] : vector<8x8xf32> to vector<8xf32>
    %240 = vector.shape_cast %239 : vector<8xf32> to vector<8x1xf32>
    %241 = vector.broadcast %240 : vector<8x1xf32> to vector<8x8xf32>
    %242 = arith.subf %238, %241 : vector<8x8xf32>
    %243 = math.exp %242 : vector<8x8xf32>
    %cst_75 = arith.constant dense<0.000000e+00> : vector<8xf32>
    %244 = vector.multi_reduction <add>, %243, %cst_75 [1] : vector<8x8xf32> to vector<8xf32>
    %245 = vector.shape_cast %244 : vector<8xf32> to vector<8x1xf32>
    %246 = vector.broadcast %245 : vector<8x1xf32> to vector<8x8xf32>
    %247 = arith.divf %243, %246 : vector<8x8xf32>
    %248 = arith.truncf %247 : vector<8x8xf32> to vector<8x8xbf16>
    %cst_76 = arith.constant dense<0.000000e+00> : vector<8x128xf32>
    %249 = tpu.matmul %248, %91, %cst_76 {dimension_numbers = #tpu.dot_dimension_numbers<[1], [0], [0], [1], [0, 0, 1, 1], [], []>} : vector<8x8xbf16>, vector<8x128xbf16>, vector<8x128xf32> -> vector<8x128xf32>
    %250 = vector.shape_cast %46 : vector<1x128xi1> to vector<1x128xi1>
    %251 = vector.broadcast %250 : vector<1x128xi1> to vector<8x128xi1>
    %252 = arith.select %251, %249, %232 : vector<8x128xi1>, vector<8x128xf32>
    %253 = vector.extract_strided_slice %76 {offsets = [8, 0], sizes = [8, 128], strides = [1, 1]} : vector<16x128xf32> to vector<8x128xf32>
    %254 = vector.extract_strided_slice %80 {offsets = [8, 0], sizes = [8, 128], strides = [1, 1]} : vector<16x128xf32> to vector<8x128xf32>
    %255 = vector.extract_strided_slice %84 {offsets = [8, 0], sizes = [8, 128], strides = [1, 1]} : vector<16x128xf32> to vector<8x128xf32>
    %cst_77 = arith.constant 2.500000e-01 : f32
    %256 = vector.broadcast %cst_77 : f32 to vector<8x128xf32>
    %257 = arith.mulf %253, %256 : vector<8x128xf32>
    %258 = arith.truncf %254 : vector<8x128xf32> to vector<8x128xbf16>
    %259 = arith.truncf %255 : vector<8x128xf32> to vector<8x128xbf16>
    %cst_78 = arith.constant 0.000000e+00 : f32
    %260 = vector.broadcast %cst_78 : f32 to vector<8x128xf32>
    %cst_79 = arith.constant 0.000000e+00 : f32
    %261 = vector.shape_cast %11 : vector<1x128xi1> to vector<1x128xi1>
    %262 = vector.broadcast %261 : vector<1x128xi1> to vector<8x128xi1>
    %263 = vector.broadcast %cst_79 : f32 to vector<8x128xf32>
    %264 = arith.select %262, %257, %263 : vector<8x128xi1>, vector<8x128xf32>
    %265 = arith.truncf %264 : vector<8x128xf32> to vector<8x128xbf16>
    %cst_80 = arith.constant dense<0.000000e+00> : vector<8x8xf32>
    %266 = tpu.matmul %265, %258, %cst_80 {dimension_numbers = #tpu.dot_dimension_numbers<[1], [1], [0], [0], [0, 0, 1, 0], [], []>} : vector<8x128xbf16>, vector<8x128xbf16>, vector<8x8xf32> -> vector<8x8xf32>
    %cst_81 = arith.constant dense<0xFF800000> : vector<8xf32>
    %267 = vector.multi_reduction <maximumf>, %266, %cst_81 [1] : vector<8x8xf32> to vector<8xf32>
    %268 = vector.shape_cast %267 : vector<8xf32> to vector<8x1xf32>
    %269 = vector.broadcast %268 : vector<8x1xf32> to vector<8x8xf32>
    %270 = arith.subf %266, %269 : vector<8x8xf32>
    %271 = math.exp %270 : vector<8x8xf32>
    %cst_82 = arith.constant dense<0.000000e+00> : vector<8xf32>
    %272 = vector.multi_reduction <add>, %271, %cst_82 [1] : vector<8x8xf32> to vector<8xf32>
    %273 = vector.shape_cast %272 : vector<8xf32> to vector<8x1xf32>
    %274 = vector.broadcast %273 : vector<8x1xf32> to vector<8x8xf32>
    %275 = arith.divf %271, %274 : vector<8x8xf32>
    %276 = arith.truncf %275 : vector<8x8xf32> to vector<8x8xbf16>
    %cst_83 = arith.constant dense<0.000000e+00> : vector<8x128xf32>
    %277 = tpu.matmul %276, %259, %cst_83 {dimension_numbers = #tpu.dot_dimension_numbers<[1], [0], [0], [1], [0, 0, 1, 1], [], []>} : vector<8x8xbf16>, vector<8x128xbf16>, vector<8x128xf32> -> vector<8x128xf32>
    %278 = vector.shape_cast %11 : vector<1x128xi1> to vector<1x128xi1>
    %279 = vector.broadcast %278 : vector<1x128xi1> to vector<8x128xi1>
    %280 = arith.select %279, %277, %260 : vector<8x128xi1>, vector<8x128xf32>
    %cst_84 = arith.constant 0.000000e+00 : f32
    %281 = vector.shape_cast %16 : vector<1x128xi1> to vector<1x128xi1>
    %282 = vector.broadcast %281 : vector<1x128xi1> to vector<8x128xi1>
    %283 = vector.broadcast %cst_84 : f32 to vector<8x128xf32>
    %284 = arith.select %282, %257, %283 : vector<8x128xi1>, vector<8x128xf32>
    %285 = arith.truncf %284 : vector<8x128xf32> to vector<8x128xbf16>
    %cst_85 = arith.constant dense<0.000000e+00> : vector<8x8xf32>
    %286 = tpu.matmul %285, %258, %cst_85 {dimension_numbers = #tpu.dot_dimension_numbers<[1], [1], [0], [0], [0, 0, 1, 0], [], []>} : vector<8x128xbf16>, vector<8x128xbf16>, vector<8x8xf32> -> vector<8x8xf32>
    %cst_86 = arith.constant dense<0xFF800000> : vector<8xf32>
    %287 = vector.multi_reduction <maximumf>, %286, %cst_86 [1] : vector<8x8xf32> to vector<8xf32>
    %288 = vector.shape_cast %287 : vector<8xf32> to vector<8x1xf32>
    %289 = vector.broadcast %288 : vector<8x1xf32> to vector<8x8xf32>
    %290 = arith.subf %286, %289 : vector<8x8xf32>
    %291 = math.exp %290 : vector<8x8xf32>
    %cst_87 = arith.constant dense<0.000000e+00> : vector<8xf32>
    %292 = vector.multi_reduction <add>, %291, %cst_87 [1] : vector<8x8xf32> to vector<8xf32>
    %293 = vector.shape_cast %292 : vector<8xf32> to vector<8x1xf32>
    %294 = vector.broadcast %293 : vector<8x1xf32> to vector<8x8xf32>
    %295 = arith.divf %291, %294 : vector<8x8xf32>
    %296 = arith.truncf %295 : vector<8x8xf32> to vector<8x8xbf16>
    %cst_88 = arith.constant dense<0.000000e+00> : vector<8x128xf32>
    %297 = tpu.matmul %296, %259, %cst_88 {dimension_numbers = #tpu.dot_dimension_numbers<[1], [0], [0], [1], [0, 0, 1, 1], [], []>} : vector<8x8xbf16>, vector<8x128xbf16>, vector<8x128xf32> -> vector<8x128xf32>
    %298 = vector.shape_cast %16 : vector<1x128xi1> to vector<1x128xi1>
    %299 = vector.broadcast %298 : vector<1x128xi1> to vector<8x128xi1>
    %300 = arith.select %299, %297, %280 : vector<8x128xi1>, vector<8x128xf32>
    %cst_89 = arith.constant 0.000000e+00 : f32
    %301 = vector.shape_cast %21 : vector<1x128xi1> to vector<1x128xi1>
    %302 = vector.broadcast %301 : vector<1x128xi1> to vector<8x128xi1>
    %303 = vector.broadcast %cst_89 : f32 to vector<8x128xf32>
    %304 = arith.select %302, %257, %303 : vector<8x128xi1>, vector<8x128xf32>
    %305 = arith.truncf %304 : vector<8x128xf32> to vector<8x128xbf16>
    %cst_90 = arith.constant dense<0.000000e+00> : vector<8x8xf32>
    %306 = tpu.matmul %305, %258, %cst_90 {dimension_numbers = #tpu.dot_dimension_numbers<[1], [1], [0], [0], [0, 0, 1, 0], [], []>} : vector<8x128xbf16>, vector<8x128xbf16>, vector<8x8xf32> -> vector<8x8xf32>
    %cst_91 = arith.constant dense<0xFF800000> : vector<8xf32>
    %307 = vector.multi_reduction <maximumf>, %306, %cst_91 [1] : vector<8x8xf32> to vector<8xf32>
    %308 = vector.shape_cast %307 : vector<8xf32> to vector<8x1xf32>
    %309 = vector.broadcast %308 : vector<8x1xf32> to vector<8x8xf32>
    %310 = arith.subf %306, %309 : vector<8x8xf32>
    %311 = math.exp %310 : vector<8x8xf32>
    %cst_92 = arith.constant dense<0.000000e+00> : vector<8xf32>
    %312 = vector.multi_reduction <add>, %311, %cst_92 [1] : vector<8x8xf32> to vector<8xf32>
    %313 = vector.shape_cast %312 : vector<8xf32> to vector<8x1xf32>
    %314 = vector.broadcast %313 : vector<8x1xf32> to vector<8x8xf32>
    %315 = arith.divf %311, %314 : vector<8x8xf32>
    %316 = arith.truncf %315 : vector<8x8xf32> to vector<8x8xbf16>
    %cst_93 = arith.constant dense<0.000000e+00> : vector<8x128xf32>
    %317 = tpu.matmul %316, %259, %cst_93 {dimension_numbers = #tpu.dot_dimension_numbers<[1], [0], [0], [1], [0, 0, 1, 1], [], []>} : vector<8x8xbf16>, vector<8x128xbf16>, vector<8x128xf32> -> vector<8x128xf32>
    %318 = vector.shape_cast %21 : vector<1x128xi1> to vector<1x128xi1>
    %319 = vector.broadcast %318 : vector<1x128xi1> to vector<8x128xi1>
    %320 = arith.select %319, %317, %300 : vector<8x128xi1>, vector<8x128xf32>
    %cst_94 = arith.constant 0.000000e+00 : f32
    %321 = vector.shape_cast %26 : vector<1x128xi1> to vector<1x128xi1>
    %322 = vector.broadcast %321 : vector<1x128xi1> to vector<8x128xi1>
    %323 = vector.broadcast %cst_94 : f32 to vector<8x128xf32>
    %324 = arith.select %322, %257, %323 : vector<8x128xi1>, vector<8x128xf32>
    %325 = arith.truncf %324 : vector<8x128xf32> to vector<8x128xbf16>
    %cst_95 = arith.constant dense<0.000000e+00> : vector<8x8xf32>
    %326 = tpu.matmul %325, %258, %cst_95 {dimension_numbers = #tpu.dot_dimension_numbers<[1], [1], [0], [0], [0, 0, 1, 0], [], []>} : vector<8x128xbf16>, vector<8x128xbf16>, vector<8x8xf32> -> vector<8x8xf32>
    %cst_96 = arith.constant dense<0xFF800000> : vector<8xf32>
    %327 = vector.multi_reduction <maximumf>, %326, %cst_96 [1] : vector<8x8xf32> to vector<8xf32>
    %328 = vector.shape_cast %327 : vector<8xf32> to vector<8x1xf32>
    %329 = vector.broadcast %328 : vector<8x1xf32> to vector<8x8xf32>
    %330 = arith.subf %326, %329 : vector<8x8xf32>
    %331 = math.exp %330 : vector<8x8xf32>
    %cst_97 = arith.constant dense<0.000000e+00> : vector<8xf32>
    %332 = vector.multi_reduction <add>, %331, %cst_97 [1] : vector<8x8xf32> to vector<8xf32>
    %333 = vector.shape_cast %332 : vector<8xf32> to vector<8x1xf32>
    %334 = vector.broadcast %333 : vector<8x1xf32> to vector<8x8xf32>
    %335 = arith.divf %331, %334 : vector<8x8xf32>
    %336 = arith.truncf %335 : vector<8x8xf32> to vector<8x8xbf16>
    %cst_98 = arith.constant dense<0.000000e+00> : vector<8x128xf32>
    %337 = tpu.matmul %336, %259, %cst_98 {dimension_numbers = #tpu.dot_dimension_numbers<[1], [0], [0], [1], [0, 0, 1, 1], [], []>} : vector<8x8xbf16>, vector<8x128xbf16>, vector<8x128xf32> -> vector<8x128xf32>
    %338 = vector.shape_cast %26 : vector<1x128xi1> to vector<1x128xi1>
    %339 = vector.broadcast %338 : vector<1x128xi1> to vector<8x128xi1>
    %340 = arith.select %339, %337, %320 : vector<8x128xi1>, vector<8x128xf32>
    %cst_99 = arith.constant 0.000000e+00 : f32
    %341 = vector.shape_cast %31 : vector<1x128xi1> to vector<1x128xi1>
    %342 = vector.broadcast %341 : vector<1x128xi1> to vector<8x128xi1>
    %343 = vector.broadcast %cst_99 : f32 to vector<8x128xf32>
    %344 = arith.select %342, %257, %343 : vector<8x128xi1>, vector<8x128xf32>
    %345 = arith.truncf %344 : vector<8x128xf32> to vector<8x128xbf16>
    %cst_100 = arith.constant dense<0.000000e+00> : vector<8x8xf32>
    %346 = tpu.matmul %345, %258, %cst_100 {dimension_numbers = #tpu.dot_dimension_numbers<[1], [1], [0], [0], [0, 0, 1, 0], [], []>} : vector<8x128xbf16>, vector<8x128xbf16>, vector<8x8xf32> -> vector<8x8xf32>
    %cst_101 = arith.constant dense<0xFF800000> : vector<8xf32>
    %347 = vector.multi_reduction <maximumf>, %346, %cst_101 [1] : vector<8x8xf32> to vector<8xf32>
    %348 = vector.shape_cast %347 : vector<8xf32> to vector<8x1xf32>
    %349 = vector.broadcast %348 : vector<8x1xf32> to vector<8x8xf32>
    %350 = arith.subf %346, %349 : vector<8x8xf32>
    %351 = math.exp %350 : vector<8x8xf32>
    %cst_102 = arith.constant dense<0.000000e+00> : vector<8xf32>
    %352 = vector.multi_reduction <add>, %351, %cst_102 [1] : vector<8x8xf32> to vector<8xf32>
    %353 = vector.shape_cast %352 : vector<8xf32> to vector<8x1xf32>
    %354 = vector.broadcast %353 : vector<8x1xf32> to vector<8x8xf32>
    %355 = arith.divf %351, %354 : vector<8x8xf32>
    %356 = arith.truncf %355 : vector<8x8xf32> to vector<8x8xbf16>
    %cst_103 = arith.constant dense<0.000000e+00> : vector<8x128xf32>
    %357 = tpu.matmul %356, %259, %cst_103 {dimension_numbers = #tpu.dot_dimension_numbers<[1], [0], [0], [1], [0, 0, 1, 1], [], []>} : vector<8x8xbf16>, vector<8x128xbf16>, vector<8x128xf32> -> vector<8x128xf32>
    %358 = vector.shape_cast %31 : vector<1x128xi1> to vector<1x128xi1>
    %359 = vector.broadcast %358 : vector<1x128xi1> to vector<8x128xi1>
    %360 = arith.select %359, %357, %340 : vector<8x128xi1>, vector<8x128xf32>
    %cst_104 = arith.constant 0.000000e+00 : f32
    %361 = vector.shape_cast %36 : vector<1x128xi1> to vector<1x128xi1>
    %362 = vector.broadcast %361 : vector<1x128xi1> to vector<8x128xi1>
    %363 = vector.broadcast %cst_104 : f32 to vector<8x128xf32>
    %364 = arith.select %362, %257, %363 : vector<8x128xi1>, vector<8x128xf32>
    %365 = arith.truncf %364 : vector<8x128xf32> to vector<8x128xbf16>
    %cst_105 = arith.constant dense<0.000000e+00> : vector<8x8xf32>
    %366 = tpu.matmul %365, %258, %cst_105 {dimension_numbers = #tpu.dot_dimension_numbers<[1], [1], [0], [0], [0, 0, 1, 0], [], []>} : vector<8x128xbf16>, vector<8x128xbf16>, vector<8x8xf32> -> vector<8x8xf32>
    %cst_106 = arith.constant dense<0xFF800000> : vector<8xf32>
    %367 = vector.multi_reduction <maximumf>, %366, %cst_106 [1] : vector<8x8xf32> to vector<8xf32>
    %368 = vector.shape_cast %367 : vector<8xf32> to vector<8x1xf32>
    %369 = vector.broadcast %368 : vector<8x1xf32> to vector<8x8xf32>
    %370 = arith.subf %366, %369 : vector<8x8xf32>
    %371 = math.exp %370 : vector<8x8xf32>
    %cst_107 = arith.constant dense<0.000000e+00> : vector<8xf32>
    %372 = vector.multi_reduction <add>, %371, %cst_107 [1] : vector<8x8xf32> to vector<8xf32>
    %373 = vector.shape_cast %372 : vector<8xf32> to vector<8x1xf32>
    %374 = vector.broadcast %373 : vector<8x1xf32> to vector<8x8xf32>
    %375 = arith.divf %371, %374 : vector<8x8xf32>
    %376 = arith.truncf %375 : vector<8x8xf32> to vector<8x8xbf16>
    %cst_108 = arith.constant dense<0.000000e+00> : vector<8x128xf32>
    %377 = tpu.matmul %376, %259, %cst_108 {dimension_numbers = #tpu.dot_dimension_numbers<[1], [0], [0], [1], [0, 0, 1, 1], [], []>} : vector<8x8xbf16>, vector<8x128xbf16>, vector<8x128xf32> -> vector<8x128xf32>
    %378 = vector.shape_cast %36 : vector<1x128xi1> to vector<1x128xi1>
    %379 = vector.broadcast %378 : vector<1x128xi1> to vector<8x128xi1>
    %380 = arith.select %379, %377, %360 : vector<8x128xi1>, vector<8x128xf32>
    %cst_109 = arith.constant 0.000000e+00 : f32
    %381 = vector.shape_cast %41 : vector<1x128xi1> to vector<1x128xi1>
    %382 = vector.broadcast %381 : vector<1x128xi1> to vector<8x128xi1>
    %383 = vector.broadcast %cst_109 : f32 to vector<8x128xf32>
    %384 = arith.select %382, %257, %383 : vector<8x128xi1>, vector<8x128xf32>
    %385 = arith.truncf %384 : vector<8x128xf32> to vector<8x128xbf16>
    %cst_110 = arith.constant dense<0.000000e+00> : vector<8x8xf32>
    %386 = tpu.matmul %385, %258, %cst_110 {dimension_numbers = #tpu.dot_dimension_numbers<[1], [1], [0], [0], [0, 0, 1, 0], [], []>} : vector<8x128xbf16>, vector<8x128xbf16>, vector<8x8xf32> -> vector<8x8xf32>
    %cst_111 = arith.constant dense<0xFF800000> : vector<8xf32>
    %387 = vector.multi_reduction <maximumf>, %386, %cst_111 [1] : vector<8x8xf32> to vector<8xf32>
    %388 = vector.shape_cast %387 : vector<8xf32> to vector<8x1xf32>
    %389 = vector.broadcast %388 : vector<8x1xf32> to vector<8x8xf32>
    %390 = arith.subf %386, %389 : vector<8x8xf32>
    %391 = math.exp %390 : vector<8x8xf32>
    %cst_112 = arith.constant dense<0.000000e+00> : vector<8xf32>
    %392 = vector.multi_reduction <add>, %391, %cst_112 [1] : vector<8x8xf32> to vector<8xf32>
    %393 = vector.shape_cast %392 : vector<8xf32> to vector<8x1xf32>
    %394 = vector.broadcast %393 : vector<8x1xf32> to vector<8x8xf32>
    %395 = arith.divf %391, %394 : vector<8x8xf32>
    %396 = arith.truncf %395 : vector<8x8xf32> to vector<8x8xbf16>
    %cst_113 = arith.constant dense<0.000000e+00> : vector<8x128xf32>
    %397 = tpu.matmul %396, %259, %cst_113 {dimension_numbers = #tpu.dot_dimension_numbers<[1], [0], [0], [1], [0, 0, 1, 1], [], []>} : vector<8x8xbf16>, vector<8x128xbf16>, vector<8x128xf32> -> vector<8x128xf32>
    %398 = vector.shape_cast %41 : vector<1x128xi1> to vector<1x128xi1>
    %399 = vector.broadcast %398 : vector<1x128xi1> to vector<8x128xi1>
    %400 = arith.select %399, %397, %380 : vector<8x128xi1>, vector<8x128xf32>
    %cst_114 = arith.constant 0.000000e+00 : f32
    %401 = vector.shape_cast %46 : vector<1x128xi1> to vector<1x128xi1>
    %402 = vector.broadcast %401 : vector<1x128xi1> to vector<8x128xi1>
    %403 = vector.broadcast %cst_114 : f32 to vector<8x128xf32>
    %404 = arith.select %402, %257, %403 : vector<8x128xi1>, vector<8x128xf32>
    %405 = arith.truncf %404 : vector<8x128xf32> to vector<8x128xbf16>
    %cst_115 = arith.constant dense<0.000000e+00> : vector<8x8xf32>
    %406 = tpu.matmul %405, %258, %cst_115 {dimension_numbers = #tpu.dot_dimension_numbers<[1], [1], [0], [0], [0, 0, 1, 0], [], []>} : vector<8x128xbf16>, vector<8x128xbf16>, vector<8x8xf32> -> vector<8x8xf32>
    %cst_116 = arith.constant dense<0xFF800000> : vector<8xf32>
    %407 = vector.multi_reduction <maximumf>, %406, %cst_116 [1] : vector<8x8xf32> to vector<8xf32>
    %408 = vector.shape_cast %407 : vector<8xf32> to vector<8x1xf32>
    %409 = vector.broadcast %408 : vector<8x1xf32> to vector<8x8xf32>
    %410 = arith.subf %406, %409 : vector<8x8xf32>
    %411 = math.exp %410 : vector<8x8xf32>
    %cst_117 = arith.constant dense<0.000000e+00> : vector<8xf32>
    %412 = vector.multi_reduction <add>, %411, %cst_117 [1] : vector<8x8xf32> to vector<8xf32>
    %413 = vector.shape_cast %412 : vector<8xf32> to vector<8x1xf32>
    %414 = vector.broadcast %413 : vector<8x1xf32> to vector<8x8xf32>
    %415 = arith.divf %411, %414 : vector<8x8xf32>
    %416 = arith.truncf %415 : vector<8x8xf32> to vector<8x8xbf16>
    %cst_118 = arith.constant dense<0.000000e+00> : vector<8x128xf32>
    %417 = tpu.matmul %416, %259, %cst_118 {dimension_numbers = #tpu.dot_dimension_numbers<[1], [0], [0], [1], [0, 0, 1, 1], [], []>} : vector<8x8xbf16>, vector<8x128xbf16>, vector<8x128xf32> -> vector<8x128xf32>
    %418 = vector.shape_cast %46 : vector<1x128xi1> to vector<1x128xi1>
    %419 = vector.broadcast %418 : vector<1x128xi1> to vector<8x128xi1>
    %420 = arith.select %419, %417, %400 : vector<8x128xi1>, vector<8x128xf32>
    %421 = tpu.concatenate %252, %420 in 0 : vector<8x128xf32>, vector<8x128xf32> -> vector<16x128xf32>
    %422 = arith.truncf %421 : vector<16x128xf32> to vector<16x128xbf16>
    %c0_119 = arith.constant 0 : index
    %c0_120 = arith.constant 0 : index
    %c0_121 = arith.constant 0 : index
    %423 = vector.load %arg9[%c0_119, %c0_120, %c0_121] : memref<1x128x128xbf16, #tpu.memory_space<vmem>>, vector<1x128x128xbf16>
    %424 = vector.shape_cast %423 : vector<1x128x128xbf16> to vector<128x128xbf16>
    %cst_122 = arith.constant dense<0.000000e+00> : vector<16x128xf32>
    %425 = tpu.matmul %422, %424, %cst_122 {dimension_numbers = #tpu.dot_dimension_numbers<[1], [0], [0], [1], [0, 0, 1, 1], [], []>} : vector<16x128xbf16>, vector<128x128xbf16>, vector<16x128xf32> -> vector<16x128xf32>
    %c0_123 = arith.constant 0 : index
    %c0_124 = arith.constant 0 : index
    %c0_125 = arith.constant 0 : index
    %426 = vector.load %arg10[%c0_123, %c0_124, %c0_125] : memref<1x1x128xf32, #tpu.memory_space<vmem>>, vector<1x1x128xf32>
    %427 = vector.shape_cast %426 : vector<1x1x128xf32> to vector<1x128xf32>
    %428 = vector.broadcast %427 : vector<1x128xf32> to vector<16x128xf32>
    %429 = arith.addf %425, %428 : vector<16x128xf32>
    %430 = arith.addf %3, %429 : vector<16x128xf32>
    %cst_126 = arith.constant dense<0.000000e+00> : vector<16xf32>
    %431 = vector.multi_reduction <add>, %430, %cst_126 [1] : vector<16x128xf32> to vector<16xf32>
    %432 = vector.shape_cast %431 : vector<16xf32> to vector<16x1xf32>
    %cst_127 = arith.constant 1.280000e+02 : f32
    %433 = vector.broadcast %cst_127 : f32 to vector<16x1xf32>
    %434 = arith.divf %432, %433 : vector<16x1xf32>
    %435 = vector.broadcast %434 : vector<16x1xf32> to vector<16x128xf32>
    %436 = arith.subf %430, %435 : vector<16x128xf32>
    %437 = arith.mulf %436, %436 : vector<16x128xf32>
    %cst_128 = arith.constant dense<0.000000e+00> : vector<16xf32>
    %438 = vector.multi_reduction <add>, %437, %cst_128 [1] : vector<16x128xf32> to vector<16xf32>
    %439 = vector.shape_cast %438 : vector<16xf32> to vector<16x1xf32>
    %cst_129 = arith.constant 1.280000e+02 : f32
    %440 = vector.broadcast %cst_129 : f32 to vector<16x1xf32>
    %441 = arith.divf %439, %440 : vector<16x1xf32>
    %442 = vector.broadcast %434 : vector<16x1xf32> to vector<16x128xf32>
    %443 = arith.subf %430, %442 : vector<16x128xf32>
    %cst_130 = arith.constant 9.99999974E-6 : f32
    %444 = vector.broadcast %cst_130 : f32 to vector<16x1xf32>
    %445 = arith.addf %441, %444 : vector<16x1xf32>
    %446 = math.rsqrt %445 : vector<16x1xf32>
    %447 = vector.broadcast %446 : vector<16x1xf32> to vector<16x128xf32>
    %448 = arith.mulf %443, %447 : vector<16x128xf32>
    %c0_131 = arith.constant 0 : index
    %c0_132 = arith.constant 0 : index
    %c0_133 = arith.constant 0 : index
    %449 = vector.load %arg11[%c0_131, %c0_132, %c0_133] : memref<1x1x128xf32, #tpu.memory_space<vmem>>, vector<1x1x128xf32>
    %450 = vector.shape_cast %449 : vector<1x1x128xf32> to vector<1x128xf32>
    %451 = vector.broadcast %450 : vector<1x128xf32> to vector<16x128xf32>
    %452 = arith.mulf %448, %451 : vector<16x128xf32>
    %c0_134 = arith.constant 0 : index
    %c0_135 = arith.constant 0 : index
    %c0_136 = arith.constant 0 : index
    %453 = vector.load %arg12[%c0_134, %c0_135, %c0_136] : memref<1x1x128xf32, #tpu.memory_space<vmem>>, vector<1x1x128xf32>
    %454 = vector.shape_cast %453 : vector<1x1x128xf32> to vector<1x128xf32>
    %455 = vector.broadcast %454 : vector<1x128xf32> to vector<16x128xf32>
    %456 = arith.addf %452, %455 : vector<16x128xf32>
    %cst_137 = arith.constant dense<0.000000e+00> : vector<32xf32>
    %457 = vector.multi_reduction <add>, %5, %cst_137 [1] : vector<32x128xf32> to vector<32xf32>
    %458 = vector.shape_cast %457 : vector<32xf32> to vector<32x1xf32>
    %cst_138 = arith.constant 1.280000e+02 : f32
    %459 = vector.broadcast %cst_138 : f32 to vector<32x1xf32>
    %460 = arith.divf %458, %459 : vector<32x1xf32>
    %461 = vector.broadcast %460 : vector<32x1xf32> to vector<32x128xf32>
    %462 = arith.subf %5, %461 : vector<32x128xf32>
    %463 = arith.mulf %462, %462 : vector<32x128xf32>
    %cst_139 = arith.constant dense<0.000000e+00> : vector<32xf32>
    %464 = vector.multi_reduction <add>, %463, %cst_139 [1] : vector<32x128xf32> to vector<32xf32>
    %465 = vector.shape_cast %464 : vector<32xf32> to vector<32x1xf32>
    %cst_140 = arith.constant 1.280000e+02 : f32
    %466 = vector.broadcast %cst_140 : f32 to vector<32x1xf32>
    %467 = arith.divf %465, %466 : vector<32x1xf32>
    %468 = vector.broadcast %460 : vector<32x1xf32> to vector<32x128xf32>
    %469 = arith.subf %5, %468 : vector<32x128xf32>
    %cst_141 = arith.constant 9.99999974E-6 : f32
    %470 = vector.broadcast %cst_141 : f32 to vector<32x1xf32>
    %471 = arith.addf %467, %470 : vector<32x1xf32>
    %472 = math.rsqrt %471 : vector<32x1xf32>
    %473 = vector.broadcast %472 : vector<32x1xf32> to vector<32x128xf32>
    %474 = arith.mulf %469, %473 : vector<32x128xf32>
    %c0_142 = arith.constant 0 : index
    %c0_143 = arith.constant 0 : index
    %c0_144 = arith.constant 0 : index
    %475 = vector.load %arg13[%c0_142, %c0_143, %c0_144] : memref<1x1x128xf32, #tpu.memory_space<vmem>>, vector<1x1x128xf32>
    %476 = vector.shape_cast %475 : vector<1x1x128xf32> to vector<1x128xf32>
    %477 = vector.broadcast %476 : vector<1x128xf32> to vector<32x128xf32>
    %478 = arith.mulf %474, %477 : vector<32x128xf32>
    %c0_145 = arith.constant 0 : index
    %c0_146 = arith.constant 0 : index
    %c0_147 = arith.constant 0 : index
    %479 = vector.load %arg14[%c0_145, %c0_146, %c0_147] : memref<1x1x128xf32, #tpu.memory_space<vmem>>, vector<1x1x128xf32>
    %480 = vector.shape_cast %479 : vector<1x1x128xf32> to vector<1x128xf32>
    %481 = vector.broadcast %480 : vector<1x128xf32> to vector<32x128xf32>
    %482 = arith.addf %478, %481 : vector<32x128xf32>
    %483 = arith.truncf %456 : vector<16x128xf32> to vector<16x128xbf16>
    %c0_148 = arith.constant 0 : index
    %c0_149 = arith.constant 0 : index
    %c0_150 = arith.constant 0 : index
    %484 = vector.load %arg15[%c0_148, %c0_149, %c0_150] : memref<1x128x128xbf16, #tpu.memory_space<vmem>>, vector<1x128x128xbf16>
    %485 = vector.shape_cast %484 : vector<1x128x128xbf16> to vector<128x128xbf16>
    %cst_151 = arith.constant dense<0.000000e+00> : vector<16x128xf32>
    %486 = tpu.matmul %483, %485, %cst_151 {dimension_numbers = #tpu.dot_dimension_numbers<[1], [0], [0], [1], [0, 0, 1, 1], [], []>} : vector<16x128xbf16>, vector<128x128xbf16>, vector<16x128xf32> -> vector<16x128xf32>
    %487 = arith.truncf %482 : vector<32x128xf32> to vector<32x128xbf16>
    %c0_152 = arith.constant 0 : index
    %c0_153 = arith.constant 0 : index
    %c0_154 = arith.constant 0 : index
    %488 = vector.load %arg16[%c0_152, %c0_153, %c0_154] : memref<1x128x128xbf16, #tpu.memory_space<vmem>>, vector<1x128x128xbf16>
    %489 = vector.shape_cast %488 : vector<1x128x128xbf16> to vector<128x128xbf16>
    %cst_155 = arith.constant dense<0.000000e+00> : vector<32x128xf32>
    %490 = tpu.matmul %487, %489, %cst_155 {dimension_numbers = #tpu.dot_dimension_numbers<[1], [0], [0], [1], [0, 0, 1, 1], [], []>} : vector<32x128xbf16>, vector<128x128xbf16>, vector<32x128xf32> -> vector<32x128xf32>
    %491 = arith.truncf %482 : vector<32x128xf32> to vector<32x128xbf16>
    %c0_156 = arith.constant 0 : index
    %c0_157 = arith.constant 0 : index
    %c0_158 = arith.constant 0 : index
    %492 = vector.load %arg17[%c0_156, %c0_157, %c0_158] : memref<1x128x128xbf16, #tpu.memory_space<vmem>>, vector<1x128x128xbf16>
    %493 = vector.shape_cast %492 : vector<1x128x128xbf16> to vector<128x128xbf16>
    %cst_159 = arith.constant dense<0.000000e+00> : vector<32x128xf32>
    %494 = tpu.matmul %491, %493, %cst_159 {dimension_numbers = #tpu.dot_dimension_numbers<[1], [0], [0], [1], [0, 0, 1, 1], [], []>} : vector<32x128xbf16>, vector<128x128xbf16>, vector<32x128xf32> -> vector<32x128xf32>
    %495 = vector.extract_strided_slice %486 {offsets = [0, 0], sizes = [8, 128], strides = [1, 1]} : vector<16x128xf32> to vector<8x128xf32>
    %496 = vector.extract_strided_slice %490 {offsets = [0, 0], sizes = [16, 128], strides = [1, 1]} : vector<32x128xf32> to vector<16x128xf32>
    %497 = vector.extract_strided_slice %494 {offsets = [0, 0], sizes = [16, 128], strides = [1, 1]} : vector<32x128xf32> to vector<16x128xf32>
    %cst_160 = arith.constant 2.500000e-01 : f32
    %498 = vector.broadcast %cst_160 : f32 to vector<8x128xf32>
    %499 = arith.mulf %495, %498 : vector<8x128xf32>
    %500 = arith.truncf %496 : vector<16x128xf32> to vector<16x128xbf16>
    %501 = arith.truncf %497 : vector<16x128xf32> to vector<16x128xbf16>
    %cst_161 = arith.constant 0.000000e+00 : f32
    %502 = vector.broadcast %cst_161 : f32 to vector<8x128xf32>
    %cst_162 = arith.constant 0.000000e+00 : f32
    %503 = vector.shape_cast %11 : vector<1x128xi1> to vector<1x128xi1>
    %504 = vector.broadcast %503 : vector<1x128xi1> to vector<8x128xi1>
    %505 = vector.broadcast %cst_162 : f32 to vector<8x128xf32>
    %506 = arith.select %504, %499, %505 : vector<8x128xi1>, vector<8x128xf32>
    %507 = arith.truncf %506 : vector<8x128xf32> to vector<8x128xbf16>
    %cst_163 = arith.constant dense<0.000000e+00> : vector<8x16xf32>
    %508 = tpu.matmul %507, %500, %cst_163 {dimension_numbers = #tpu.dot_dimension_numbers<[1], [1], [0], [0], [0, 0, 1, 0], [], []>} : vector<8x128xbf16>, vector<16x128xbf16>, vector<8x16xf32> -> vector<8x16xf32>
    %cst_164 = arith.constant dense<0xFF800000> : vector<8xf32>
    %509 = vector.multi_reduction <maximumf>, %508, %cst_164 [1] : vector<8x16xf32> to vector<8xf32>
    %510 = vector.shape_cast %509 : vector<8xf32> to vector<8x1xf32>
    %511 = vector.broadcast %510 : vector<8x1xf32> to vector<8x16xf32>
    %512 = arith.subf %508, %511 : vector<8x16xf32>
    %513 = math.exp %512 : vector<8x16xf32>
    %cst_165 = arith.constant dense<0.000000e+00> : vector<8xf32>
    %514 = vector.multi_reduction <add>, %513, %cst_165 [1] : vector<8x16xf32> to vector<8xf32>
    %515 = vector.shape_cast %514 : vector<8xf32> to vector<8x1xf32>
    %516 = vector.broadcast %515 : vector<8x1xf32> to vector<8x16xf32>
    %517 = arith.divf %513, %516 : vector<8x16xf32>
    %518 = arith.truncf %517 : vector<8x16xf32> to vector<8x16xbf16>
    %cst_166 = arith.constant dense<0.000000e+00> : vector<8x128xf32>
    %519 = tpu.matmul %518, %501, %cst_166 {dimension_numbers = #tpu.dot_dimension_numbers<[1], [0], [0], [1], [0, 0, 1, 1], [], []>} : vector<8x16xbf16>, vector<16x128xbf16>, vector<8x128xf32> -> vector<8x128xf32>
    %520 = vector.shape_cast %11 : vector<1x128xi1> to vector<1x128xi1>
    %521 = vector.broadcast %520 : vector<1x128xi1> to vector<8x128xi1>
    %522 = arith.select %521, %519, %502 : vector<8x128xi1>, vector<8x128xf32>
    %cst_167 = arith.constant 0.000000e+00 : f32
    %523 = vector.shape_cast %16 : vector<1x128xi1> to vector<1x128xi1>
    %524 = vector.broadcast %523 : vector<1x128xi1> to vector<8x128xi1>
    %525 = vector.broadcast %cst_167 : f32 to vector<8x128xf32>
    %526 = arith.select %524, %499, %525 : vector<8x128xi1>, vector<8x128xf32>
    %527 = arith.truncf %526 : vector<8x128xf32> to vector<8x128xbf16>
    %cst_168 = arith.constant dense<0.000000e+00> : vector<8x16xf32>
    %528 = tpu.matmul %527, %500, %cst_168 {dimension_numbers = #tpu.dot_dimension_numbers<[1], [1], [0], [0], [0, 0, 1, 0], [], []>} : vector<8x128xbf16>, vector<16x128xbf16>, vector<8x16xf32> -> vector<8x16xf32>
    %cst_169 = arith.constant dense<0xFF800000> : vector<8xf32>
    %529 = vector.multi_reduction <maximumf>, %528, %cst_169 [1] : vector<8x16xf32> to vector<8xf32>
    %530 = vector.shape_cast %529 : vector<8xf32> to vector<8x1xf32>
    %531 = vector.broadcast %530 : vector<8x1xf32> to vector<8x16xf32>
    %532 = arith.subf %528, %531 : vector<8x16xf32>
    %533 = math.exp %532 : vector<8x16xf32>
    %cst_170 = arith.constant dense<0.000000e+00> : vector<8xf32>
    %534 = vector.multi_reduction <add>, %533, %cst_170 [1] : vector<8x16xf32> to vector<8xf32>
    %535 = vector.shape_cast %534 : vector<8xf32> to vector<8x1xf32>
    %536 = vector.broadcast %535 : vector<8x1xf32> to vector<8x16xf32>
    %537 = arith.divf %533, %536 : vector<8x16xf32>
    %538 = arith.truncf %537 : vector<8x16xf32> to vector<8x16xbf16>
    %cst_171 = arith.constant dense<0.000000e+00> : vector<8x128xf32>
    %539 = tpu.matmul %538, %501, %cst_171 {dimension_numbers = #tpu.dot_dimension_numbers<[1], [0], [0], [1], [0, 0, 1, 1], [], []>} : vector<8x16xbf16>, vector<16x128xbf16>, vector<8x128xf32> -> vector<8x128xf32>
    %540 = vector.shape_cast %16 : vector<1x128xi1> to vector<1x128xi1>
    %541 = vector.broadcast %540 : vector<1x128xi1> to vector<8x128xi1>
    %542 = arith.select %541, %539, %522 : vector<8x128xi1>, vector<8x128xf32>
    %cst_172 = arith.constant 0.000000e+00 : f32
    %543 = vector.shape_cast %21 : vector<1x128xi1> to vector<1x128xi1>
    %544 = vector.broadcast %543 : vector<1x128xi1> to vector<8x128xi1>
    %545 = vector.broadcast %cst_172 : f32 to vector<8x128xf32>
    %546 = arith.select %544, %499, %545 : vector<8x128xi1>, vector<8x128xf32>
    %547 = arith.truncf %546 : vector<8x128xf32> to vector<8x128xbf16>
    %cst_173 = arith.constant dense<0.000000e+00> : vector<8x16xf32>
    %548 = tpu.matmul %547, %500, %cst_173 {dimension_numbers = #tpu.dot_dimension_numbers<[1], [1], [0], [0], [0, 0, 1, 0], [], []>} : vector<8x128xbf16>, vector<16x128xbf16>, vector<8x16xf32> -> vector<8x16xf32>
    %cst_174 = arith.constant dense<0xFF800000> : vector<8xf32>
    %549 = vector.multi_reduction <maximumf>, %548, %cst_174 [1] : vector<8x16xf32> to vector<8xf32>
    %550 = vector.shape_cast %549 : vector<8xf32> to vector<8x1xf32>
    %551 = vector.broadcast %550 : vector<8x1xf32> to vector<8x16xf32>
    %552 = arith.subf %548, %551 : vector<8x16xf32>
    %553 = math.exp %552 : vector<8x16xf32>
    %cst_175 = arith.constant dense<0.000000e+00> : vector<8xf32>
    %554 = vector.multi_reduction <add>, %553, %cst_175 [1] : vector<8x16xf32> to vector<8xf32>
    %555 = vector.shape_cast %554 : vector<8xf32> to vector<8x1xf32>
    %556 = vector.broadcast %555 : vector<8x1xf32> to vector<8x16xf32>
    %557 = arith.divf %553, %556 : vector<8x16xf32>
    %558 = arith.truncf %557 : vector<8x16xf32> to vector<8x16xbf16>
    %cst_176 = arith.constant dense<0.000000e+00> : vector<8x128xf32>
    %559 = tpu.matmul %558, %501, %cst_176 {dimension_numbers = #tpu.dot_dimension_numbers<[1], [0], [0], [1], [0, 0, 1, 1], [], []>} : vector<8x16xbf16>, vector<16x128xbf16>, vector<8x128xf32> -> vector<8x128xf32>
    %560 = vector.shape_cast %21 : vector<1x128xi1> to vector<1x128xi1>
    %561 = vector.broadcast %560 : vector<1x128xi1> to vector<8x128xi1>
    %562 = arith.select %561, %559, %542 : vector<8x128xi1>, vector<8x128xf32>
    %cst_177 = arith.constant 0.000000e+00 : f32
    %563 = vector.shape_cast %26 : vector<1x128xi1> to vector<1x128xi1>
    %564 = vector.broadcast %563 : vector<1x128xi1> to vector<8x128xi1>
    %565 = vector.broadcast %cst_177 : f32 to vector<8x128xf32>
    %566 = arith.select %564, %499, %565 : vector<8x128xi1>, vector<8x128xf32>
    %567 = arith.truncf %566 : vector<8x128xf32> to vector<8x128xbf16>
    %cst_178 = arith.constant dense<0.000000e+00> : vector<8x16xf32>
    %568 = tpu.matmul %567, %500, %cst_178 {dimension_numbers = #tpu.dot_dimension_numbers<[1], [1], [0], [0], [0, 0, 1, 0], [], []>} : vector<8x128xbf16>, vector<16x128xbf16>, vector<8x16xf32> -> vector<8x16xf32>
    %cst_179 = arith.constant dense<0xFF800000> : vector<8xf32>
    %569 = vector.multi_reduction <maximumf>, %568, %cst_179 [1] : vector<8x16xf32> to vector<8xf32>
    %570 = vector.shape_cast %569 : vector<8xf32> to vector<8x1xf32>
    %571 = vector.broadcast %570 : vector<8x1xf32> to vector<8x16xf32>
    %572 = arith.subf %568, %571 : vector<8x16xf32>
    %573 = math.exp %572 : vector<8x16xf32>
    %cst_180 = arith.constant dense<0.000000e+00> : vector<8xf32>
    %574 = vector.multi_reduction <add>, %573, %cst_180 [1] : vector<8x16xf32> to vector<8xf32>
    %575 = vector.shape_cast %574 : vector<8xf32> to vector<8x1xf32>
    %576 = vector.broadcast %575 : vector<8x1xf32> to vector<8x16xf32>
    %577 = arith.divf %573, %576 : vector<8x16xf32>
    %578 = arith.truncf %577 : vector<8x16xf32> to vector<8x16xbf16>
    %cst_181 = arith.constant dense<0.000000e+00> : vector<8x128xf32>
    %579 = tpu.matmul %578, %501, %cst_181 {dimension_numbers = #tpu.dot_dimension_numbers<[1], [0], [0], [1], [0, 0, 1, 1], [], []>} : vector<8x16xbf16>, vector<16x128xbf16>, vector<8x128xf32> -> vector<8x128xf32>
    %580 = vector.shape_cast %26 : vector<1x128xi1> to vector<1x128xi1>
    %581 = vector.broadcast %580 : vector<1x128xi1> to vector<8x128xi1>
    %582 = arith.select %581, %579, %562 : vector<8x128xi1>, vector<8x128xf32>
    %cst_182 = arith.constant 0.000000e+00 : f32
    %583 = vector.shape_cast %31 : vector<1x128xi1> to vector<1x128xi1>
    %584 = vector.broadcast %583 : vector<1x128xi1> to vector<8x128xi1>
    %585 = vector.broadcast %cst_182 : f32 to vector<8x128xf32>
    %586 = arith.select %584, %499, %585 : vector<8x128xi1>, vector<8x128xf32>
    %587 = arith.truncf %586 : vector<8x128xf32> to vector<8x128xbf16>
    %cst_183 = arith.constant dense<0.000000e+00> : vector<8x16xf32>
    %588 = tpu.matmul %587, %500, %cst_183 {dimension_numbers = #tpu.dot_dimension_numbers<[1], [1], [0], [0], [0, 0, 1, 0], [], []>} : vector<8x128xbf16>, vector<16x128xbf16>, vector<8x16xf32> -> vector<8x16xf32>
    %cst_184 = arith.constant dense<0xFF800000> : vector<8xf32>
    %589 = vector.multi_reduction <maximumf>, %588, %cst_184 [1] : vector<8x16xf32> to vector<8xf32>
    %590 = vector.shape_cast %589 : vector<8xf32> to vector<8x1xf32>
    %591 = vector.broadcast %590 : vector<8x1xf32> to vector<8x16xf32>
    %592 = arith.subf %588, %591 : vector<8x16xf32>
    %593 = math.exp %592 : vector<8x16xf32>
    %cst_185 = arith.constant dense<0.000000e+00> : vector<8xf32>
    %594 = vector.multi_reduction <add>, %593, %cst_185 [1] : vector<8x16xf32> to vector<8xf32>
    %595 = vector.shape_cast %594 : vector<8xf32> to vector<8x1xf32>
    %596 = vector.broadcast %595 : vector<8x1xf32> to vector<8x16xf32>
    %597 = arith.divf %593, %596 : vector<8x16xf32>
    %598 = arith.truncf %597 : vector<8x16xf32> to vector<8x16xbf16>
    %cst_186 = arith.constant dense<0.000000e+00> : vector<8x128xf32>
    %599 = tpu.matmul %598, %501, %cst_186 {dimension_numbers = #tpu.dot_dimension_numbers<[1], [0], [0], [1], [0, 0, 1, 1], [], []>} : vector<8x16xbf16>, vector<16x128xbf16>, vector<8x128xf32> -> vector<8x128xf32>
    %600 = vector.shape_cast %31 : vector<1x128xi1> to vector<1x128xi1>
    %601 = vector.broadcast %600 : vector<1x128xi1> to vector<8x128xi1>
    %602 = arith.select %601, %599, %582 : vector<8x128xi1>, vector<8x128xf32>
    %cst_187 = arith.constant 0.000000e+00 : f32
    %603 = vector.shape_cast %36 : vector<1x128xi1> to vector<1x128xi1>
    %604 = vector.broadcast %603 : vector<1x128xi1> to vector<8x128xi1>
    %605 = vector.broadcast %cst_187 : f32 to vector<8x128xf32>
    %606 = arith.select %604, %499, %605 : vector<8x128xi1>, vector<8x128xf32>
    %607 = arith.truncf %606 : vector<8x128xf32> to vector<8x128xbf16>
    %cst_188 = arith.constant dense<0.000000e+00> : vector<8x16xf32>
    %608 = tpu.matmul %607, %500, %cst_188 {dimension_numbers = #tpu.dot_dimension_numbers<[1], [1], [0], [0], [0, 0, 1, 0], [], []>} : vector<8x128xbf16>, vector<16x128xbf16>, vector<8x16xf32> -> vector<8x16xf32>
    %cst_189 = arith.constant dense<0xFF800000> : vector<8xf32>
    %609 = vector.multi_reduction <maximumf>, %608, %cst_189 [1] : vector<8x16xf32> to vector<8xf32>
    %610 = vector.shape_cast %609 : vector<8xf32> to vector<8x1xf32>
    %611 = vector.broadcast %610 : vector<8x1xf32> to vector<8x16xf32>
    %612 = arith.subf %608, %611 : vector<8x16xf32>
    %613 = math.exp %612 : vector<8x16xf32>
    %cst_190 = arith.constant dense<0.000000e+00> : vector<8xf32>
    %614 = vector.multi_reduction <add>, %613, %cst_190 [1] : vector<8x16xf32> to vector<8xf32>
    %615 = vector.shape_cast %614 : vector<8xf32> to vector<8x1xf32>
    %616 = vector.broadcast %615 : vector<8x1xf32> to vector<8x16xf32>
    %617 = arith.divf %613, %616 : vector<8x16xf32>
    %618 = arith.truncf %617 : vector<8x16xf32> to vector<8x16xbf16>
    %cst_191 = arith.constant dense<0.000000e+00> : vector<8x128xf32>
    %619 = tpu.matmul %618, %501, %cst_191 {dimension_numbers = #tpu.dot_dimension_numbers<[1], [0], [0], [1], [0, 0, 1, 1], [], []>} : vector<8x16xbf16>, vector<16x128xbf16>, vector<8x128xf32> -> vector<8x128xf32>
    %620 = vector.shape_cast %36 : vector<1x128xi1> to vector<1x128xi1>
    %621 = vector.broadcast %620 : vector<1x128xi1> to vector<8x128xi1>
    %622 = arith.select %621, %619, %602 : vector<8x128xi1>, vector<8x128xf32>
    %cst_192 = arith.constant 0.000000e+00 : f32
    %623 = vector.shape_cast %41 : vector<1x128xi1> to vector<1x128xi1>
    %624 = vector.broadcast %623 : vector<1x128xi1> to vector<8x128xi1>
    %625 = vector.broadcast %cst_192 : f32 to vector<8x128xf32>
    %626 = arith.select %624, %499, %625 : vector<8x128xi1>, vector<8x128xf32>
    %627 = arith.truncf %626 : vector<8x128xf32> to vector<8x128xbf16>
    %cst_193 = arith.constant dense<0.000000e+00> : vector<8x16xf32>
    %628 = tpu.matmul %627, %500, %cst_193 {dimension_numbers = #tpu.dot_dimension_numbers<[1], [1], [0], [0], [0, 0, 1, 0], [], []>} : vector<8x128xbf16>, vector<16x128xbf16>, vector<8x16xf32> -> vector<8x16xf32>
    %cst_194 = arith.constant dense<0xFF800000> : vector<8xf32>
    %629 = vector.multi_reduction <maximumf>, %628, %cst_194 [1] : vector<8x16xf32> to vector<8xf32>
    %630 = vector.shape_cast %629 : vector<8xf32> to vector<8x1xf32>
    %631 = vector.broadcast %630 : vector<8x1xf32> to vector<8x16xf32>
    %632 = arith.subf %628, %631 : vector<8x16xf32>
    %633 = math.exp %632 : vector<8x16xf32>
    %cst_195 = arith.constant dense<0.000000e+00> : vector<8xf32>
    %634 = vector.multi_reduction <add>, %633, %cst_195 [1] : vector<8x16xf32> to vector<8xf32>
    %635 = vector.shape_cast %634 : vector<8xf32> to vector<8x1xf32>
    %636 = vector.broadcast %635 : vector<8x1xf32> to vector<8x16xf32>
    %637 = arith.divf %633, %636 : vector<8x16xf32>
    %638 = arith.truncf %637 : vector<8x16xf32> to vector<8x16xbf16>
    %cst_196 = arith.constant dense<0.000000e+00> : vector<8x128xf32>
    %639 = tpu.matmul %638, %501, %cst_196 {dimension_numbers = #tpu.dot_dimension_numbers<[1], [0], [0], [1], [0, 0, 1, 1], [], []>} : vector<8x16xbf16>, vector<16x128xbf16>, vector<8x128xf32> -> vector<8x128xf32>
    %640 = vector.shape_cast %41 : vector<1x128xi1> to vector<1x128xi1>
    %641 = vector.broadcast %640 : vector<1x128xi1> to vector<8x128xi1>
    %642 = arith.select %641, %639, %622 : vector<8x128xi1>, vector<8x128xf32>
    %cst_197 = arith.constant 0.000000e+00 : f32
    %643 = vector.shape_cast %46 : vector<1x128xi1> to vector<1x128xi1>
    %644 = vector.broadcast %643 : vector<1x128xi1> to vector<8x128xi1>
    %645 = vector.broadcast %cst_197 : f32 to vector<8x128xf32>
    %646 = arith.select %644, %499, %645 : vector<8x128xi1>, vector<8x128xf32>
    %647 = arith.truncf %646 : vector<8x128xf32> to vector<8x128xbf16>
    %cst_198 = arith.constant dense<0.000000e+00> : vector<8x16xf32>
    %648 = tpu.matmul %647, %500, %cst_198 {dimension_numbers = #tpu.dot_dimension_numbers<[1], [1], [0], [0], [0, 0, 1, 0], [], []>} : vector<8x128xbf16>, vector<16x128xbf16>, vector<8x16xf32> -> vector<8x16xf32>
    %cst_199 = arith.constant dense<0xFF800000> : vector<8xf32>
    %649 = vector.multi_reduction <maximumf>, %648, %cst_199 [1] : vector<8x16xf32> to vector<8xf32>
    %650 = vector.shape_cast %649 : vector<8xf32> to vector<8x1xf32>
    %651 = vector.broadcast %650 : vector<8x1xf32> to vector<8x16xf32>
    %652 = arith.subf %648, %651 : vector<8x16xf32>
    %653 = math.exp %652 : vector<8x16xf32>
    %cst_200 = arith.constant dense<0.000000e+00> : vector<8xf32>
    %654 = vector.multi_reduction <add>, %653, %cst_200 [1] : vector<8x16xf32> to vector<8xf32>
    %655 = vector.shape_cast %654 : vector<8xf32> to vector<8x1xf32>
    %656 = vector.broadcast %655 : vector<8x1xf32> to vector<8x16xf32>
    %657 = arith.divf %653, %656 : vector<8x16xf32>
    %658 = arith.truncf %657 : vector<8x16xf32> to vector<8x16xbf16>
    %cst_201 = arith.constant dense<0.000000e+00> : vector<8x128xf32>
    %659 = tpu.matmul %658, %501, %cst_201 {dimension_numbers = #tpu.dot_dimension_numbers<[1], [0], [0], [1], [0, 0, 1, 1], [], []>} : vector<8x16xbf16>, vector<16x128xbf16>, vector<8x128xf32> -> vector<8x128xf32>
    %660 = vector.shape_cast %46 : vector<1x128xi1> to vector<1x128xi1>
    %661 = vector.broadcast %660 : vector<1x128xi1> to vector<8x128xi1>
    %662 = arith.select %661, %659, %642 : vector<8x128xi1>, vector<8x128xf32>
    %663 = vector.extract_strided_slice %486 {offsets = [8, 0], sizes = [8, 128], strides = [1, 1]} : vector<16x128xf32> to vector<8x128xf32>
    %664 = vector.extract_strided_slice %490 {offsets = [16, 0], sizes = [16, 128], strides = [1, 1]} : vector<32x128xf32> to vector<16x128xf32>
    %665 = vector.extract_strided_slice %494 {offsets = [16, 0], sizes = [16, 128], strides = [1, 1]} : vector<32x128xf32> to vector<16x128xf32>
    %cst_202 = arith.constant 2.500000e-01 : f32
    %666 = vector.broadcast %cst_202 : f32 to vector<8x128xf32>
    %667 = arith.mulf %663, %666 : vector<8x128xf32>
    %668 = arith.truncf %664 : vector<16x128xf32> to vector<16x128xbf16>
    %669 = arith.truncf %665 : vector<16x128xf32> to vector<16x128xbf16>
    %cst_203 = arith.constant 0.000000e+00 : f32
    %670 = vector.broadcast %cst_203 : f32 to vector<8x128xf32>
    %cst_204 = arith.constant 0.000000e+00 : f32
    %671 = vector.shape_cast %11 : vector<1x128xi1> to vector<1x128xi1>
    %672 = vector.broadcast %671 : vector<1x128xi1> to vector<8x128xi1>
    %673 = vector.broadcast %cst_204 : f32 to vector<8x128xf32>
    %674 = arith.select %672, %667, %673 : vector<8x128xi1>, vector<8x128xf32>
    %675 = arith.truncf %674 : vector<8x128xf32> to vector<8x128xbf16>
    %cst_205 = arith.constant dense<0.000000e+00> : vector<8x16xf32>
    %676 = tpu.matmul %675, %668, %cst_205 {dimension_numbers = #tpu.dot_dimension_numbers<[1], [1], [0], [0], [0, 0, 1, 0], [], []>} : vector<8x128xbf16>, vector<16x128xbf16>, vector<8x16xf32> -> vector<8x16xf32>
    %cst_206 = arith.constant dense<0xFF800000> : vector<8xf32>
    %677 = vector.multi_reduction <maximumf>, %676, %cst_206 [1] : vector<8x16xf32> to vector<8xf32>
    %678 = vector.shape_cast %677 : vector<8xf32> to vector<8x1xf32>
    %679 = vector.broadcast %678 : vector<8x1xf32> to vector<8x16xf32>
    %680 = arith.subf %676, %679 : vector<8x16xf32>
    %681 = math.exp %680 : vector<8x16xf32>
    %cst_207 = arith.constant dense<0.000000e+00> : vector<8xf32>
    %682 = vector.multi_reduction <add>, %681, %cst_207 [1] : vector<8x16xf32> to vector<8xf32>
    %683 = vector.shape_cast %682 : vector<8xf32> to vector<8x1xf32>
    %684 = vector.broadcast %683 : vector<8x1xf32> to vector<8x16xf32>
    %685 = arith.divf %681, %684 : vector<8x16xf32>
    %686 = arith.truncf %685 : vector<8x16xf32> to vector<8x16xbf16>
    %cst_208 = arith.constant dense<0.000000e+00> : vector<8x128xf32>
    %687 = tpu.matmul %686, %669, %cst_208 {dimension_numbers = #tpu.dot_dimension_numbers<[1], [0], [0], [1], [0, 0, 1, 1], [], []>} : vector<8x16xbf16>, vector<16x128xbf16>, vector<8x128xf32> -> vector<8x128xf32>
    %688 = vector.shape_cast %11 : vector<1x128xi1> to vector<1x128xi1>
    %689 = vector.broadcast %688 : vector<1x128xi1> to vector<8x128xi1>
    %690 = arith.select %689, %687, %670 : vector<8x128xi1>, vector<8x128xf32>
    %cst_209 = arith.constant 0.000000e+00 : f32
    %691 = vector.shape_cast %16 : vector<1x128xi1> to vector<1x128xi1>
    %692 = vector.broadcast %691 : vector<1x128xi1> to vector<8x128xi1>
    %693 = vector.broadcast %cst_209 : f32 to vector<8x128xf32>
    %694 = arith.select %692, %667, %693 : vector<8x128xi1>, vector<8x128xf32>
    %695 = arith.truncf %694 : vector<8x128xf32> to vector<8x128xbf16>
    %cst_210 = arith.constant dense<0.000000e+00> : vector<8x16xf32>
    %696 = tpu.matmul %695, %668, %cst_210 {dimension_numbers = #tpu.dot_dimension_numbers<[1], [1], [0], [0], [0, 0, 1, 0], [], []>} : vector<8x128xbf16>, vector<16x128xbf16>, vector<8x16xf32> -> vector<8x16xf32>
    %cst_211 = arith.constant dense<0xFF800000> : vector<8xf32>
    %697 = vector.multi_reduction <maximumf>, %696, %cst_211 [1] : vector<8x16xf32> to vector<8xf32>
    %698 = vector.shape_cast %697 : vector<8xf32> to vector<8x1xf32>
    %699 = vector.broadcast %698 : vector<8x1xf32> to vector<8x16xf32>
    %700 = arith.subf %696, %699 : vector<8x16xf32>
    %701 = math.exp %700 : vector<8x16xf32>
    %cst_212 = arith.constant dense<0.000000e+00> : vector<8xf32>
    %702 = vector.multi_reduction <add>, %701, %cst_212 [1] : vector<8x16xf32> to vector<8xf32>
    %703 = vector.shape_cast %702 : vector<8xf32> to vector<8x1xf32>
    %704 = vector.broadcast %703 : vector<8x1xf32> to vector<8x16xf32>
    %705 = arith.divf %701, %704 : vector<8x16xf32>
    %706 = arith.truncf %705 : vector<8x16xf32> to vector<8x16xbf16>
    %cst_213 = arith.constant dense<0.000000e+00> : vector<8x128xf32>
    %707 = tpu.matmul %706, %669, %cst_213 {dimension_numbers = #tpu.dot_dimension_numbers<[1], [0], [0], [1], [0, 0, 1, 1], [], []>} : vector<8x16xbf16>, vector<16x128xbf16>, vector<8x128xf32> -> vector<8x128xf32>
    %708 = vector.shape_cast %16 : vector<1x128xi1> to vector<1x128xi1>
    %709 = vector.broadcast %708 : vector<1x128xi1> to vector<8x128xi1>
    %710 = arith.select %709, %707, %690 : vector<8x128xi1>, vector<8x128xf32>
    %cst_214 = arith.constant 0.000000e+00 : f32
    %711 = vector.shape_cast %21 : vector<1x128xi1> to vector<1x128xi1>
    %712 = vector.broadcast %711 : vector<1x128xi1> to vector<8x128xi1>
    %713 = vector.broadcast %cst_214 : f32 to vector<8x128xf32>
    %714 = arith.select %712, %667, %713 : vector<8x128xi1>, vector<8x128xf32>
    %715 = arith.truncf %714 : vector<8x128xf32> to vector<8x128xbf16>
    %cst_215 = arith.constant dense<0.000000e+00> : vector<8x16xf32>
    %716 = tpu.matmul %715, %668, %cst_215 {dimension_numbers = #tpu.dot_dimension_numbers<[1], [1], [0], [0], [0, 0, 1, 0], [], []>} : vector<8x128xbf16>, vector<16x128xbf16>, vector<8x16xf32> -> vector<8x16xf32>
    %cst_216 = arith.constant dense<0xFF800000> : vector<8xf32>
    %717 = vector.multi_reduction <maximumf>, %716, %cst_216 [1] : vector<8x16xf32> to vector<8xf32>
    %718 = vector.shape_cast %717 : vector<8xf32> to vector<8x1xf32>
    %719 = vector.broadcast %718 : vector<8x1xf32> to vector<8x16xf32>
    %720 = arith.subf %716, %719 : vector<8x16xf32>
    %721 = math.exp %720 : vector<8x16xf32>
    %cst_217 = arith.constant dense<0.000000e+00> : vector<8xf32>
    %722 = vector.multi_reduction <add>, %721, %cst_217 [1] : vector<8x16xf32> to vector<8xf32>
    %723 = vector.shape_cast %722 : vector<8xf32> to vector<8x1xf32>
    %724 = vector.broadcast %723 : vector<8x1xf32> to vector<8x16xf32>
    %725 = arith.divf %721, %724 : vector<8x16xf32>
    %726 = arith.truncf %725 : vector<8x16xf32> to vector<8x16xbf16>
    %cst_218 = arith.constant dense<0.000000e+00> : vector<8x128xf32>
    %727 = tpu.matmul %726, %669, %cst_218 {dimension_numbers = #tpu.dot_dimension_numbers<[1], [0], [0], [1], [0, 0, 1, 1], [], []>} : vector<8x16xbf16>, vector<16x128xbf16>, vector<8x128xf32> -> vector<8x128xf32>
    %728 = vector.shape_cast %21 : vector<1x128xi1> to vector<1x128xi1>
    %729 = vector.broadcast %728 : vector<1x128xi1> to vector<8x128xi1>
    %730 = arith.select %729, %727, %710 : vector<8x128xi1>, vector<8x128xf32>
    %cst_219 = arith.constant 0.000000e+00 : f32
    %731 = vector.shape_cast %26 : vector<1x128xi1> to vector<1x128xi1>
    %732 = vector.broadcast %731 : vector<1x128xi1> to vector<8x128xi1>
    %733 = vector.broadcast %cst_219 : f32 to vector<8x128xf32>
    %734 = arith.select %732, %667, %733 : vector<8x128xi1>, vector<8x128xf32>
    %735 = arith.truncf %734 : vector<8x128xf32> to vector<8x128xbf16>
    %cst_220 = arith.constant dense<0.000000e+00> : vector<8x16xf32>
    %736 = tpu.matmul %735, %668, %cst_220 {dimension_numbers = #tpu.dot_dimension_numbers<[1], [1], [0], [0], [0, 0, 1, 0], [], []>} : vector<8x128xbf16>, vector<16x128xbf16>, vector<8x16xf32> -> vector<8x16xf32>
    %cst_221 = arith.constant dense<0xFF800000> : vector<8xf32>
    %737 = vector.multi_reduction <maximumf>, %736, %cst_221 [1] : vector<8x16xf32> to vector<8xf32>
    %738 = vector.shape_cast %737 : vector<8xf32> to vector<8x1xf32>
    %739 = vector.broadcast %738 : vector<8x1xf32> to vector<8x16xf32>
    %740 = arith.subf %736, %739 : vector<8x16xf32>
    %741 = math.exp %740 : vector<8x16xf32>
    %cst_222 = arith.constant dense<0.000000e+00> : vector<8xf32>
    %742 = vector.multi_reduction <add>, %741, %cst_222 [1] : vector<8x16xf32> to vector<8xf32>
    %743 = vector.shape_cast %742 : vector<8xf32> to vector<8x1xf32>
    %744 = vector.broadcast %743 : vector<8x1xf32> to vector<8x16xf32>
    %745 = arith.divf %741, %744 : vector<8x16xf32>
    %746 = arith.truncf %745 : vector<8x16xf32> to vector<8x16xbf16>
    %cst_223 = arith.constant dense<0.000000e+00> : vector<8x128xf32>
    %747 = tpu.matmul %746, %669, %cst_223 {dimension_numbers = #tpu.dot_dimension_numbers<[1], [0], [0], [1], [0, 0, 1, 1], [], []>} : vector<8x16xbf16>, vector<16x128xbf16>, vector<8x128xf32> -> vector<8x128xf32>
    %748 = vector.shape_cast %26 : vector<1x128xi1> to vector<1x128xi1>
    %749 = vector.broadcast %748 : vector<1x128xi1> to vector<8x128xi1>
    %750 = arith.select %749, %747, %730 : vector<8x128xi1>, vector<8x128xf32>
    %cst_224 = arith.constant 0.000000e+00 : f32
    %751 = vector.shape_cast %31 : vector<1x128xi1> to vector<1x128xi1>
    %752 = vector.broadcast %751 : vector<1x128xi1> to vector<8x128xi1>
    %753 = vector.broadcast %cst_224 : f32 to vector<8x128xf32>
    %754 = arith.select %752, %667, %753 : vector<8x128xi1>, vector<8x128xf32>
    %755 = arith.truncf %754 : vector<8x128xf32> to vector<8x128xbf16>
    %cst_225 = arith.constant dense<0.000000e+00> : vector<8x16xf32>
    %756 = tpu.matmul %755, %668, %cst_225 {dimension_numbers = #tpu.dot_dimension_numbers<[1], [1], [0], [0], [0, 0, 1, 0], [], []>} : vector<8x128xbf16>, vector<16x128xbf16>, vector<8x16xf32> -> vector<8x16xf32>
    %cst_226 = arith.constant dense<0xFF800000> : vector<8xf32>
    %757 = vector.multi_reduction <maximumf>, %756, %cst_226 [1] : vector<8x16xf32> to vector<8xf32>
    %758 = vector.shape_cast %757 : vector<8xf32> to vector<8x1xf32>
    %759 = vector.broadcast %758 : vector<8x1xf32> to vector<8x16xf32>
    %760 = arith.subf %756, %759 : vector<8x16xf32>
    %761 = math.exp %760 : vector<8x16xf32>
    %cst_227 = arith.constant dense<0.000000e+00> : vector<8xf32>
    %762 = vector.multi_reduction <add>, %761, %cst_227 [1] : vector<8x16xf32> to vector<8xf32>
    %763 = vector.shape_cast %762 : vector<8xf32> to vector<8x1xf32>
    %764 = vector.broadcast %763 : vector<8x1xf32> to vector<8x16xf32>
    %765 = arith.divf %761, %764 : vector<8x16xf32>
    %766 = arith.truncf %765 : vector<8x16xf32> to vector<8x16xbf16>
    %cst_228 = arith.constant dense<0.000000e+00> : vector<8x128xf32>
    %767 = tpu.matmul %766, %669, %cst_228 {dimension_numbers = #tpu.dot_dimension_numbers<[1], [0], [0], [1], [0, 0, 1, 1], [], []>} : vector<8x16xbf16>, vector<16x128xbf16>, vector<8x128xf32> -> vector<8x128xf32>
    %768 = vector.shape_cast %31 : vector<1x128xi1> to vector<1x128xi1>
    %769 = vector.broadcast %768 : vector<1x128xi1> to vector<8x128xi1>
    %770 = arith.select %769, %767, %750 : vector<8x128xi1>, vector<8x128xf32>
    %cst_229 = arith.constant 0.000000e+00 : f32
    %771 = vector.shape_cast %36 : vector<1x128xi1> to vector<1x128xi1>
    %772 = vector.broadcast %771 : vector<1x128xi1> to vector<8x128xi1>
    %773 = vector.broadcast %cst_229 : f32 to vector<8x128xf32>
    %774 = arith.select %772, %667, %773 : vector<8x128xi1>, vector<8x128xf32>
    %775 = arith.truncf %774 : vector<8x128xf32> to vector<8x128xbf16>
    %cst_230 = arith.constant dense<0.000000e+00> : vector<8x16xf32>
    %776 = tpu.matmul %775, %668, %cst_230 {dimension_numbers = #tpu.dot_dimension_numbers<[1], [1], [0], [0], [0, 0, 1, 0], [], []>} : vector<8x128xbf16>, vector<16x128xbf16>, vector<8x16xf32> -> vector<8x16xf32>
    %cst_231 = arith.constant dense<0xFF800000> : vector<8xf32>
    %777 = vector.multi_reduction <maximumf>, %776, %cst_231 [1] : vector<8x16xf32> to vector<8xf32>
    %778 = vector.shape_cast %777 : vector<8xf32> to vector<8x1xf32>
    %779 = vector.broadcast %778 : vector<8x1xf32> to vector<8x16xf32>
    %780 = arith.subf %776, %779 : vector<8x16xf32>
    %781 = math.exp %780 : vector<8x16xf32>
    %cst_232 = arith.constant dense<0.000000e+00> : vector<8xf32>
    %782 = vector.multi_reduction <add>, %781, %cst_232 [1] : vector<8x16xf32> to vector<8xf32>
    %783 = vector.shape_cast %782 : vector<8xf32> to vector<8x1xf32>
    %784 = vector.broadcast %783 : vector<8x1xf32> to vector<8x16xf32>
    %785 = arith.divf %781, %784 : vector<8x16xf32>
    %786 = arith.truncf %785 : vector<8x16xf32> to vector<8x16xbf16>
    %cst_233 = arith.constant dense<0.000000e+00> : vector<8x128xf32>
    %787 = tpu.matmul %786, %669, %cst_233 {dimension_numbers = #tpu.dot_dimension_numbers<[1], [0], [0], [1], [0, 0, 1, 1], [], []>} : vector<8x16xbf16>, vector<16x128xbf16>, vector<8x128xf32> -> vector<8x128xf32>
    %788 = vector.shape_cast %36 : vector<1x128xi1> to vector<1x128xi1>
    %789 = vector.broadcast %788 : vector<1x128xi1> to vector<8x128xi1>
    %790 = arith.select %789, %787, %770 : vector<8x128xi1>, vector<8x128xf32>
    %cst_234 = arith.constant 0.000000e+00 : f32
    %791 = vector.shape_cast %41 : vector<1x128xi1> to vector<1x128xi1>
    %792 = vector.broadcast %791 : vector<1x128xi1> to vector<8x128xi1>
    %793 = vector.broadcast %cst_234 : f32 to vector<8x128xf32>
    %794 = arith.select %792, %667, %793 : vector<8x128xi1>, vector<8x128xf32>
    %795 = arith.truncf %794 : vector<8x128xf32> to vector<8x128xbf16>
    %cst_235 = arith.constant dense<0.000000e+00> : vector<8x16xf32>
    %796 = tpu.matmul %795, %668, %cst_235 {dimension_numbers = #tpu.dot_dimension_numbers<[1], [1], [0], [0], [0, 0, 1, 0], [], []>} : vector<8x128xbf16>, vector<16x128xbf16>, vector<8x16xf32> -> vector<8x16xf32>
    %cst_236 = arith.constant dense<0xFF800000> : vector<8xf32>
    %797 = vector.multi_reduction <maximumf>, %796, %cst_236 [1] : vector<8x16xf32> to vector<8xf32>
    %798 = vector.shape_cast %797 : vector<8xf32> to vector<8x1xf32>
    %799 = vector.broadcast %798 : vector<8x1xf32> to vector<8x16xf32>
    %800 = arith.subf %796, %799 : vector<8x16xf32>
    %801 = math.exp %800 : vector<8x16xf32>
    %cst_237 = arith.constant dense<0.000000e+00> : vector<8xf32>
    %802 = vector.multi_reduction <add>, %801, %cst_237 [1] : vector<8x16xf32> to vector<8xf32>
    %803 = vector.shape_cast %802 : vector<8xf32> to vector<8x1xf32>
    %804 = vector.broadcast %803 : vector<8x1xf32> to vector<8x16xf32>
    %805 = arith.divf %801, %804 : vector<8x16xf32>
    %806 = arith.truncf %805 : vector<8x16xf32> to vector<8x16xbf16>
    %cst_238 = arith.constant dense<0.000000e+00> : vector<8x128xf32>
    %807 = tpu.matmul %806, %669, %cst_238 {dimension_numbers = #tpu.dot_dimension_numbers<[1], [0], [0], [1], [0, 0, 1, 1], [], []>} : vector<8x16xbf16>, vector<16x128xbf16>, vector<8x128xf32> -> vector<8x128xf32>
    %808 = vector.shape_cast %41 : vector<1x128xi1> to vector<1x128xi1>
    %809 = vector.broadcast %808 : vector<1x128xi1> to vector<8x128xi1>
    %810 = arith.select %809, %807, %790 : vector<8x128xi1>, vector<8x128xf32>
    %cst_239 = arith.constant 0.000000e+00 : f32
    %811 = vector.shape_cast %46 : vector<1x128xi1> to vector<1x128xi1>
    %812 = vector.broadcast %811 : vector<1x128xi1> to vector<8x128xi1>
    %813 = vector.broadcast %cst_239 : f32 to vector<8x128xf32>
    %814 = arith.select %812, %667, %813 : vector<8x128xi1>, vector<8x128xf32>
    %815 = arith.truncf %814 : vector<8x128xf32> to vector<8x128xbf16>
    %cst_240 = arith.constant dense<0.000000e+00> : vector<8x16xf32>
    %816 = tpu.matmul %815, %668, %cst_240 {dimension_numbers = #tpu.dot_dimension_numbers<[1], [1], [0], [0], [0, 0, 1, 0], [], []>} : vector<8x128xbf16>, vector<16x128xbf16>, vector<8x16xf32> -> vector<8x16xf32>
    %cst_241 = arith.constant dense<0xFF800000> : vector<8xf32>
    %817 = vector.multi_reduction <maximumf>, %816, %cst_241 [1] : vector<8x16xf32> to vector<8xf32>
    %818 = vector.shape_cast %817 : vector<8xf32> to vector<8x1xf32>
    %819 = vector.broadcast %818 : vector<8x1xf32> to vector<8x16xf32>
    %820 = arith.subf %816, %819 : vector<8x16xf32>
    %821 = math.exp %820 : vector<8x16xf32>
    %cst_242 = arith.constant dense<0.000000e+00> : vector<8xf32>
    %822 = vector.multi_reduction <add>, %821, %cst_242 [1] : vector<8x16xf32> to vector<8xf32>
    %823 = vector.shape_cast %822 : vector<8xf32> to vector<8x1xf32>
    %824 = vector.broadcast %823 : vector<8x1xf32> to vector<8x16xf32>
    %825 = arith.divf %821, %824 : vector<8x16xf32>
    %826 = arith.truncf %825 : vector<8x16xf32> to vector<8x16xbf16>
    %cst_243 = arith.constant dense<0.000000e+00> : vector<8x128xf32>
    %827 = tpu.matmul %826, %669, %cst_243 {dimension_numbers = #tpu.dot_dimension_numbers<[1], [0], [0], [1], [0, 0, 1, 1], [], []>} : vector<8x16xbf16>, vector<16x128xbf16>, vector<8x128xf32> -> vector<8x128xf32>
    %828 = vector.shape_cast %46 : vector<1x128xi1> to vector<1x128xi1>
    %829 = vector.broadcast %828 : vector<1x128xi1> to vector<8x128xi1>
    %830 = arith.select %829, %827, %810 : vector<8x128xi1>, vector<8x128xf32>
    %831 = tpu.concatenate %662, %830 in 0 : vector<8x128xf32>, vector<8x128xf32> -> vector<16x128xf32>
    %832 = arith.truncf %831 : vector<16x128xf32> to vector<16x128xbf16>
    %c0_244 = arith.constant 0 : index
    %c0_245 = arith.constant 0 : index
    %c0_246 = arith.constant 0 : index
    %833 = vector.load %arg18[%c0_244, %c0_245, %c0_246] : memref<1x128x128xbf16, #tpu.memory_space<vmem>>, vector<1x128x128xbf16>
    %834 = vector.shape_cast %833 : vector<1x128x128xbf16> to vector<128x128xbf16>
    %cst_247 = arith.constant dense<0.000000e+00> : vector<16x128xf32>
    %835 = tpu.matmul %832, %834, %cst_247 {dimension_numbers = #tpu.dot_dimension_numbers<[1], [0], [0], [1], [0, 0, 1, 1], [], []>} : vector<16x128xbf16>, vector<128x128xbf16>, vector<16x128xf32> -> vector<16x128xf32>
    %c0_248 = arith.constant 0 : index
    %c0_249 = arith.constant 0 : index
    %c0_250 = arith.constant 0 : index
    %836 = vector.load %arg19[%c0_248, %c0_249, %c0_250] : memref<1x1x128xf32, #tpu.memory_space<vmem>>, vector<1x1x128xf32>
    %837 = vector.shape_cast %836 : vector<1x1x128xf32> to vector<1x128xf32>
    %838 = vector.broadcast %837 : vector<1x128xf32> to vector<16x128xf32>
    %839 = arith.addf %835, %838 : vector<16x128xf32>
    %840 = arith.addf %430, %839 : vector<16x128xf32>
    %cst_251 = arith.constant dense<0.000000e+00> : vector<16xf32>
    %841 = vector.multi_reduction <add>, %840, %cst_251 [1] : vector<16x128xf32> to vector<16xf32>
    %842 = vector.shape_cast %841 : vector<16xf32> to vector<16x1xf32>
    %cst_252 = arith.constant 1.280000e+02 : f32
    %843 = vector.broadcast %cst_252 : f32 to vector<16x1xf32>
    %844 = arith.divf %842, %843 : vector<16x1xf32>
    %845 = vector.broadcast %844 : vector<16x1xf32> to vector<16x128xf32>
    %846 = arith.subf %840, %845 : vector<16x128xf32>
    %847 = arith.mulf %846, %846 : vector<16x128xf32>
    %cst_253 = arith.constant dense<0.000000e+00> : vector<16xf32>
    %848 = vector.multi_reduction <add>, %847, %cst_253 [1] : vector<16x128xf32> to vector<16xf32>
    %849 = vector.shape_cast %848 : vector<16xf32> to vector<16x1xf32>
    %cst_254 = arith.constant 1.280000e+02 : f32
    %850 = vector.broadcast %cst_254 : f32 to vector<16x1xf32>
    %851 = arith.divf %849, %850 : vector<16x1xf32>
    %852 = vector.broadcast %844 : vector<16x1xf32> to vector<16x128xf32>
    %853 = arith.subf %840, %852 : vector<16x128xf32>
    %cst_255 = arith.constant 9.99999974E-6 : f32
    %854 = vector.broadcast %cst_255 : f32 to vector<16x1xf32>
    %855 = arith.addf %851, %854 : vector<16x1xf32>
    %856 = math.rsqrt %855 : vector<16x1xf32>
    %857 = vector.broadcast %856 : vector<16x1xf32> to vector<16x128xf32>
    %858 = arith.mulf %853, %857 : vector<16x128xf32>
    %c0_256 = arith.constant 0 : index
    %c0_257 = arith.constant 0 : index
    %c0_258 = arith.constant 0 : index
    %859 = vector.load %arg20[%c0_256, %c0_257, %c0_258] : memref<1x1x128xf32, #tpu.memory_space<vmem>>, vector<1x1x128xf32>
    %860 = vector.shape_cast %859 : vector<1x1x128xf32> to vector<1x128xf32>
    %861 = vector.broadcast %860 : vector<1x128xf32> to vector<16x128xf32>
    %862 = arith.mulf %858, %861 : vector<16x128xf32>
    %c0_259 = arith.constant 0 : index
    %c0_260 = arith.constant 0 : index
    %c0_261 = arith.constant 0 : index
    %863 = vector.load %arg21[%c0_259, %c0_260, %c0_261] : memref<1x1x128xf32, #tpu.memory_space<vmem>>, vector<1x1x128xf32>
    %864 = vector.shape_cast %863 : vector<1x1x128xf32> to vector<1x128xf32>
    %865 = vector.broadcast %864 : vector<1x128xf32> to vector<16x128xf32>
    %866 = arith.addf %862, %865 : vector<16x128xf32>
    %867 = arith.truncf %866 : vector<16x128xf32> to vector<16x128xbf16>
    %c0_262 = arith.constant 0 : index
    %c0_263 = arith.constant 0 : index
    %c0_264 = arith.constant 0 : index
    %868 = vector.load %arg22[%c0_262, %c0_263, %c0_264] : memref<1x128x512xbf16, #tpu.memory_space<vmem>>, vector<1x128x512xbf16>
    %869 = vector.shape_cast %868 : vector<1x128x512xbf16> to vector<128x512xbf16>
    %cst_265 = arith.constant dense<0.000000e+00> : vector<16x512xf32>
    %870 = tpu.matmul %867, %869, %cst_265 {dimension_numbers = #tpu.dot_dimension_numbers<[1], [0], [0], [1], [0, 0, 1, 1], [], []>} : vector<16x128xbf16>, vector<128x512xbf16>, vector<16x512xf32> -> vector<16x512xf32>
    %c0_266 = arith.constant 0 : index
    %c0_267 = arith.constant 0 : index
    %c0_268 = arith.constant 0 : index
    %871 = vector.load %arg23[%c0_266, %c0_267, %c0_268] : memref<1x1x512xf32, #tpu.memory_space<vmem>>, vector<1x1x512xf32>
    %872 = vector.shape_cast %871 : vector<1x1x512xf32> to vector<1x512xf32>
    %873 = vector.broadcast %872 : vector<1x512xf32> to vector<16x512xf32>
    %874 = arith.addf %870, %873 : vector<16x512xf32>
    %cst_269 = arith.constant 5.000000e-01 : f32
    %875 = vector.broadcast %cst_269 : f32 to vector<16x512xf32>
    %876 = arith.mulf %875, %874 : vector<16x512xf32>
    %cst_270 = arith.constant 0.707106769 : f32
    %877 = vector.broadcast %cst_270 : f32 to vector<16x512xf32>
    %878 = arith.mulf %874, %877 : vector<16x512xf32>
    %cst_271 = arith.constant 0.000000e+00 : f32
    %879 = vector.broadcast %cst_271 : f32 to vector<16x512xf32>
    %880 = arith.subf %879, %878 : vector<16x512xf32>
    %881 = arith.maximumf %878, %880 : vector<16x512xf32>
    %cst_272 = arith.constant 0.327591091 : f32
    %882 = vector.broadcast %cst_272 : f32 to vector<16x512xf32>
    %883 = arith.mulf %882, %881 : vector<16x512xf32>
    %cst_273 = arith.constant 1.000000e+00 : f32
    %884 = vector.broadcast %cst_273 : f32 to vector<16x512xf32>
    %885 = arith.addf %884, %883 : vector<16x512xf32>
    %cst_274 = arith.constant 1.000000e+00 : f32
    %886 = vector.broadcast %cst_274 : f32 to vector<16x512xf32>
    %887 = arith.divf %886, %885 : vector<16x512xf32>
    %cst_275 = arith.constant 1.06140542 : f32
    %888 = vector.broadcast %cst_275 : f32 to vector<16x512xf32>
    %889 = arith.mulf %888, %887 : vector<16x512xf32>
    %cst_276 = arith.constant 1.45315206 : f32
    %890 = vector.broadcast %cst_276 : f32 to vector<16x512xf32>
    %891 = arith.subf %889, %890 : vector<16x512xf32>
    %892 = arith.mulf %891, %887 : vector<16x512xf32>
    %cst_277 = arith.constant 1.42141378 : f32
    %893 = vector.broadcast %cst_277 : f32 to vector<16x512xf32>
    %894 = arith.addf %892, %893 : vector<16x512xf32>
    %895 = arith.mulf %894, %887 : vector<16x512xf32>
    %cst_278 = arith.constant 0.284496725 : f32
    %896 = vector.broadcast %cst_278 : f32 to vector<16x512xf32>
    %897 = arith.subf %895, %896 : vector<16x512xf32>
    %898 = arith.mulf %897, %887 : vector<16x512xf32>
    %cst_279 = arith.constant 0.254829586 : f32
    %899 = vector.broadcast %cst_279 : f32 to vector<16x512xf32>
    %900 = arith.addf %898, %899 : vector<16x512xf32>
    %901 = arith.mulf %900, %887 : vector<16x512xf32>
    %cst_280 = arith.constant 0.000000e+00 : f32
    %902 = vector.broadcast %cst_280 : f32 to vector<16x512xf32>
    %903 = arith.subf %902, %881 : vector<16x512xf32>
    %904 = arith.mulf %903, %881 : vector<16x512xf32>
    %905 = math.exp %904 : vector<16x512xf32>
    %906 = arith.mulf %901, %905 : vector<16x512xf32>
    %cst_281 = arith.constant 1.000000e+00 : f32
    %907 = vector.broadcast %cst_281 : f32 to vector<16x512xf32>
    %908 = arith.subf %907, %906 : vector<16x512xf32>
    %cst_282 = arith.constant 0.000000e+00 : f32
    %909 = vector.broadcast %cst_282 : f32 to vector<16x512xf32>
    %910 = arith.cmpf olt, %878, %909 : vector<16x512xf32>
    %cst_283 = arith.constant 0.000000e+00 : f32
    %911 = vector.broadcast %cst_283 : f32 to vector<16x512xf32>
    %912 = arith.subf %911, %908 : vector<16x512xf32>
    %913 = arith.select %910, %912, %908 : vector<16x512xi1>, vector<16x512xf32>
    %cst_284 = arith.constant 1.000000e+00 : f32
    %914 = vector.broadcast %cst_284 : f32 to vector<16x512xf32>
    %915 = arith.addf %914, %913 : vector<16x512xf32>
    %916 = arith.mulf %876, %915 : vector<16x512xf32>
    %917 = arith.truncf %916 : vector<16x512xf32> to vector<16x512xbf16>
    %c0_285 = arith.constant 0 : index
    %c0_286 = arith.constant 0 : index
    %c0_287 = arith.constant 0 : index
    %918 = vector.load %arg24[%c0_285, %c0_286, %c0_287] : memref<1x512x128xbf16, #tpu.memory_space<vmem>>, vector<1x512x128xbf16>
    %919 = vector.shape_cast %918 : vector<1x512x128xbf16> to vector<512x128xbf16>
    %cst_288 = arith.constant dense<0.000000e+00> : vector<16x128xf32>
    %920 = tpu.matmul %917, %919, %cst_288 {dimension_numbers = #tpu.dot_dimension_numbers<[1], [0], [0], [1], [0, 0, 1, 1], [], []>} : vector<16x512xbf16>, vector<512x128xbf16>, vector<16x128xf32> -> vector<16x128xf32>
    %c0_289 = arith.constant 0 : index
    %c0_290 = arith.constant 0 : index
    %c0_291 = arith.constant 0 : index
    %921 = vector.load %arg25[%c0_289, %c0_290, %c0_291] : memref<1x1x128xf32, #tpu.memory_space<vmem>>, vector<1x1x128xf32>
    %922 = vector.shape_cast %921 : vector<1x1x128xf32> to vector<1x128xf32>
    %923 = vector.broadcast %922 : vector<1x128xf32> to vector<16x128xf32>
    %924 = arith.addf %920, %923 : vector<16x128xf32>
    %925 = arith.addf %840, %924 : vector<16x128xf32>
    %c0_292 = arith.constant 0 : index
    %c0_293 = arith.constant 0 : index
    %926 = vector.load %arg27[%c0_292, %c0_293] : memref<16x128xf32, #tpu.memory_space<vmem>>, vector<16x128xf32>
    tpu.vector_store %arg27[%c0_292, %c0_293], %925 {strides = array<i32>} : memref<16x128xf32, #tpu.memory_space<vmem>>, vector<16x128xf32>,
    %c1_i32 = arith.constant 1 : i32
    %927 = arith.cmpi eq, %arg1, %c1_i32 : i32
    %928 = arith.extui %927 : i1 to i32
    %c0_i32_294 = arith.constant 0 : i32
    %929 = arith.cmpi ne, %928, %c0_i32_294 : i32
    scf.if %929 {
      %930 = vector.shape_cast %925 : vector<16x128xf32> to vector<2x8x128xf32>
      %c0_295 = arith.constant 0 : index
      %c0_296 = arith.constant 0 : index
      %c0_297 = arith.constant 0 : index
      %931 = vector.load %arg26[%c0_295, %c0_296, %c0_297] : memref<2x8x128xf32, #tpu.memory_space<vmem>>, vector<2x8x128xf32>
      tpu.vector_store %arg26[%c0_295, %c0_296, %c0_297], %930 {strides = array<i32>} : memref<2x8x128xf32, #tpu.memory_space<vmem>>, vector<2x8x128xf32>,
    } else {
    }
    return
  }
  func.func @transform_0(%arg0: i32, %arg1: i32) -> (i32, i32, i32) {
    %c0_i32 = arith.constant 0 : i32
    %c0_i32_0 = arith.constant 0 : i32
    %c0_i32_1 = arith.constant 0 : i32
    return %arg0, %c0_i32, %c0_i32_0 : i32, i32, i32
  }
  func.func @transform_1(%arg0: i32, %arg1: i32) -> (i32, i32, i32) {
    %c0_i32 = arith.constant 0 : i32
    %c0_i32_0 = arith.constant 0 : i32
    %c0_i32_1 = arith.constant 0 : i32
    return %arg0, %c0_i32, %c0_i32_0 : i32, i32, i32
  }
  func.func @transform_2(%arg0: i32, %arg1: i32) -> (i32, i32, i32) {
    %c0_i32 = arith.constant 0 : i32
    %c0_i32_0 = arith.constant 0 : i32
    %c0_i32_1 = arith.constant 0 : i32
    return %arg1, %c0_i32, %c0_i32_0 : i32, i32, i32
  }
  func.func @transform_3(%arg0: i32, %arg1: i32) -> (i32, i32, i32) {
    %c0_i32 = arith.constant 0 : i32
    %c0_i32_0 = arith.constant 0 : i32
    %c0_i32_1 = arith.constant 0 : i32
    return %arg1, %c0_i32, %c0_i32_0 : i32, i32, i32
  }
  func.func @transform_4(%arg0: i32, %arg1: i32) -> (i32, i32, i32) {
    %c0_i32 = arith.constant 0 : i32
    %c0_i32_0 = arith.constant 0 : i32
    %c0_i32_1 = arith.constant 0 : i32
    return %arg1, %c0_i32, %c0_i32_0 : i32, i32, i32
  }
  func.func @transform_5(%arg0: i32, %arg1: i32) -> (i32, i32, i32) {
    %c0_i32 = arith.constant 0 : i32
    %c0_i32_0 = arith.constant 0 : i32
    %c0_i32_1 = arith.constant 0 : i32
    return %arg1, %c0_i32, %c0_i32_0 : i32, i32, i32
  }
  func.func @transform_6(%arg0: i32, %arg1: i32) -> (i32, i32, i32) {
    %c0_i32 = arith.constant 0 : i32
    %c0_i32_0 = arith.constant 0 : i32
    %c0_i32_1 = arith.constant 0 : i32
    return %arg1, %c0_i32, %c0_i32_0 : i32, i32, i32
  }
  func.func @transform_7(%arg0: i32, %arg1: i32) -> (i32, i32, i32) {
    %c0_i32 = arith.constant 0 : i32
    %c0_i32_0 = arith.constant 0 : i32
    %c0_i32_1 = arith.constant 0 : i32
    return %arg1, %c0_i32, %c0_i32_0 : i32, i32, i32
  }
  func.func @transform_8(%arg0: i32, %arg1: i32) -> (i32, i32, i32) {
    %c0_i32 = arith.constant 0 : i32
    %c0_i32_0 = arith.constant 0 : i32
    %c0_i32_1 = arith.constant 0 : i32
    return %arg1, %c0_i32, %c0_i32_0 : i32, i32, i32
  }
  func.func @transform_9(%arg0: i32, %arg1: i32) -> (i32, i32, i32) {
    %c0_i32 = arith.constant 0 : i32
    %c0_i32_0 = arith.constant 0 : i32
    %c0_i32_1 = arith.constant 0 : i32
    return %arg1, %c0_i32, %c0_i32_0 : i32, i32, i32
  }
  func.func @transform_10(%arg0: i32, %arg1: i32) -> (i32, i32, i32) {
    %c0_i32 = arith.constant 0 : i32
    %c0_i32_0 = arith.constant 0 : i32
    %c0_i32_1 = arith.constant 0 : i32
    return %arg1, %c0_i32, %c0_i32_0 : i32, i32, i32
  }
  func.func @transform_11(%arg0: i32, %arg1: i32) -> (i32, i32, i32) {
    %c0_i32 = arith.constant 0 : i32
    %c0_i32_0 = arith.constant 0 : i32
    %c0_i32_1 = arith.constant 0 : i32
    return %arg1, %c0_i32, %c0_i32_0 : i32, i32, i32
  }
  func.func @transform_12(%arg0: i32, %arg1: i32) -> (i32, i32, i32) {
    %c0_i32 = arith.constant 0 : i32
    %c0_i32_0 = arith.constant 0 : i32
    %c0_i32_1 = arith.constant 0 : i32
    return %arg1, %c0_i32, %c0_i32_0 : i32, i32, i32
  }
  func.func @transform_13(%arg0: i32, %arg1: i32) -> (i32, i32, i32) {
    %c0_i32 = arith.constant 0 : i32
    %c0_i32_0 = arith.constant 0 : i32
    %c0_i32_1 = arith.constant 0 : i32
    return %arg1, %c0_i32, %c0_i32_0 : i32, i32, i32
  }
  func.func @transform_14(%arg0: i32, %arg1: i32) -> (i32, i32, i32) {
    %c0_i32 = arith.constant 0 : i32
    %c0_i32_0 = arith.constant 0 : i32
    %c0_i32_1 = arith.constant 0 : i32
    return %arg1, %c0_i32, %c0_i32_0 : i32, i32, i32
  }
  func.func @transform_15(%arg0: i32, %arg1: i32) -> (i32, i32, i32) {
    %c0_i32 = arith.constant 0 : i32
    %c0_i32_0 = arith.constant 0 : i32
    %c0_i32_1 = arith.constant 0 : i32
    return %arg1, %c0_i32, %c0_i32_0 : i32, i32, i32
  }
  func.func @transform_16(%arg0: i32, %arg1: i32) -> (i32, i32, i32) {
    %c0_i32 = arith.constant 0 : i32
    %c0_i32_0 = arith.constant 0 : i32
    %c0_i32_1 = arith.constant 0 : i32
    return %arg1, %c0_i32, %c0_i32_0 : i32, i32, i32
  }
  func.func @transform_17(%arg0: i32, %arg1: i32) -> (i32, i32, i32) {
    %c0_i32 = arith.constant 0 : i32
    %c0_i32_0 = arith.constant 0 : i32
    %c0_i32_1 = arith.constant 0 : i32
    return %arg1, %c0_i32, %c0_i32_0 : i32, i32, i32
  }
  func.func @transform_18(%arg0: i32, %arg1: i32) -> (i32, i32, i32) {
    %c0_i32 = arith.constant 0 : i32
    %c0_i32_0 = arith.constant 0 : i32
    %c0_i32_1 = arith.constant 0 : i32
    return %arg1, %c0_i32, %c0_i32_0 : i32, i32, i32
  }
  func.func @transform_19(%arg0: i32, %arg1: i32) -> (i32, i32, i32) {
    %c0_i32 = arith.constant 0 : i32
    %c0_i32_0 = arith.constant 0 : i32
    %c0_i32_1 = arith.constant 0 : i32
    return %arg1, %c0_i32, %c0_i32_0 : i32, i32, i32
  }
  func.func @transform_20(%arg0: i32, %arg1: i32) -> (i32, i32, i32) {
    %c0_i32 = arith.constant 0 : i32
    %c0_i32_0 = arith.constant 0 : i32
    %c0_i32_1 = arith.constant 0 : i32
    return %arg1, %c0_i32, %c0_i32_0 : i32, i32, i32
  }
  func.func @transform_21(%arg0: i32, %arg1: i32) -> (i32, i32, i32) {
    %c0_i32 = arith.constant 0 : i32
    %c0_i32_0 = arith.constant 0 : i32
    %c0_i32_1 = arith.constant 0 : i32
    return %arg1, %c0_i32, %c0_i32_0 : i32, i32, i32
  }
  func.func @transform_22(%arg0: i32, %arg1: i32) -> (i32, i32, i32) {
    %c0_i32 = arith.constant 0 : i32
    %c0_i32_0 = arith.constant 0 : i32
    %c0_i32_1 = arith.constant 0 : i32
    return %arg1, %c0_i32, %c0_i32_0 : i32, i32, i32
  }
  func.func @transform_23(%arg0: i32, %arg1: i32) -> (i32, i32, i32) {
    %c0_i32 = arith.constant 0 : i32
    %c0_i32_0 = arith.constant 0 : i32
    %c0_i32_1 = arith.constant 0 : i32
    return %arg1, %c0_i32, %c0_i32_0 : i32, i32, i32
  }
  func.func @transform_24(%arg0: i32, %arg1: i32) -> (i32, i32, i32) {
    %c0_i32 = arith.constant 0 : i32
    %c0_i32_0 = arith.constant 0 : i32
    %c0_i32_1 = arith.constant 0 : i32
    return %arg0, %c0_i32, %c0_i32_0 : i32, i32, i32
  }
}

</mosaic_0001>

<llo_original>
// kernel: stacked_cross_attention_fwd.1
$region0: #{stacked_cross_attention_fwd.1}
  #allocation0 [shape = 'u32[]', space=smem, size = 0x4, offset = 0x4, fixed_abs, tag = 'smem constant byte address 0x4 - core index']
  #allocation1 [shape = 'u32[144,128]{1,0:T(1,128)}', space=vmem, size = 0x12000, scoped, tag = 'internal scratch']
  #allocation2 [shape = 'f32[16,128]{1,0:T(8,128)}', space=vmem, size = 0x2000, scoped, tag = 'scratch operand']
  %s0 = inlined_call_operand.vmem [shape: f32[2,8,128], index: 0, kind: input, shape index: {}]
  %s1 = inlined_call_operand.vmem [shape: f32[2,16,128], index: 1, kind: input, shape index: {}]
  %s2 = inlined_call_operand.vmem [shape: f32[2,1,128], index: 2, kind: input, shape index: {}]
  %s3 = inlined_call_operand.vmem [shape: f32[2,1,128], index: 3, kind: input, shape index: {}]
  %s4 = inlined_call_operand.vmem [shape: bf16[2,128,128], index: 4, kind: input, shape index: {}]
  %s5 = inlined_call_operand.vmem [shape: bf16[2,128,128], index: 5, kind: input, shape index: {}]
  %s6 = inlined_call_operand.vmem [shape: bf16[2,128,128], index: 6, kind: input, shape index: {}]
  %s7 = inlined_call_operand.vmem [shape: bf16[2,128,128], index: 7, kind: input, shape index: {}]
  %s8 = inlined_call_operand.vmem [shape: f32[2,1,128], index: 8, kind: input, shape index: {}]
  %s9 = inlined_call_operand.vmem [shape: f32[2,1,128], index: 9, kind: input, shape index: {}]
  %s10 = inlined_call_operand.vmem [shape: f32[2,1,128], index: 10, kind: input, shape index: {}]
  %s11 = inlined_call_operand.vmem [shape: f32[2,1,128], index: 11, kind: input, shape index: {}]
  %s12 = inlined_call_operand.vmem [shape: f32[2,1,128], index: 12, kind: input, shape index: {}]
  %s13 = inlined_call_operand.vmem [shape: bf16[2,128,128], index: 13, kind: input, shape index: {}]
  %s14 = inlined_call_operand.vmem [shape: bf16[2,128,128], index: 14, kind: input, shape index: {}]
  %s15 = inlined_call_operand.vmem [shape: bf16[2,128,128], index: 15, kind: input, shape index: {}]
  %s16 = inlined_call_operand.vmem [shape: bf16[2,128,128], index: 16, kind: input, shape index: {}]
  %s17 = inlined_call_operand.vmem [shape: f32[2,1,128], index: 17, kind: input, shape index: {}]
  %s18 = inlined_call_operand.vmem [shape: f32[2,1,128], index: 18, kind: input, shape index: {}]
  %s19 = inlined_call_operand.vmem [shape: f32[2,1,128], index: 19, kind: input, shape index: {}]
  %s20 = inlined_call_operand.vmem [shape: bf16[2,128,512], index: 20, kind: input, shape index: {}]
  %s21 = inlined_call_operand.vmem [shape: f32[2,1,512], index: 21, kind: input, shape index: {}]
  %s22 = inlined_call_operand.vmem [shape: bf16[2,512,128], index: 22, kind: input, shape index: {}]
  %s23 = inlined_call_operand.vmem [shape: f32[2,1,128], index: 23, kind: input, shape index: {}]
  %s24 = inlined_call_operand.hbm [shape: f32[2,8,128], index: 24, kind: output, shape index: {}]
  %s25 = sld [smem:[#allocation0]]
  $region137: #{stacked_cross_attention_fwd.1} parent=0
    _
  %s27 = ssub.s32 1, %s25
  %s28 = scalar_select 0, %s27, %s25
  $region1: #{stacked_cross_attention_fwd.1} parent=0
    #allocation3 [shape = 'u8[8192]{0}', space=vmem, size = 0x2000, scoped, tag = 'output window, operand 0, single buffered']
    #allocation4 [shape = 's32[2]{0}', space=sflag, size = 0x8, scoped, tag = 'scoped memory for stacked_cross_attention_fwd.1']
    %29 = vsyncpa [#allocation4], 0
    loop: start=0, step=1, limit=4
    $region2: #{stacked_cross_attention_fwd.1} parent=1 // loop_pre_header
      _
    $region3: #{stacked_cross_attention_fwd.1} parent=1 // loop_header
      %s31 = sphi 0, %s35
      %p32 = scmp.ge.s32.totalorder %s31, 4
      %s38 = sphi 0, %s50
      %s39 = sphi 0, %s46
      %s40 = sphi 0, %s38
      %s41 = sphi 0, %s39
      %s42 = sphi 0, %s40
      %s43 = sphi 0, %s41
      %s53 = sphi 0, %s55
      %s56 = sphi 0, %s53
      %s57 = sphi 0, %s56
      %s73 = sphi 0, %s57
      %s79 = sphi 0, %s81
      %s82 = sphi 0, %s79
      %s83 = sphi 0, %s82
      %s99 = sphi 0, %s83
      %s105 = sphi 0, %s107
      %s108 = sphi 0, %s105
      %s109 = sphi 0, %s108
      %s125 = sphi 0, %s109
      %s131 = sphi 0, %s133
      %s134 = sphi 0, %s131
      %s135 = sphi 0, %s134
      %s151 = sphi 0, %s135
      %s157 = sphi 0, %s159
      %s160 = sphi 0, %s157
      %s161 = sphi 0, %s160
      %s177 = sphi 0, %s161
      %s183 = sphi 0, %s185
      %s186 = sphi 0, %s183
      %s187 = sphi 0, %s186
      %s203 = sphi 0, %s187
      %s209 = sphi 0, %s211
      %s212 = sphi 0, %s209
      %s213 = sphi 0, %s212
      %s229 = sphi 0, %s213
      %s235 = sphi 0, %s237
      %s238 = sphi 0, %s235
      %s239 = sphi 0, %s238
      %s255 = sphi 0, %s239
      %s261 = sphi 0, %s263
      %s264 = sphi 0, %s261
      %s265 = sphi 0, %s264
      %s281 = sphi 0, %s265
      %s287 = sphi 0, %s289
      %s290 = sphi 0, %s287
      %s291 = sphi 0, %s290
      %s307 = sphi 0, %s291
      %s313 = sphi 0, %s315
      %s316 = sphi 0, %s313
      %s317 = sphi 0, %s316
      %s333 = sphi 0, %s317
      %s339 = sphi 0, %s341
      %s342 = sphi 0, %s339
      %s343 = sphi 0, %s342
      %s359 = sphi 0, %s343
      %s365 = sphi 0, %s367
      %s368 = sphi 0, %s365
      %s369 = sphi 0, %s368
      %s385 = sphi 0, %s369
      %s391 = sphi 0, %s393
      %s394 = sphi 0, %s391
      %s395 = sphi 0, %s394
      %s411 = sphi 0, %s395
      %s417 = sphi 0, %s419
      %s420 = sphi 0, %s417
      %s421 = sphi 0, %s420
      %s437 = sphi 0, %s421
      %s443 = sphi 0, %s445
      %s446 = sphi 0, %s443
      %s447 = sphi 0, %s446
      %s463 = sphi 0, %s447
      %s469 = sphi 0, %s471
      %s472 = sphi 0, %s469
      %s473 = sphi 0, %s472
      %s489 = sphi 0, %s473
      %s495 = sphi 0, %s497
      %s498 = sphi 0, %s495
      %s499 = sphi 0, %s498
      %s515 = sphi 0, %s499
      %s521 = sphi 0, %s523
      %s524 = sphi 0, %s521
      %s525 = sphi 0, %s524
      %s541 = sphi 0, %s525
      %s547 = sphi 0, %s549
      %s550 = sphi 0, %s547
      %s551 = sphi 0, %s550
      %s567 = sphi 0, %s551
      %s573 = sphi 0, %s575
      %s576 = sphi 0, %s573
      %s577 = sphi 0, %s576
      %s593 = sphi 0, %s577
      %s599 = sphi 0, %s601
      %s602 = sphi 0, %s599
      %s603 = sphi 0, %s602
      %s619 = sphi 0, %s603
      %s625 = sphi 0, %s627
      %s628 = sphi 0, %s625
      %s629 = sphi 0, %s628
      %s645 = sphi 0, %s629
      %s651 = sphi 0, %s653
      %s654 = sphi 0, %s651
      %s655 = sphi 0, %s654
      %s671 = sphi 0, %s655
      %s677 = sphi 0, %s679
      %s680 = sphi 0, %s677
      %s681 = sphi 0, %s680
      %s697 = sphi 0, %s681
    $region4: #{stacked_cross_attention_fwd.1} parent=1 // loop_header_branch
      %34 = sbr.rel (%p32) target = $region8
    $region5: #{stacked_cross_attention_fwd.1} parent=1 // loop_body
      %s36 = ssub.s32 %s31, 1
      %s37 = ssub.s32 %s31, 2
      %s44 = sadd.s32 1, %s39
      %p45 = scmp.ge.s32.totalorder %s44, 2
      %s46 = scalar_select %p45, 0, %s44
      %s47 = sadd.s32 1, %s38
      %s48 = scalar_select %p45, %s47, %s38
      %p49 = scmp.ge.s32.totalorder %s48, 1
      %s50 = scalar_select %p49, 0, %s48
      %s51 = ssub.s32 %s38, %s50
      %p52 = scmp.eq.s32.totalorder %s51, 0
      %s54 = sadd.s32 %s53, 1
      %s55 = scalar_select %p52, %s53, %s54
      %p58 = pneg %p52
      %p59 = scmp.eq.s32.totalorder %s31, 1
      %p60 = por %p58, %p59
      %p61 = scmp.ne.s32.totalorder %s53, %s56
      %p62 = scmp.eq.s32.totalorder %s31, 0
      %p63 = por %p61, %p62
      %p64 = scmp.ne.s32.totalorder %s53, %s56
      %p65 = scmp.eq.s32.totalorder %s36, 1
      %p66 = por %p64, %p65
      %p67 = scmp.ne.s32.totalorder %s56, %s57
      %p68 = scmp.eq.s32.totalorder %s36, 0
      %p69 = por %p67, %p68
      %p70 = scmp.ne.s32.totalorder %s56, %s57
      %p71 = scmp.eq.s32.totalorder %s37, 1
      %p72 = por %p70, %p71
      %p74 = scmp.ne.s32.totalorder %s57, %s73
      %p75 = scmp.eq.s32.totalorder %s37, 0
      %p76 = por %p74, %p75
      %s77 = ssub.s32 %s38, %s50
      %p78 = scmp.eq.s32.totalorder %s77, 0
      %s80 = sadd.s32 %s79, 1
      %s81 = scalar_select %p78, %s79, %s80
      %p84 = pneg %p78
      %p85 = scmp.eq.s32.totalorder %s31, 1
      %p86 = por %p84, %p85
      %p87 = scmp.ne.s32.totalorder %s79, %s82
      %p88 = scmp.eq.s32.totalorder %s31, 0
      %p89 = por %p87, %p88
      %p90 = scmp.ne.s32.totalorder %s79, %s82
      %p91 = scmp.eq.s32.totalorder %s36, 1
      %p92 = por %p90, %p91
      %p93 = scmp.ne.s32.totalorder %s82, %s83
      %p94 = scmp.eq.s32.totalorder %s36, 0
      %p95 = por %p93, %p94
      %p96 = scmp.ne.s32.totalorder %s82, %s83
      %p97 = scmp.eq.s32.totalorder %s37, 1
      %p98 = por %p96, %p97
      %p100 = scmp.ne.s32.totalorder %s83, %s99
      %p101 = scmp.eq.s32.totalorder %s37, 0
      %p102 = por %p100, %p101
      %s103 = ssub.s32 %s39, %s46
      %p104 = scmp.eq.s32.totalorder %s103, 0
      %s106 = sadd.s32 %s105, 1
      %s107 = scalar_select %p104, %s105, %s106
      %p110 = pneg %p104
      %p111 = scmp.eq.s32.totalorder %s31, 1
      %p112 = por %p110, %p111
      %p113 = scmp.ne.s32.totalorder %s105, %s108
      %p114 = scmp.eq.s32.totalorder %s31, 0
      %p115 = por %p113, %p114
      %p116 = scmp.ne.s32.totalorder %s105, %s108
      %p117 = scmp.eq.s32.totalorder %s36, 1
      %p118 = por %p116, %p117
      %p119 = scmp.ne.s32.totalorder %s108, %s109
      %p120 = scmp.eq.s32.totalorder %s36, 0
      %p121 = por %p119, %p120
      %p122 = scmp.ne.s32.totalorder %s108, %s109
      %p123 = scmp.eq.s32.totalorder %s37, 1
      %p124 = por %p122, %p123
      %p126 = scmp.ne.s32.totalorder %s109, %s125
      %p127 = scmp.eq.s32.totalorder %s37, 0
      %p128 = por %p126, %p127
      %s129 = ssub.s32 %s39, %s46
      %p130 = scmp.eq.s32.totalorder %s129, 0
      %s132 = sadd.s32 %s131, 1
      %s133 = scalar_select %p130, %s131, %s132
      %p136 = pneg %p130
      %p137 = scmp.eq.s32.totalorder %s31, 1
      %p138 = por %p136, %p137
      %p139 = scmp.ne.s32.totalorder %s131, %s134
      %p140 = scmp.eq.s32.totalorder %s31, 0
      %p141 = por %p139, %p140
      %p142 = scmp.ne.s32.totalorder %s131, %s134
      %p143 = scmp.eq.s32.totalorder %s36, 1
      %p144 = por %p142, %p143
      %p145 = scmp.ne.s32.totalorder %s134, %s135
      %p146 = scmp.eq.s32.totalorder %s36, 0
      %p147 = por %p145, %p146
      %p148 = scmp.ne.s32.totalorder %s134, %s135
      %p149 = scmp.eq.s32.totalorder %s37, 1
      %p150 = por %p148, %p149
      %p152 = scmp.ne.s32.totalorder %s135, %s151
      %p153 = scmp.eq.s32.totalorder %s37, 0
      %p154 = por %p152, %p153
      %s155 = ssub.s32 %s39, %s46
      %p156 = scmp.eq.s32.totalorder %s155, 0
      %s158 = sadd.s32 %s157, 1
      %s159 = scalar_select %p156, %s157, %s158
      %p162 = pneg %p156
      %p163 = scmp.eq.s32.totalorder %s31, 1
      %p164 = por %p162, %p163
      %p165 = scmp.ne.s32.totalorder %s157, %s160
      %p166 = scmp.eq.s32.totalorder %s31, 0
      %p167 = por %p165, %p166
      %p168 = scmp.ne.s32.totalorder %s157, %s160
      %p169 = scmp.eq.s32.totalorder %s36, 1
      %p170 = por %p168, %p169
      %p171 = scmp.ne.s32.totalorder %s160, %s161
      %p172 = scmp.eq.s32.totalorder %s36, 0
      %p173 = por %p171, %p172
      %p174 = scmp.ne.s32.totalorder %s160, %s161
      %p175 = scmp.eq.s32.totalorder %s37, 1
      %p176 = por %p174, %p175
      %p178 = scmp.ne.s32.totalorder %s161, %s177
      %p179 = scmp.eq.s32.totalorder %s37, 0
      %p180 = por %p178, %p179
      %s181 = ssub.s32 %s39, %s46
      %p182 = scmp.eq.s32.totalorder %s181, 0
      %s184 = sadd.s32 %s183, 1
      %s185 = scalar_select %p182, %s183, %s184
      %p188 = pneg %p182
      %p189 = scmp.eq.s32.totalorder %s31, 1
      %p190 = por %p188, %p189
      %p191 = scmp.ne.s32.totalorder %s183, %s186
      %p192 = scmp.eq.s32.totalorder %s31, 0
      %p193 = por %p191, %p192
      %p194 = scmp.ne.s32.totalorder %s183, %s186
      %p195 = scmp.eq.s32.totalorder %s36, 1
      %p196 = por %p194, %p195
      %p197 = scmp.ne.s32.totalorder %s186, %s187
      %p198 = scmp.eq.s32.totalorder %s36, 0
      %p199 = por %p197, %p198
      %p200 = scmp.ne.s32.totalorder %s186, %s187
      %p201 = scmp.eq.s32.totalorder %s37, 1
      %p202 = por %p200, %p201
      %p204 = scmp.ne.s32.totalorder %s187, %s203
      %p205 = scmp.eq.s32.totalorder %s37, 0
      %p206 = por %p204, %p205
      %s207 = ssub.s32 %s39, %s46
      %p208 = scmp.eq.s32.totalorder %s207, 0
      %s210 = sadd.s32 %s209, 1
      %s211 = scalar_select %p208, %s209, %s210
      %p214 = pneg %p208
      %p215 = scmp.eq.s32.totalorder %s31, 1
      %p216 = por %p214, %p215
      %p217 = scmp.ne.s32.totalorder %s209, %s212
      %p218 = scmp.eq.s32.totalorder %s31, 0
      %p219 = por %p217, %p218
      %p220 = scmp.ne.s32.totalorder %s209, %s212
      %p221 = scmp.eq.s32.totalorder %s36, 1
      %p222 = por %p220, %p221
      %p223 = scmp.ne.s32.totalorder %s212, %s213
      %p224 = scmp.eq.s32.totalorder %s36, 0
      %p225 = por %p223, %p224
      %p226 = scmp.ne.s32.totalorder %s212, %s213
      %p227 = scmp.eq.s32.totalorder %s37, 1
      %p228 = por %p226, %p227
      %p230 = scmp.ne.s32.totalorder %s213, %s229
      %p231 = scmp.eq.s32.totalorder %s37, 0
      %p232 = por %p230, %p231
      %s233 = ssub.s32 %s39, %s46
      %p234 = scmp.eq.s32.totalorder %s233, 0
      %s236 = sadd.s32 %s235, 1
      %s237 = scalar_select %p234, %s235, %s236
      %p240 = pneg %p234
      %p241 = scmp.eq.s32.totalorder %s31, 1
      %p242 = por %p240, %p241
      %p243 = scmp.ne.s32.totalorder %s235, %s238
      %p244 = scmp.eq.s32.totalorder %s31, 0
      %p245 = por %p243, %p244
      %p246 = scmp.ne.s32.totalorder %s235, %s238
      %p247 = scmp.eq.s32.totalorder %s36, 1
      %p248 = por %p246, %p247
      %p249 = scmp.ne.s32.totalorder %s238, %s239
      %p250 = scmp.eq.s32.totalorder %s36, 0
      %p251 = por %p249, %p250
      %p252 = scmp.ne.s32.totalorder %s238, %s239
      %p253 = scmp.eq.s32.totalorder %s37, 1
      %p254 = por %p252, %p253
      %p256 = scmp.ne.s32.totalorder %s239, %s255
      %p257 = scmp.eq.s32.totalorder %s37, 0
      %p258 = por %p256, %p257
      %s259 = ssub.s32 %s39, %s46
      %p260 = scmp.eq.s32.totalorder %s259, 0
      %s262 = sadd.s32 %s261, 1
      %s263 = scalar_select %p260, %s261, %s262
      %p266 = pneg %p260
      %p267 = scmp.eq.s32.totalorder %s31, 1
      %p268 = por %p266, %p267
      %p269 = scmp.ne.s32.totalorder %s261, %s264
      %p270 = scmp.eq.s32.totalorder %s31, 0
      %p271 = por %p269, %p270
      %p272 = scmp.ne.s32.totalorder %s261, %s264
      %p273 = scmp.eq.s32.totalorder %s36, 1
      %p274 = por %p272, %p273
      %p275 = scmp.ne.s32.totalorder %s264, %s265
      %p276 = scmp.eq.s32.totalorder %s36, 0
      %p277 = por %p275, %p276
      %p278 = scmp.ne.s32.totalorder %s264, %s265
      %p279 = scmp.eq.s32.totalorder %s37, 1
      %p280 = por %p278, %p279
      %p282 = scmp.ne.s32.totalorder %s265, %s281
      %p283 = scmp.eq.s32.totalorder %s37, 0
      %p284 = por %p282, %p283
      %s285 = ssub.s32 %s39, %s46
      %p286 = scmp.eq.s32.totalorder %s285, 0
      %s288 = sadd.s32 %s287, 1
      %s289 = scalar_select %p286, %s287, %s288
      %p292 = pneg %p286
      %p293 = scmp.eq.s32.totalorder %s31, 1
      %p294 = por %p292, %p293
      %p295 = scmp.ne.s32.totalorder %s287, %s290
      %p296 = scmp.eq.s32.totalorder %s31, 0
      %p297 = por %p295, %p296
      %p298 = scmp.ne.s32.totalorder %s287, %s290
      %p299 = scmp.eq.s32.totalorder %s36, 1
      %p300 = por %p298, %p299
      %p301 = scmp.ne.s32.totalorder %s290, %s291
      %p302 = scmp.eq.s32.totalorder %s36, 0
      %p303 = por %p301, %p302
      %p304 = scmp.ne.s32.totalorder %s290, %s291
      %p305 = scmp.eq.s32.totalorder %s37, 1
      %p306 = por %p304, %p305
      %p308 = scmp.ne.s32.totalorder %s291, %s307
      %p309 = scmp.eq.s32.totalorder %s37, 0
      %p310 = por %p308, %p309
      %s311 = ssub.s32 %s39, %s46
      %p312 = scmp.eq.s32.totalorder %s311, 0
      %s314 = sadd.s32 %s313, 1
      %s315 = scalar_select %p312, %s313, %s314
      %p318 = pneg %p312
      %p319 = scmp.eq.s32.totalorder %s31, 1
      %p320 = por %p318, %p319
      %p321 = scmp.ne.s32.totalorder %s313, %s316
      %p322 = scmp.eq.s32.totalorder %s31, 0
      %p323 = por %p321, %p322
      %p324 = scmp.ne.s32.totalorder %s313, %s316
      %p325 = scmp.eq.s32.totalorder %s36, 1
      %p326 = por %p324, %p325
      %p327 = scmp.ne.s32.totalorder %s316, %s317
      %p328 = scmp.eq.s32.totalorder %s36, 0
      %p329 = por %p327, %p328
      %p330 = scmp.ne.s32.totalorder %s316, %s317
      %p331 = scmp.eq.s32.totalorder %s37, 1
      %p332 = por %p330, %p331
      %p334 = scmp.ne.s32.totalorder %s317, %s333
      %p335 = scmp.eq.s32.totalorder %s37, 0
      %p336 = por %p334, %p335
      %s337 = ssub.s32 %s39, %s46
      %p338 = scmp.eq.s32.totalorder %s337, 0
      %s340 = sadd.s32 %s339, 1
      %s341 = scalar_select %p338, %s339, %s340
      %p344 = pneg %p338
      %p345 = scmp.eq.s32.totalorder %s31, 1
      %p346 = por %p344, %p345
      %p347 = scmp.ne.s32.totalorder %s339, %s342
      %p348 = scmp.eq.s32.totalorder %s31, 0
      %p349 = por %p347, %p348
      %p350 = scmp.ne.s32.totalorder %s339, %s342
      %p351 = scmp.eq.s32.totalorder %s36, 1
      %p352 = por %p350, %p351
      %p353 = scmp.ne.s32.totalorder %s342, %s343
      %p354 = scmp.eq.s32.totalorder %s36, 0
      %p355 = por %p353, %p354
      %p356 = scmp.ne.s32.totalorder %s342, %s343
      %p357 = scmp.eq.s32.totalorder %s37, 1
      %p358 = por %p356, %p357
      %p360 = scmp.ne.s32.totalorder %s343, %s359
      %p361 = scmp.eq.s32.totalorder %s37, 0
      %p362 = por %p360, %p361
      %s363 = ssub.s32 %s39, %s46
      %p364 = scmp.eq.s32.totalorder %s363, 0
      %s366 = sadd.s32 %s365, 1
      %s367 = scalar_select %p364, %s365, %s366
      %p370 = pneg %p364
      %p371 = scmp.eq.s32.totalorder %s31, 1
      %p372 = por %p370, %p371
      %p373 = scmp.ne.s32.totalorder %s365, %s368
      %p374 = scmp.eq.s32.totalorder %s31, 0
      %p375 = por %p373, %p374
      %p376 = scmp.ne.s32.totalorder %s365, %s368
      %p377 = scmp.eq.s32.totalorder %s36, 1
      %p378 = por %p376, %p377
      %p379 = scmp.ne.s32.totalorder %s368, %s369
      %p380 = scmp.eq.s32.totalorder %s36, 0
      %p381 = por %p379, %p380
      %p382 = scmp.ne.s32.totalorder %s368, %s369
      %p383 = scmp.eq.s32.totalorder %s37, 1
      %p384 = por %p382, %p383
      %p386 = scmp.ne.s32.totalorder %s369, %s385
      %p387 = scmp.eq.s32.totalorder %s37, 0
      %p388 = por %p386, %p387
      %s389 = ssub.s32 %s39, %s46
      %p390 = scmp.eq.s32.totalorder %s389, 0
      %s392 = sadd.s32 %s391, 1
      %s393 = scalar_select %p390, %s391, %s392
      %p396 = pneg %p390
      %p397 = scmp.eq.s32.totalorder %s31, 1
      %p398 = por %p396, %p397
      %p399 = scmp.ne.s32.totalorder %s391, %s394
      %p400 = scmp.eq.s32.totalorder %s31, 0
      %p401 = por %p399, %p400
      %p402 = scmp.ne.s32.totalorder %s391, %s394
      %p403 = scmp.eq.s32.totalorder %s36, 1
      %p404 = por %p402, %p403
      %p405 = scmp.ne.s32.totalorder %s394, %s395
      %p406 = scmp.eq.s32.totalorder %s36, 0
      %p407 = por %p405, %p406
      %p408 = scmp.ne.s32.totalorder %s394, %s395
      %p409 = scmp.eq.s32.totalorder %s37, 1
      %p410 = por %p408, %p409
      %p412 = scmp.ne.s32.totalorder %s395, %s411
      %p413 = scmp.eq.s32.totalorder %s37, 0
      %p414 = por %p412, %p413
      %s415 = ssub.s32 %s39, %s46
      %p416 = scmp.eq.s32.totalorder %s415, 0
      %s418 = sadd.s32 %s417, 1
      %s419 = scalar_select %p416, %s417, %s418
      %p422 = pneg %p416
      %p423 = scmp.eq.s32.totalorder %s31, 1
      %p424 = por %p422, %p423
      %p425 = scmp.ne.s32.totalorder %s417, %s420
      %p426 = scmp.eq.s32.totalorder %s31, 0
      %p427 = por %p425, %p426
      %p428 = scmp.ne.s32.totalorder %s417, %s420
      %p429 = scmp.eq.s32.totalorder %s36, 1
      %p430 = por %p428, %p429
      %p431 = scmp.ne.s32.totalorder %s420, %s421
      %p432 = scmp.eq.s32.totalorder %s36, 0
      %p433 = por %p431, %p432
      %p434 = scmp.ne.s32.totalorder %s420, %s421
      %p435 = scmp.eq.s32.totalorder %s37, 1
      %p436 = por %p434, %p435
      %p438 = scmp.ne.s32.totalorder %s421, %s437
      %p439 = scmp.eq.s32.totalorder %s37, 0
      %p440 = por %p438, %p439
      %s441 = ssub.s32 %s39, %s46
      %p442 = scmp.eq.s32.totalorder %s441, 0
      %s444 = sadd.s32 %s443, 1
      %s445 = scalar_select %p442, %s443, %s444
      %p448 = pneg %p442
      %p449 = scmp.eq.s32.totalorder %s31, 1
      %p450 = por %p448, %p449
      %p451 = scmp.ne.s32.totalorder %s443, %s446
      %p452 = scmp.eq.s32.totalorder %s31, 0
      %p453 = por %p451, %p452
      %p454 = scmp.ne.s32.totalorder %s443, %s446
      %p455 = scmp.eq.s32.totalorder %s36, 1
      %p456 = por %p454, %p455
      %p457 = scmp.ne.s32.totalorder %s446, %s447
      %p458 = scmp.eq.s32.totalorder %s36, 0
      %p459 = por %p457, %p458
      %p460 = scmp.ne.s32.totalorder %s446, %s447
      %p461 = scmp.eq.s32.totalorder %s37, 1
      %p462 = por %p460, %p461
      %p464 = scmp.ne.s32.totalorder %s447, %s463
      %p465 = scmp.eq.s32.totalorder %s37, 0
      %p466 = por %p464, %p465
      %s467 = ssub.s32 %s39, %s46
      %p468 = scmp.eq.s32.totalorder %s467, 0
      %s470 = sadd.s32 %s469, 1
      %s471 = scalar_select %p468, %s469, %s470
      %p474 = pneg %p468
      %p475 = scmp.eq.s32.totalorder %s31, 1
      %p476 = por %p474, %p475
      %p477 = scmp.ne.s32.totalorder %s469, %s472
      %p478 = scmp.eq.s32.totalorder %s31, 0
      %p479 = por %p477, %p478
      %p480 = scmp.ne.s32.totalorder %s469, %s472
      %p481 = scmp.eq.s32.totalorder %s36, 1
      %p482 = por %p480, %p481
      %p483 = scmp.ne.s32.totalorder %s472, %s473
      %p484 = scmp.eq.s32.totalorder %s36, 0
      %p485 = por %p483, %p484
      %p486 = scmp.ne.s32.totalorder %s472, %s473
      %p487 = scmp.eq.s32.totalorder %s37, 1
      %p488 = por %p486, %p487
      %p490 = scmp.ne.s32.totalorder %s473, %s489
      %p491 = scmp.eq.s32.totalorder %s37, 0
      %p492 = por %p490, %p491
      %s493 = ssub.s32 %s39, %s46
      %p494 = scmp.eq.s32.totalorder %s493, 0
      %s496 = sadd.s32 %s495, 1
      %s497 = scalar_select %p494, %s495, %s496
      %p500 = pneg %p494
      %p501 = scmp.eq.s32.totalorder %s31, 1
      %p502 = por %p500, %p501
      %p503 = scmp.ne.s32.totalorder %s495, %s498
      %p504 = scmp.eq.s32.totalorder %s31, 0
      %p505 = por %p503, %p504
      %p506 = scmp.ne.s32.totalorder %s495, %s498
      %p507 = scmp.eq.s32.totalorder %s36, 1
      %p508 = por %p506, %p507
      %p509 = scmp.ne.s32.totalorder %s498, %s499
      %p510 = scmp.eq.s32.totalorder %s36, 0
      %p511 = por %p509, %p510
      %p512 = scmp.ne.s32.totalorder %s498, %s499
      %p513 = scmp.eq.s32.totalorder %s37, 1
      %p514 = por %p512, %p513
      %p516 = scmp.ne.s32.totalorder %s499, %s515
      %p517 = scmp.eq.s32.totalorder %s37, 0
      %p518 = por %p516, %p517
      %s519 = ssub.s32 %s39, %s46
      %p520 = scmp.eq.s32.totalorder %s519, 0
      %s522 = sadd.s32 %s521, 1
      %s523 = scalar_select %p520, %s521, %s522
      %p526 = pneg %p520
      %p527 = scmp.eq.s32.totalorder %s31, 1
      %p528 = por %p526, %p527
      %p529 = scmp.ne.s32.totalorder %s521, %s524
      %p530 = scmp.eq.s32.totalorder %s31, 0
      %p531 = por %p529, %p530
      %p532 = scmp.ne.s32.totalorder %s521, %s524
      %p533 = scmp.eq.s32.totalorder %s36, 1
      %p534 = por %p532, %p533
      %p535 = scmp.ne.s32.totalorder %s524, %s525
      %p536 = scmp.eq.s32.totalorder %s36, 0
      %p537 = por %p535, %p536
      %p538 = scmp.ne.s32.totalorder %s524, %s525
      %p539 = scmp.eq.s32.totalorder %s37, 1
      %p540 = por %p538, %p539
      %p542 = scmp.ne.s32.totalorder %s525, %s541
      %p543 = scmp.eq.s32.totalorder %s37, 0
      %p544 = por %p542, %p543
      %s545 = ssub.s32 %s39, %s46
      %p546 = scmp.eq.s32.totalorder %s545, 0
      %s548 = sadd.s32 %s547, 1
      %s549 = scalar_select %p546, %s547, %s548
      %p552 = pneg %p546
      %p553 = scmp.eq.s32.totalorder %s31, 1
      %p554 = por %p552, %p553
      %p555 = scmp.ne.s32.totalorder %s547, %s550
      %p556 = scmp.eq.s32.totalorder %s31, 0
      %p557 = por %p555, %p556
      %p558 = scmp.ne.s32.totalorder %s547, %s550
      %p559 = scmp.eq.s32.totalorder %s36, 1
      %p560 = por %p558, %p559
      %p561 = scmp.ne.s32.totalorder %s550, %s551
      %p562 = scmp.eq.s32.totalorder %s36, 0
      %p563 = por %p561, %p562
      %p564 = scmp.ne.s32.totalorder %s550, %s551
      %p565 = scmp.eq.s32.totalorder %s37, 1
      %p566 = por %p564, %p565
      %p568 = scmp.ne.s32.totalorder %s551, %s567
      %p569 = scmp.eq.s32.totalorder %s37, 0
      %p570 = por %p568, %p569
      %s571 = ssub.s32 %s39, %s46
      %p572 = scmp.eq.s32.totalorder %s571, 0
      %s574 = sadd.s32 %s573, 1
      %s575 = scalar_select %p572, %s573, %s574
      %p578 = pneg %p572
      %p579 = scmp.eq.s32.totalorder %s31, 1
      %p580 = por %p578, %p579
      %p581 = scmp.ne.s32.totalorder %s573, %s576
      %p582 = scmp.eq.s32.totalorder %s31, 0
      %p583 = por %p581, %p582
      %p584 = scmp.ne.s32.totalorder %s573, %s576
      %p585 = scmp.eq.s32.totalorder %s36, 1
      %p586 = por %p584, %p585
      %p587 = scmp.ne.s32.totalorder %s576, %s577
      %p588 = scmp.eq.s32.totalorder %s36, 0
      %p589 = por %p587, %p588
      %p590 = scmp.ne.s32.totalorder %s576, %s577
      %p591 = scmp.eq.s32.totalorder %s37, 1
      %p592 = por %p590, %p591
      %p594 = scmp.ne.s32.totalorder %s577, %s593
      %p595 = scmp.eq.s32.totalorder %s37, 0
      %p596 = por %p594, %p595
      %s597 = ssub.s32 %s39, %s46
      %p598 = scmp.eq.s32.totalorder %s597, 0
      %s600 = sadd.s32 %s599, 1
      %s601 = scalar_select %p598, %s599, %s600
      %p604 = pneg %p598
      %p605 = scmp.eq.s32.totalorder %s31, 1
      %p606 = por %p604, %p605
      %p607 = scmp.ne.s32.totalorder %s599, %s602
      %p608 = scmp.eq.s32.totalorder %s31, 0
      %p609 = por %p607, %p608
      %p610 = scmp.ne.s32.totalorder %s599, %s602
      %p611 = scmp.eq.s32.totalorder %s36, 1
      %p612 = por %p610, %p611
      %p613 = scmp.ne.s32.totalorder %s602, %s603
      %p614 = scmp.eq.s32.totalorder %s36, 0
      %p615 = por %p613, %p614
      %p616 = scmp.ne.s32.totalorder %s602, %s603
      %p617 = scmp.eq.s32.totalorder %s37, 1
      %p618 = por %p616, %p617
      %p620 = scmp.ne.s32.totalorder %s603, %s619
      %p621 = scmp.eq.s32.totalorder %s37, 0
      %p622 = por %p620, %p621
      %s623 = ssub.s32 %s39, %s46
      %p624 = scmp.eq.s32.totalorder %s623, 0
      %s626 = sadd.s32 %s625, 1
      %s627 = scalar_select %p624, %s625, %s626
      %p630 = pneg %p624
      %p631 = scmp.eq.s32.totalorder %s31, 1
      %p632 = por %p630, %p631
      %p633 = scmp.ne.s32.totalorder %s625, %s628
      %p634 = scmp.eq.s32.totalorder %s31, 0
      %p635 = por %p633, %p634
      %p636 = scmp.ne.s32.totalorder %s625, %s628
      %p637 = scmp.eq.s32.totalorder %s36, 1
      %p638 = por %p636, %p637
      %p639 = scmp.ne.s32.totalorder %s628, %s629
      %p640 = scmp.eq.s32.totalorder %s36, 0
      %p641 = por %p639, %p640
      %p642 = scmp.ne.s32.totalorder %s628, %s629
      %p643 = scmp.eq.s32.totalorder %s37, 1
      %p644 = por %p642, %p643
      %p646 = scmp.ne.s32.totalorder %s629, %s645
      %p647 = scmp.eq.s32.totalorder %s37, 0
      %p648 = por %p646, %p647
      %s649 = ssub.s32 %s39, %s46
      %p650 = scmp.eq.s32.totalorder %s649, 0
      %s652 = sadd.s32 %s651, 1
      %s653 = scalar_select %p650, %s651, %s652
      %p656 = pneg %p650
      %p657 = scmp.eq.s32.totalorder %s31, 1
      %p658 = por %p656, %p657
      %p659 = scmp.ne.s32.totalorder %s651, %s654
      %p660 = scmp.eq.s32.totalorder %s31, 0
      %p661 = por %p659, %p660
      %p662 = scmp.ne.s32.totalorder %s651, %s654
      %p663 = scmp.eq.s32.totalorder %s36, 1
      %p664 = por %p662, %p663
      %p665 = scmp.ne.s32.totalorder %s654, %s655
      %p666 = scmp.eq.s32.totalorder %s36, 0
      %p667 = por %p665, %p666
      %p668 = scmp.ne.s32.totalorder %s654, %s655
      %p669 = scmp.eq.s32.totalorder %s37, 1
      %p670 = por %p668, %p669
      %p672 = scmp.ne.s32.totalorder %s655, %s671
      %p673 = scmp.eq.s32.totalorder %s37, 0
      %p674 = por %p672, %p673
      %s675 = ssub.s32 %s38, %s50
      %p676 = scmp.eq.s32.totalorder %s675, 0
      %s678 = sadd.s32 %s677, 1
      %s679 = scalar_select %p676, %s677, %s678
      %p682 = pneg %p676
      %p683 = scmp.eq.s32.totalorder %s31, 1
      %p684 = por %p682, %p683
      %p685 = scmp.ne.s32.totalorder %s677, %s680
      %p686 = scmp.eq.s32.totalorder %s31, 0
      %p687 = por %p685, %p686
      %p688 = scmp.ne.s32.totalorder %s677, %s680
      %p689 = scmp.eq.s32.totalorder %s36, 1
      %p690 = por %p688, %p689
      %p691 = scmp.ne.s32.totalorder %s680, %s681
      %p692 = scmp.eq.s32.totalorder %s36, 0
      %p693 = por %p691, %p692
      %p694 = scmp.ne.s32.totalorder %s680, %s681
      %p695 = scmp.eq.s32.totalorder %s37, 1
      %p696 = por %p694, %p695
      %p698 = scmp.ne.s32.totalorder %s681, %s697
      %p699 = scmp.eq.s32.totalorder %s37, 0
      %p700 = por %p698, %p699
      %p701 = scmp.le.s32.totalorder 1, %s31
      %p702 = scmp.lt.s32.totalorder %s31, 3
      %p703 = pnand %p701, %p702
      %p704 = pneg %p703
      // Predicated region
      $region9: #{stacked_cross_attention_fwd.1} parent=5 // pred_check
        _
      $region10: #{stacked_cross_attention_fwd.1} parent=5 // pred_check_branch
        %706 = sbr.rel (%p703) target = $region12
      $region11: #{stacked_cross_attention_fwd.1} parent=5 // pred_region
        %s707 = ssub.s32 %s31, 1
        // Predicated region
        $region13: #{stacked_cross_attention_fwd.1} parent=11 // pred_check
          %p708 = pneg %p69
        $region14: #{stacked_cross_attention_fwd.1} parent=11 // pred_check_branch
          %710 = sbr.rel (%p708) target = $region16
        $region15: #{stacked_cross_attention_fwd.1} parent=11 // pred_region
          %s711 = smul.u32 2, %s40
          %p712 = scmp.lt.s32.totalorder %s711, 1
          %s713 = scalar_select %p712, %s711, 1
          %s714 = smul.addr %s713, 8
          %s715 = scalar_lea.vmem %s0, %s714
          %s716 = smul.u32 2, %s40
        $region16: #{stacked_cross_attention_fwd.1} parent=11 // pred_fallthru
          _
        // Predicated region
        $region17: #{stacked_cross_attention_fwd.1} parent=11 // pred_check
          %p717 = pneg %p95
        $region18: #{stacked_cross_attention_fwd.1} parent=11 // pred_check_branch
          %719 = sbr.rel (%p717) target = $region20
        $region19: #{stacked_cross_attention_fwd.1} parent=11 // pred_region
          %s720 = smul.u32 2, %s40
          %p721 = scmp.lt.s32.totalorder %s720, 1
          %s722 = scalar_select %p721, %s720, 1
          %s723 = smul.addr %s722, 2
          %s724 = smul.addr %s723, 8
          %s725 = scalar_lea.vmem %s1, %s724
          %s726 = smul.u32 2, %s40
        $region20: #{stacked_cross_attention_fwd.1} parent=11 // pred_fallthru
          _
      $region12: #{stacked_cross_attention_fwd.1} parent=5 // pred_fallthru
        _
      %p727 = scmp.lt.s32.totalorder %s31, 2
      // Predicated region
      $region21: #{stacked_cross_attention_fwd.1} parent=5 // pred_check
        %p728 = pneg %p727
      $region22: #{stacked_cross_attention_fwd.1} parent=5 // pred_check_branch
        %730 = sbr.rel (%p728) target = $region24
      $region23: #{stacked_cross_attention_fwd.1} parent=5 // pred_region
        // Predicated region
        $region25: #{stacked_cross_attention_fwd.1} parent=23 // pred_check
          %p731 = pneg %p115
        $region26: #{stacked_cross_attention_fwd.1} parent=23 // pred_check_branch
          %733 = sbr.rel (%p731) target = $region28
        $region27: #{stacked_cross_attention_fwd.1} parent=23 // pred_region
          %p734 = scmp.lt.s32.totalorder %s39, 1
          %s735 = scalar_select %p734, %s39, 1
          %s736 = scalar_lea.vmem %s2, %s735
        $region28: #{stacked_cross_attention_fwd.1} parent=23 // pred_fallthru
          _
        // Predicated region
        $region29: #{stacked_cross_attention_fwd.1} parent=23 // pred_check
          %p737 = pneg %p141
        $region30: #{stacked_cross_attention_fwd.1} parent=23 // pred_check_branch
          %739 = sbr.rel (%p737) target = $region32
        $region31: #{stacked_cross_attention_fwd.1} parent=23 // pred_region
          %p740 = scmp.lt.s32.totalorder %s39, 1
          %s741 = scalar_select %p740, %s39, 1
          %s742 = scalar_lea.vmem %s3, %s741
        $region32: #{stacked_cross_attention_fwd.1} parent=23 // pred_fallthru
          _
        // Predicated region
        $region33: #{stacked_cross_attention_fwd.1} parent=23 // pred_check
          %p743 = pneg %p167
        $region34: #{stacked_cross_attention_fwd.1} parent=23 // pred_check_branch
          %745 = sbr.rel (%p743) target = $region36
        $region35: #{stacked_cross_attention_fwd.1} parent=23 // pred_region
          %p746 = scmp.lt.s32.totalorder %s39, 1
          %s747 = scalar_select %p746, %s39, 1
          %s748 = smul.addr %s747, 16
          %s749 = smul.addr %s748, 4
          %s750 = scalar_lea.vmem %s4, %s749
        $region36: #{stacked_cross_attention_fwd.1} parent=23 // pred_fallthru
          _
        // Predicated region
        $region37: #{stacked_cross_attention_fwd.1} parent=23 // pred_check
          %p751 = pneg %p193
        $region38: #{stacked_cross_attention_fwd.1} parent=23 // pred_check_branch
          %753 = sbr.rel (%p751) target = $region40
        $region39: #{stacked_cross_attention_fwd.1} parent=23 // pred_region
          %p754 = scmp.lt.s32.totalorder %s39, 1
          %s755 = scalar_select %p754, %s39, 1
          %s756 = smul.addr %s755, 16
          %s757 = smul.addr %s756, 4
          %s758 = scalar_lea.vmem %s5, %s757
        $region40: #{stacked_cross_attention_fwd.1} parent=23 // pred_fallthru
          _
        // Predicated region
        $region41: #{stacked_cross_attention_fwd.1} parent=23 // pred_check
          %p759 = pneg %p219
        $region42: #{stacked_cross_attention_fwd.1} parent=23 // pred_check_branch
          %761 = sbr.rel (%p759) target = $region44
        $region43: #{stacked_cross_attention_fwd.1} parent=23 // pred_region
          %p762 = scmp.lt.s32.totalorder %s39, 1
          %s763 = scalar_select %p762, %s39, 1
          %s764 = smul.addr %s763, 16
          %s765 = smul.addr %s764, 4
          %s766 = scalar_lea.vmem %s6, %s765
        $region44: #{stacked_cross_attention_fwd.1} parent=23 // pred_fallthru
          _
        // Predicated region
        $region45: #{stacked_cross_attention_fwd.1} parent=23 // pred_check
          %p767 = pneg %p245
        $region46: #{stacked_cross_attention_fwd.1} parent=23 // pred_check_branch
          %769 = sbr.rel (%p767) target = $region48
        $region47: #{stacked_cross_attention_fwd.1} parent=23 // pred_region
          %p770 = scmp.lt.s32.totalorder %s39, 1
          %s771 = scalar_select %p770, %s39, 1
          %s772 = smul.addr %s771, 16
          %s773 = smul.addr %s772, 4
          %s774 = scalar_lea.vmem %s7, %s773
        $region48: #{stacked_cross_attention_fwd.1} parent=23 // pred_fallthru
          _
        // Predicated region
        $region49: #{stacked_cross_attention_fwd.1} parent=23 // pred_check
          %p775 = pneg %p271
        $region50: #{stacked_cross_attention_fwd.1} parent=23 // pred_check_branch
          %777 = sbr.rel (%p775) target = $region52
        $region51: #{stacked_cross_attention_fwd.1} parent=23 // pred_region
          %p778 = scmp.lt.s32.totalorder %s39, 1
          %s779 = scalar_select %p778, %s39, 1
          %s780 = scalar_lea.vmem %s8, %s779
        $region52: #{stacked_cross_attention_fwd.1} parent=23 // pred_fallthru
          _
        // Predicated region
        $region53: #{stacked_cross_attention_fwd.1} parent=23 // pred_check
          %p781 = pneg %p297
        $region54: #{stacked_cross_attention_fwd.1} parent=23 // pred_check_branch
          %783 = sbr.rel (%p781) target = $region56
        $region55: #{stacked_cross_attention_fwd.1} parent=23 // pred_region
          %p784 = scmp.lt.s32.totalorder %s39, 1
          %s785 = scalar_select %p784, %s39, 1
          %s786 = scalar_lea.vmem %s9, %s785
        $region56: #{stacked_cross_attention_fwd.1} parent=23 // pred_fallthru
          _
        // Predicated region
        $region57: #{stacked_cross_attention_fwd.1} parent=23 // pred_check
          %p787 = pneg %p323
        $region58: #{stacked_cross_attention_fwd.1} parent=23 // pred_check_branch
          %789 = sbr.rel (%p787) target = $region60
        $region59: #{stacked_cross_attention_fwd.1} parent=23 // pred_region
          %p790 = scmp.lt.s32.totalorder %s39, 1
          %s791 = scalar_select %p790, %s39, 1
          %s792 = scalar_lea.vmem %s10, %s791
        $region60: #{stacked_cross_attention_fwd.1} parent=23 // pred_fallthru
          _
        // Predicated region
        $region61: #{stacked_cross_attention_fwd.1} parent=23 // pred_check
          %p793 = pneg %p349
        $region62: #{stacked_cross_attention_fwd.1} parent=23 // pred_check_branch
          %795 = sbr.rel (%p793) target = $region64
        $region63: #{stacked_cross_attention_fwd.1} parent=23 // pred_region
          %p796 = scmp.lt.s32.totalorder %s39, 1
          %s797 = scalar_select %p796, %s39, 1
          %s798 = scalar_lea.vmem %s11, %s797
        $region64: #{stacked_cross_attention_fwd.1} parent=23 // pred_fallthru
          _
        // Predicated region
        $region65: #{stacked_cross_attention_fwd.1} parent=23 // pred_check
          %p799 = pneg %p375
        $region66: #{stacked_cross_attention_fwd.1} parent=23 // pred_check_branch
          %801 = sbr.rel (%p799) target = $region68
        $region67: #{stacked_cross_attention_fwd.1} parent=23 // pred_region
          %p802 = scmp.lt.s32.totalorder %s39, 1
          %s803 = scalar_select %p802, %s39, 1
          %s804 = scalar_lea.vmem %s12, %s803
        $region68: #{stacked_cross_attention_fwd.1} parent=23 // pred_fallthru
          _
        // Predicated region
        $region69: #{stacked_cross_attention_fwd.1} parent=23 // pred_check
          %p805 = pneg %p401
        $region70: #{stacked_cross_attention_fwd.1} parent=23 // pred_check_branch
          %807 = sbr.rel (%p805) target = $region72
        $region71: #{stacked_cross_attention_fwd.1} parent=23 // pred_region
          %p808 = scmp.lt.s32.totalorder %s39, 1
          %s809 = scalar_select %p808, %s39, 1
          %s810 = smul.addr %s809, 16
          %s811 = smul.addr %s810, 4
          %s812 = scalar_lea.vmem %s13, %s811
        $region72: #{stacked_cross_attention_fwd.1} parent=23 // pred_fallthru
          _
        // Predicated region
        $region73: #{stacked_cross_attention_fwd.1} parent=23 // pred_check
          %p813 = pneg %p427
        $region74: #{stacked_cross_attention_fwd.1} parent=23 // pred_check_branch
          %815 = sbr.rel (%p813) target = $region76
        $region75: #{stacked_cross_attention_fwd.1} parent=23 // pred_region
          %p816 = scmp.lt.s32.totalorder %s39, 1
          %s817 = scalar_select %p816, %s39, 1
          %s818 = smul.addr %s817, 16
          %s819 = smul.addr %s818, 4
          %s820 = scalar_lea.vmem %s14, %s819
        $region76: #{stacked_cross_attention_fwd.1} parent=23 // pred_fallthru
          _
        // Predicated region
        $region77: #{stacked_cross_attention_fwd.1} parent=23 // pred_check
          %p821 = pneg %p453
        $region78: #{stacked_cross_attention_fwd.1} parent=23 // pred_check_branch
          %823 = sbr.rel (%p821) target = $region80
        $region79: #{stacked_cross_attention_fwd.1} parent=23 // pred_region
          %p824 = scmp.lt.s32.totalorder %s39, 1
          %s825 = scalar_select %p824, %s39, 1
          %s826 = smul.addr %s825, 16
          %s827 = smul.addr %s826, 4
          %s828 = scalar_lea.vmem %s15, %s827
        $region80: #{stacked_cross_attention_fwd.1} parent=23 // pred_fallthru
          _
        // Predicated region
        $region81: #{stacked_cross_attention_fwd.1} parent=23 // pred_check
          %p829 = pneg %p479
        $region82: #{stacked_cross_attention_fwd.1} parent=23 // pred_check_branch
          %831 = sbr.rel (%p829) target = $region84
        $region83: #{stacked_cross_attention_fwd.1} parent=23 // pred_region
          %p832 = scmp.lt.s32.totalorder %s39, 1
          %s833 = scalar_select %p832, %s39, 1
          %s834 = smul.addr %s833, 16
          %s835 = smul.addr %s834, 4
          %s836 = scalar_lea.vmem %s16, %s835
        $region84: #{stacked_cross_attention_fwd.1} parent=23 // pred_fallthru
          _
        // Predicated region
        $region85: #{stacked_cross_attention_fwd.1} parent=23 // pred_check
          %p837 = pneg %p505
        $region86: #{stacked_cross_attention_fwd.1} parent=23 // pred_check_branch
          %839 = sbr.rel (%p837) target = $region88
        $region87: #{stacked_cross_attention_fwd.1} parent=23 // pred_region
          %p840 = scmp.lt.s32.totalorder %s39, 1
          %s841 = scalar_select %p840, %s39, 1
          %s842 = scalar_lea.vmem %s17, %s841
        $region88: #{stacked_cross_attention_fwd.1} parent=23 // pred_fallthru
          _
        // Predicated region
        $region89: #{stacked_cross_attention_fwd.1} parent=23 // pred_check
          %p843 = pneg %p531
        $region90: #{stacked_cross_attention_fwd.1} parent=23 // pred_check_branch
          %845 = sbr.rel (%p843) target = $region92
        $region91: #{stacked_cross_attention_fwd.1} parent=23 // pred_region
          %p846 = scmp.lt.s32.totalorder %s39, 1
          %s847 = scalar_select %p846, %s39, 1
          %s848 = scalar_lea.vmem %s18, %s847
        $region92: #{stacked_cross_attention_fwd.1} parent=23 // pred_fallthru
          _
        // Predicated region
        $region93: #{stacked_cross_attention_fwd.1} parent=23 // pred_check
          %p849 = pneg %p557
        $region94: #{stacked_cross_attention_fwd.1} parent=23 // pred_check_branch
          %851 = sbr.rel (%p849) target = $region96
        $region95: #{stacked_cross_attention_fwd.1} parent=23 // pred_region
          %p852 = scmp.lt.s32.totalorder %s39, 1
          %s853 = scalar_select %p852, %s39, 1
          %s854 = scalar_lea.vmem %s19, %s853
        $region96: #{stacked_cross_attention_fwd.1} parent=23 // pred_fallthru
          _
        // Predicated region
        $region97: #{stacked_cross_attention_fwd.1} parent=23 // pred_check
          %p855 = pneg %p583
        $region98: #{stacked_cross_attention_fwd.1} parent=23 // pred_check_branch
          %857 = sbr.rel (%p855) target = $region100
        $region99: #{stacked_cross_attention_fwd.1} parent=23 // pred_region
          %p858 = scmp.lt.s32.totalorder %s39, 1
          %s859 = scalar_select %p858, %s39, 1
          %s860 = smul.addr %s859, 64
          %s861 = smul.addr %s860, 4
          %s862 = scalar_lea.vmem %s20, %s861
        $region100: #{stacked_cross_attention_fwd.1} parent=23 // pred_fallthru
          _
        // Predicated region
        $region101: #{stacked_cross_attention_fwd.1} parent=23 // pred_check
          %p863 = pneg %p609
        $region102: #{stacked_cross_attention_fwd.1} parent=23 // pred_check_branch
          %865 = sbr.rel (%p863) target = $region104
        $region103: #{stacked_cross_attention_fwd.1} parent=23 // pred_region
          %p866 = scmp.lt.s32.totalorder %s39, 1
          %s867 = scalar_select %p866, %s39, 1
          %s868 = smul.addr %s867, 4
          %s869 = scalar_lea.vmem %s21, %s868
        $region104: #{stacked_cross_attention_fwd.1} parent=23 // pred_fallthru
          _
        // Predicated region
        $region105: #{stacked_cross_attention_fwd.1} parent=23 // pred_check
          %p870 = pneg %p635
        $region106: #{stacked_cross_attention_fwd.1} parent=23 // pred_check_branch
          %872 = sbr.rel (%p870) target = $region108
        $region107: #{stacked_cross_attention_fwd.1} parent=23 // pred_region
          %p873 = scmp.lt.s32.totalorder %s39, 1
          %s874 = scalar_select %p873, %s39, 1
          %s875 = smul.addr %s874, 64
          %s876 = smul.addr %s875, 4
          %s877 = scalar_lea.vmem %s22, %s876
        $region108: #{stacked_cross_attention_fwd.1} parent=23 // pred_fallthru
          _
        // Predicated region
        $region109: #{stacked_cross_attention_fwd.1} parent=23 // pred_check
          %p878 = pneg %p661
        $region110: #{stacked_cross_attention_fwd.1} parent=23 // pred_check_branch
          %880 = sbr.rel (%p878) target = $region112
        $region111: #{stacked_cross_attention_fwd.1} parent=23 // pred_region
          %p881 = scmp.lt.s32.totalorder %s39, 1
          %s882 = scalar_select %p881, %s39, 1
          %s883 = scalar_lea.vmem %s23, %s882
        $region112: #{stacked_cross_attention_fwd.1} parent=23 // pred_fallthru
          _
      $region24: #{stacked_cross_attention_fwd.1} parent=5 // pred_fallthru
        _
      %p884 = scmp.le.s32.totalorder 1, %s31
      %p885 = scmp.lt.s32.totalorder %s31, 3
      %p886 = pnand %p884, %p885
      %p887 = pneg %p886
      // Predicated region
      $region113: #{stacked_cross_attention_fwd.1} parent=5 // pred_check
        _
      $region114: #{stacked_cross_attention_fwd.1} parent=5 // pred_check_branch
        %889 = sbr.rel (%p886) target = $region116
      $region115: #{stacked_cross_attention_fwd.1} parent=5 // pred_region
        %s890 = ssub.s32 %s31, 1
        %s891 = smul.u32 2, %s40
        %p892 = scmp.lt.s32.totalorder %s891, 1
        %s893 = scalar_select %p892, %s891, 1
        %s894 = smul.addr %s893, 8
        %s895 = scalar_lea.vmem %s0, %s894
        %p896 = pneg %p69
        %p897 = pneg %p66
        %s898 = smul.u32 2, %s40
        %p899 = scmp.lt.s32.totalorder %s898, 1
        %s900 = scalar_select %p899, %s898, 1
        %s901 = smul.addr %s900, 2
        %s902 = smul.addr %s901, 8
        %s903 = scalar_lea.vmem %s1, %s902
        %p904 = pneg %p95
        %p905 = pneg %p92
        %p906 = scmp.lt.s32.totalorder %s41, 1
        %s907 = scalar_select %p906, %s41, 1
        %s908 = scalar_lea.vmem %s2, %s907
        %p909 = pneg %p121
        %p910 = pneg %p118
        %p911 = scmp.lt.s32.totalorder %s41, 1
        %s912 = scalar_select %p911, %s41, 1
        %s913 = scalar_lea.vmem %s3, %s912
        %p914 = pneg %p147
        %p915 = pneg %p144
        %p916 = scmp.lt.s32.totalorder %s41, 1
        %s917 = scalar_select %p916, %s41, 1
        %s918 = smul.addr %s917, 16
        %s919 = smul.addr %s918, 4
        %s920 = scalar_lea.vmem %s4, %s919
        %p921 = pneg %p173
        %p922 = pneg %p170
        %p923 = scmp.lt.s32.totalorder %s41, 1
        %s924 = scalar_select %p923, %s41, 1
        %s925 = smul.addr %s924, 16
        %s926 = smul.addr %s925, 4
        %s927 = scalar_lea.vmem %s5, %s926
        %p928 = pneg %p199
        %p929 = pneg %p196
        %p930 = scmp.lt.s32.totalorder %s41, 1
        %s931 = scalar_select %p930, %s41, 1
        %s932 = smul.addr %s931, 16
        %s933 = smul.addr %s932, 4
        %s934 = scalar_lea.vmem %s6, %s933
        %p935 = pneg %p225
        %p936 = pneg %p222
        %p937 = scmp.lt.s32.totalorder %s41, 1
        %s938 = scalar_select %p937, %s41, 1
        %s939 = smul.addr %s938, 16
        %s940 = smul.addr %s939, 4
        %s941 = scalar_lea.vmem %s7, %s940
        %p942 = pneg %p251
        %p943 = pneg %p248
        %p944 = scmp.lt.s32.totalorder %s41, 1
        %s945 = scalar_select %p944, %s41, 1
        %s946 = scalar_lea.vmem %s8, %s945
        %p947 = pneg %p277
        %p948 = pneg %p274
        %p949 = scmp.lt.s32.totalorder %s41, 1
        %s950 = scalar_select %p949, %s41, 1
        %s951 = scalar_lea.vmem %s9, %s950
        %p952 = pneg %p303
        %p953 = pneg %p300
        %p954 = scmp.lt.s32.totalorder %s41, 1
        %s955 = scalar_select %p954, %s41, 1
        %s956 = scalar_lea.vmem %s10, %s955
        %p957 = pneg %p329
        %p958 = pneg %p326
        %p959 = scmp.lt.s32.totalorder %s41, 1
        %s960 = scalar_select %p959, %s41, 1
        %s961 = scalar_lea.vmem %s11, %s960
        %p962 = pneg %p355
        %p963 = pneg %p352
        %p964 = scmp.lt.s32.totalorder %s41, 1
        %s965 = scalar_select %p964, %s41, 1
        %s966 = scalar_lea.vmem %s12, %s965
        %p967 = pneg %p381
        %p968 = pneg %p378
        %p969 = scmp.lt.s32.totalorder %s41, 1
        %s970 = scalar_select %p969, %s41, 1
        %s971 = smul.addr %s970, 16
        %s972 = smul.addr %s971, 4
        %s973 = scalar_lea.vmem %s13, %s972
        %p974 = pneg %p407
        %p975 = pneg %p404
        %p976 = scmp.lt.s32.totalorder %s41, 1
        %s977 = scalar_select %p976, %s41, 1
        %s978 = smul.addr %s977, 16
        %s979 = smul.addr %s978, 4
        %s980 = scalar_lea.vmem %s14, %s979
        %p981 = pneg %p433
        %p982 = pneg %p430
        %p983 = scmp.lt.s32.totalorder %s41, 1
        %s984 = scalar_select %p983, %s41, 1
        %s985 = smul.addr %s984, 16
        %s986 = smul.addr %s985, 4
        %s987 = scalar_lea.vmem %s15, %s986
        %p988 = pneg %p459
        %p989 = pneg %p456
        %p990 = scmp.lt.s32.totalorder %s41, 1
        %s991 = scalar_select %p990, %s41, 1
        %s992 = smul.addr %s991, 16
        %s993 = smul.addr %s992, 4
        %s994 = scalar_lea.vmem %s16, %s993
        %p995 = pneg %p485
        %p996 = pneg %p482
        %p997 = scmp.lt.s32.totalorder %s41, 1
        %s998 = scalar_select %p997, %s41, 1
        %s999 = scalar_lea.vmem %s17, %s998
        %p1000 = pneg %p511
        %p1001 = pneg %p508
        %p1002 = scmp.lt.s32.totalorder %s41, 1
        %s1003 = scalar_select %p1002, %s41, 1
        %s1004 = scalar_lea.vmem %s18, %s1003
        %p1005 = pneg %p537
        %p1006 = pneg %p534
        %p1007 = scmp.lt.s32.totalorder %s41, 1
        %s1008 = scalar_select %p1007, %s41, 1
        %s1009 = scalar_lea.vmem %s19, %s1008
        %p1010 = pneg %p563
        %p1011 = pneg %p560
        %p1012 = scmp.lt.s32.totalorder %s41, 1
        %s1013 = scalar_select %p1012, %s41, 1
        %s1014 = smul.addr %s1013, 64
        %s1015 = smul.addr %s1014, 4
        %s1016 = scalar_lea.vmem %s20, %s1015
        %p1017 = pneg %p589
        %p1018 = pneg %p586
        %p1019 = scmp.lt.s32.totalorder %s41, 1
        %s1020 = scalar_select %p1019, %s41, 1
        %s1021 = smul.addr %s1020, 4
        %s1022 = scalar_lea.vmem %s21, %s1021
        %p1023 = pneg %p615
        %p1024 = pneg %p612
        %p1025 = scmp.lt.s32.totalorder %s41, 1
        %s1026 = scalar_select %p1025, %s41, 1
        %s1027 = smul.addr %s1026, 64
        %s1028 = smul.addr %s1027, 4
        %s1029 = scalar_lea.vmem %s22, %s1028
        %p1030 = pneg %p641
        %p1031 = pneg %p638
        %p1032 = scmp.lt.s32.totalorder %s41, 1
        %s1033 = scalar_select %p1032, %s41, 1
        %s1034 = scalar_lea.vmem %s23, %s1033
        %p1035 = pneg %p667
        %p1036 = pneg %p664
        %p1037 = pneg %p693
        %p1038 = pneg %p690
        %s1039 = smul.u32 2, %s40
        %p1040 = scmp.lt.s32.totalorder %s1039, 1
        %s1041 = scalar_select %p1040, %s1039, 1
        %s1042 = smul.addr %s1041, 8
        %s1043 = scalar_lea.vmem %s0, %s1042
        %s1044 = smul.u32 2, %s40
        %s1045 = smul.u32 2, %s40
        %p1046 = scmp.lt.s32.totalorder %s1045, 1
        %s1047 = scalar_select %p1046, %s1045, 1
        %s1048 = smul.addr %s1047, 2
        %s1049 = smul.addr %s1048, 8
        %s1050 = scalar_lea.vmem %s1, %s1049
        %s1051 = smul.u32 2, %s40
        %p1052 = scmp.lt.s32.totalorder %s41, 1
        %s1053 = scalar_select %p1052, %s41, 1
        %s1054 = scalar_lea.vmem %s2, %s1053
        %p1055 = scmp.lt.s32.totalorder %s41, 1
        %s1056 = scalar_select %p1055, %s41, 1
        %s1057 = scalar_lea.vmem %s3, %s1056
        %p1058 = scmp.lt.s32.totalorder %s41, 1
        %s1059 = scalar_select %p1058, %s41, 1
        %s1060 = smul.addr %s1059, 16
        %s1061 = smul.addr %s1060, 4
        %s1062 = scalar_lea.vmem %s4, %s1061
        %p1063 = scmp.lt.s32.totalorder %s41, 1
        %s1064 = scalar_select %p1063, %s41, 1
        %s1065 = smul.addr %s1064, 16
        %s1066 = smul.addr %s1065, 4
        %s1067 = scalar_lea.vmem %s5, %s1066
        %p1068 = scmp.lt.s32.totalorder %s41, 1
        %s1069 = scalar_select %p1068, %s41, 1
        %s1070 = smul.addr %s1069, 16
        %s1071 = smul.addr %s1070, 4
        %s1072 = scalar_lea.vmem %s6, %s1071
        %p1073 = scmp.lt.s32.totalorder %s41, 1
        %s1074 = scalar_select %p1073, %s41, 1
        %s1075 = smul.addr %s1074, 16
        %s1076 = smul.addr %s1075, 4
        %s1077 = scalar_lea.vmem %s7, %s1076
        %p1078 = scmp.lt.s32.totalorder %s41, 1
        %s1079 = scalar_select %p1078, %s41, 1
        %s1080 = scalar_lea.vmem %s8, %s1079
        %p1081 = scmp.lt.s32.totalorder %s41, 1
        %s1082 = scalar_select %p1081, %s41, 1
        %s1083 = scalar_lea.vmem %s9, %s1082
        %p1084 = scmp.lt.s32.totalorder %s41, 1
        %s1085 = scalar_select %p1084, %s41, 1
        %s1086 = scalar_lea.vmem %s10, %s1085
        %p1087 = scmp.lt.s32.totalorder %s41, 1
        %s1088 = scalar_select %p1087, %s41, 1
        %s1089 = scalar_lea.vmem %s11, %s1088
        %p1090 = scmp.lt.s32.totalorder %s41, 1
        %s1091 = scalar_select %p1090, %s41, 1
        %s1092 = scalar_lea.vmem %s12, %s1091
        %p1093 = scmp.lt.s32.totalorder %s41, 1
        %s1094 = scalar_select %p1093, %s41, 1
        %s1095 = smul.addr %s1094, 16
        %s1096 = smul.addr %s1095, 4
        %s1097 = scalar_lea.vmem %s13, %s1096
        %p1098 = scmp.lt.s32.totalorder %s41, 1
        %s1099 = scalar_select %p1098, %s41, 1
        %s1100 = smul.addr %s1099, 16
        %s1101 = smul.addr %s1100, 4
        %s1102 = scalar_lea.vmem %s14, %s1101
        %p1103 = scmp.lt.s32.totalorder %s41, 1
        %s1104 = scalar_select %p1103, %s41, 1
        %s1105 = smul.addr %s1104, 16
        %s1106 = smul.addr %s1105, 4
        %s1107 = scalar_lea.vmem %s15, %s1106
        %p1108 = scmp.lt.s32.totalorder %s41, 1
        %s1109 = scalar_select %p1108, %s41, 1
        %s1110 = smul.addr %s1109, 16
        %s1111 = smul.addr %s1110, 4
        %s1112 = scalar_lea.vmem %s16, %s1111
        %p1113 = scmp.lt.s32.totalorder %s41, 1
        %s1114 = scalar_select %p1113, %s41, 1
        %s1115 = scalar_lea.vmem %s17, %s1114
        %p1116 = scmp.lt.s32.totalorder %s41, 1
        %s1117 = scalar_select %p1116, %s41, 1
        %s1118 = scalar_lea.vmem %s18, %s1117
        %p1119 = scmp.lt.s32.totalorder %s41, 1
        %s1120 = scalar_select %p1119, %s41, 1
        %s1121 = scalar_lea.vmem %s19, %s1120
        %p1122 = scmp.lt.s32.totalorder %s41, 1
        %s1123 = scalar_select %p1122, %s41, 1
        %s1124 = smul.addr %s1123, 64
        %s1125 = smul.addr %s1124, 4
        %s1126 = scalar_lea.vmem %s20, %s1125
        %p1127 = scmp.lt.s32.totalorder %s41, 1
        %s1128 = scalar_select %p1127, %s41, 1
        %s1129 = smul.addr %s1128, 4
        %s1130 = scalar_lea.vmem %s21, %s1129
        %p1131 = scmp.lt.s32.totalorder %s41, 1
        %s1132 = scalar_select %p1131, %s41, 1
        %s1133 = smul.addr %s1132, 64
        %s1134 = smul.addr %s1133, 4
        %s1135 = scalar_lea.vmem %s22, %s1134
        %p1136 = scmp.lt.s32.totalorder %s41, 1
        %s1137 = scalar_select %p1136, %s41, 1
        %s1138 = scalar_lea.vmem %s23, %s1137
        %s1139 = smul.u32 2, %s40
        %p1141 = scmp.eq.s32.totalorder %s41, 0
        // Predicated region
        $region117: #{stacked_cross_attention_fwd.1} parent=115 // pred_check
          %p1142 = pneg %p1141
        $region118: #{stacked_cross_attention_fwd.1} parent=115 // pred_check_branch
          %1144 = sbr.rel (%p1142) target = $region120
        $region119: #{stacked_cross_attention_fwd.1} parent=115 // pred_region
          %v1145 = vld [vmem:[%s1043] sm:$0xff]
          %v1146 = vld [vmem:[%s1043 + $0x8] sm:$0xff]
          %1147 = vst [vmem:[#allocation2] sm:$0xff] %v1145
          %1148 = vst [vmem:[#allocation2 + $0x8] sm:$0xff] %v1146
        $region120: #{stacked_cross_attention_fwd.1} parent=115 // pred_fallthru
          _
        %v1149 = vld [vmem:[#allocation2] sm:$0xff]
        %v1150 = vld [vmem:[#allocation2 + $0x8] sm:$0xff]
        %v1151 = vld [vmem:[%s1050] sm:$0xff]
        %v1152 = vld [vmem:[%s1050 + $0x8] sm:$0xff]
        %v1153 = vld [vmem:[%s1050 + $0x10] sm:$0xff]
        %v1154 = vld [vmem:[%s1050 + $0x18] sm:$0xff]
        %v1155 = vlaneseq
        %v1156 = vand.u32 %v1155, 127
        %vm1157 = vcmp.ge.s32.totalorder %v1156, 0
        %vm1158 = vcmp.lt.s32.totalorder %v1156, 16
        %vm1159 = vmand %vm1157, %vm1158
        %vm1160 = vcmp.ge.s32.totalorder %v1156, 16
        %vm1161 = vcmp.lt.s32.totalorder %v1156, 32
        %vm1162 = vmand %vm1160, %vm1161
        %vm1163 = vcmp.ge.s32.totalorder %v1156, 32
        %vm1164 = vcmp.lt.s32.totalorder %v1156, 48
        %vm1165 = vmand %vm1163, %vm1164
        %vm1166 = vcmp.ge.s32.totalorder %v1156, 48
        %vm1167 = vcmp.lt.s32.totalorder %v1156, 64
        %vm1168 = vmand %vm1166, %vm1167
        %vm1169 = vcmp.ge.s32.totalorder %v1156, 64
        %vm1170 = vcmp.lt.s32.totalorder %v1156, 80
        %vm1171 = vmand %vm1169, %vm1170
        %vm1172 = vcmp.ge.s32.totalorder %v1156, 80
        %vm1173 = vcmp.lt.s32.totalorder %v1156, 96
        %vm1174 = vmand %vm1172, %vm1173
        %vm1175 = vcmp.ge.s32.totalorder %v1156, 96
        %vm1176 = vcmp.lt.s32.totalorder %v1156, 112
        %vm1177 = vmand %vm1175, %vm1176
        %vm1178 = vcmp.ge.s32.totalorder %v1156, 112
        %vm1179 = vcmp.lt.s32.totalorder %v1156, 128
        %vm1180 = vmand %vm1178, %vm1179
        %1181 = vadd.xlane.f32.xlu0 %v1149
        %v1182 = vpop.xlane.xlu0 %1181
        %1183 = vadd.xlane.f32.xlu0 %v1150
        %v1184 = vpop.xlane.xlu0 %1183
        %v1185 = vrcp.pop 128.0
        %v1186 = vmul.f32 %v1182, %v1185
        %v1187 = vmul.f32 %v1184, %v1185
        %v1188 = vsub.f32 %v1149, %v1186
        %v1189 = vsub.f32 %v1150, %v1187
        %v1190 = vmul.f32 %v1188, %v1188
        %v1191 = vmul.f32 %v1189, %v1189
        %1192 = vadd.xlane.f32.xlu0 %v1190
        %v1193 = vpop.xlane.xlu0 %1192
        %1194 = vadd.xlane.f32.xlu0 %v1191
        %v1195 = vpop.xlane.xlu0 %1194
        %v1196 = vmul.f32 %v1193, %v1185
        %v1197 = vmul.f32 %v1195, %v1185
        %v1198 = vadd.f32 %v1196, 1e-05
        %v1199 = vadd.f32 %v1197, 1e-05
        %v1200 = vrsqrt.pop %v1198
        %v1201 = vrsqrt.pop %v1199
        %v1202 = vmul.f32 %v1188, %v1200
        %v1203 = vmul.f32 %v1189, %v1201
        %v1204 = vld [vmem:[%s1054] sm:$0x1]
        %v1206 = vlaneseq
        %v1207 = vshrl.u32 %v1206, 7
        %v1208 = vsub.s32 0, %v1207
        %v1209 = vrot.slane %v1204, %v1208
        %v1211 = vmul.f32 %v1202, %v1209
        %v1212 = vmul.f32 %v1203, %v1209
        %v1213 = vld [vmem:[%s1057] sm:$0x1]
        %v1215 = vlaneseq
        %v1216 = vshrl.u32 %v1215, 7
        %v1217 = vsub.s32 0, %v1216
        %v1218 = vrot.slane %v1213, %v1217
        %v1220 = vadd.f32 %v1211, %v1218
        %v1221 = vadd.f32 %v1212, %v1218
        %v1222 = vpack.c.bf16 %v1221, %v1220
        %v1223 = vld [vmem:[%s1062] sm:$0xf]
        %v1224 = vld [vmem:[%s1062 + $0x4] sm:$0xf]
        %v1225 = vld [vmem:[%s1062 + $0x8] sm:$0xf]
        %v1226 = vld [vmem:[%s1062 + $0xc] sm:$0xf]
        %v1227 = vld [vmem:[%s1062 + $0x10] sm:$0xf]
        %v1228 = vld [vmem:[%s1062 + $0x14] sm:$0xf]
        %v1229 = vld [vmem:[%s1062 + $0x18] sm:$0xf]
        %v1230 = vld [vmem:[%s1062 + $0x1c] sm:$0xf]
        %v1231 = vld [vmem:[%s1062 + $0x20] sm:$0xf]
        %v1232 = vld [vmem:[%s1062 + $0x24] sm:$0xf]
        %v1233 = vld [vmem:[%s1062 + $0x28] sm:$0xf]
        %v1234 = vld [vmem:[%s1062 + $0x2c] sm:$0xf]
        %v1235 = vld [vmem:[%s1062 + $0x30] sm:$0xf]
        %v1236 = vld [vmem:[%s1062 + $0x34] sm:$0xf]
        %v1237 = vld [vmem:[%s1062 + $0x38] sm:$0xf]
        %v1238 = vld [vmem:[%s1062 + $0x3c] sm:$0xf]
        %v1255 = vunpack.c.l.b16 %v1223
        %v1256 = vunpack.c.l.b16 %v1224
        %v1257 = vunpack.c.l.b16 %v1225
        %v1258 = vunpack.c.l.b16 %v1226
        %v1259 = vunpack.c.l.b16 %v1227
        %v1260 = vunpack.c.l.b16 %v1228
        %v1261 = vunpack.c.l.b16 %v1229
        %v1262 = vunpack.c.l.b16 %v1230
        %v1263 = vunpack.c.l.b16 %v1231
        %v1264 = vunpack.c.l.b16 %v1232
        %v1265 = vunpack.c.l.b16 %v1233
        %v1266 = vunpack.c.l.b16 %v1234
        %v1267 = vunpack.c.l.b16 %v1235
        %v1268 = vunpack.c.l.b16 %v1236
        %v1269 = vunpack.c.l.b16 %v1237
        %v1270 = vunpack.c.l.b16 %v1238
        %v1271 = vpack.c.b16 %v1256, %v1255
        %v1272 = vpack.c.b16 %v1258, %v1257
        %v1273 = vpack.c.b16 %v1260, %v1259
        %v1274 = vpack.c.b16 %v1262, %v1261
        %v1275 = vpack.c.b16 %v1264, %v1263
        %v1276 = vpack.c.b16 %v1266, %v1265
        %v1277 = vpack.c.b16 %v1268, %v1267
        %v1278 = vpack.c.b16 %v1270, %v1269
        %1287 = vmatprep.subr.bf16.mxu0 0
        %1288 = vmatpush1.bf16.msra.mxu0 %v1271
        %1289 = vmatprep.subr.bf16.mxu0 0
        %1290 = vmatpush1.bf16.msra.mxu0 %v1272
        %1291 = vmatprep.subr.bf16.mxu0 0
        %1292 = vmatpush1.bf16.msra.mxu0 %v1273
        %1293 = vmatprep.subr.bf16.mxu0 0
        %1294 = vmatpush1.bf16.msra.mxu0 %v1274
        %1295 = vmatprep.subr.bf16.mxu0 0
        %1296 = vmatpush1.bf16.msra.mxu0 %v1275
        %1297 = vmatprep.subr.bf16.mxu0 0
        %1298 = vmatpush1.bf16.msra.mxu0 %v1276
        %1299 = vmatprep.subr.bf16.mxu0 0
        %1300 = vmatpush1.bf16.msra.mxu0 %v1277
        %1301 = vmatprep.subr.bf16.mxu0 0
        %1302 = vmatpush1.bf16.msra.mxu0 %v1278
        %1303 = vmatprep.subr.bf16.mxu0 0
        %1304 = vmatpush1.bf16.msra.mxu0 0
        %1305 = vmatprep.subr.bf16.mxu0 0
        %1306 = vmatpush1.bf16.msra.mxu0 0
        %1307 = vmatprep.subr.bf16.mxu0 0
        %1308 = vmatpush1.bf16.msra.mxu0 0
        %1309 = vmatprep.subr.bf16.mxu0 0
        %1310 = vmatpush1.bf16.msra.mxu0 0
        %1311 = vmatprep.subr.bf16.mxu0 0
        %1312 = vmatpush1.bf16.msra.mxu0 0
        %1313 = vmatprep.subr.bf16.mxu0 0
        %1314 = vmatpush1.bf16.msra.mxu0 0
        %1315 = vmatprep.subr.bf16.mxu0 0
        %1316 = vmatpush1.bf16.msra.mxu0 0
        %1317 = vmatprep.subr.bf16.mxu0 0
        %1318 = vmatpush1.bf16.msra.mxu0 0
        %1319 = vmatprep.mubr.bf16.mxu0 0
        %1320 = vmatmul.mubr.bf16.gmra.mrb[0].mxu0 %v1222
        %v1321 = vpop.f32.mrb[0].mxu0
        %v1322 = vadd.f32 0.0, %v1321
        %v1323 = vpop.f32.mrb[0].mxu0
        %v1324 = vpop.f32.mrb[0].mxu0
        %v1325 = vadd.f32 0.0, %v1324
        %v1326 = vpop.f32.mrb[0].mxu0
        %1327 = vdwg.mxu0
        %v1328 = vld [vmem:[%s1067] sm:$0xf]
        %v1329 = vld [vmem:[%s1067 + $0x4] sm:$0xf]
        %v1330 = vld [vmem:[%s1067 + $0x8] sm:$0xf]
        %v1331 = vld [vmem:[%s1067 + $0xc] sm:$0xf]
        %v1332 = vld [vmem:[%s1067 + $0x10] sm:$0xf]
        %v1333 = vld [vmem:[%s1067 + $0x14] sm:$0xf]
        %v1334 = vld [vmem:[%s1067 + $0x18] sm:$0xf]
        %v1335 = vld [vmem:[%s1067 + $0x1c] sm:$0xf]
        %v1336 = vld [vmem:[%s1067 + $0x20] sm:$0xf]
        %v1337 = vld [vmem:[%s1067 + $0x24] sm:$0xf]
        %v1338 = vld [vmem:[%s1067 + $0x28] sm:$0xf]
        %v1339 = vld [vmem:[%s1067 + $0x2c] sm:$0xf]
        %v1340 = vld [vmem:[%s1067 + $0x30] sm:$0xf]
        %v1341 = vld [vmem:[%s1067 + $0x34] sm:$0xf]
        %v1342 = vld [vmem:[%s1067 + $0x38] sm:$0xf]
        %v1343 = vld [vmem:[%s1067 + $0x3c] sm:$0xf]
        %v1360 = vunpack.c.l.b16 %v1328
        %v1361 = vunpack.c.l.b16 %v1329
        %v1362 = vunpack.c.l.b16 %v1330
        %v1363 = vunpack.c.l.b16 %v1331
        %v1364 = vunpack.c.l.b16 %v1332
        %v1365 = vunpack.c.l.b16 %v1333
        %v1366 = vunpack.c.l.b16 %v1334
        %v1367 = vunpack.c.l.b16 %v1335
        %v1368 = vunpack.c.l.b16 %v1336
        %v1369 = vunpack.c.l.b16 %v1337
        %v1370 = vunpack.c.l.b16 %v1338
        %v1371 = vunpack.c.l.b16 %v1339
        %v1372 = vunpack.c.l.b16 %v1340
        %v1373 = vunpack.c.l.b16 %v1341
        %v1374 = vunpack.c.l.b16 %v1342
        %v1375 = vunpack.c.l.b16 %v1343
        %v1376 = vpack.c.b16 %v1361, %v1360
        %v1377 = vpack.c.b16 %v1363, %v1362
        %v1378 = vpack.c.b16 %v1365, %v1364
        %v1379 = vpack.c.b16 %v1367, %v1366
        %v1380 = vpack.c.b16 %v1369, %v1368
        %v1381 = vpack.c.b16 %v1371, %v1370
        %v1382 = vpack.c.b16 %v1373, %v1372
        %v1383 = vpack.c.b16 %v1375, %v1374
        %1392 = vmatprep.subr.bf16.mxu0 0
        %1393 = vmatpush1.bf16.msra.mxu0 %v1376
        %1394 = vmatprep.subr.bf16.mxu0 0
        %1395 = vmatpush1.bf16.msra.mxu0 %v1377
        %1396 = vmatprep.subr.bf16.mxu0 0
        %1397 = vmatpush1.bf16.msra.mxu0 %v1378
        %1398 = vmatprep.subr.bf16.mxu0 0
        %1399 = vmatpush1.bf16.msra.mxu0 %v1379
        %1400 = vmatprep.subr.bf16.mxu0 0
        %1401 = vmatpush1.bf16.msra.mxu0 %v1380
        %1402 = vmatprep.subr.bf16.mxu0 0
        %1403 = vmatpush1.bf16.msra.mxu0 %v1381
        %1404 = vmatprep.subr.bf16.mxu0 0
        %1405 = vmatpush1.bf16.msra.mxu0 %v1382
        %1406 = vmatprep.subr.bf16.mxu0 0
        %1407 = vmatpush1.bf16.msra.mxu0 %v1383
        %1408 = vmatprep.subr.bf16.mxu0 0
        %1409 = vmatpush1.bf16.msra.mxu0 0
        %1410 = vmatprep.subr.bf16.mxu0 0
        %1411 = vmatpush1.bf16.msra.mxu0 0
        %1412 = vmatprep.subr.bf16.mxu0 0
        %1413 = vmatpush1.bf16.msra.mxu0 0
        %1414 = vmatprep.subr.bf16.mxu0 0
        %1415 = vmatpush1.bf16.msra.mxu0 0
        %1416 = vmatprep.subr.bf16.mxu0 0
        %1417 = vmatpush1.bf16.msra.mxu0 0
        %1418 = vmatprep.subr.bf16.mxu0 0
        %1419 = vmatpush1.bf16.msra.mxu0 0
        %1420 = vmatprep.subr.bf16.mxu0 0
        %1421 = vmatpush1.bf16.msra.mxu0 0
        %1422 = vmatprep.subr.bf16.mxu0 0
        %1423 = vmatpush1.bf16.msra.mxu0 0
        %1424 = vmatprep.mubr.bf16.mxu0 0
        %1425 = vmatmul.mubr.bf16.gmra.mrb[0].mxu0 %v1222
        %v1426 = vpop.f32.mrb[0].mxu0
        %v1427 = vadd.f32 0.0, %v1426
        %v1428 = vpop.f32.mrb[0].mxu0
        %v1429 = vpop.f32.mrb[0].mxu0
        %v1430 = vadd.f32 0.0, %v1429
        %v1431 = vpop.f32.mrb[0].mxu0
        %1432 = vdwg.mxu0
        %v1433 = vld [vmem:[%s1072] sm:$0xf]
        %v1434 = vld [vmem:[%s1072 + $0x4] sm:$0xf]
        %v1435 = vld [vmem:[%s1072 + $0x8] sm:$0xf]
        %v1436 = vld [vmem:[%s1072 + $0xc] sm:$0xf]
        %v1437 = vld [vmem:[%s1072 + $0x10] sm:$0xf]
        %v1438 = vld [vmem:[%s1072 + $0x14] sm:$0xf]
        %v1439 = vld [vmem:[%s1072 + $0x18] sm:$0xf]
        %v1440 = vld [vmem:[%s1072 + $0x1c] sm:$0xf]
        %v1441 = vld [vmem:[%s1072 + $0x20] sm:$0xf]
        %v1442 = vld [vmem:[%s1072 + $0x24] sm:$0xf]
        %v1443 = vld [vmem:[%s1072 + $0x28] sm:$0xf]
        %v1444 = vld [vmem:[%s1072 + $0x2c] sm:$0xf]
        %v1445 = vld [vmem:[%s1072 + $0x30] sm:$0xf]
        %v1446 = vld [vmem:[%s1072 + $0x34] sm:$0xf]
        %v1447 = vld [vmem:[%s1072 + $0x38] sm:$0xf]
        %v1448 = vld [vmem:[%s1072 + $0x3c] sm:$0xf]
        %v1465 = vunpack.c.l.b16 %v1433
        %v1466 = vunpack.c.l.b16 %v1434
        %v1467 = vunpack.c.l.b16 %v1435
        %v1468 = vunpack.c.l.b16 %v1436
        %v1469 = vunpack.c.l.b16 %v1437
        %v1470 = vunpack.c.l.b16 %v1438
        %v1471 = vunpack.c.l.b16 %v1439
        %v1472 = vunpack.c.l.b16 %v1440
        %v1473 = vunpack.c.l.b16 %v1441
        %v1474 = vunpack.c.l.b16 %v1442
        %v1475 = vunpack.c.l.b16 %v1443
        %v1476 = vunpack.c.l.b16 %v1444
        %v1477 = vunpack.c.l.b16 %v1445
        %v1478 = vunpack.c.l.b16 %v1446
        %v1479 = vunpack.c.l.b16 %v1447
        %v1480 = vunpack.c.l.b16 %v1448
        %v1481 = vpack.c.b16 %v1466, %v1465
        %v1482 = vpack.c.b16 %v1468, %v1467
        %v1483 = vpack.c.b16 %v1470, %v1469
        %v1484 = vpack.c.b16 %v1472, %v1471
        %v1485 = vpack.c.b16 %v1474, %v1473
        %v1486 = vpack.c.b16 %v1476, %v1475
        %v1487 = vpack.c.b16 %v1478, %v1477
        %v1488 = vpack.c.b16 %v1480, %v1479
        %1497 = vmatprep.subr.bf16.mxu0 0
        %1498 = vmatpush1.bf16.msra.mxu0 %v1481
        %1499 = vmatprep.subr.bf16.mxu0 0
        %1500 = vmatpush1.bf16.msra.mxu0 %v1482
        %1501 = vmatprep.subr.bf16.mxu0 0
        %1502 = vmatpush1.bf16.msra.mxu0 %v1483
        %1503 = vmatprep.subr.bf16.mxu0 0
        %1504 = vmatpush1.bf16.msra.mxu0 %v1484
        %1505 = vmatprep.subr.bf16.mxu0 0
        %1506 = vmatpush1.bf16.msra.mxu0 %v1485
        %1507 = vmatprep.subr.bf16.mxu0 0
        %1508 = vmatpush1.bf16.msra.mxu0 %v1486
        %1509 = vmatprep.subr.bf16.mxu0 0
        %1510 = vmatpush1.bf16.msra.mxu0 %v1487
        %1511 = vmatprep.subr.bf16.mxu0 0
        %1512 = vmatpush1.bf16.msra.mxu0 %v1488
        %1513 = vmatprep.subr.bf16.mxu0 0
        %1514 = vmatpush1.bf16.msra.mxu0 0
        %1515 = vmatprep.subr.bf16.mxu0 0
        %1516 = vmatpush1.bf16.msra.mxu0 0
        %1517 = vmatprep.subr.bf16.mxu0 0
        %1518 = vmatpush1.bf16.msra.mxu0 0
        %1519 = vmatprep.subr.bf16.mxu0 0
        %1520 = vmatpush1.bf16.msra.mxu0 0
        %1521 = vmatprep.subr.bf16.mxu0 0
        %1522 = vmatpush1.bf16.msra.mxu0 0
        %1523 = vmatprep.subr.bf16.mxu0 0
        %1524 = vmatpush1.bf16.msra.mxu0 0
        %1525 = vmatprep.subr.bf16.mxu0 0
        %1526 = vmatpush1.bf16.msra.mxu0 0
        %1527 = vmatprep.subr.bf16.mxu0 0
        %1528 = vmatpush1.bf16.msra.mxu0 0
        %1529 = vmatprep.mubr.bf16.mxu0 0
        %1530 = vmatmul.mubr.bf16.gmra.mrb[0].mxu0 %v1222
        %v1531 = vpop.f32.mrb[0].mxu0
        %v1532 = vadd.f32 0.0, %v1531
        %v1533 = vpop.f32.mrb[0].mxu0
        %v1534 = vpop.f32.mrb[0].mxu0
        %v1535 = vadd.f32 0.0, %v1534
        %v1536 = vpop.f32.mrb[0].mxu0
        %1537 = vdwg.mxu0
        %v1538 = vmul.f32 %v1322, 0.25
        %v1539 = vpack.c.bf16 %v1427, %v1427
        %v1540 = vpack.c.bf16 %v1532, %v1532
        %v1541 = vsel %vm1159, 1, 0
        %vm1542 = vcmp.eq.s32.totalorder %v1541, 1
        %v1543 = vsel %vm1542, %v1538, 0.0
        %v1544 = vpack.c.bf16 %v1543, %v1543
        %1545 = vmatprep.subr.bf16.mxu0 0
        %1546 = vmatpush1.bf16.xpose.msra.mxu0 %v1539
        %1547 = vmatprep.subr.bf16.mxu0 0
        %1548 = vmatpush1.bf16.xpose.msra.mxu0 0
        %1549 = vmatprep.subr.bf16.mxu0 0
        %1550 = vmatpush1.bf16.xpose.msra.mxu0 0
        %1551 = vmatprep.subr.bf16.mxu0 0
        %1552 = vmatpush1.bf16.xpose.msra.mxu0 0
        %1553 = vmatprep.subr.bf16.mxu0 0
        %1554 = vmatpush1.bf16.xpose.msra.mxu0 0
        %1555 = vmatprep.subr.bf16.mxu0 0
        %1556 = vmatpush1.bf16.xpose.msra.mxu0 0
        %1557 = vmatprep.subr.bf16.mxu0 0
        %1558 = vmatpush1.bf16.xpose.msra.mxu0 0
        %1559 = vmatprep.subr.bf16.mxu0 0
        %1560 = vmatpush1.bf16.xpose.msra.mxu0 0
        %1561 = vmatprep.subr.bf16.mxu0 0
        %1562 = vmatpush1.bf16.xpose.msra.mxu0 0
        %1563 = vmatprep.subr.bf16.mxu0 0
        %1564 = vmatpush1.bf16.xpose.msra.mxu0 0
        %1565 = vmatprep.subr.bf16.mxu0 0
        %1566 = vmatpush1.bf16.xpose.msra.mxu0 0
        %1567 = vmatprep.subr.bf16.mxu0 0
        %1568 = vmatpush1.bf16.xpose.msra.mxu0 0
        %1569 = vmatprep.subr.bf16.mxu0 0
        %1570 = vmatpush1.bf16.xpose.msra.mxu0 0
        %1571 = vmatprep.subr.bf16.mxu0 0
        %1572 = vmatpush1.bf16.xpose.msra.mxu0 0
        %1573 = vmatprep.subr.bf16.mxu0 0
        %1574 = vmatpush1.bf16.xpose.msra.mxu0 0
        %1575 = vmatprep.subr.bf16.mxu0 0
        %1576 = vmatpush1.bf16.xpose.msra.mxu0 0
        %1577 = vmatprep.mubr.bf16.mxu0 0
        %1578 = vmatmul.mubr.bf16.gmra.mrb[0].mxu0 %v1544
        %v1579 = vpop.f32.mrb[0].mxu0
        %v1580 = vadd.f32 0.0, %v1579
        %v1581 = vpop.f32.mrb[0].mxu0
        %v1582 = vpop.f32.mrb[0].mxu0
        %v1583 = vpop.f32.mrb[0].mxu0
        %1584 = vdwg.mxu0
        %vm1585 = vcmask 64512
        %v1586 = vsel %vm1585, %v1580, -inf
        %1587 = vmax.xlane.f32.xlu0 %v1586
        %v1588 = vpop.xlane.xlu0 %1587
        %v1589 = vsub.f32 %v1580, %v1588
        %v1590 = vmul.f32 %v1589, 1.442695
        %v1591 = vpow.pop %v1590
        %v1592 = vsel %vm1585, %v1591, 0.0
        %1593 = vadd.xlane.f32.xlu0 %v1592
        %v1594 = vpop.xlane.xlu0 %1593
        %v1595 = vrcp.pop %v1594
        %v1596 = vmul.f32 %v1591, %v1595
        %v1597 = vpack.c.bf16 %v1596, %v1596
        %v1599 = vsel %vm1585, %v1597, 0
        %vm1601 = vcmask 1043456
        %v1603 = vsel %vm1601, %v1540, 0
        %1605 = vmatprep.subr.bf16.mxu0 0
        %1606 = vmatpush1.bf16.msra.mxu0 %v1603
        %1607 = vmatprep.subr.bf16.mxu0 0
        %1608 = vmatpush1.bf16.msra.mxu0 0
        %1609 = vmatprep.subr.bf16.mxu0 0
        %1610 = vmatpush1.bf16.msra.mxu0 0
        %1611 = vmatprep.subr.bf16.mxu0 0
        %1612 = vmatpush1.bf16.msra.mxu0 0
        %1613 = vmatprep.subr.bf16.mxu0 0
        %1614 = vmatpush1.bf16.msra.mxu0 0
        %1615 = vmatprep.subr.bf16.mxu0 0
        %1616 = vmatpush1.bf16.msra.mxu0 0
        %1617 = vmatprep.subr.bf16.mxu0 0
        %1618 = vmatpush1.bf16.msra.mxu0 0
        %1619 = vmatprep.subr.bf16.mxu0 0
        %1620 = vmatpush1.bf16.msra.mxu0 0
        %1621 = vmatprep.subr.bf16.mxu0 0
        %1622 = vmatpush1.bf16.msra.mxu0 0
        %1623 = vmatprep.subr.bf16.mxu0 0
        %1624 = vmatpush1.bf16.msra.mxu0 0
        %1625 = vmatprep.subr.bf16.mxu0 0
        %1626 = vmatpush1.bf16.msra.mxu0 0
        %1627 = vmatprep.subr.bf16.mxu0 0
        %1628 = vmatpush1.bf16.msra.mxu0 0
        %1629 = vmatprep.subr.bf16.mxu0 0
        %1630 = vmatpush1.bf16.msra.mxu0 0
        %1631 = vmatprep.subr.bf16.mxu0 0
        %1632 = vmatpush1.bf16.msra.mxu0 0
        %1633 = vmatprep.subr.bf16.mxu0 0
        %1634 = vmatpush1.bf16.msra.mxu0 0
        %1635 = vmatprep.subr.bf16.mxu0 0
        %1636 = vmatpush1.bf16.msra.mxu0 0
        %1637 = vmatprep.mubr.bf16.mxu0 0
        %1638 = vmatmul.mubr.bf16.gmra.mrb[0].mxu0 %v1599
        %v1639 = vpop.f32.mrb[0].mxu0
        %v1640 = vadd.f32 0.0, %v1639
        %v1641 = vpop.f32.mrb[0].mxu0
        %v1642 = vpop.f32.mrb[0].mxu0
        %v1643 = vpop.f32.mrb[0].mxu0
        %1644 = vdwg.mxu0
        %v1645 = vsel %vm1542, %v1640, 0.0
        %v1646 = vsel %vm1162, 1, 0
        %vm1647 = vcmp.eq.s32.totalorder %v1646, 1
        %v1648 = vsel %vm1647, %v1538, 0.0
        %v1649 = vpack.c.bf16 %v1648, %v1648
        %1650 = vmatprep.subr.bf16.mxu0 0
        %1651 = vmatpush1.bf16.xpose.msra.mxu0 %v1539
        %1652 = vmatprep.subr.bf16.mxu0 0
        %1653 = vmatpush1.bf16.xpose.msra.mxu0 0
        %1654 = vmatprep.subr.bf16.mxu0 0
        %1655 = vmatpush1.bf16.xpose.msra.mxu0 0
        %1656 = vmatprep.subr.bf16.mxu0 0
        %1657 = vmatpush1.bf16.xpose.msra.mxu0 0
        %1658 = vmatprep.subr.bf16.mxu0 0
        %1659 = vmatpush1.bf16.xpose.msra.mxu0 0
        %1660 = vmatprep.subr.bf16.mxu0 0
        %1661 = vmatpush1.bf16.xpose.msra.mxu0 0
        %1662 = vmatprep.subr.bf16.mxu0 0
        %1663 = vmatpush1.bf16.xpose.msra.mxu0 0
        %1664 = vmatprep.subr.bf16.mxu0 0
        %1665 = vmatpush1.bf16.xpose.msra.mxu0 0
        %1666 = vmatprep.subr.bf16.mxu0 0
        %1667 = vmatpush1.bf16.xpose.msra.mxu0 0
        %1668 = vmatprep.subr.bf16.mxu0 0
        %1669 = vmatpush1.bf16.xpose.msra.mxu0 0
        %1670 = vmatprep.subr.bf16.mxu0 0
        %1671 = vmatpush1.bf16.xpose.msra.mxu0 0
        %1672 = vmatprep.subr.bf16.mxu0 0
        %1673 = vmatpush1.bf16.xpose.msra.mxu0 0
        %1674 = vmatprep.subr.bf16.mxu0 0
        %1675 = vmatpush1.bf16.xpose.msra.mxu0 0
        %1676 = vmatprep.subr.bf16.mxu0 0
        %1677 = vmatpush1.bf16.xpose.msra.mxu0 0
        %1678 = vmatprep.subr.bf16.mxu0 0
        %1679 = vmatpush1.bf16.xpose.msra.mxu0 0
        %1680 = vmatprep.subr.bf16.mxu0 0
        %1681 = vmatpush1.bf16.xpose.msra.mxu0 0
        %1682 = vmatprep.mubr.bf16.mxu0 0
        %1683 = vmatmul.mubr.bf16.gmra.mrb[0].mxu0 %v1649
        %v1684 = vpop.f32.mrb[0].mxu0
        %v1685 = vadd.f32 0.0, %v1684
        %v1686 = vpop.f32.mrb[0].mxu0
        %v1687 = vpop.f32.mrb[0].mxu0
        %v1688 = vpop.f32.mrb[0].mxu0
        %1689 = vdwg.mxu0
        %v1690 = vsel %vm1585, %v1685, -inf
        %1691 = vmax.xlane.f32.xlu0 %v1690
        %v1692 = vpop.xlane.xlu0 %1691
        %v1693 = vsub.f32 %v1685, %v1692
        %v1694 = vmul.f32 %v1693, 1.442695
        %v1695 = vpow.pop %v1694
        %v1696 = vsel %vm1585, %v1695, 0.0
        %1697 = vadd.xlane.f32.xlu0 %v1696
        %v1698 = vpop.xlane.xlu0 %1697
        %v1699 = vrcp.pop %v1698
        %v1700 = vmul.f32 %v1695, %v1699
        %v1701 = vpack.c.bf16 %v1700, %v1700
        %v1703 = vsel %vm1585, %v1701, 0
        %1705 = vmatprep.subr.bf16.mxu0 0
        %1706 = vmatpush1.bf16.msra.mxu0 %v1603
        %1707 = vmatprep.subr.bf16.mxu0 0
        %1708 = vmatpush1.bf16.msra.mxu0 0
        %1709 = vmatprep.subr.bf16.mxu0 0
        %1710 = vmatpush1.bf16.msra.mxu0 0
        %1711 = vmatprep.subr.bf16.mxu0 0
        %1712 = vmatpush1.bf16.msra.mxu0 0
        %1713 = vmatprep.subr.bf16.mxu0 0
        %1714 = vmatpush1.bf16.msra.mxu0 0
        %1715 = vmatprep.subr.bf16.mxu0 0
        %1716 = vmatpush1.bf16.msra.mxu0 0
        %1717 = vmatprep.subr.bf16.mxu0 0
        %1718 = vmatpush1.bf16.msra.mxu0 0
        %1719 = vmatprep.subr.bf16.mxu0 0
        %1720 = vmatpush1.bf16.msra.mxu0 0
        %1721 = vmatprep.subr.bf16.mxu0 0
        %1722 = vmatpush1.bf16.msra.mxu0 0
        %1723 = vmatprep.subr.bf16.mxu0 0
        %1724 = vmatpush1.bf16.msra.mxu0 0
        %1725 = vmatprep.subr.bf16.mxu0 0
        %1726 = vmatpush1.bf16.msra.mxu0 0
        %1727 = vmatprep.subr.bf16.mxu0 0
        %1728 = vmatpush1.bf16.msra.mxu0 0
        %1729 = vmatprep.subr.bf16.mxu0 0
        %1730 = vmatpush1.bf16.msra.mxu0 0
        %1731 = vmatprep.subr.bf16.mxu0 0
        %1732 = vmatpush1.bf16.msra.mxu0 0
        %1733 = vmatprep.subr.bf16.mxu0 0
        %1734 = vmatpush1.bf16.msra.mxu0 0
        %1735 = vmatprep.subr.bf16.mxu0 0
        %1736 = vmatpush1.bf16.msra.mxu0 0
        %1737 = vmatprep.mubr.bf16.mxu0 0
        %1738 = vmatmul.mubr.bf16.gmra.mrb[0].mxu0 %v1703
        %v1739 = vpop.f32.mrb[0].mxu0
        %v1740 = vadd.f32 0.0, %v1739
        %v1741 = vpop.f32.mrb[0].mxu0
        %v1742 = vpop.f32.mrb[0].mxu0
        %v1743 = vpop.f32.mrb[0].mxu0
        %1744 = vdwg.mxu0
        %v1745 = vsel %vm1647, %v1740, %v1645
        %v1746 = vsel %vm1165, 1, 0
        %vm1747 = vcmp.eq.s32.totalorder %v1746, 1
        %v1748 = vsel %vm1747, %v1538, 0.0
        %v1749 = vpack.c.bf16 %v1748, %v1748
        %1750 = vmatprep.subr.bf16.mxu0 0
        %1751 = vmatpush1.bf16.xpose.msra.mxu0 %v1539
        %1752 = vmatprep.subr.bf16.mxu0 0
        %1753 = vmatpush1.bf16.xpose.msra.mxu0 0
        %1754 = vmatprep.subr.bf16.mxu0 0
        %1755 = vmatpush1.bf16.xpose.msra.mxu0 0
        %1756 = vmatprep.subr.bf16.mxu0 0
        %1757 = vmatpush1.bf16.xpose.msra.mxu0 0
        %1758 = vmatprep.subr.bf16.mxu0 0
        %1759 = vmatpush1.bf16.xpose.msra.mxu0 0
        %1760 = vmatprep.subr.bf16.mxu0 0
        %1761 = vmatpush1.bf16.xpose.msra.mxu0 0
        %1762 = vmatprep.subr.bf16.mxu0 0
        %1763 = vmatpush1.bf16.xpose.msra.mxu0 0
        %1764 = vmatprep.subr.bf16.mxu0 0
        %1765 = vmatpush1.bf16.xpose.msra.mxu0 0
        %1766 = vmatprep.subr.bf16.mxu0 0
        %1767 = vmatpush1.bf16.xpose.msra.mxu0 0
        %1768 = vmatprep.subr.bf16.mxu0 0
        %1769 = vmatpush1.bf16.xpose.msra.mxu0 0
        %1770 = vmatprep.subr.bf16.mxu0 0
        %1771 = vmatpush1.bf16.xpose.msra.mxu0 0
        %1772 = vmatprep.subr.bf16.mxu0 0
        %1773 = vmatpush1.bf16.xpose.msra.mxu0 0
        %1774 = vmatprep.subr.bf16.mxu0 0
        %1775 = vmatpush1.bf16.xpose.msra.mxu0 0
        %1776 = vmatprep.subr.bf16.mxu0 0
        %1777 = vmatpush1.bf16.xpose.msra.mxu0 0
        %1778 = vmatprep.subr.bf16.mxu0 0
        %1779 = vmatpush1.bf16.xpose.msra.mxu0 0
        %1780 = vmatprep.subr.bf16.mxu0 0
        %1781 = vmatpush1.bf16.xpose.msra.mxu0 0
        %1782 = vmatprep.mubr.bf16.mxu0 0
        %1783 = vmatmul.mubr.bf16.gmra.mrb[0].mxu0 %v1749
        %v1784 = vpop.f32.mrb[0].mxu0
        %v1785 = vadd.f32 0.0, %v1784
        %v1786 = vpop.f32.mrb[0].mxu0
        %v1787 = vpop.f32.mrb[0].mxu0
        %v1788 = vpop.f32.mrb[0].mxu0
        %1789 = vdwg.mxu0
        %v1790 = vsel %vm1585, %v1785, -inf
        %1791 = vmax.xlane.f32.xlu0 %v1790
        %v1792 = vpop.xlane.xlu0 %1791
        %v1793 = vsub.f32 %v1785, %v1792
        %v1794 = vmul.f32 %v1793, 1.442695
        %v1795 = vpow.pop %v1794
        %v1796 = vsel %vm1585, %v1795, 0.0
        %1797 = vadd.xlane.f32.xlu0 %v1796
        %v1798 = vpop.xlane.xlu0 %1797
        %v1799 = vrcp.pop %v1798
        %v1800 = vmul.f32 %v1795, %v1799
        %v1801 = vpack.c.bf16 %v1800, %v1800
        %v1803 = vsel %vm1585, %v1801, 0
        %1805 = vmatprep.subr.bf16.mxu0 0
        %1806 = vmatpush1.bf16.msra.mxu0 %v1603
        %1807 = vmatprep.subr.bf16.mxu0 0
        %1808 = vmatpush1.bf16.msra.mxu0 0
        %1809 = vmatprep.subr.bf16.mxu0 0
        %1810 = vmatpush1.bf16.msra.mxu0 0
        %1811 = vmatprep.subr.bf16.mxu0 0
        %1812 = vmatpush1.bf16.msra.mxu0 0
        %1813 = vmatprep.subr.bf16.mxu0 0
        %1814 = vmatpush1.bf16.msra.mxu0 0
        %1815 = vmatprep.subr.bf16.mxu0 0
        %1816 = vmatpush1.bf16.msra.mxu0 0
        %1817 = vmatprep.subr.bf16.mxu0 0
        %1818 = vmatpush1.bf16.msra.mxu0 0
        %1819 = vmatprep.subr.bf16.mxu0 0
        %1820 = vmatpush1.bf16.msra.mxu0 0
        %1821 = vmatprep.subr.bf16.mxu0 0
        %1822 = vmatpush1.bf16.msra.mxu0 0
        %1823 = vmatprep.subr.bf16.mxu0 0
        %1824 = vmatpush1.bf16.msra.mxu0 0
        %1825 = vmatprep.subr.bf16.mxu0 0
        %1826 = vmatpush1.bf16.msra.mxu0 0
        %1827 = vmatprep.subr.bf16.mxu0 0
        %1828 = vmatpush1.bf16.msra.mxu0 0
        %1829 = vmatprep.subr.bf16.mxu0 0
        %1830 = vmatpush1.bf16.msra.mxu0 0
        %1831 = vmatprep.subr.bf16.mxu0 0
        %1832 = vmatpush1.bf16.msra.mxu0 0
        %1833 = vmatprep.subr.bf16.mxu0 0
        %1834 = vmatpush1.bf16.msra.mxu0 0
        %1835 = vmatprep.subr.bf16.mxu0 0
        %1836 = vmatpush1.bf16.msra.mxu0 0
        %1837 = vmatprep.mubr.bf16.mxu0 0
        %1838 = vmatmul.mubr.bf16.gmra.mrb[0].mxu0 %v1803
        %v1839 = vpop.f32.mrb[0].mxu0
        %v1840 = vadd.f32 0.0, %v1839
        %v1841 = vpop.f32.mrb[0].mxu0
        %v1842 = vpop.f32.mrb[0].mxu0
        %v1843 = vpop.f32.mrb[0].mxu0
        %1844 = vdwg.mxu0
        %v1845 = vsel %vm1747, %v1840, %v1745
        %v1846 = vsel %vm1168, 1, 0
        %vm1847 = vcmp.eq.s32.totalorder %v1846, 1
        %v1848 = vsel %vm1847, %v1538, 0.0
        %v1849 = vpack.c.bf16 %v1848, %v1848
        %1850 = vmatprep.subr.bf16.mxu0 0
        %1851 = vmatpush1.bf16.xpose.msra.mxu0 %v1539
        %1852 = vmatprep.subr.bf16.mxu0 0
        %1853 = vmatpush1.bf16.xpose.msra.mxu0 0
        %1854 = vmatprep.subr.bf16.mxu0 0
        %1855 = vmatpush1.bf16.xpose.msra.mxu0 0
        %1856 = vmatprep.subr.bf16.mxu0 0
        %1857 = vmatpush1.bf16.xpose.msra.mxu0 0
        %1858 = vmatprep.subr.bf16.mxu0 0
        %1859 = vmatpush1.bf16.xpose.msra.mxu0 0
        %1860 = vmatprep.subr.bf16.mxu0 0
        %1861 = vmatpush1.bf16.xpose.msra.mxu0 0
        %1862 = vmatprep.subr.bf16.mxu0 0
        %1863 = vmatpush1.bf16.xpose.msra.mxu0 0
        %1864 = vmatprep.subr.bf16.mxu0 0
        %1865 = vmatpush1.bf16.xpose.msra.mxu0 0
        %1866 = vmatprep.subr.bf16.mxu0 0
        %1867 = vmatpush1.bf16.xpose.msra.mxu0 0
        %1868 = vmatprep.subr.bf16.mxu0 0
        %1869 = vmatpush1.bf16.xpose.msra.mxu0 0
        %1870 = vmatprep.subr.bf16.mxu0 0
        %1871 = vmatpush1.bf16.xpose.msra.mxu0 0
        %1872 = vmatprep.subr.bf16.mxu0 0
        %1873 = vmatpush1.bf16.xpose.msra.mxu0 0
        %1874 = vmatprep.subr.bf16.mxu0 0
        %1875 = vmatpush1.bf16.xpose.msra.mxu0 0
        %1876 = vmatprep.subr.bf16.mxu0 0
        %1877 = vmatpush1.bf16.xpose.msra.mxu0 0
        %1878 = vmatprep.subr.bf16.mxu0 0
        %1879 = vmatpush1.bf16.xpose.msra.mxu0 0
        %1880 = vmatprep.subr.bf16.mxu0 0
        %1881 = vmatpush1.bf16.xpose.msra.mxu0 0
        %1882 = vmatprep.mubr.bf16.mxu0 0
        %1883 = vmatmul.mubr.bf16.gmra.mrb[0].mxu0 %v1849
        %v1884 = vpop.f32.mrb[0].mxu0
        %v1885 = vadd.f32 0.0, %v1884
        %v1886 = vpop.f32.mrb[0].mxu0
        %v1887 = vpop.f32.mrb[0].mxu0
        %v1888 = vpop.f32.mrb[0].mxu0
        %1889 = vdwg.mxu0
        %v1890 = vsel %vm1585, %v1885, -inf
        %1891 = vmax.xlane.f32.xlu0 %v1890
        %v1892 = vpop.xlane.xlu0 %1891
        %v1893 = vsub.f32 %v1885, %v1892
        %v1894 = vmul.f32 %v1893, 1.442695
        %v1895 = vpow.pop %v1894
        %v1896 = vsel %vm1585, %v1895, 0.0
        %1897 = vadd.xlane.f32.xlu0 %v1896
        %v1898 = vpop.xlane.xlu0 %1897
        %v1899 = vrcp.pop %v1898
        %v1900 = vmul.f32 %v1895, %v1899
        %v1901 = vpack.c.bf16 %v1900, %v1900
        %v1903 = vsel %vm1585, %v1901, 0
        %1905 = vmatprep.subr.bf16.mxu0 0
        %1906 = vmatpush1.bf16.msra.mxu0 %v1603
        %1907 = vmatprep.subr.bf16.mxu0 0
        %1908 = vmatpush1.bf16.msra.mxu0 0
        %1909 = vmatprep.subr.bf16.mxu0 0
        %1910 = vmatpush1.bf16.msra.mxu0 0
        %1911 = vmatprep.subr.bf16.mxu0 0
        %1912 = vmatpush1.bf16.msra.mxu0 0
        %1913 = vmatprep.subr.bf16.mxu0 0
        %1914 = vmatpush1.bf16.msra.mxu0 0
        %1915 = vmatprep.subr.bf16.mxu0 0
        %1916 = vmatpush1.bf16.msra.mxu0 0
        %1917 = vmatprep.subr.bf16.mxu0 0
        %1918 = vmatpush1.bf16.msra.mxu0 0
        %1919 = vmatprep.subr.bf16.mxu0 0
        %1920 = vmatpush1.bf16.msra.mxu0 0
        %1921 = vmatprep.subr.bf16.mxu0 0
        %1922 = vmatpush1.bf16.msra.mxu0 0
        %1923 = vmatprep.subr.bf16.mxu0 0
        %1924 = vmatpush1.bf16.msra.mxu0 0
        %1925 = vmatprep.subr.bf16.mxu0 0
        %1926 = vmatpush1.bf16.msra.mxu0 0
        %1927 = vmatprep.subr.bf16.mxu0 0
        %1928 = vmatpush1.bf16.msra.mxu0 0
        %1929 = vmatprep.subr.bf16.mxu0 0
        %1930 = vmatpush1.bf16.msra.mxu0 0
        %1931 = vmatprep.subr.bf16.mxu0 0
        %1932 = vmatpush1.bf16.msra.mxu0 0
        %1933 = vmatprep.subr.bf16.mxu0 0
        %1934 = vmatpush1.bf16.msra.mxu0 0
        %1935 = vmatprep.subr.bf16.mxu0 0
        %1936 = vmatpush1.bf16.msra.mxu0 0
        %1937 = vmatprep.mubr.bf16.mxu0 0
        %1938 = vmatmul.mubr.bf16.gmra.mrb[0].mxu0 %v1903
        %v1939 = vpop.f32.mrb[0].mxu0
        %v1940 = vadd.f32 0.0, %v1939
        %v1941 = vpop.f32.mrb[0].mxu0
        %v1942 = vpop.f32.mrb[0].mxu0
        %v1943 = vpop.f32.mrb[0].mxu0
        %1944 = vdwg.mxu0
        %v1945 = vsel %vm1847, %v1940, %v1845
        %v1946 = vsel %vm1171, 1, 0
        %vm1947 = vcmp.eq.s32.totalorder %v1946, 1
        %v1948 = vsel %vm1947, %v1538, 0.0
        %v1949 = vpack.c.bf16 %v1948, %v1948
        %1950 = vmatprep.subr.bf16.mxu0 0
        %1951 = vmatpush1.bf16.xpose.msra.mxu0 %v1539
        %1952 = vmatprep.subr.bf16.mxu0 0
        %1953 = vmatpush1.bf16.xpose.msra.mxu0 0
        %1954 = vmatprep.subr.bf16.mxu0 0
        %1955 = vmatpush1.bf16.xpose.msra.mxu0 0
        %1956 = vmatprep.subr.bf16.mxu0 0
        %1957 = vmatpush1.bf16.xpose.msra.mxu0 0
        %1958 = vmatprep.subr.bf16.mxu0 0
        %1959 = vmatpush1.bf16.xpose.msra.mxu0 0
        %1960 = vmatprep.subr.bf16.mxu0 0
        %1961 = vmatpush1.bf16.xpose.msra.mxu0 0
        %1962 = vmatprep.subr.bf16.mxu0 0
        %1963 = vmatpush1.bf16.xpose.msra.mxu0 0
        %1964 = vmatprep.subr.bf16.mxu0 0
        %1965 = vmatpush1.bf16.xpose.msra.mxu0 0
        %1966 = vmatprep.subr.bf16.mxu0 0
        %1967 = vmatpush1.bf16.xpose.msra.mxu0 0
        %1968 = vmatprep.subr.bf16.mxu0 0
        %1969 = vmatpush1.bf16.xpose.msra.mxu0 0
        %1970 = vmatprep.subr.bf16.mxu0 0
        %1971 = vmatpush1.bf16.xpose.msra.mxu0 0
        %1972 = vmatprep.subr.bf16.mxu0 0
        %1973 = vmatpush1.bf16.xpose.msra.mxu0 0
        %1974 = vmatprep.subr.bf16.mxu0 0
        %1975 = vmatpush1.bf16.xpose.msra.mxu0 0
        %1976 = vmatprep.subr.bf16.mxu0 0
        %1977 = vmatpush1.bf16.xpose.msra.mxu0 0
        %1978 = vmatprep.subr.bf16.mxu0 0
        %1979 = vmatpush1.bf16.xpose.msra.mxu0 0
        %1980 = vmatprep.subr.bf16.mxu0 0
        %1981 = vmatpush1.bf16.xpose.msra.mxu0 0
        %1982 = vmatprep.mubr.bf16.mxu0 0
        %1983 = vmatmul.mubr.bf16.gmra.mrb[0].mxu0 %v1949
        %v1984 = vpop.f32.mrb[0].mxu0
        %v1985 = vadd.f32 0.0, %v1984
        %v1986 = vpop.f32.mrb[0].mxu0
        %v1987 = vpop.f32.mrb[0].mxu0
        %v1988 = vpop.f32.mrb[0].mxu0
        %1989 = vdwg.mxu0
        %v1990 = vsel %vm1585, %v1985, -inf
        %1991 = vmax.xlane.f32.xlu0 %v1990
        %v1992 = vpop.xlane.xlu0 %1991
        %v1993 = vsub.f32 %v1985, %v1992
        %v1994 = vmul.f32 %v1993, 1.442695
        %v1995 = vpow.pop %v1994
        %v1996 = vsel %vm1585, %v1995, 0.0
        %1997 = vadd.xlane.f32.xlu0 %v1996
        %v1998 = vpop.xlane.xlu0 %1997
        %v1999 = vrcp.pop %v1998
        %v2000 = vmul.f32 %v1995, %v1999
        %v2001 = vpack.c.bf16 %v2000, %v2000
        %v2003 = vsel %vm1585, %v2001, 0
        %2005 = vmatprep.subr.bf16.mxu0 0
        %2006 = vmatpush1.bf16.msra.mxu0 %v1603
        %2007 = vmatprep.subr.bf16.mxu0 0
        %2008 = vmatpush1.bf16.msra.mxu0 0
        %2009 = vmatprep.subr.bf16.mxu0 0
        %2010 = vmatpush1.bf16.msra.mxu0 0
        %2011 = vmatprep.subr.bf16.mxu0 0
        %2012 = vmatpush1.bf16.msra.mxu0 0
        %2013 = vmatprep.subr.bf16.mxu0 0
        %2014 = vmatpush1.bf16.msra.mxu0 0
        %2015 = vmatprep.subr.bf16.mxu0 0
        %2016 = vmatpush1.bf16.msra.mxu0 0
        %2017 = vmatprep.subr.bf16.mxu0 0
        %2018 = vmatpush1.bf16.msra.mxu0 0
        %2019 = vmatprep.subr.bf16.mxu0 0
        %2020 = vmatpush1.bf16.msra.mxu0 0
        %2021 = vmatprep.subr.bf16.mxu0 0
        %2022 = vmatpush1.bf16.msra.mxu0 0
        %2023 = vmatprep.subr.bf16.mxu0 0
        %2024 = vmatpush1.bf16.msra.mxu0 0
        %2025 = vmatprep.subr.bf16.mxu0 0
        %2026 = vmatpush1.bf16.msra.mxu0 0
        %2027 = vmatprep.subr.bf16.mxu0 0
        %2028 = vmatpush1.bf16.msra.mxu0 0
        %2029 = vmatprep.subr.bf16.mxu0 0
        %2030 = vmatpush1.bf16.msra.mxu0 0
        %2031 = vmatprep.subr.bf16.mxu0 0
        %2032 = vmatpush1.bf16.msra.mxu0 0
        %2033 = vmatprep.subr.bf16.mxu0 0
        %2034 = vmatpush1.bf16.msra.mxu0 0
        %2035 = vmatprep.subr.bf16.mxu0 0
        %2036 = vmatpush1.bf16.msra.mxu0 0
        %2037 = vmatprep.mubr.bf16.mxu0 0
        %2038 = vmatmul.mubr.bf16.gmra.mrb[0].mxu0 %v2003
        %v2039 = vpop.f32.mrb[0].mxu0
        %v2040 = vadd.f32 0.0, %v2039
        %v2041 = vpop.f32.mrb[0].mxu0
        %v2042 = vpop.f32.mrb[0].mxu0
        %v2043 = vpop.f32.mrb[0].mxu0
        %2044 = vdwg.mxu0
        %v2045 = vsel %vm1947, %v2040, %v1945
        %v2046 = vsel %vm1174, 1, 0
        %vm2047 = vcmp.eq.s32.totalorder %v2046, 1
        %v2048 = vsel %vm2047, %v1538, 0.0
        %v2049 = vpack.c.bf16 %v2048, %v2048
        %2050 = vmatprep.subr.bf16.mxu0 0
        %2051 = vmatpush1.bf16.xpose.msra.mxu0 %v1539
        %2052 = vmatprep.subr.bf16.mxu0 0
        %2053 = vmatpush1.bf16.xpose.msra.mxu0 0
        %2054 = vmatprep.subr.bf16.mxu0 0
        %2055 = vmatpush1.bf16.xpose.msra.mxu0 0
        %2056 = vmatprep.subr.bf16.mxu0 0
        %2057 = vmatpush1.bf16.xpose.msra.mxu0 0
        %2058 = vmatprep.subr.bf16.mxu0 0
        %2059 = vmatpush1.bf16.xpose.msra.mxu0 0
        %2060 = vmatprep.subr.bf16.mxu0 0
        %2061 = vmatpush1.bf16.xpose.msra.mxu0 0
        %2062 = vmatprep.subr.bf16.mxu0 0
        %2063 = vmatpush1.bf16.xpose.msra.mxu0 0
        %2064 = vmatprep.subr.bf16.mxu0 0
        %2065 = vmatpush1.bf16.xpose.msra.mxu0 0
        %2066 = vmatprep.subr.bf16.mxu0 0
        %2067 = vmatpush1.bf16.xpose.msra.mxu0 0
        %2068 = vmatprep.subr.bf16.mxu0 0
        %2069 = vmatpush1.bf16.xpose.msra.mxu0 0
        %2070 = vmatprep.subr.bf16.mxu0 0
        %2071 = vmatpush1.bf16.xpose.msra.mxu0 0
        %2072 = vmatprep.subr.bf16.mxu0 0
        %2073 = vmatpush1.bf16.xpose.msra.mxu0 0
        %2074 = vmatprep.subr.bf16.mxu0 0
        %2075 = vmatpush1.bf16.xpose.msra.mxu0 0
        %2076 = vmatprep.subr.bf16.mxu0 0
        %2077 = vmatpush1.bf16.xpose.msra.mxu0 0
        %2078 = vmatprep.subr.bf16.mxu0 0
        %2079 = vmatpush1.bf16.xpose.msra.mxu0 0
        %2080 = vmatprep.subr.bf16.mxu0 0
        %2081 = vmatpush1.bf16.xpose.msra.mxu0 0
        %2082 = vmatprep.mubr.bf16.mxu0 0
        %2083 = vmatmul.mubr.bf16.gmra.mrb[0].mxu0 %v2049
        %v2084 = vpop.f32.mrb[0].mxu0
        %v2085 = vadd.f32 0.0, %v2084
        %v2086 = vpop.f32.mrb[0].mxu0
        %v2087 = vpop.f32.mrb[0].mxu0
        %v2088 = vpop.f32.mrb[0].mxu0
        %2089 = vdwg.mxu0
        %v2090 = vsel %vm1585, %v2085, -inf
        %2091 = vmax.xlane.f32.xlu0 %v2090
        %v2092 = vpop.xlane.xlu0 %2091
        %v2093 = vsub.f32 %v2085, %v2092
        %v2094 = vmul.f32 %v2093, 1.442695
        %v2095 = vpow.pop %v2094
        %v2096 = vsel %vm1585, %v2095, 0.0
        %2097 = vadd.xlane.f32.xlu0 %v2096
        %v2098 = vpop.xlane.xlu0 %2097
        %v2099 = vrcp.pop %v2098
        %v2100 = vmul.f32 %v2095, %v2099
        %v2101 = vpack.c.bf16 %v2100, %v2100
        %v2103 = vsel %vm1585, %v2101, 0
        %2105 = vmatprep.subr.bf16.mxu0 0
        %2106 = vmatpush1.bf16.msra.mxu0 %v1603
        %2107 = vmatprep.subr.bf16.mxu0 0
        %2108 = vmatpush1.bf16.msra.mxu0 0
        %2109 = vmatprep.subr.bf16.mxu0 0
        %2110 = vmatpush1.bf16.msra.mxu0 0
        %2111 = vmatprep.subr.bf16.mxu0 0
        %2112 = vmatpush1.bf16.msra.mxu0 0
        %2113 = vmatprep.subr.bf16.mxu0 0
        %2114 = vmatpush1.bf16.msra.mxu0 0
        %2115 = vmatprep.subr.bf16.mxu0 0
        %2116 = vmatpush1.bf16.msra.mxu0 0
        %2117 = vmatprep.subr.bf16.mxu0 0
        %2118 = vmatpush1.bf16.msra.mxu0 0
        %2119 = vmatprep.subr.bf16.mxu0 0
        %2120 = vmatpush1.bf16.msra.mxu0 0
        %2121 = vmatprep.subr.bf16.mxu0 0
        %2122 = vmatpush1.bf16.msra.mxu0 0
        %2123 = vmatprep.subr.bf16.mxu0 0
        %2124 = vmatpush1.bf16.msra.mxu0 0
        %2125 = vmatprep.subr.bf16.mxu0 0
        %2126 = vmatpush1.bf16.msra.mxu0 0
        %2127 = vmatprep.subr.bf16.mxu0 0
        %2128 = vmatpush1.bf16.msra.mxu0 0
        %2129 = vmatprep.subr.bf16.mxu0 0
        %2130 = vmatpush1.bf16.msra.mxu0 0
        %2131 = vmatprep.subr.bf16.mxu0 0
        %2132 = vmatpush1.bf16.msra.mxu0 0
        %2133 = vmatprep.subr.bf16.mxu0 0
        %2134 = vmatpush1.bf16.msra.mxu0 0
        %2135 = vmatprep.subr.bf16.mxu0 0
        %2136 = vmatpush1.bf16.msra.mxu0 0
        %2137 = vmatprep.mubr.bf16.mxu0 0
        %2138 = vmatmul.mubr.bf16.gmra.mrb[0].mxu0 %v2103
        %v2139 = vpop.f32.mrb[0].mxu0
        %v2140 = vadd.f32 0.0, %v2139
        %v2141 = vpop.f32.mrb[0].mxu0
        %v2142 = vpop.f32.mrb[0].mxu0
        %v2143 = vpop.f32.mrb[0].mxu0
        %2144 = vdwg.mxu0
        %v2145 = vsel %vm2047, %v2140, %v2045
        %v2146 = vsel %vm1177, 1, 0
        %vm2147 = vcmp.eq.s32.totalorder %v2146, 1
        %v2148 = vsel %vm2147, %v1538, 0.0
        %v2149 = vpack.c.bf16 %v2148, %v2148
        %2150 = vmatprep.subr.bf16.mxu0 0
        %2151 = vmatpush1.bf16.xpose.msra.mxu0 %v1539
        %2152 = vmatprep.subr.bf16.mxu0 0
        %2153 = vmatpush1.bf16.xpose.msra.mxu0 0
        %2154 = vmatprep.subr.bf16.mxu0 0
        %2155 = vmatpush1.bf16.xpose.msra.mxu0 0
        %2156 = vmatprep.subr.bf16.mxu0 0
        %2157 = vmatpush1.bf16.xpose.msra.mxu0 0
        %2158 = vmatprep.subr.bf16.mxu0 0
        %2159 = vmatpush1.bf16.xpose.msra.mxu0 0
        %2160 = vmatprep.subr.bf16.mxu0 0
        %2161 = vmatpush1.bf16.xpose.msra.mxu0 0
        %2162 = vmatprep.subr.bf16.mxu0 0
        %2163 = vmatpush1.bf16.xpose.msra.mxu0 0
        %2164 = vmatprep.subr.bf16.mxu0 0
        %2165 = vmatpush1.bf16.xpose.msra.mxu0 0
        %2166 = vmatprep.subr.bf16.mxu0 0
        %2167 = vmatpush1.bf16.xpose.msra.mxu0 0
        %2168 = vmatprep.subr.bf16.mxu0 0
        %2169 = vmatpush1.bf16.xpose.msra.mxu0 0
        %2170 = vmatprep.subr.bf16.mxu0 0
        %2171 = vmatpush1.bf16.xpose.msra.mxu0 0
        %2172 = vmatprep.subr.bf16.mxu0 0
        %2173 = vmatpush1.bf16.xpose.msra.mxu0 0
        %2174 = vmatprep.subr.bf16.mxu0 0
        %2175 = vmatpush1.bf16.xpose.msra.mxu0 0
        %2176 = vmatprep.subr.bf16.mxu0 0
        %2177 = vmatpush1.bf16.xpose.msra.mxu0 0
        %2178 = vmatprep.subr.bf16.mxu0 0
        %2179 = vmatpush1.bf16.xpose.msra.mxu0 0
        %2180 = vmatprep.subr.bf16.mxu0 0
        %2181 = vmatpush1.bf16.xpose.msra.mxu0 0
        %2182 = vmatprep.mubr.bf16.mxu0 0
        %2183 = vmatmul.mubr.bf16.gmra.mrb[0].mxu0 %v2149
        %v2184 = vpop.f32.mrb[0].mxu0
        %v2185 = vadd.f32 0.0, %v2184
        %v2186 = vpop.f32.mrb[0].mxu0
        %v2187 = vpop.f32.mrb[0].mxu0
        %v2188 = vpop.f32.mrb[0].mxu0
        %2189 = vdwg.mxu0
        %v2190 = vsel %vm1585, %v2185, -inf
        %2191 = vmax.xlane.f32.xlu0 %v2190
        %v2192 = vpop.xlane.xlu0 %2191
        %v2193 = vsub.f32 %v2185, %v2192
        %v2194 = vmul.f32 %v2193, 1.442695
        %v2195 = vpow.pop %v2194
        %v2196 = vsel %vm1585, %v2195, 0.0
        %2197 = vadd.xlane.f32.xlu0 %v2196
        %v2198 = vpop.xlane.xlu0 %2197
        %v2199 = vrcp.pop %v2198
        %v2200 = vmul.f32 %v2195, %v2199
        %v2201 = vpack.c.bf16 %v2200, %v2200
        %v2203 = vsel %vm1585, %v2201, 0
        %2205 = vmatprep.subr.bf16.mxu0 0
        %2206 = vmatpush1.bf16.msra.mxu0 %v1603
        %2207 = vmatprep.subr.bf16.mxu0 0
        %2208 = vmatpush1.bf16.msra.mxu0 0
        %2209 = vmatprep.subr.bf16.mxu0 0
        %2210 = vmatpush1.bf16.msra.mxu0 0
        %2211 = vmatprep.subr.bf16.mxu0 0
        %2212 = vmatpush1.bf16.msra.mxu0 0
        %2213 = vmatprep.subr.bf16.mxu0 0
        %2214 = vmatpush1.bf16.msra.mxu0 0
        %2215 = vmatprep.subr.bf16.mxu0 0
        %2216 = vmatpush1.bf16.msra.mxu0 0
        %2217 = vmatprep.subr.bf16.mxu0 0
        %2218 = vmatpush1.bf16.msra.mxu0 0
        %2219 = vmatprep.subr.bf16.mxu0 0
        %2220 = vmatpush1.bf16.msra.mxu0 0
        %2221 = vmatprep.subr.bf16.mxu0 0
        %2222 = vmatpush1.bf16.msra.mxu0 0
        %2223 = vmatprep.subr.bf16.mxu0 0
        %2224 = vmatpush1.bf16.msra.mxu0 0
        %2225 = vmatprep.subr.bf16.mxu0 0
        %2226 = vmatpush1.bf16.msra.mxu0 0
        %2227 = vmatprep.subr.bf16.mxu0 0
        %2228 = vmatpush1.bf16.msra.mxu0 0
        %2229 = vmatprep.subr.bf16.mxu0 0
        %2230 = vmatpush1.bf16.msra.mxu0 0
        %2231 = vmatprep.subr.bf16.mxu0 0
        %2232 = vmatpush1.bf16.msra.mxu0 0
        %2233 = vmatprep.subr.bf16.mxu0 0
        %2234 = vmatpush1.bf16.msra.mxu0 0
        %2235 = vmatprep.subr.bf16.mxu0 0
        %2236 = vmatpush1.bf16.msra.mxu0 0
        %2237 = vmatprep.mubr.bf16.mxu0 0
        %2238 = vmatmul.mubr.bf16.gmra.mrb[0].mxu0 %v2203
        %v2239 = vpop.f32.mrb[0].mxu0
        %v2240 = vadd.f32 0.0, %v2239
        %v2241 = vpop.f32.mrb[0].mxu0
        %v2242 = vpop.f32.mrb[0].mxu0
        %v2243 = vpop.f32.mrb[0].mxu0
        %2244 = vdwg.mxu0
        %v2245 = vsel %vm2147, %v2240, %v2145
        %v2246 = vsel %vm1180, 1, 0
        %vm2247 = vcmp.eq.s32.totalorder %v2246, 1
        %v2248 = vsel %vm2247, %v1538, 0.0
        %v2249 = vpack.c.bf16 %v2248, %v2248
        %2250 = vmatprep.subr.bf16.mxu0 0
        %2251 = vmatpush1.bf16.xpose.msra.mxu0 %v1539
        %2252 = vmatprep.subr.bf16.mxu0 0
        %2253 = vmatpush1.bf16.xpose.msra.mxu0 0
        %2254 = vmatprep.subr.bf16.mxu0 0
        %2255 = vmatpush1.bf16.xpose.msra.mxu0 0
        %2256 = vmatprep.subr.bf16.mxu0 0
        %2257 = vmatpush1.bf16.xpose.msra.mxu0 0
        %2258 = vmatprep.subr.bf16.mxu0 0
        %2259 = vmatpush1.bf16.xpose.msra.mxu0 0
        %2260 = vmatprep.subr.bf16.mxu0 0
        %2261 = vmatpush1.bf16.xpose.msra.mxu0 0
        %2262 = vmatprep.subr.bf16.mxu0 0
        %2263 = vmatpush1.bf16.xpose.msra.mxu0 0
        %2264 = vmatprep.subr.bf16.mxu0 0
        %2265 = vmatpush1.bf16.xpose.msra.mxu0 0
        %2266 = vmatprep.subr.bf16.mxu0 0
        %2267 = vmatpush1.bf16.xpose.msra.mxu0 0
        %2268 = vmatprep.subr.bf16.mxu0 0
        %2269 = vmatpush1.bf16.xpose.msra.mxu0 0
        %2270 = vmatprep.subr.bf16.mxu0 0
        %2271 = vmatpush1.bf16.xpose.msra.mxu0 0
        %2272 = vmatprep.subr.bf16.mxu0 0
        %2273 = vmatpush1.bf16.xpose.msra.mxu0 0
        %2274 = vmatprep.subr.bf16.mxu0 0
        %2275 = vmatpush1.bf16.xpose.msra.mxu0 0
        %2276 = vmatprep.subr.bf16.mxu0 0
        %2277 = vmatpush1.bf16.xpose.msra.mxu0 0
        %2278 = vmatprep.subr.bf16.mxu0 0
        %2279 = vmatpush1.bf16.xpose.msra.mxu0 0
        %2280 = vmatprep.subr.bf16.mxu0 0
        %2281 = vmatpush1.bf16.xpose.msra.mxu0 0
        %2282 = vmatprep.mubr.bf16.mxu0 0
        %2283 = vmatmul.mubr.bf16.gmra.mrb[0].mxu0 %v2249
        %v2284 = vpop.f32.mrb[0].mxu0
        %v2285 = vadd.f32 0.0, %v2284
        %v2286 = vpop.f32.mrb[0].mxu0
        %v2287 = vpop.f32.mrb[0].mxu0
        %v2288 = vpop.f32.mrb[0].mxu0
        %2289 = vdwg.mxu0
        %v2290 = vsel %vm1585, %v2285, -inf
        %2291 = vmax.xlane.f32.xlu0 %v2290
        %v2292 = vpop.xlane.xlu0 %2291
        %v2293 = vsub.f32 %v2285, %v2292
        %v2294 = vmul.f32 %v2293, 1.442695
        %v2295 = vpow.pop %v2294
        %v2296 = vsel %vm1585, %v2295, 0.0
        %2297 = vadd.xlane.f32.xlu0 %v2296
        %v2298 = vpop.xlane.xlu0 %2297
        %v2299 = vrcp.pop %v2298
        %v2300 = vmul.f32 %v2295, %v2299
        %v2301 = vpack.c.bf16 %v2300, %v2300
        %v2303 = vsel %vm1585, %v2301, 0
        %2305 = vmatprep.subr.bf16.mxu0 0
        %2306 = vmatpush1.bf16.msra.mxu0 %v1603
        %2307 = vmatprep.subr.bf16.mxu0 0
        %2308 = vmatpush1.bf16.msra.mxu0 0
        %2309 = vmatprep.subr.bf16.mxu0 0
        %2310 = vmatpush1.bf16.msra.mxu0 0
        %2311 = vmatprep.subr.bf16.mxu0 0
        %2312 = vmatpush1.bf16.msra.mxu0 0
        %2313 = vmatprep.subr.bf16.mxu0 0
        %2314 = vmatpush1.bf16.msra.mxu0 0
        %2315 = vmatprep.subr.bf16.mxu0 0
        %2316 = vmatpush1.bf16.msra.mxu0 0
        %2317 = vmatprep.subr.bf16.mxu0 0
        %2318 = vmatpush1.bf16.msra.mxu0 0
        %2319 = vmatprep.subr.bf16.mxu0 0
        %2320 = vmatpush1.bf16.msra.mxu0 0
        %2321 = vmatprep.subr.bf16.mxu0 0
        %2322 = vmatpush1.bf16.msra.mxu0 0
        %2323 = vmatprep.subr.bf16.mxu0 0
        %2324 = vmatpush1.bf16.msra.mxu0 0
        %2325 = vmatprep.subr.bf16.mxu0 0
        %2326 = vmatpush1.bf16.msra.mxu0 0
        %2327 = vmatprep.subr.bf16.mxu0 0
        %2328 = vmatpush1.bf16.msra.mxu0 0
        %2329 = vmatprep.subr.bf16.mxu0 0
        %2330 = vmatpush1.bf16.msra.mxu0 0
        %2331 = vmatprep.subr.bf16.mxu0 0
        %2332 = vmatpush1.bf16.msra.mxu0 0
        %2333 = vmatprep.subr.bf16.mxu0 0
        %2334 = vmatpush1.bf16.msra.mxu0 0
        %2335 = vmatprep.subr.bf16.mxu0 0
        %2336 = vmatpush1.bf16.msra.mxu0 0
        %2337 = vmatprep.mubr.bf16.mxu0 0
        %2338 = vmatmul.mubr.bf16.gmra.mrb[0].mxu0 %v2303
        %v2339 = vpop.f32.mrb[0].mxu0
        %v2340 = vadd.f32 0.0, %v2339
        %v2341 = vpop.f32.mrb[0].mxu0
        %v2342 = vpop.f32.mrb[0].mxu0
        %v2343 = vpop.f32.mrb[0].mxu0
        %2344 = vdwg.mxu0
        %v2345 = vsel %vm2247, %v2340, %v2245
        %v2346 = vmul.f32 %v1325, 0.25
        %v2347 = vpack.c.bf16 %v1430, %v1430
        %v2348 = vpack.c.bf16 %v1535, %v1535
        %v2349 = vsel %vm1542, %v2346, 0.0
        %v2350 = vpack.c.bf16 %v2349, %v2349
        %2351 = vmatprep.subr.bf16.mxu0 0
        %2352 = vmatpush1.bf16.xpose.msra.mxu0 %v2347
        %2353 = vmatprep.subr.bf16.mxu0 0
        %2354 = vmatpush1.bf16.xpose.msra.mxu0 0
        %2355 = vmatprep.subr.bf16.mxu0 0
        %2356 = vmatpush1.bf16.xpose.msra.mxu0 0
        %2357 = vmatprep.subr.bf16.mxu0 0
        %2358 = vmatpush1.bf16.xpose.msra.mxu0 0
        %2359 = vmatprep.subr.bf16.mxu0 0
        %2360 = vmatpush1.bf16.xpose.msra.mxu0 0
        %2361 = vmatprep.subr.bf16.mxu0 0
        %2362 = vmatpush1.bf16.xpose.msra.mxu0 0
        %2363 = vmatprep.subr.bf16.mxu0 0
        %2364 = vmatpush1.bf16.xpose.msra.mxu0 0
        %2365 = vmatprep.subr.bf16.mxu0 0
        %2366 = vmatpush1.bf16.xpose.msra.mxu0 0
        %2367 = vmatprep.subr.bf16.mxu0 0
        %2368 = vmatpush1.bf16.xpose.msra.mxu0 0
        %2369 = vmatprep.subr.bf16.mxu0 0
        %2370 = vmatpush1.bf16.xpose.msra.mxu0 0
        %2371 = vmatprep.subr.bf16.mxu0 0
        %2372 = vmatpush1.bf16.xpose.msra.mxu0 0
        %2373 = vmatprep.subr.bf16.mxu0 0
        %2374 = vmatpush1.bf16.xpose.msra.mxu0 0
        %2375 = vmatprep.subr.bf16.mxu0 0
        %2376 = vmatpush1.bf16.xpose.msra.mxu0 0
        %2377 = vmatprep.subr.bf16.mxu0 0
        %2378 = vmatpush1.bf16.xpose.msra.mxu0 0
        %2379 = vmatprep.subr.bf16.mxu0 0
        %2380 = vmatpush1.bf16.xpose.msra.mxu0 0
        %2381 = vmatprep.subr.bf16.mxu0 0
        %2382 = vmatpush1.bf16.xpose.msra.mxu0 0
        %2383 = vmatprep.mubr.bf16.mxu0 0
        %2384 = vmatmul.mubr.bf16.gmra.mrb[0].mxu0 %v2350
        %v2385 = vpop.f32.mrb[0].mxu0
        %v2386 = vadd.f32 0.0, %v2385
        %v2387 = vpop.f32.mrb[0].mxu0
        %v2388 = vpop.f32.mrb[0].mxu0
        %v2389 = vpop.f32.mrb[0].mxu0
        %2390 = vdwg.mxu0
        %v2391 = vsel %vm1585, %v2386, -inf
        %2392 = vmax.xlane.f32.xlu0 %v2391
        %v2393 = vpop.xlane.xlu0 %2392
        %v2394 = vsub.f32 %v2386, %v2393
        %v2395 = vmul.f32 %v2394, 1.442695
        %v2396 = vpow.pop %v2395
        %v2397 = vsel %vm1585, %v2396, 0.0
        %2398 = vadd.xlane.f32.xlu0 %v2397
        %v2399 = vpop.xlane.xlu0 %2398
        %v2400 = vrcp.pop %v2399
        %v2401 = vmul.f32 %v2396, %v2400
        %v2402 = vpack.c.bf16 %v2401, %v2401
        %v2404 = vsel %vm1585, %v2402, 0
        %v2407 = vsel %vm1601, %v2348, 0
        %2409 = vmatprep.subr.bf16.mxu0 0
        %2410 = vmatpush1.bf16.msra.mxu0 %v2407
        %2411 = vmatprep.subr.bf16.mxu0 0
        %2412 = vmatpush1.bf16.msra.mxu0 0
        %2413 = vmatprep.subr.bf16.mxu0 0
        %2414 = vmatpush1.bf16.msra.mxu0 0
        %2415 = vmatprep.subr.bf16.mxu0 0
        %2416 = vmatpush1.bf16.msra.mxu0 0
        %2417 = vmatprep.subr.bf16.mxu0 0
        %2418 = vmatpush1.bf16.msra.mxu0 0
        %2419 = vmatprep.subr.bf16.mxu0 0
        %2420 = vmatpush1.bf16.msra.mxu0 0
        %2421 = vmatprep.subr.bf16.mxu0 0
        %2422 = vmatpush1.bf16.msra.mxu0 0
        %2423 = vmatprep.subr.bf16.mxu0 0
        %2424 = vmatpush1.bf16.msra.mxu0 0
        %2425 = vmatprep.subr.bf16.mxu0 0
        %2426 = vmatpush1.bf16.msra.mxu0 0
        %2427 = vmatprep.subr.bf16.mxu0 0
        %2428 = vmatpush1.bf16.msra.mxu0 0
        %2429 = vmatprep.subr.bf16.mxu0 0
        %2430 = vmatpush1.bf16.msra.mxu0 0
        %2431 = vmatprep.subr.bf16.mxu0 0
        %2432 = vmatpush1.bf16.msra.mxu0 0
        %2433 = vmatprep.subr.bf16.mxu0 0
        %2434 = vmatpush1.bf16.msra.mxu0 0
        %2435 = vmatprep.subr.bf16.mxu0 0
        %2436 = vmatpush1.bf16.msra.mxu0 0
        %2437 = vmatprep.subr.bf16.mxu0 0
        %2438 = vmatpush1.bf16.msra.mxu0 0
        %2439 = vmatprep.subr.bf16.mxu0 0
        %2440 = vmatpush1.bf16.msra.mxu0 0
        %2441 = vmatprep.mubr.bf16.mxu0 0
        %2442 = vmatmul.mubr.bf16.gmra.mrb[0].mxu0 %v2404
        %v2443 = vpop.f32.mrb[0].mxu0
        %v2444 = vadd.f32 0.0, %v2443
        %v2445 = vpop.f32.mrb[0].mxu0
        %v2446 = vpop.f32.mrb[0].mxu0
        %v2447 = vpop.f32.mrb[0].mxu0
        %2448 = vdwg.mxu0
        %v2449 = vsel %vm1542, %v2444, 0.0
        %v2450 = vsel %vm1647, %v2346, 0.0
        %v2451 = vpack.c.bf16 %v2450, %v2450
        %2452 = vmatprep.subr.bf16.mxu0 0
        %2453 = vmatpush1.bf16.xpose.msra.mxu0 %v2347
        %2454 = vmatprep.subr.bf16.mxu0 0
        %2455 = vmatpush1.bf16.xpose.msra.mxu0 0
        %2456 = vmatprep.subr.bf16.mxu0 0
        %2457 = vmatpush1.bf16.xpose.msra.mxu0 0
        %2458 = vmatprep.subr.bf16.mxu0 0
        %2459 = vmatpush1.bf16.xpose.msra.mxu0 0
        %2460 = vmatprep.subr.bf16.mxu0 0
        %2461 = vmatpush1.bf16.xpose.msra.mxu0 0
        %2462 = vmatprep.subr.bf16.mxu0 0
        %2463 = vmatpush1.bf16.xpose.msra.mxu0 0
        %2464 = vmatprep.subr.bf16.mxu0 0
        %2465 = vmatpush1.bf16.xpose.msra.mxu0 0
        %2466 = vmatprep.subr.bf16.mxu0 0
        %2467 = vmatpush1.bf16.xpose.msra.mxu0 0
        %2468 = vmatprep.subr.bf16.mxu0 0
        %2469 = vmatpush1.bf16.xpose.msra.mxu0 0
        %2470 = vmatprep.subr.bf16.mxu0 0
        %2471 = vmatpush1.bf16.xpose.msra.mxu0 0
        %2472 = vmatprep.subr.bf16.mxu0 0
        %2473 = vmatpush1.bf16.xpose.msra.mxu0 0
        %2474 = vmatprep.subr.bf16.mxu0 0
        %2475 = vmatpush1.bf16.xpose.msra.mxu0 0
        %2476 = vmatprep.subr.bf16.mxu0 0
        %2477 = vmatpush1.bf16.xpose.msra.mxu0 0
        %2478 = vmatprep.subr.bf16.mxu0 0
        %2479 = vmatpush1.bf16.xpose.msra.mxu0 0
        %2480 = vmatprep.subr.bf16.mxu0 0
        %2481 = vmatpush1.bf16.xpose.msra.mxu0 0
        %2482 = vmatprep.subr.bf16.mxu0 0
        %2483 = vmatpush1.bf16.xpose.msra.mxu0 0
        %2484 = vmatprep.mubr.bf16.mxu0 0
        %2485 = vmatmul.mubr.bf16.gmra.mrb[0].mxu0 %v2451
        %v2486 = vpop.f32.mrb[0].mxu0
        %v2487 = vadd.f32 0.0, %v2486
        %v2488 = vpop.f32.mrb[0].mxu0
        %v2489 = vpop.f32.mrb[0].mxu0
        %v2490 = vpop.f32.mrb[0].mxu0
        %2491 = vdwg.mxu0
        %v2492 = vsel %vm1585, %v2487, -inf
        %2493 = vmax.xlane.f32.xlu0 %v2492
        %v2494 = vpop.xlane.xlu0 %2493
        %v2495 = vsub.f32 %v2487, %v2494
        %v2496 = vmul.f32 %v2495, 1.442695
        %v2497 = vpow.pop %v2496
        %v2498 = vsel %vm1585, %v2497, 0.0
        %2499 = vadd.xlane.f32.xlu0 %v2498
        %v2500 = vpop.xlane.xlu0 %2499
        %v2501 = vrcp.pop %v2500
        %v2502 = vmul.f32 %v2497, %v2501
        %v2503 = vpack.c.bf16 %v2502, %v2502
        %v2505 = vsel %vm1585, %v2503, 0
        %2507 = vmatprep.subr.bf16.mxu0 0
        %2508 = vmatpush1.bf16.msra.mxu0 %v2407
        %2509 = vmatprep.subr.bf16.mxu0 0
        %2510 = vmatpush1.bf16.msra.mxu0 0
        %2511 = vmatprep.subr.bf16.mxu0 0
        %2512 = vmatpush1.bf16.msra.mxu0 0
        %2513 = vmatprep.subr.bf16.mxu0 0
        %2514 = vmatpush1.bf16.msra.mxu0 0
        %2515 = vmatprep.subr.bf16.mxu0 0
        %2516 = vmatpush1.bf16.msra.mxu0 0
        %2517 = vmatprep.subr.bf16.mxu0 0
        %2518 = vmatpush1.bf16.msra.mxu0 0
        %2519 = vmatprep.subr.bf16.mxu0 0
        %2520 = vmatpush1.bf16.msra.mxu0 0
        %2521 = vmatprep.subr.bf16.mxu0 0
        %2522 = vmatpush1.bf16.msra.mxu0 0
        %2523 = vmatprep.subr.bf16.mxu0 0
        %2524 = vmatpush1.bf16.msra.mxu0 0
        %2525 = vmatprep.subr.bf16.mxu0 0
        %2526 = vmatpush1.bf16.msra.mxu0 0
        %2527 = vmatprep.subr.bf16.mxu0 0
        %2528 = vmatpush1.bf16.msra.mxu0 0
        %2529 = vmatprep.subr.bf16.mxu0 0
        %2530 = vmatpush1.bf16.msra.mxu0 0
        %2531 = vmatprep.subr.bf16.mxu0 0
        %2532 = vmatpush1.bf16.msra.mxu0 0
        %2533 = vmatprep.subr.bf16.mxu0 0
        %2534 = vmatpush1.bf16.msra.mxu0 0
        %2535 = vmatprep.subr.bf16.mxu0 0
        %2536 = vmatpush1.bf16.msra.mxu0 0
        %2537 = vmatprep.subr.bf16.mxu0 0
        %2538 = vmatpush1.bf16.msra.mxu0 0
        %2539 = vmatprep.mubr.bf16.mxu0 0
        %2540 = vmatmul.mubr.bf16.gmra.mrb[0].mxu0 %v2505
        %v2541 = vpop.f32.mrb[0].mxu0
        %v2542 = vadd.f32 0.0, %v2541
        %v2543 = vpop.f32.mrb[0].mxu0
        %v2544 = vpop.f32.mrb[0].mxu0
        %v2545 = vpop.f32.mrb[0].mxu0
        %2546 = vdwg.mxu0
        %v2547 = vsel %vm1647, %v2542, %v2449
        %v2548 = vsel %vm1747, %v2346, 0.0
        %v2549 = vpack.c.bf16 %v2548, %v2548
        %2550 = vmatprep.subr.bf16.mxu0 0
        %2551 = vmatpush1.bf16.xpose.msra.mxu0 %v2347
        %2552 = vmatprep.subr.bf16.mxu0 0
        %2553 = vmatpush1.bf16.xpose.msra.mxu0 0
        %2554 = vmatprep.subr.bf16.mxu0 0
        %2555 = vmatpush1.bf16.xpose.msra.mxu0 0
        %2556 = vmatprep.subr.bf16.mxu0 0
        %2557 = vmatpush1.bf16.xpose.msra.mxu0 0
        %2558 = vmatprep.subr.bf16.mxu0 0
        %2559 = vmatpush1.bf16.xpose.msra.mxu0 0
        %2560 = vmatprep.subr.bf16.mxu0 0
        %2561 = vmatpush1.bf16.xpose.msra.mxu0 0
        %2562 = vmatprep.subr.bf16.mxu0 0
        %2563 = vmatpush1.bf16.xpose.msra.mxu0 0
        %2564 = vmatprep.subr.bf16.mxu0 0
        %2565 = vmatpush1.bf16.xpose.msra.mxu0 0
        %2566 = vmatprep.subr.bf16.mxu0 0
        %2567 = vmatpush1.bf16.xpose.msra.mxu0 0
        %2568 = vmatprep.subr.bf16.mxu0 0
        %2569 = vmatpush1.bf16.xpose.msra.mxu0 0
        %2570 = vmatprep.subr.bf16.mxu0 0
        %2571 = vmatpush1.bf16.xpose.msra.mxu0 0
        %2572 = vmatprep.subr.bf16.mxu0 0
        %2573 = vmatpush1.bf16.xpose.msra.mxu0 0
        %2574 = vmatprep.subr.bf16.mxu0 0
        %2575 = vmatpush1.bf16.xpose.msra.mxu0 0
        %2576 = vmatprep.subr.bf16.mxu0 0
        %2577 = vmatpush1.bf16.xpose.msra.mxu0 0
        %2578 = vmatprep.subr.bf16.mxu0 0
        %2579 = vmatpush1.bf16.xpose.msra.mxu0 0
        %2580 = vmatprep.subr.bf16.mxu0 0
        %2581 = vmatpush1.bf16.xpose.msra.mxu0 0
        %2582 = vmatprep.mubr.bf16.mxu0 0
        %2583 = vmatmul.mubr.bf16.gmra.mrb[0].mxu0 %v2549
        %v2584 = vpop.f32.mrb[0].mxu0
        %v2585 = vadd.f32 0.0, %v2584
        %v2586 = vpop.f32.mrb[0].mxu0
        %v2587 = vpop.f32.mrb[0].mxu0
        %v2588 = vpop.f32.mrb[0].mxu0
        %2589 = vdwg.mxu0
        %v2590 = vsel %vm1585, %v2585, -inf
        %2591 = vmax.xlane.f32.xlu0 %v2590
        %v2592 = vpop.xlane.xlu0 %2591
        %v2593 = vsub.f32 %v2585, %v2592
        %v2594 = vmul.f32 %v2593, 1.442695
        %v2595 = vpow.pop %v2594
        %v2596 = vsel %vm1585, %v2595, 0.0
        %2597 = vadd.xlane.f32.xlu0 %v2596
        %v2598 = vpop.xlane.xlu0 %2597
        %v2599 = vrcp.pop %v2598
        %v2600 = vmul.f32 %v2595, %v2599
        %v2601 = vpack.c.bf16 %v2600, %v2600
        %v2603 = vsel %vm1585, %v2601, 0
        %2605 = vmatprep.subr.bf16.mxu0 0
        %2606 = vmatpush1.bf16.msra.mxu0 %v2407
        %2607 = vmatprep.subr.bf16.mxu0 0
        %2608 = vmatpush1.bf16.msra.mxu0 0
        %2609 = vmatprep.subr.bf16.mxu0 0
        %2610 = vmatpush1.bf16.msra.mxu0 0
        %2611 = vmatprep.subr.bf16.mxu0 0
        %2612 = vmatpush1.bf16.msra.mxu0 0
        %2613 = vmatprep.subr.bf16.mxu0 0
        %2614 = vmatpush1.bf16.msra.mxu0 0
        %2615 = vmatprep.subr.bf16.mxu0 0
        %2616 = vmatpush1.bf16.msra.mxu0 0
        %2617 = vmatprep.subr.bf16.mxu0 0
        %2618 = vmatpush1.bf16.msra.mxu0 0
        %2619 = vmatprep.subr.bf16.mxu0 0
        %2620 = vmatpush1.bf16.msra.mxu0 0
        %2621 = vmatprep.subr.bf16.mxu0 0
        %2622 = vmatpush1.bf16.msra.mxu0 0
        %2623 = vmatprep.subr.bf16.mxu0 0
        %2624 = vmatpush1.bf16.msra.mxu0 0
        %2625 = vmatprep.subr.bf16.mxu0 0
        %2626 = vmatpush1.bf16.msra.mxu0 0
        %2627 = vmatprep.subr.bf16.mxu0 0
        %2628 = vmatpush1.bf16.msra.mxu0 0
        %2629 = vmatprep.subr.bf16.mxu0 0
        %2630 = vmatpush1.bf16.msra.mxu0 0
        %2631 = vmatprep.subr.bf16.mxu0 0
        %2632 = vmatpush1.bf16.msra.mxu0 0
        %2633 = vmatprep.subr.bf16.mxu0 0
        %2634 = vmatpush1.bf16.msra.mxu0 0
        %2635 = vmatprep.subr.bf16.mxu0 0
        %2636 = vmatpush1.bf16.msra.mxu0 0
        %2637 = vmatprep.mubr.bf16.mxu0 0
        %2638 = vmatmul.mubr.bf16.gmra.mrb[0].mxu0 %v2603
        %v2639 = vpop.f32.mrb[0].mxu0
        %v2640 = vadd.f32 0.0, %v2639
        %v2641 = vpop.f32.mrb[0].mxu0
        %v2642 = vpop.f32.mrb[0].mxu0
        %v2643 = vpop.f32.mrb[0].mxu0
        %2644 = vdwg.mxu0
        %v2645 = vsel %vm1747, %v2640, %v2547
        %v2646 = vsel %vm1847, %v2346, 0.0
        %v2647 = vpack.c.bf16 %v2646, %v2646
        %2648 = vmatprep.subr.bf16.mxu0 0
        %2649 = vmatpush1.bf16.xpose.msra.mxu0 %v2347
        %2650 = vmatprep.subr.bf16.mxu0 0
        %2651 = vmatpush1.bf16.xpose.msra.mxu0 0
        %2652 = vmatprep.subr.bf16.mxu0 0
        %2653 = vmatpush1.bf16.xpose.msra.mxu0 0
        %2654 = vmatprep.subr.bf16.mxu0 0
        %2655 = vmatpush1.bf16.xpose.msra.mxu0 0
        %2656 = vmatprep.subr.bf16.mxu0 0
        %2657 = vmatpush1.bf16.xpose.msra.mxu0 0
        %2658 = vmatprep.subr.bf16.mxu0 0
        %2659 = vmatpush1.bf16.xpose.msra.mxu0 0
        %2660 = vmatprep.subr.bf16.mxu0 0
        %2661 = vmatpush1.bf16.xpose.msra.mxu0 0
        %2662 = vmatprep.subr.bf16.mxu0 0
        %2663 = vmatpush1.bf16.xpose.msra.mxu0 0
        %2664 = vmatprep.subr.bf16.mxu0 0
        %2665 = vmatpush1.bf16.xpose.msra.mxu0 0
        %2666 = vmatprep.subr.bf16.mxu0 0
        %2667 = vmatpush1.bf16.xpose.msra.mxu0 0
        %2668 = vmatprep.subr.bf16.mxu0 0
        %2669 = vmatpush1.bf16.xpose.msra.mxu0 0
        %2670 = vmatprep.subr.bf16.mxu0 0
        %2671 = vmatpush1.bf16.xpose.msra.mxu0 0
        %2672 = vmatprep.subr.bf16.mxu0 0
        %2673 = vmatpush1.bf16.xpose.msra.mxu0 0
        %2674 = vmatprep.subr.bf16.mxu0 0
        %2675 = vmatpush1.bf16.xpose.msra.mxu0 0
        %2676 = vmatprep.subr.bf16.mxu0 0
        %2677 = vmatpush1.bf16.xpose.msra.mxu0 0
        %2678 = vmatprep.subr.bf16.mxu0 0
        %2679 = vmatpush1.bf16.xpose.msra.mxu0 0
        %2680 = vmatprep.mubr.bf16.mxu0 0
        %2681 = vmatmul.mubr.bf16.gmra.mrb[0].mxu0 %v2647
        %v2682 = vpop.f32.mrb[0].mxu0
        %v2683 = vadd.f32 0.0, %v2682
        %v2684 = vpop.f32.mrb[0].mxu0
        %v2685 = vpop.f32.mrb[0].mxu0
        %v2686 = vpop.f32.mrb[0].mxu0
        %2687 = vdwg.mxu0
        %v2688 = vsel %vm1585, %v2683, -inf
        %2689 = vmax.xlane.f32.xlu0 %v2688
        %v2690 = vpop.xlane.xlu0 %2689
        %v2691 = vsub.f32 %v2683, %v2690
        %v2692 = vmul.f32 %v2691, 1.442695
        %v2693 = vpow.pop %v2692
        %v2694 = vsel %vm1585, %v2693, 0.0
        %2695 = vadd.xlane.f32.xlu0 %v2694
        %v2696 = vpop.xlane.xlu0 %2695
        %v2697 = vrcp.pop %v2696
        %v2698 = vmul.f32 %v2693, %v2697
        %v2699 = vpack.c.bf16 %v2698, %v2698
        %v2701 = vsel %vm1585, %v2699, 0
        %2703 = vmatprep.subr.bf16.mxu0 0
        %2704 = vmatpush1.bf16.msra.mxu0 %v2407
        %2705 = vmatprep.subr.bf16.mxu0 0
        %2706 = vmatpush1.bf16.msra.mxu0 0
        %2707 = vmatprep.subr.bf16.mxu0 0
        %2708 = vmatpush1.bf16.msra.mxu0 0
        %2709 = vmatprep.subr.bf16.mxu0 0
        %2710 = vmatpush1.bf16.msra.mxu0 0
        %2711 = vmatprep.subr.bf16.mxu0 0
        %2712 = vmatpush1.bf16.msra.mxu0 0
        %2713 = vmatprep.subr.bf16.mxu0 0
        %2714 = vmatpush1.bf16.msra.mxu0 0
        %2715 = vmatprep.subr.bf16.mxu0 0
        %2716 = vmatpush1.bf16.msra.mxu0 0
        %2717 = vmatprep.subr.bf16.mxu0 0
        %2718 = vmatpush1.bf16.msra.mxu0 0
        %2719 = vmatprep.subr.bf16.mxu0 0
        %2720 = vmatpush1.bf16.msra.mxu0 0
        %2721 = vmatprep.subr.bf16.mxu0 0
        %2722 = vmatpush1.bf16.msra.mxu0 0
        %2723 = vmatprep.subr.bf16.mxu0 0
        %2724 = vmatpush1.bf16.msra.mxu0 0
        %2725 = vmatprep.subr.bf16.mxu0 0
        %2726 = vmatpush1.bf16.msra.mxu0 0
        %2727 = vmatprep.subr.bf16.mxu0 0
        %2728 = vmatpush1.bf16.msra.mxu0 0
        %2729 = vmatprep.subr.bf16.mxu0 0
        %2730 = vmatpush1.bf16.msra.mxu0 0
        %2731 = vmatprep.subr.bf16.mxu0 0
        %2732 = vmatpush1.bf16.msra.mxu0 0
        %2733 = vmatprep.subr.bf16.mxu0 0
        %2734 = vmatpush1.bf16.msra.mxu0 0
        %2735 = vmatprep.mubr.bf16.mxu0 0
        %2736 = vmatmul.mubr.bf16.gmra.mrb[0].mxu0 %v2701
        %v2737 = vpop.f32.mrb[0].mxu0
        %v2738 = vadd.f32 0.0, %v2737
        %v2739 = vpop.f32.mrb[0].mxu0
        %v2740 = vpop.f32.mrb[0].mxu0
        %v2741 = vpop.f32.mrb[0].mxu0
        %2742 = vdwg.mxu0
        %v2743 = vsel %vm1847, %v2738, %v2645
        %v2744 = vsel %vm1947, %v2346, 0.0
        %v2745 = vpack.c.bf16 %v2744, %v2744
        %2746 = vmatprep.subr.bf16.mxu0 0
        %2747 = vmatpush1.bf16.xpose.msra.mxu0 %v2347
        %2748 = vmatprep.subr.bf16.mxu0 0
        %2749 = vmatpush1.bf16.xpose.msra.mxu0 0
        %2750 = vmatprep.subr.bf16.mxu0 0
        %2751 = vmatpush1.bf16.xpose.msra.mxu0 0
        %2752 = vmatprep.subr.bf16.mxu0 0
        %2753 = vmatpush1.bf16.xpose.msra.mxu0 0
        %2754 = vmatprep.subr.bf16.mxu0 0
        %2755 = vmatpush1.bf16.xpose.msra.mxu0 0
        %2756 = vmatprep.subr.bf16.mxu0 0
        %2757 = vmatpush1.bf16.xpose.msra.mxu0 0
        %2758 = vmatprep.subr.bf16.mxu0 0
        %2759 = vmatpush1.bf16.xpose.msra.mxu0 0
        %2760 = vmatprep.subr.bf16.mxu0 0
        %2761 = vmatpush1.bf16.xpose.msra.mxu0 0
        %2762 = vmatprep.subr.bf16.mxu0 0
        %2763 = vmatpush1.bf16.xpose.msra.mxu0 0
        %2764 = vmatprep.subr.bf16.mxu0 0
        %2765 = vmatpush1.bf16.xpose.msra.mxu0 0
        %2766 = vmatprep.subr.bf16.mxu0 0
        %2767 = vmatpush1.bf16.xpose.msra.mxu0 0
        %2768 = vmatprep.subr.bf16.mxu0 0
        %2769 = vmatpush1.bf16.xpose.msra.mxu0 0
        %2770 = vmatprep.subr.bf16.mxu0 0
        %2771 = vmatpush1.bf16.xpose.msra.mxu0 0
        %2772 = vmatprep.subr.bf16.mxu0 0
        %2773 = vmatpush1.bf16.xpose.msra.mxu0 0
        %2774 = vmatprep.subr.bf16.mxu0 0
        %2775 = vmatpush1.bf16.xpose.msra.mxu0 0
        %2776 = vmatprep.subr.bf16.mxu0 0
        %2777 = vmatpush1.bf16.xpose.msra.mxu0 0
        %2778 = vmatprep.mubr.bf16.mxu0 0
        %2779 = vmatmul.mubr.bf16.gmra.mrb[0].mxu0 %v2745
        %v2780 = vpop.f32.mrb[0].mxu0
        %v2781 = vadd.f32 0.0, %v2780
        %v2782 = vpop.f32.mrb[0].mxu0
        %v2783 = vpop.f32.mrb[0].mxu0
        %v2784 = vpop.f32.mrb[0].mxu0
        %2785 = vdwg.mxu0
        %v2786 = vsel %vm1585, %v2781, -inf
        %2787 = vmax.xlane.f32.xlu0 %v2786
        %v2788 = vpop.xlane.xlu0 %2787
        %v2789 = vsub.f32 %v2781, %v2788
        %v2790 = vmul.f32 %v2789, 1.442695
        %v2791 = vpow.pop %v2790
        %v2792 = vsel %vm1585, %v2791, 0.0
        %2793 = vadd.xlane.f32.xlu0 %v2792
        %v2794 = vpop.xlane.xlu0 %2793
        %v2795 = vrcp.pop %v2794
        %v2796 = vmul.f32 %v2791, %v2795
        %v2797 = vpack.c.bf16 %v2796, %v2796
        %v2799 = vsel %vm1585, %v2797, 0
        %2801 = vmatprep.subr.bf16.mxu0 0
        %2802 = vmatpush1.bf16.msra.mxu0 %v2407
        %2803 = vmatprep.subr.bf16.mxu0 0
        %2804 = vmatpush1.bf16.msra.mxu0 0
        %2805 = vmatprep.subr.bf16.mxu0 0
        %2806 = vmatpush1.bf16.msra.mxu0 0
        %2807 = vmatprep.subr.bf16.mxu0 0
        %2808 = vmatpush1.bf16.msra.mxu0 0
        %2809 = vmatprep.subr.bf16.mxu0 0
        %2810 = vmatpush1.bf16.msra.mxu0 0
        %2811 = vmatprep.subr.bf16.mxu0 0
        %2812 = vmatpush1.bf16.msra.mxu0 0
        %2813 = vmatprep.subr.bf16.mxu0 0
        %2814 = vmatpush1.bf16.msra.mxu0 0
        %2815 = vmatprep.subr.bf16.mxu0 0
        %2816 = vmatpush1.bf16.msra.mxu0 0
        %2817 = vmatprep.subr.bf16.mxu0 0
        %2818 = vmatpush1.bf16.msra.mxu0 0
        %2819 = vmatprep.subr.bf16.mxu0 0
        %2820 = vmatpush1.bf16.msra.mxu0 0
        %2821 = vmatprep.subr.bf16.mxu0 0
        %2822 = vmatpush1.bf16.msra.mxu0 0
        %2823 = vmatprep.subr.bf16.mxu0 0
        %2824 = vmatpush1.bf16.msra.mxu0 0
        %2825 = vmatprep.subr.bf16.mxu0 0
        %2826 = vmatpush1.bf16.msra.mxu0 0
        %2827 = vmatprep.subr.bf16.mxu0 0
        %2828 = vmatpush1.bf16.msra.mxu0 0
        %2829 = vmatprep.subr.bf16.mxu0 0
        %2830 = vmatpush1.bf16.msra.mxu0 0
        %2831 = vmatprep.subr.bf16.mxu0 0
        %2832 = vmatpush1.bf16.msra.mxu0 0
        %2833 = vmatprep.mubr.bf16.mxu0 0
        %2834 = vmatmul.mubr.bf16.gmra.mrb[0].mxu0 %v2799
        %v2835 = vpop.f32.mrb[0].mxu0
        %v2836 = vadd.f32 0.0, %v2835
        %v2837 = vpop.f32.mrb[0].mxu0
        %v2838 = vpop.f32.mrb[0].mxu0
        %v2839 = vpop.f32.mrb[0].mxu0
        %2840 = vdwg.mxu0
        %v2841 = vsel %vm1947, %v2836, %v2743
        %v2842 = vsel %vm2047, %v2346, 0.0
        %v2843 = vpack.c.bf16 %v2842, %v2842
        %2844 = vmatprep.subr.bf16.mxu0 0
        %2845 = vmatpush1.bf16.xpose.msra.mxu0 %v2347
        %2846 = vmatprep.subr.bf16.mxu0 0
        %2847 = vmatpush1.bf16.xpose.msra.mxu0 0
        %2848 = vmatprep.subr.bf16.mxu0 0
        %2849 = vmatpush1.bf16.xpose.msra.mxu0 0
        %2850 = vmatprep.subr.bf16.mxu0 0
        %2851 = vmatpush1.bf16.xpose.msra.mxu0 0
        %2852 = vmatprep.subr.bf16.mxu0 0
        %2853 = vmatpush1.bf16.xpose.msra.mxu0 0
        %2854 = vmatprep.subr.bf16.mxu0 0
        %2855 = vmatpush1.bf16.xpose.msra.mxu0 0
        %2856 = vmatprep.subr.bf16.mxu0 0
        %2857 = vmatpush1.bf16.xpose.msra.mxu0 0
        %2858 = vmatprep.subr.bf16.mxu0 0
        %2859 = vmatpush1.bf16.xpose.msra.mxu0 0
        %2860 = vmatprep.subr.bf16.mxu0 0
        %2861 = vmatpush1.bf16.xpose.msra.mxu0 0
        %2862 = vmatprep.subr.bf16.mxu0 0
        %2863 = vmatpush1.bf16.xpose.msra.mxu0 0
        %2864 = vmatprep.subr.bf16.mxu0 0
        %2865 = vmatpush1.bf16.xpose.msra.mxu0 0
        %2866 = vmatprep.subr.bf16.mxu0 0
        %2867 = vmatpush1.bf16.xpose.msra.mxu0 0
        %2868 = vmatprep.subr.bf16.mxu0 0
        %2869 = vmatpush1.bf16.xpose.msra.mxu0 0
        %2870 = vmatprep.subr.bf16.mxu0 0
        %2871 = vmatpush1.bf16.xpose.msra.mxu0 0
        %2872 = vmatprep.subr.bf16.mxu0 0
        %2873 = vmatpush1.bf16.xpose.msra.mxu0 0
        %2874 = vmatprep.subr.bf16.mxu0 0
        %2875 = vmatpush1.bf16.xpose.msra.mxu0 0
        %2876 = vmatprep.mubr.bf16.mxu0 0
        %2877 = vmatmul.mubr.bf16.gmra.mrb[0].mxu0 %v2843
        %v2878 = vpop.f32.mrb[0].mxu0
        %v2879 = vadd.f32 0.0, %v2878
        %v2880 = vpop.f32.mrb[0].mxu0
        %v2881 = vpop.f32.mrb[0].mxu0
        %v2882 = vpop.f32.mrb[0].mxu0
        %2883 = vdwg.mxu0
        %v2884 = vsel %vm1585, %v2879, -inf
        %2885 = vmax.xlane.f32.xlu0 %v2884
        %v2886 = vpop.xlane.xlu0 %2885
        %v2887 = vsub.f32 %v2879, %v2886
        %v2888 = vmul.f32 %v2887, 1.442695
        %v2889 = vpow.pop %v2888
        %v2890 = vsel %vm1585, %v2889, 0.0
        %2891 = vadd.xlane.f32.xlu0 %v2890
        %v2892 = vpop.xlane.xlu0 %2891
        %v2893 = vrcp.pop %v2892
        %v2894 = vmul.f32 %v2889, %v2893
        %v2895 = vpack.c.bf16 %v2894, %v2894
        %v2897 = vsel %vm1585, %v2895, 0
        %2899 = vmatprep.subr.bf16.mxu0 0
        %2900 = vmatpush1.bf16.msra.mxu0 %v2407
        %2901 = vmatprep.subr.bf16.mxu0 0
        %2902 = vmatpush1.bf16.msra.mxu0 0
        %2903 = vmatprep.subr.bf16.mxu0 0
        %2904 = vmatpush1.bf16.msra.mxu0 0
        %2905 = vmatprep.subr.bf16.mxu0 0
        %2906 = vmatpush1.bf16.msra.mxu0 0
        %2907 = vmatprep.subr.bf16.mxu0 0
        %2908 = vmatpush1.bf16.msra.mxu0 0
        %2909 = vmatprep.subr.bf16.mxu0 0
        %2910 = vmatpush1.bf16.msra.mxu0 0
        %2911 = vmatprep.subr.bf16.mxu0 0
        %2912 = vmatpush1.bf16.msra.mxu0 0
        %2913 = vmatprep.subr.bf16.mxu0 0
        %2914 = vmatpush1.bf16.msra.mxu0 0
        %2915 = vmatprep.subr.bf16.mxu0 0
        %2916 = vmatpush1.bf16.msra.mxu0 0
        %2917 = vmatprep.subr.bf16.mxu0 0
        %2918 = vmatpush1.bf16.msra.mxu0 0
        %2919 = vmatprep.subr.bf16.mxu0 0
        %2920 = vmatpush1.bf16.msra.mxu0 0
        %2921 = vmatprep.subr.bf16.mxu0 0
        %2922 = vmatpush1.bf16.msra.mxu0 0
        %2923 = vmatprep.subr.bf16.mxu0 0
        %2924 = vmatpush1.bf16.msra.mxu0 0
        %2925 = vmatprep.subr.bf16.mxu0 0
        %2926 = vmatpush1.bf16.msra.mxu0 0
        %2927 = vmatprep.subr.bf16.mxu0 0
        %2928 = vmatpush1.bf16.msra.mxu0 0
        %2929 = vmatprep.subr.bf16.mxu0 0
        %2930 = vmatpush1.bf16.msra.mxu0 0
        %2931 = vmatprep.mubr.bf16.mxu0 0
        %2932 = vmatmul.mubr.bf16.gmra.mrb[0].mxu0 %v2897
        %v2933 = vpop.f32.mrb[0].mxu0
        %v2934 = vadd.f32 0.0, %v2933
        %v2935 = vpop.f32.mrb[0].mxu0
        %v2936 = vpop.f32.mrb[0].mxu0
        %v2937 = vpop.f32.mrb[0].mxu0
        %2938 = vdwg.mxu0
        %v2939 = vsel %vm2047, %v2934, %v2841
        %v2940 = vsel %vm2147, %v2346, 0.0
        %v2941 = vpack.c.bf16 %v2940, %v2940
        %2942 = vmatprep.subr.bf16.mxu0 0
        %2943 = vmatpush1.bf16.xpose.msra.mxu0 %v2347
        %2944 = vmatprep.subr.bf16.mxu0 0
        %2945 = vmatpush1.bf16.xpose.msra.mxu0 0
        %2946 = vmatprep.subr.bf16.mxu0 0
        %2947 = vmatpush1.bf16.xpose.msra.mxu0 0
        %2948 = vmatprep.subr.bf16.mxu0 0
        %2949 = vmatpush1.bf16.xpose.msra.mxu0 0
        %2950 = vmatprep.subr.bf16.mxu0 0
        %2951 = vmatpush1.bf16.xpose.msra.mxu0 0
        %2952 = vmatprep.subr.bf16.mxu0 0
        %2953 = vmatpush1.bf16.xpose.msra.mxu0 0
        %2954 = vmatprep.subr.bf16.mxu0 0
        %2955 = vmatpush1.bf16.xpose.msra.mxu0 0
        %2956 = vmatprep.subr.bf16.mxu0 0
        %2957 = vmatpush1.bf16.xpose.msra.mxu0 0
        %2958 = vmatprep.subr.bf16.mxu0 0
        %2959 = vmatpush1.bf16.xpose.msra.mxu0 0
        %2960 = vmatprep.subr.bf16.mxu0 0
        %2961 = vmatpush1.bf16.xpose.msra.mxu0 0
        %2962 = vmatprep.subr.bf16.mxu0 0
        %2963 = vmatpush1.bf16.xpose.msra.mxu0 0
        %2964 = vmatprep.subr.bf16.mxu0 0
        %2965 = vmatpush1.bf16.xpose.msra.mxu0 0
        %2966 = vmatprep.subr.bf16.mxu0 0
        %2967 = vmatpush1.bf16.xpose.msra.mxu0 0
        %2968 = vmatprep.subr.bf16.mxu0 0
        %2969 = vmatpush1.bf16.xpose.msra.mxu0 0
        %2970 = vmatprep.subr.bf16.mxu0 0
        %2971 = vmatpush1.bf16.xpose.msra.mxu0 0
        %2972 = vmatprep.subr.bf16.mxu0 0
        %2973 = vmatpush1.bf16.xpose.msra.mxu0 0
        %2974 = vmatprep.mubr.bf16.mxu0 0
        %2975 = vmatmul.mubr.bf16.gmra.mrb[0].mxu0 %v2941
        %v2976 = vpop.f32.mrb[0].mxu0
        %v2977 = vadd.f32 0.0, %v2976
        %v2978 = vpop.f32.mrb[0].mxu0
        %v2979 = vpop.f32.mrb[0].mxu0
        %v2980 = vpop.f32.mrb[0].mxu0
        %2981 = vdwg.mxu0
        %v2982 = vsel %vm1585, %v2977, -inf
        %2983 = vmax.xlane.f32.xlu0 %v2982
        %v2984 = vpop.xlane.xlu0 %2983
        %v2985 = vsub.f32 %v2977, %v2984
        %v2986 = vmul.f32 %v2985, 1.442695
        %v2987 = vpow.pop %v2986
        %v2988 = vsel %vm1585, %v2987, 0.0
        %2989 = vadd.xlane.f32.xlu0 %v2988
        %v2990 = vpop.xlane.xlu0 %2989
        %v2991 = vrcp.pop %v2990
        %v2992 = vmul.f32 %v2987, %v2991
        %v2993 = vpack.c.bf16 %v2992, %v2992
        %v2995 = vsel %vm1585, %v2993, 0
        %2997 = vmatprep.subr.bf16.mxu0 0
        %2998 = vmatpush1.bf16.msra.mxu0 %v2407
        %2999 = vmatprep.subr.bf16.mxu0 0
        %3000 = vmatpush1.bf16.msra.mxu0 0
        %3001 = vmatprep.subr.bf16.mxu0 0
        %3002 = vmatpush1.bf16.msra.mxu0 0
        %3003 = vmatprep.subr.bf16.mxu0 0
        %3004 = vmatpush1.bf16.msra.mxu0 0
        %3005 = vmatprep.subr.bf16.mxu0 0
        %3006 = vmatpush1.bf16.msra.mxu0 0
        %3007 = vmatprep.subr.bf16.mxu0 0
        %3008 = vmatpush1.bf16.msra.mxu0 0
        %3009 = vmatprep.subr.bf16.mxu0 0
        %3010 = vmatpush1.bf16.msra.mxu0 0
        %3011 = vmatprep.subr.bf16.mxu0 0
        %3012 = vmatpush1.bf16.msra.mxu0 0
        %3013 = vmatprep.subr.bf16.mxu0 0
        %3014 = vmatpush1.bf16.msra.mxu0 0
        %3015 = vmatprep.subr.bf16.mxu0 0
        %3016 = vmatpush1.bf16.msra.mxu0 0
        %3017 = vmatprep.subr.bf16.mxu0 0
        %3018 = vmatpush1.bf16.msra.mxu0 0
        %3019 = vmatprep.subr.bf16.mxu0 0
        %3020 = vmatpush1.bf16.msra.mxu0 0
        %3021 = vmatprep.subr.bf16.mxu0 0
        %3022 = vmatpush1.bf16.msra.mxu0 0
        %3023 = vmatprep.subr.bf16.mxu0 0
        %3024 = vmatpush1.bf16.msra.mxu0 0
        %3025 = vmatprep.subr.bf16.mxu0 0
        %3026 = vmatpush1.bf16.msra.mxu0 0
        %3027 = vmatprep.subr.bf16.mxu0 0
        %3028 = vmatpush1.bf16.msra.mxu0 0
        %3029 = vmatprep.mubr.bf16.mxu0 0
        %3030 = vmatmul.mubr.bf16.gmra.mrb[0].mxu0 %v2995
        %v3031 = vpop.f32.mrb[0].mxu0
        %v3032 = vadd.f32 0.0, %v3031
        %v3033 = vpop.f32.mrb[0].mxu0
        %v3034 = vpop.f32.mrb[0].mxu0
        %v3035 = vpop.f32.mrb[0].mxu0
        %3036 = vdwg.mxu0
        %v3037 = vsel %vm2147, %v3032, %v2939
        %v3038 = vsel %vm2247, %v2346, 0.0
        %v3039 = vpack.c.bf16 %v3038, %v3038
        %3040 = vmatprep.subr.bf16.mxu0 0
        %3041 = vmatpush1.bf16.xpose.msra.mxu0 %v2347
        %3042 = vmatprep.subr.bf16.mxu0 0
        %3043 = vmatpush1.bf16.xpose.msra.mxu0 0
        %3044 = vmatprep.subr.bf16.mxu0 0
        %3045 = vmatpush1.bf16.xpose.msra.mxu0 0
        %3046 = vmatprep.subr.bf16.mxu0 0
        %3047 = vmatpush1.bf16.xpose.msra.mxu0 0
        %3048 = vmatprep.subr.bf16.mxu0 0
        %3049 = vmatpush1.bf16.xpose.msra.mxu0 0
        %3050 = vmatprep.subr.bf16.mxu0 0
        %3051 = vmatpush1.bf16.xpose.msra.mxu0 0
        %3052 = vmatprep.subr.bf16.mxu0 0
        %3053 = vmatpush1.bf16.xpose.msra.mxu0 0
        %3054 = vmatprep.subr.bf16.mxu0 0
        %3055 = vmatpush1.bf16.xpose.msra.mxu0 0
        %3056 = vmatprep.subr.bf16.mxu0 0
        %3057 = vmatpush1.bf16.xpose.msra.mxu0 0
        %3058 = vmatprep.subr.bf16.mxu0 0
        %3059 = vmatpush1.bf16.xpose.msra.mxu0 0
        %3060 = vmatprep.subr.bf16.mxu0 0
        %3061 = vmatpush1.bf16.xpose.msra.mxu0 0
        %3062 = vmatprep.subr.bf16.mxu0 0
        %3063 = vmatpush1.bf16.xpose.msra.mxu0 0
        %3064 = vmatprep.subr.bf16.mxu0 0
        %3065 = vmatpush1.bf16.xpose.msra.mxu0 0
        %3066 = vmatprep.subr.bf16.mxu0 0
        %3067 = vmatpush1.bf16.xpose.msra.mxu0 0
        %3068 = vmatprep.subr.bf16.mxu0 0
        %3069 = vmatpush1.bf16.xpose.msra.mxu0 0
        %3070 = vmatprep.subr.bf16.mxu0 0
        %3071 = vmatpush1.bf16.xpose.msra.mxu0 0
        %3072 = vmatprep.mubr.bf16.mxu0 0
        %3073 = vmatmul.mubr.bf16.gmra.mrb[0].mxu0 %v3039
        %v3074 = vpop.f32.mrb[0].mxu0
        %v3075 = vadd.f32 0.0, %v3074
        %v3076 = vpop.f32.mrb[0].mxu0
        %v3077 = vpop.f32.mrb[0].mxu0
        %v3078 = vpop.f32.mrb[0].mxu0
        %3079 = vdwg.mxu0
        %v3080 = vsel %vm1585, %v3075, -inf
        %3081 = vmax.xlane.f32.xlu0 %v3080
        %v3082 = vpop.xlane.xlu0 %3081
        %v3083 = vsub.f32 %v3075, %v3082
        %v3084 = vmul.f32 %v3083, 1.442695
        %v3085 = vpow.pop %v3084
        %v3086 = vsel %vm1585, %v3085, 0.0
        %3087 = vadd.xlane.f32.xlu0 %v3086
        %v3088 = vpop.xlane.xlu0 %3087
        %v3089 = vrcp.pop %v3088
        %v3090 = vmul.f32 %v3085, %v3089
        %v3091 = vpack.c.bf16 %v3090, %v3090
        %v3093 = vsel %vm1585, %v3091, 0
        %3095 = vmatprep.subr.bf16.mxu0 0
        %3096 = vmatpush1.bf16.msra.mxu0 %v2407
        %3097 = vmatprep.subr.bf16.mxu0 0
        %3098 = vmatpush1.bf16.msra.mxu0 0
        %3099 = vmatprep.subr.bf16.mxu0 0
        %3100 = vmatpush1.bf16.msra.mxu0 0
        %3101 = vmatprep.subr.bf16.mxu0 0
        %3102 = vmatpush1.bf16.msra.mxu0 0
        %3103 = vmatprep.subr.bf16.mxu0 0
        %3104 = vmatpush1.bf16.msra.mxu0 0
        %3105 = vmatprep.subr.bf16.mxu0 0
        %3106 = vmatpush1.bf16.msra.mxu0 0
        %3107 = vmatprep.subr.bf16.mxu0 0
        %3108 = vmatpush1.bf16.msra.mxu0 0
        %3109 = vmatprep.subr.bf16.mxu0 0
        %3110 = vmatpush1.bf16.msra.mxu0 0
        %3111 = vmatprep.subr.bf16.mxu0 0
        %3112 = vmatpush1.bf16.msra.mxu0 0
        %3113 = vmatprep.subr.bf16.mxu0 0
        %3114 = vmatpush1.bf16.msra.mxu0 0
        %3115 = vmatprep.subr.bf16.mxu0 0
        %3116 = vmatpush1.bf16.msra.mxu0 0
        %3117 = vmatprep.subr.bf16.mxu0 0
        %3118 = vmatpush1.bf16.msra.mxu0 0
        %3119 = vmatprep.subr.bf16.mxu0 0
        %3120 = vmatpush1.bf16.msra.mxu0 0
        %3121 = vmatprep.subr.bf16.mxu0 0
        %3122 = vmatpush1.bf16.msra.mxu0 0
        %3123 = vmatprep.subr.bf16.mxu0 0
        %3124 = vmatpush1.bf16.msra.mxu0 0
        %3125 = vmatprep.subr.bf16.mxu0 0
        %3126 = vmatpush1.bf16.msra.mxu0 0
        %3127 = vmatprep.mubr.bf16.mxu0 0
        %3128 = vmatmul.mubr.bf16.gmra.mrb[0].mxu0 %v3093
        %v3129 = vpop.f32.mrb[0].mxu0
        %v3130 = vadd.f32 0.0, %v3129
        %v3131 = vpop.f32.mrb[0].mxu0
        %v3132 = vpop.f32.mrb[0].mxu0
        %v3133 = vpop.f32.mrb[0].mxu0
        %3134 = vdwg.mxu0
        %v3135 = vsel %vm2247, %v3130, %v3037
        %v3136 = vpack.c.bf16 %v3135, %v2345
        %v3137 = vld [vmem:[%s1077] sm:$0xf]
        %v3138 = vld [vmem:[%s1077 + $0x4] sm:$0xf]
        %v3139 = vld [vmem:[%s1077 + $0x8] sm:$0xf]
        %v3140 = vld [vmem:[%s1077 + $0xc] sm:$0xf]
        %v3141 = vld [vmem:[%s1077 + $0x10] sm:$0xf]
        %v3142 = vld [vmem:[%s1077 + $0x14] sm:$0xf]
        %v3143 = vld [vmem:[%s1077 + $0x18] sm:$0xf]
        %v3144 = vld [vmem:[%s1077 + $0x1c] sm:$0xf]
        %v3145 = vld [vmem:[%s1077 + $0x20] sm:$0xf]
        %v3146 = vld [vmem:[%s1077 + $0x24] sm:$0xf]
        %v3147 = vld [vmem:[%s1077 + $0x28] sm:$0xf]
        %v3148 = vld [vmem:[%s1077 + $0x2c] sm:$0xf]
        %v3149 = vld [vmem:[%s1077 + $0x30] sm:$0xf]
        %v3150 = vld [vmem:[%s1077 + $0x34] sm:$0xf]
        %v3151 = vld [vmem:[%s1077 + $0x38] sm:$0xf]
        %v3152 = vld [vmem:[%s1077 + $0x3c] sm:$0xf]
        %v3153 = vld [vmem:[%s1080] sm:$0x1]
        %v3155 = vlaneseq
        %v3156 = vshrl.u32 %v3155, 7
        %v3157 = vsub.s32 0, %v3156
        %v3158 = vrot.slane %v3153, %v3157
        %v3176 = vunpack.c.l.b16 %v3137
        %v3177 = vunpack.c.l.b16 %v3138
        %v3178 = vunpack.c.l.b16 %v3139
        %v3179 = vunpack.c.l.b16 %v3140
        %v3180 = vunpack.c.l.b16 %v3141
        %v3181 = vunpack.c.l.b16 %v3142
        %v3182 = vunpack.c.l.b16 %v3143
        %v3183 = vunpack.c.l.b16 %v3144
        %v3184 = vunpack.c.l.b16 %v3145
        %v3185 = vunpack.c.l.b16 %v3146
        %v3186 = vunpack.c.l.b16 %v3147
        %v3187 = vunpack.c.l.b16 %v3148
        %v3188 = vunpack.c.l.b16 %v3149
        %v3189 = vunpack.c.l.b16 %v3150
        %v3190 = vunpack.c.l.b16 %v3151
        %v3191 = vunpack.c.l.b16 %v3152
        %v3192 = vpack.c.b16 %v3177, %v3176
        %v3193 = vpack.c.b16 %v3179, %v3178
        %v3194 = vpack.c.b16 %v3181, %v3180
        %v3195 = vpack.c.b16 %v3183, %v3182
        %v3196 = vpack.c.b16 %v3185, %v3184
        %v3197 = vpack.c.b16 %v3187, %v3186
        %v3198 = vpack.c.b16 %v3189, %v3188
        %v3199 = vpack.c.b16 %v3191, %v3190
        %3208 = vmatprep.subr.bf16.mxu0 0
        %3209 = vmatpush1.bf16.msra.mxu0 %v3192
        %3210 = vmatprep.subr.bf16.mxu0 0
        %3211 = vmatpush1.bf16.msra.mxu0 %v3193
        %3212 = vmatprep.subr.bf16.mxu0 0
        %3213 = vmatpush1.bf16.msra.mxu0 %v3194
        %3214 = vmatprep.subr.bf16.mxu0 0
        %3215 = vmatpush1.bf16.msra.mxu0 %v3195
        %3216 = vmatprep.subr.bf16.mxu0 0
        %3217 = vmatpush1.bf16.msra.mxu0 %v3196
        %3218 = vmatprep.subr.bf16.mxu0 0
        %3219 = vmatpush1.bf16.msra.mxu0 %v3197
        %3220 = vmatprep.subr.bf16.mxu0 0
        %3221 = vmatpush1.bf16.msra.mxu0 %v3198
        %3222 = vmatprep.subr.bf16.mxu0 0
        %3223 = vmatpush1.bf16.msra.mxu0 %v3199
        %3224 = vmatprep.subr.bf16.mxu0 0
        %3225 = vmatpush1.bf16.msra.mxu0 0
        %3226 = vmatprep.subr.bf16.mxu0 0
        %3227 = vmatpush1.bf16.msra.mxu0 0
        %3228 = vmatprep.subr.bf16.mxu0 0
        %3229 = vmatpush1.bf16.msra.mxu0 0
        %3230 = vmatprep.subr.bf16.mxu0 0
        %3231 = vmatpush1.bf16.msra.mxu0 0
        %3232 = vmatprep.subr.bf16.mxu0 0
        %3233 = vmatpush1.bf16.msra.mxu0 0
        %3234 = vmatprep.subr.bf16.mxu0 0
        %3235 = vmatpush1.bf16.msra.mxu0 0
        %3236 = vmatprep.subr.bf16.mxu0 0
        %3237 = vmatpush1.bf16.msra.mxu0 0
        %3238 = vmatprep.subr.bf16.mxu0 0
        %3239 = vmatpush1.bf16.msra.mxu0 0
        %3240 = vmatprep.mubr.bf16.mxu0 0
        %3241 = vmatmul.mubr.bf16.gmra.mrb[0].mxu0 %v3136
        %v3242 = vpop.f32.mrb[0].mxu0
        %v3243 = vadd.f32 %v3158, %v3242
        %v3244 = vpop.f32.mrb[0].mxu0
        %v3245 = vpop.f32.mrb[0].mxu0
        %v3246 = vadd.f32 %v3158, %v3245
        %v3247 = vpop.f32.mrb[0].mxu0
        %3248 = vdwg.mxu0
        %v3249 = vadd.f32 %v1149, %v3243
        %v3250 = vadd.f32 %v1150, %v3246
        %3251 = vadd.xlane.f32.xlu0 %v3249
        %v3252 = vpop.xlane.xlu0 %3251
        %3253 = vadd.xlane.f32.xlu0 %v3250
        %v3254 = vpop.xlane.xlu0 %3253
        %v3255 = vmul.f32 %v3252, %v1185
        %v3256 = vmul.f32 %v3254, %v1185
        %v3257 = vsub.f32 %v3249, %v3255
        %v3258 = vsub.f32 %v3250, %v3256
        %v3259 = vmul.f32 %v3257, %v3257
        %v3260 = vmul.f32 %v3258, %v3258
        %3261 = vadd.xlane.f32.xlu0 %v3259
        %v3262 = vpop.xlane.xlu0 %3261
        %3263 = vadd.xlane.f32.xlu0 %v3260
        %v3264 = vpop.xlane.xlu0 %3263
        %v3265 = vmul.f32 %v3262, %v1185
        %v3266 = vmul.f32 %v3264, %v1185
        %v3267 = vadd.f32 %v3265, 1e-05
        %v3268 = vadd.f32 %v3266, 1e-05
        %v3269 = vrsqrt.pop %v3267
        %v3270 = vrsqrt.pop %v3268
        %v3271 = vmul.f32 %v3257, %v3269
        %v3272 = vmul.f32 %v3258, %v3270
        %v3273 = vld [vmem:[%s1083] sm:$0x1]
        %v3275 = vlaneseq
        %v3276 = vshrl.u32 %v3275, 7
        %v3277 = vsub.s32 0, %v3276
        %v3278 = vrot.slane %v3273, %v3277
        %v3280 = vmul.f32 %v3271, %v3278
        %v3281 = vmul.f32 %v3272, %v3278
        %v3282 = vld [vmem:[%s1086] sm:$0x1]
        %v3284 = vlaneseq
        %v3285 = vshrl.u32 %v3284, 7
        %v3286 = vsub.s32 0, %v3285
        %v3287 = vrot.slane %v3282, %v3286
        %v3289 = vadd.f32 %v3280, %v3287
        %v3290 = vadd.f32 %v3281, %v3287
        %3291 = vadd.xlane.f32.xlu0 %v1151
        %v3292 = vpop.xlane.xlu0 %3291
        %3293 = vadd.xlane.f32.xlu0 %v1152
        %v3294 = vpop.xlane.xlu0 %3293
        %3295 = vadd.xlane.f32.xlu0 %v1153
        %v3296 = vpop.xlane.xlu0 %3295
        %3297 = vadd.xlane.f32.xlu0 %v1154
        %v3298 = vpop.xlane.xlu0 %3297
        %v3299 = vmul.f32 %v3292, %v1185
        %v3300 = vmul.f32 %v3294, %v1185
        %v3301 = vmul.f32 %v3296, %v1185
        %v3302 = vmul.f32 %v3298, %v1185
        %v3303 = vsub.f32 %v1151, %v3299
        %v3304 = vsub.f32 %v1152, %v3300
        %v3305 = vsub.f32 %v1153, %v3301
        %v3306 = vsub.f32 %v1154, %v3302
        %v3307 = vmul.f32 %v3303, %v3303
        %v3308 = vmul.f32 %v3304, %v3304
        %v3309 = vmul.f32 %v3305, %v3305
        %v3310 = vmul.f32 %v3306, %v3306
        %3311 = vadd.xlane.f32.xlu0 %v3307
        %v3312 = vpop.xlane.xlu0 %3311
        %3313 = vadd.xlane.f32.xlu0 %v3308
        %v3314 = vpop.xlane.xlu0 %3313
        %3315 = vadd.xlane.f32.xlu0 %v3309
        %v3316 = vpop.xlane.xlu0 %3315
        %3317 = vadd.xlane.f32.xlu0 %v3310
        %v3318 = vpop.xlane.xlu0 %3317
        %v3319 = vmul.f32 %v3312, %v1185
        %v3320 = vmul.f32 %v3314, %v1185
        %v3321 = vmul.f32 %v3316, %v1185
        %v3322 = vmul.f32 %v3318, %v1185
        %v3323 = vadd.f32 %v3319, 1e-05
        %v3324 = vadd.f32 %v3320, 1e-05
        %v3325 = vadd.f32 %v3321, 1e-05
        %v3326 = vadd.f32 %v3322, 1e-05
        %v3327 = vrsqrt.pop %v3323
        %v3328 = vrsqrt.pop %v3324
        %v3329 = vrsqrt.pop %v3325
        %v3330 = vrsqrt.pop %v3326
        %v3331 = vmul.f32 %v3303, %v3327
        %v3332 = vmul.f32 %v3304, %v3328
        %v3333 = vmul.f32 %v3305, %v3329
        %v3334 = vmul.f32 %v3306, %v3330
        %v3335 = vld [vmem:[%s1089] sm:$0x1]
        %v3337 = vlaneseq
        %v3338 = vshrl.u32 %v3337, 7
        %v3339 = vsub.s32 0, %v3338
        %v3340 = vrot.slane %v3335, %v3339
        %v3342 = vmul.f32 %v3331, %v3340
        %v3343 = vmul.f32 %v3332, %v3340
        %v3344 = vmul.f32 %v3333, %v3340
        %v3345 = vmul.f32 %v3334, %v3340
        %v3346 = vld [vmem:[%s1092] sm:$0x1]
        %v3348 = vlaneseq
        %v3349 = vshrl.u32 %v3348, 7
        %v3350 = vsub.s32 0, %v3349
        %v3351 = vrot.slane %v3346, %v3350
        %v3353 = vadd.f32 %v3342, %v3351
        %v3354 = vadd.f32 %v3343, %v3351
        %v3355 = vadd.f32 %v3344, %v3351
        %v3356 = vadd.f32 %v3345, %v3351
        %v3357 = vpack.c.bf16 %v3290, %v3289
        %v3358 = vld [vmem:[%s1097] sm:$0xf]
        %v3359 = vld [vmem:[%s1097 + $0x4] sm:$0xf]
        %v3360 = vld [vmem:[%s1097 + $0x8] sm:$0xf]
        %v3361 = vld [vmem:[%s1097 + $0xc] sm:$0xf]
        %v3362 = vld [vmem:[%s1097 + $0x10] sm:$0xf]
        %v3363 = vld [vmem:[%s1097 + $0x14] sm:$0xf]
        %v3364 = vld [vmem:[%s1097 + $0x18] sm:$0xf]
        %v3365 = vld [vmem:[%s1097 + $0x1c] sm:$0xf]
        %v3366 = vld [vmem:[%s1097 + $0x20] sm:$0xf]
        %v3367 = vld [vmem:[%s1097 + $0x24] sm:$0xf]
        %v3368 = vld [vmem:[%s1097 + $0x28] sm:$0xf]
        %v3369 = vld [vmem:[%s1097 + $0x2c] sm:$0xf]
        %v3370 = vld [vmem:[%s1097 + $0x30] sm:$0xf]
        %v3371 = vld [vmem:[%s1097 + $0x34] sm:$0xf]
        %v3372 = vld [vmem:[%s1097 + $0x38] sm:$0xf]
        %v3373 = vld [vmem:[%s1097 + $0x3c] sm:$0xf]
        %v3390 = vunpack.c.l.b16 %v3358
        %v3391 = vunpack.c.l.b16 %v3359
        %v3392 = vunpack.c.l.b16 %v3360
        %v3393 = vunpack.c.l.b16 %v3361
        %v3394 = vunpack.c.l.b16 %v3362
        %v3395 = vunpack.c.l.b16 %v3363
        %v3396 = vunpack.c.l.b16 %v3364
        %v3397 = vunpack.c.l.b16 %v3365
        %v3398 = vunpack.c.l.b16 %v3366
        %v3399 = vunpack.c.l.b16 %v3367
        %v3400 = vunpack.c.l.b16 %v3368
        %v3401 = vunpack.c.l.b16 %v3369
        %v3402 = vunpack.c.l.b16 %v3370
        %v3403 = vunpack.c.l.b16 %v3371
        %v3404 = vunpack.c.l.b16 %v3372
        %v3405 = vunpack.c.l.b16 %v3373
        %v3406 = vpack.c.b16 %v3391, %v3390
        %v3407 = vpack.c.b16 %v3393, %v3392
        %v3408 = vpack.c.b16 %v3395, %v3394
        %v3409 = vpack.c.b16 %v3397, %v3396
        %v3410 = vpack.c.b16 %v3399, %v3398
        %v3411 = vpack.c.b16 %v3401, %v3400
        %v3412 = vpack.c.b16 %v3403, %v3402
        %v3413 = vpack.c.b16 %v3405, %v3404
        %3422 = vmatprep.subr.bf16.mxu0 0
        %3423 = vmatpush1.bf16.msra.mxu0 %v3406
        %3424 = vmatprep.subr.bf16.mxu0 0
        %3425 = vmatpush1.bf16.msra.mxu0 %v3407
        %3426 = vmatprep.subr.bf16.mxu0 0
        %3427 = vmatpush1.bf16.msra.mxu0 %v3408
        %3428 = vmatprep.subr.bf16.mxu0 0
        %3429 = vmatpush1.bf16.msra.mxu0 %v3409
        %3430 = vmatprep.subr.bf16.mxu0 0
        %3431 = vmatpush1.bf16.msra.mxu0 %v3410
        %3432 = vmatprep.subr.bf16.mxu0 0
        %3433 = vmatpush1.bf16.msra.mxu0 %v3411
        %3434 = vmatprep.subr.bf16.mxu0 0
        %3435 = vmatpush1.bf16.msra.mxu0 %v3412
        %3436 = vmatprep.subr.bf16.mxu0 0
        %3437 = vmatpush1.bf16.msra.mxu0 %v3413
        %3438 = vmatprep.subr.bf16.mxu0 0
        %3439 = vmatpush1.bf16.msra.mxu0 0
        %3440 = vmatprep.subr.bf16.mxu0 0
        %3441 = vmatpush1.bf16.msra.mxu0 0
        %3442 = vmatprep.subr.bf16.mxu0 0
        %3443 = vmatpush1.bf16.msra.mxu0 0
        %3444 = vmatprep.subr.bf16.mxu0 0
        %3445 = vmatpush1.bf16.msra.mxu0 0
        %3446 = vmatprep.subr.bf16.mxu0 0
        %3447 = vmatpush1.bf16.msra.mxu0 0
        %3448 = vmatprep.subr.bf16.mxu0 0
        %3449 = vmatpush1.bf16.msra.mxu0 0
        %3450 = vmatprep.subr.bf16.mxu0 0
        %3451 = vmatpush1.bf16.msra.mxu0 0
        %3452 = vmatprep.subr.bf16.mxu0 0
        %3453 = vmatpush1.bf16.msra.mxu0 0
        %3454 = vmatprep.mubr.bf16.mxu0 0
        %3455 = vmatmul.mubr.bf16.gmra.mrb[0].mxu0 %v3357
        %v3456 = vpop.f32.mrb[0].mxu0
        %v3457 = vadd.f32 0.0, %v3456
        %v3458 = vpop.f32.mrb[0].mxu0
        %v3459 = vpop.f32.mrb[0].mxu0
        %v3460 = vadd.f32 0.0, %v3459
        %v3461 = vpop.f32.mrb[0].mxu0
        %3462 = vdwg.mxu0
        %v3463 = vpack.c.bf16 %v3354, %v3353
        %v3464 = vpack.c.bf16 %v3356, %v3355
        %v3465 = vld [vmem:[%s1102] sm:$0xf]
        %v3466 = vld [vmem:[%s1102 + $0x4] sm:$0xf]
        %v3467 = vld [vmem:[%s1102 + $0x8] sm:$0xf]
        %v3468 = vld [vmem:[%s1102 + $0xc] sm:$0xf]
        %v3469 = vld [vmem:[%s1102 + $0x10] sm:$0xf]
        %v3470 = vld [vmem:[%s1102 + $0x14] sm:$0xf]
        %v3471 = vld [vmem:[%s1102 + $0x18] sm:$0xf]
        %v3472 = vld [vmem:[%s1102 + $0x1c] sm:$0xf]
        %v3473 = vld [vmem:[%s1102 + $0x20] sm:$0xf]
        %v3474 = vld [vmem:[%s1102 + $0x24] sm:$0xf]
        %v3475 = vld [vmem:[%s1102 + $0x28] sm:$0xf]
        %v3476 = vld [vmem:[%s1102 + $0x2c] sm:$0xf]
        %v3477 = vld [vmem:[%s1102 + $0x30] sm:$0xf]
        %v3478 = vld [vmem:[%s1102 + $0x34] sm:$0xf]
        %v3479 = vld [vmem:[%s1102 + $0x38] sm:$0xf]
        %v3480 = vld [vmem:[%s1102 + $0x3c] sm:$0xf]
        %v3497 = vunpack.c.l.b16 %v3465
        %v3498 = vunpack.c.l.b16 %v3466
        %v3499 = vunpack.c.l.b16 %v3467
        %v3500 = vunpack.c.l.b16 %v3468
        %v3501 = vunpack.c.l.b16 %v3469
        %v3502 = vunpack.c.l.b16 %v3470
        %v3503 = vunpack.c.l.b16 %v3471
        %v3504 = vunpack.c.l.b16 %v3472
        %v3505 = vunpack.c.l.b16 %v3473
        %v3506 = vunpack.c.l.b16 %v3474
        %v3507 = vunpack.c.l.b16 %v3475
        %v3508 = vunpack.c.l.b16 %v3476
        %v3509 = vunpack.c.l.b16 %v3477
        %v3510 = vunpack.c.l.b16 %v3478
        %v3511 = vunpack.c.l.b16 %v3479
        %v3512 = vunpack.c.l.b16 %v3480
        %v3513 = vpack.c.b16 %v3498, %v3497
        %v3514 = vpack.c.b16 %v3500, %v3499
        %v3515 = vpack.c.b16 %v3502, %v3501
        %v3516 = vpack.c.b16 %v3504, %v3503
        %v3517 = vpack.c.b16 %v3506, %v3505
        %v3518 = vpack.c.b16 %v3508, %v3507
        %v3519 = vpack.c.b16 %v3510, %v3509
        %v3520 = vpack.c.b16 %v3512, %v3511
        %3529 = vmatprep.subr.bf16.mxu0 0
        %3530 = vmatpush1.bf16.msra.mxu0 %v3513
        %3531 = vmatprep.subr.bf16.mxu0 0
        %3532 = vmatpush1.bf16.msra.mxu0 %v3514
        %3533 = vmatprep.subr.bf16.mxu0 0
        %3534 = vmatpush1.bf16.msra.mxu0 %v3515
        %3535 = vmatprep.subr.bf16.mxu0 0
        %3536 = vmatpush1.bf16.msra.mxu0 %v3516
        %3537 = vmatprep.subr.bf16.mxu0 0
        %3538 = vmatpush1.bf16.msra.mxu0 %v3517
        %3539 = vmatprep.subr.bf16.mxu0 0
        %3540 = vmatpush1.bf16.msra.mxu0 %v3518
        %3541 = vmatprep.subr.bf16.mxu0 0
        %3542 = vmatpush1.bf16.msra.mxu0 %v3519
        %3543 = vmatprep.subr.bf16.mxu0 0
        %3544 = vmatpush1.bf16.msra.mxu0 %v3520
        %3545 = vmatprep.subr.bf16.mxu0 0
        %3546 = vmatpush1.bf16.msra.mxu0 0
        %3547 = vmatprep.subr.bf16.mxu0 0
        %3548 = vmatpush1.bf16.msra.mxu0 0
        %3549 = vmatprep.subr.bf16.mxu0 0
        %3550 = vmatpush1.bf16.msra.mxu0 0
        %3551 = vmatprep.subr.bf16.mxu0 0
        %3552 = vmatpush1.bf16.msra.mxu0 0
        %3553 = vmatprep.subr.bf16.mxu0 0
        %3554 = vmatpush1.bf16.msra.mxu0 0
        %3555 = vmatprep.subr.bf16.mxu0 0
        %3556 = vmatpush1.bf16.msra.mxu0 0
        %3557 = vmatprep.subr.bf16.mxu0 0
        %3558 = vmatpush1.bf16.msra.mxu0 0
        %3559 = vmatprep.subr.bf16.mxu0 0
        %3560 = vmatpush1.bf16.msra.mxu0 0
        %3561 = vmatprep.mubr.bf16.mxu0 0
        %3562 = vmatmul.mubr.bf16.gmra.mrb[0].mxu0 %v3463
        %v3563 = vpop.f32.mrb[0].mxu0
        %v3564 = vadd.f32 0.0, %v3563
        %v3565 = vpop.f32.mrb[0].mxu0
        %v3566 = vpop.f32.mrb[0].mxu0
        %v3567 = vadd.f32 0.0, %v3566
        %v3568 = vpop.f32.mrb[0].mxu0
        %3569 = vmatprep.mubr.bf16.mxu0 0
        %3570 = vmatmul.mubr.bf16.gmra.mrb[0].mxu0 %v3464
        %v3571 = vpop.f32.mrb[0].mxu0
        %v3572 = vadd.f32 0.0, %v3571
        %v3573 = vpop.f32.mrb[0].mxu0
        %v3574 = vpop.f32.mrb[0].mxu0
        %v3575 = vadd.f32 0.0, %v3574
        %v3576 = vpop.f32.mrb[0].mxu0
        %3577 = vdwg.mxu0
        %v3578 = vld [vmem:[%s1107] sm:$0xf]
        %v3579 = vld [vmem:[%s1107 + $0x4] sm:$0xf]
        %v3580 = vld [vmem:[%s1107 + $0x8] sm:$0xf]
        %v3581 = vld [vmem:[%s1107 + $0xc] sm:$0xf]
        %v3582 = vld [vmem:[%s1107 + $0x10] sm:$0xf]
        %v3583 = vld [vmem:[%s1107 + $0x14] sm:$0xf]
        %v3584 = vld [vmem:[%s1107 + $0x18] sm:$0xf]
        %v3585 = vld [vmem:[%s1107 + $0x1c] sm:$0xf]
        %v3586 = vld [vmem:[%s1107 + $0x20] sm:$0xf]
        %v3587 = vld [vmem:[%s1107 + $0x24] sm:$0xf]
        %v3588 = vld [vmem:[%s1107 + $0x28] sm:$0xf]
        %v3589 = vld [vmem:[%s1107 + $0x2c] sm:$0xf]
        %v3590 = vld [vmem:[%s1107 + $0x30] sm:$0xf]
        %v3591 = vld [vmem:[%s1107 + $0x34] sm:$0xf]
        %v3592 = vld [vmem:[%s1107 + $0x38] sm:$0xf]
        %v3593 = vld [vmem:[%s1107 + $0x3c] sm:$0xf]
        %v3610 = vunpack.c.l.b16 %v3578
        %v3611 = vunpack.c.l.b16 %v3579
        %v3612 = vunpack.c.l.b16 %v3580
        %v3613 = vunpack.c.l.b16 %v3581
        %v3614 = vunpack.c.l.b16 %v3582
        %v3615 = vunpack.c.l.b16 %v3583
        %v3616 = vunpack.c.l.b16 %v3584
        %v3617 = vunpack.c.l.b16 %v3585
        %v3618 = vunpack.c.l.b16 %v3586
        %v3619 = vunpack.c.l.b16 %v3587
        %v3620 = vunpack.c.l.b16 %v3588
        %v3621 = vunpack.c.l.b16 %v3589
        %v3622 = vunpack.c.l.b16 %v3590
        %v3623 = vunpack.c.l.b16 %v3591
        %v3624 = vunpack.c.l.b16 %v3592
        %v3625 = vunpack.c.l.b16 %v3593
        %v3626 = vpack.c.b16 %v3611, %v3610
        %v3627 = vpack.c.b16 %v3613, %v3612
        %v3628 = vpack.c.b16 %v3615, %v3614
        %v3629 = vpack.c.b16 %v3617, %v3616
        %v3630 = vpack.c.b16 %v3619, %v3618
        %v3631 = vpack.c.b16 %v3621, %v3620
        %v3632 = vpack.c.b16 %v3623, %v3622
        %v3633 = vpack.c.b16 %v3625, %v3624
        %3642 = vmatprep.subr.bf16.mxu0 0
        %3643 = vmatpush1.bf16.msra.mxu0 %v3626
        %3644 = vmatprep.subr.bf16.mxu0 0
        %3645 = vmatpush1.bf16.msra.mxu0 %v3627
        %3646 = vmatprep.subr.bf16.mxu0 0
        %3647 = vmatpush1.bf16.msra.mxu0 %v3628
        %3648 = vmatprep.subr.bf16.mxu0 0
        %3649 = vmatpush1.bf16.msra.mxu0 %v3629
        %3650 = vmatprep.subr.bf16.mxu0 0
        %3651 = vmatpush1.bf16.msra.mxu0 %v3630
        %3652 = vmatprep.subr.bf16.mxu0 0
        %3653 = vmatpush1.bf16.msra.mxu0 %v3631
        %3654 = vmatprep.subr.bf16.mxu0 0
        %3655 = vmatpush1.bf16.msra.mxu0 %v3632
        %3656 = vmatprep.subr.bf16.mxu0 0
        %3657 = vmatpush1.bf16.msra.mxu0 %v3633
        %3658 = vmatprep.subr.bf16.mxu0 0
        %3659 = vmatpush1.bf16.msra.mxu0 0
        %3660 = vmatprep.subr.bf16.mxu0 0
        %3661 = vmatpush1.bf16.msra.mxu0 0
        %3662 = vmatprep.subr.bf16.mxu0 0
        %3663 = vmatpush1.bf16.msra.mxu0 0
        %3664 = vmatprep.subr.bf16.mxu0 0
        %3665 = vmatpush1.bf16.msra.mxu0 0
        %3666 = vmatprep.subr.bf16.mxu0 0
        %3667 = vmatpush1.bf16.msra.mxu0 0
        %3668 = vmatprep.subr.bf16.mxu0 0
        %3669 = vmatpush1.bf16.msra.mxu0 0
        %3670 = vmatprep.subr.bf16.mxu0 0
        %3671 = vmatpush1.bf16.msra.mxu0 0
        %3672 = vmatprep.subr.bf16.mxu0 0
        %3673 = vmatpush1.bf16.msra.mxu0 0
        %3674 = vmatprep.mubr.bf16.mxu0 0
        %3675 = vmatmul.mubr.bf16.gmra.mrb[0].mxu0 %v3463
        %v3676 = vpop.f32.mrb[0].mxu0
        %v3677 = vadd.f32 0.0, %v3676
        %v3678 = vpop.f32.mrb[0].mxu0
        %v3679 = vpop.f32.mrb[0].mxu0
        %v3680 = vadd.f32 0.0, %v3679
        %v3681 = vpop.f32.mrb[0].mxu0
        %3682 = vmatprep.mubr.bf16.mxu0 0
        %3683 = vmatmul.mubr.bf16.gmra.mrb[0].mxu0 %v3464
        %v3684 = vpop.f32.mrb[0].mxu0
        %v3685 = vadd.f32 0.0, %v3684
        %v3686 = vpop.f32.mrb[0].mxu0
        %v3687 = vpop.f32.mrb[0].mxu0
        %v3688 = vadd.f32 0.0, %v3687
        %v3689 = vpop.f32.mrb[0].mxu0
        %3690 = vdwg.mxu0
        %v3691 = vmul.f32 %v3457, 0.25
        %v3692 = vpack.c.bf16 %v3567, %v3564
        %v3693 = vpack.c.bf16 %v3680, %v3677
        %v3694 = vsel %vm1542, %v3691, 0.0
        %v3695 = vpack.c.bf16 %v3694, %v3694
        %3696 = vmatprep.subr.bf16.mxu0 0
        %3697 = vmatpush1.bf16.xpose.msra.mxu0 %v3692
        %3698 = vmatprep.subr.bf16.mxu0 0
        %3699 = vmatpush1.bf16.xpose.msra.mxu0 0
        %3700 = vmatprep.subr.bf16.mxu0 0
        %3701 = vmatpush1.bf16.xpose.msra.mxu0 0
        %3702 = vmatprep.subr.bf16.mxu0 0
        %3703 = vmatpush1.bf16.xpose.msra.mxu0 0
        %3704 = vmatprep.subr.bf16.mxu0 0
        %3705 = vmatpush1.bf16.xpose.msra.mxu0 0
        %3706 = vmatprep.subr.bf16.mxu0 0
        %3707 = vmatpush1.bf16.xpose.msra.mxu0 0
        %3708 = vmatprep.subr.bf16.mxu0 0
        %3709 = vmatpush1.bf16.xpose.msra.mxu0 0
        %3710 = vmatprep.subr.bf16.mxu0 0
        %3711 = vmatpush1.bf16.xpose.msra.mxu0 0
        %3712 = vmatprep.subr.bf16.mxu0 0
        %3713 = vmatpush1.bf16.xpose.msra.mxu0 0
        %3714 = vmatprep.subr.bf16.mxu0 0
        %3715 = vmatpush1.bf16.xpose.msra.mxu0 0
        %3716 = vmatprep.subr.bf16.mxu0 0
        %3717 = vmatpush1.bf16.xpose.msra.mxu0 0
        %3718 = vmatprep.subr.bf16.mxu0 0
        %3719 = vmatpush1.bf16.xpose.msra.mxu0 0
        %3720 = vmatprep.subr.bf16.mxu0 0
        %3721 = vmatpush1.bf16.xpose.msra.mxu0 0
        %3722 = vmatprep.subr.bf16.mxu0 0
        %3723 = vmatpush1.bf16.xpose.msra.mxu0 0
        %3724 = vmatprep.subr.bf16.mxu0 0
        %3725 = vmatpush1.bf16.xpose.msra.mxu0 0
        %3726 = vmatprep.subr.bf16.mxu0 0
        %3727 = vmatpush1.bf16.xpose.msra.mxu0 0
        %3728 = vmatprep.mubr.bf16.mxu0 0
        %3729 = vmatmul.mubr.bf16.gmra.mrb[0].mxu0 %v3695
        %v3730 = vpop.f32.mrb[0].mxu0
        %v3731 = vadd.f32 0.0, %v3730
        %v3732 = vpop.f32.mrb[0].mxu0
        %v3733 = vpop.f32.mrb[0].mxu0
        %v3734 = vpop.f32.mrb[0].mxu0
        %3735 = vdwg.mxu0
        %vm3736 = vcmask 130048
        %v3737 = vsel %vm3736, %v3731, -inf
        %3738 = vmax.xlane.f32.xlu0 %v3737
        %v3739 = vpop.xlane.xlu0 %3738
        %v3740 = vsub.f32 %v3731, %v3739
        %v3741 = vmul.f32 %v3740, 1.442695
        %v3742 = vpow.pop %v3741
        %v3743 = vsel %vm3736, %v3742, 0.0
        %3744 = vadd.xlane.f32.xlu0 %v3743
        %v3745 = vpop.xlane.xlu0 %3744
        %v3746 = vrcp.pop %v3745
        %v3747 = vmul.f32 %v3742, %v3746
        %v3748 = vpack.c.bf16 %v3747, %v3747
        %v3750 = vsel %vm3736, %v3748, 0
        %3752 = vmatprep.subr.bf16.mxu0 0
        %3753 = vmatpush1.bf16.msra.mxu0 %v3693
        %3754 = vmatprep.subr.bf16.mxu0 0
        %3755 = vmatpush1.bf16.msra.mxu0 0
        %3756 = vmatprep.subr.bf16.mxu0 0
        %3757 = vmatpush1.bf16.msra.mxu0 0
        %3758 = vmatprep.subr.bf16.mxu0 0
        %3759 = vmatpush1.bf16.msra.mxu0 0
        %3760 = vmatprep.subr.bf16.mxu0 0
        %3761 = vmatpush1.bf16.msra.mxu0 0
        %3762 = vmatprep.subr.bf16.mxu0 0
        %3763 = vmatpush1.bf16.msra.mxu0 0
        %3764 = vmatprep.subr.bf16.mxu0 0
        %3765 = vmatpush1.bf16.msra.mxu0 0
        %3766 = vmatprep.subr.bf16.mxu0 0
        %3767 = vmatpush1.bf16.msra.mxu0 0
        %3768 = vmatprep.subr.bf16.mxu0 0
        %3769 = vmatpush1.bf16.msra.mxu0 0
        %3770 = vmatprep.subr.bf16.mxu0 0
        %3771 = vmatpush1.bf16.msra.mxu0 0
        %3772 = vmatprep.subr.bf16.mxu0 0
        %3773 = vmatpush1.bf16.msra.mxu0 0
        %3774 = vmatprep.subr.bf16.mxu0 0
        %3775 = vmatpush1.bf16.msra.mxu0 0
        %3776 = vmatprep.subr.bf16.mxu0 0
        %3777 = vmatpush1.bf16.msra.mxu0 0
        %3778 = vmatprep.subr.bf16.mxu0 0
        %3779 = vmatpush1.bf16.msra.mxu0 0
        %3780 = vmatprep.subr.bf16.mxu0 0
        %3781 = vmatpush1.bf16.msra.mxu0 0
        %3782 = vmatprep.subr.bf16.mxu0 0
        %3783 = vmatpush1.bf16.msra.mxu0 0
        %3784 = vmatprep.mubr.bf16.mxu0 0
        %3785 = vmatmul.mubr.bf16.gmra.mrb[0].mxu0 %v3750
        %v3786 = vpop.f32.mrb[0].mxu0
        %v3787 = vadd.f32 0.0, %v3786
        %v3788 = vpop.f32.mrb[0].mxu0
        %v3789 = vpop.f32.mrb[0].mxu0
        %v3790 = vpop.f32.mrb[0].mxu0
        %3791 = vdwg.mxu0
        %v3792 = vsel %vm1542, %v3787, 0.0
        %v3793 = vsel %vm1647, %v3691, 0.0
        %v3794 = vpack.c.bf16 %v3793, %v3793
        %3795 = vmatprep.subr.bf16.mxu0 0
        %3796 = vmatpush1.bf16.xpose.msra.mxu0 %v3692
        %3797 = vmatprep.subr.bf16.mxu0 0
        %3798 = vmatpush1.bf16.xpose.msra.mxu0 0
        %3799 = vmatprep.subr.bf16.mxu0 0
        %3800 = vmatpush1.bf16.xpose.msra.mxu0 0
        %3801 = vmatprep.subr.bf16.mxu0 0
        %3802 = vmatpush1.bf16.xpose.msra.mxu0 0
        %3803 = vmatprep.subr.bf16.mxu0 0
        %3804 = vmatpush1.bf16.xpose.msra.mxu0 0
        %3805 = vmatprep.subr.bf16.mxu0 0
        %3806 = vmatpush1.bf16.xpose.msra.mxu0 0
        %3807 = vmatprep.subr.bf16.mxu0 0
        %3808 = vmatpush1.bf16.xpose.msra.mxu0 0
        %3809 = vmatprep.subr.bf16.mxu0 0
        %3810 = vmatpush1.bf16.xpose.msra.mxu0 0
        %3811 = vmatprep.subr.bf16.mxu0 0
        %3812 = vmatpush1.bf16.xpose.msra.mxu0 0
        %3813 = vmatprep.subr.bf16.mxu0 0
        %3814 = vmatpush1.bf16.xpose.msra.mxu0 0
        %3815 = vmatprep.subr.bf16.mxu0 0
        %3816 = vmatpush1.bf16.xpose.msra.mxu0 0
        %3817 = vmatprep.subr.bf16.mxu0 0
        %3818 = vmatpush1.bf16.xpose.msra.mxu0 0
        %3819 = vmatprep.subr.bf16.mxu0 0
        %3820 = vmatpush1.bf16.xpose.msra.mxu0 0
        %3821 = vmatprep.subr.bf16.mxu0 0
        %3822 = vmatpush1.bf16.xpose.msra.mxu0 0
        %3823 = vmatprep.subr.bf16.mxu0 0
        %3824 = vmatpush1.bf16.xpose.msra.mxu0 0
        %3825 = vmatprep.subr.bf16.mxu0 0
        %3826 = vmatpush1.bf16.xpose.msra.mxu0 0
        %3827 = vmatprep.mubr.bf16.mxu0 0
        %3828 = vmatmul.mubr.bf16.gmra.mrb[0].mxu0 %v3794
        %v3829 = vpop.f32.mrb[0].mxu0
        %v3830 = vadd.f32 0.0, %v3829
        %v3831 = vpop.f32.mrb[0].mxu0
        %v3832 = vpop.f32.mrb[0].mxu0
        %v3833 = vpop.f32.mrb[0].mxu0
        %3834 = vdwg.mxu0
        %v3835 = vsel %vm3736, %v3830, -inf
        %3836 = vmax.xlane.f32.xlu0 %v3835
        %v3837 = vpop.xlane.xlu0 %3836
        %v3838 = vsub.f32 %v3830, %v3837
        %v3839 = vmul.f32 %v3838, 1.442695
        %v3840 = vpow.pop %v3839
        %v3841 = vsel %vm3736, %v3840, 0.0
        %3842 = vadd.xlane.f32.xlu0 %v3841
        %v3843 = vpop.xlane.xlu0 %3842
        %v3844 = vrcp.pop %v3843
        %v3845 = vmul.f32 %v3840, %v3844
        %v3846 = vpack.c.bf16 %v3845, %v3845
        %v3848 = vsel %vm3736, %v3846, 0
        %3850 = vmatprep.subr.bf16.mxu0 0
        %3851 = vmatpush1.bf16.msra.mxu0 %v3693
        %3852 = vmatprep.subr.bf16.mxu0 0
        %3853 = vmatpush1.bf16.msra.mxu0 0
        %3854 = vmatprep.subr.bf16.mxu0 0
        %3855 = vmatpush1.bf16.msra.mxu0 0
        %3856 = vmatprep.subr.bf16.mxu0 0
        %3857 = vmatpush1.bf16.msra.mxu0 0
        %3858 = vmatprep.subr.bf16.mxu0 0
        %3859 = vmatpush1.bf16.msra.mxu0 0
        %3860 = vmatprep.subr.bf16.mxu0 0
        %3861 = vmatpush1.bf16.msra.mxu0 0
        %3862 = vmatprep.subr.bf16.mxu0 0
        %3863 = vmatpush1.bf16.msra.mxu0 0
        %3864 = vmatprep.subr.bf16.mxu0 0
        %3865 = vmatpush1.bf16.msra.mxu0 0
        %3866 = vmatprep.subr.bf16.mxu0 0
        %3867 = vmatpush1.bf16.msra.mxu0 0
        %3868 = vmatprep.subr.bf16.mxu0 0
        %3869 = vmatpush1.bf16.msra.mxu0 0
        %3870 = vmatprep.subr.bf16.mxu0 0
        %3871 = vmatpush1.bf16.msra.mxu0 0
        %3872 = vmatprep.subr.bf16.mxu0 0
        %3873 = vmatpush1.bf16.msra.mxu0 0
        %3874 = vmatprep.subr.bf16.mxu0 0
        %3875 = vmatpush1.bf16.msra.mxu0 0
        %3876 = vmatprep.subr.bf16.mxu0 0
        %3877 = vmatpush1.bf16.msra.mxu0 0
        %3878 = vmatprep.subr.bf16.mxu0 0
        %3879 = vmatpush1.bf16.msra.mxu0 0
        %3880 = vmatprep.subr.bf16.mxu0 0
        %3881 = vmatpush1.bf16.msra.mxu0 0
        %3882 = vmatprep.mubr.bf16.mxu0 0
        %3883 = vmatmul.mubr.bf16.gmra.mrb[0].mxu0 %v3848
        %v3884 = vpop.f32.mrb[0].mxu0
        %v3885 = vadd.f32 0.0, %v3884
        %v3886 = vpop.f32.mrb[0].mxu0
        %v3887 = vpop.f32.mrb[0].mxu0
        %v3888 = vpop.f32.mrb[0].mxu0
        %3889 = vdwg.mxu0
        %v3890 = vsel %vm1647, %v3885, %v3792
        %v3891 = vsel %vm1747, %v3691, 0.0
        %v3892 = vpack.c.bf16 %v3891, %v3891
        %3893 = vmatprep.subr.bf16.mxu0 0
        %3894 = vmatpush1.bf16.xpose.msra.mxu0 %v3692
        %3895 = vmatprep.subr.bf16.mxu0 0
        %3896 = vmatpush1.bf16.xpose.msra.mxu0 0
        %3897 = vmatprep.subr.bf16.mxu0 0
        %3898 = vmatpush1.bf16.xpose.msra.mxu0 0
        %3899 = vmatprep.subr.bf16.mxu0 0
        %3900 = vmatpush1.bf16.xpose.msra.mxu0 0
        %3901 = vmatprep.subr.bf16.mxu0 0
        %3902 = vmatpush1.bf16.xpose.msra.mxu0 0
        %3903 = vmatprep.subr.bf16.mxu0 0
        %3904 = vmatpush1.bf16.xpose.msra.mxu0 0
        %3905 = vmatprep.subr.bf16.mxu0 0
        %3906 = vmatpush1.bf16.xpose.msra.mxu0 0
        %3907 = vmatprep.subr.bf16.mxu0 0
        %3908 = vmatpush1.bf16.xpose.msra.mxu0 0
        %3909 = vmatprep.subr.bf16.mxu0 0
        %3910 = vmatpush1.bf16.xpose.msra.mxu0 0
        %3911 = vmatprep.subr.bf16.mxu0 0
        %3912 = vmatpush1.bf16.xpose.msra.mxu0 0
        %3913 = vmatprep.subr.bf16.mxu0 0
        %3914 = vmatpush1.bf16.xpose.msra.mxu0 0
        %3915 = vmatprep.subr.bf16.mxu0 0
        %3916 = vmatpush1.bf16.xpose.msra.mxu0 0
        %3917 = vmatprep.subr.bf16.mxu0 0
        %3918 = vmatpush1.bf16.xpose.msra.mxu0 0
        %3919 = vmatprep.subr.bf16.mxu0 0
        %3920 = vmatpush1.bf16.xpose.msra.mxu0 0
        %3921 = vmatprep.subr.bf16.mxu0 0
        %3922 = vmatpush1.bf16.xpose.msra.mxu0 0
        %3923 = vmatprep.subr.bf16.mxu0 0
        %3924 = vmatpush1.bf16.xpose.msra.mxu0 0
        %3925 = vmatprep.mubr.bf16.mxu0 0
        %3926 = vmatmul.mubr.bf16.gmra.mrb[0].mxu0 %v3892
        %v3927 = vpop.f32.mrb[0].mxu0
        %v3928 = vadd.f32 0.0, %v3927
        %v3929 = vpop.f32.mrb[0].mxu0
        %v3930 = vpop.f32.mrb[0].mxu0
        %v3931 = vpop.f32.mrb[0].mxu0
        %3932 = vdwg.mxu0
        %v3933 = vsel %vm3736, %v3928, -inf
        %3934 = vmax.xlane.f32.xlu0 %v3933
        %v3935 = vpop.xlane.xlu0 %3934
        %v3936 = vsub.f32 %v3928, %v3935
        %v3937 = vmul.f32 %v3936, 1.442695
        %v3938 = vpow.pop %v3937
        %v3939 = vsel %vm3736, %v3938, 0.0
        %3940 = vadd.xlane.f32.xlu0 %v3939
        %v3941 = vpop.xlane.xlu0 %3940
        %v3942 = vrcp.pop %v3941
        %v3943 = vmul.f32 %v3938, %v3942
        %v3944 = vpack.c.bf16 %v3943, %v3943
        %v3946 = vsel %vm3736, %v3944, 0
        %3948 = vmatprep.subr.bf16.mxu0 0
        %3949 = vmatpush1.bf16.msra.mxu0 %v3693
        %3950 = vmatprep.subr.bf16.mxu0 0
        %3951 = vmatpush1.bf16.msra.mxu0 0
        %3952 = vmatprep.subr.bf16.mxu0 0
        %3953 = vmatpush1.bf16.msra.mxu0 0
        %3954 = vmatprep.subr.bf16.mxu0 0
        %3955 = vmatpush1.bf16.msra.mxu0 0
        %3956 = vmatprep.subr.bf16.mxu0 0
        %3957 = vmatpush1.bf16.msra.mxu0 0
        %3958 = vmatprep.subr.bf16.mxu0 0
        %3959 = vmatpush1.bf16.msra.mxu0 0
        %3960 = vmatprep.subr.bf16.mxu0 0
        %3961 = vmatpush1.bf16.msra.mxu0 0
        %3962 = vmatprep.subr.bf16.mxu0 0
        %3963 = vmatpush1.bf16.msra.mxu0 0
        %3964 = vmatprep.subr.bf16.mxu0 0
        %3965 = vmatpush1.bf16.msra.mxu0 0
        %3966 = vmatprep.subr.bf16.mxu0 0
        %3967 = vmatpush1.bf16.msra.mxu0 0
        %3968 = vmatprep.subr.bf16.mxu0 0
        %3969 = vmatpush1.bf16.msra.mxu0 0
        %3970 = vmatprep.subr.bf16.mxu0 0
        %3971 = vmatpush1.bf16.msra.mxu0 0
        %3972 = vmatprep.subr.bf16.mxu0 0
        %3973 = vmatpush1.bf16.msra.mxu0 0
        %3974 = vmatprep.subr.bf16.mxu0 0
        %3975 = vmatpush1.bf16.msra.mxu0 0
        %3976 = vmatprep.subr.bf16.mxu0 0
        %3977 = vmatpush1.bf16.msra.mxu0 0
        %3978 = vmatprep.subr.bf16.mxu0 0
        %3979 = vmatpush1.bf16.msra.mxu0 0
        %3980 = vmatprep.mubr.bf16.mxu0 0
        %3981 = vmatmul.mubr.bf16.gmra.mrb[0].mxu0 %v3946
        %v3982 = vpop.f32.mrb[0].mxu0
        %v3983 = vadd.f32 0.0, %v3982
        %v3984 = vpop.f32.mrb[0].mxu0
        %v3985 = vpop.f32.mrb[0].mxu0
        %v3986 = vpop.f32.mrb[0].mxu0
        %3987 = vdwg.mxu0
        %v3988 = vsel %vm1747, %v3983, %v3890
        %v3989 = vsel %vm1847, %v3691, 0.0
        %v3990 = vpack.c.bf16 %v3989, %v3989
        %3991 = vmatprep.subr.bf16.mxu0 0
        %3992 = vmatpush1.bf16.xpose.msra.mxu0 %v3692
        %3993 = vmatprep.subr.bf16.mxu0 0
        %3994 = vmatpush1.bf16.xpose.msra.mxu0 0
        %3995 = vmatprep.subr.bf16.mxu0 0
        %3996 = vmatpush1.bf16.xpose.msra.mxu0 0
        %3997 = vmatprep.subr.bf16.mxu0 0
        %3998 = vmatpush1.bf16.xpose.msra.mxu0 0
        %3999 = vmatprep.subr.bf16.mxu0 0
        %4000 = vmatpush1.bf16.xpose.msra.mxu0 0
        %4001 = vmatprep.subr.bf16.mxu0 0
        %4002 = vmatpush1.bf16.xpose.msra.mxu0 0
        %4003 = vmatprep.subr.bf16.mxu0 0
        %4004 = vmatpush1.bf16.xpose.msra.mxu0 0
        %4005 = vmatprep.subr.bf16.mxu0 0
        %4006 = vmatpush1.bf16.xpose.msra.mxu0 0
        %4007 = vmatprep.subr.bf16.mxu0 0
        %4008 = vmatpush1.bf16.xpose.msra.mxu0 0
        %4009 = vmatprep.subr.bf16.mxu0 0
        %4010 = vmatpush1.bf16.xpose.msra.mxu0 0
        %4011 = vmatprep.subr.bf16.mxu0 0
        %4012 = vmatpush1.bf16.xpose.msra.mxu0 0
        %4013 = vmatprep.subr.bf16.mxu0 0
        %4014 = vmatpush1.bf16.xpose.msra.mxu0 0
        %4015 = vmatprep.subr.bf16.mxu0 0
        %4016 = vmatpush1.bf16.xpose.msra.mxu0 0
        %4017 = vmatprep.subr.bf16.mxu0 0
        %4018 = vmatpush1.bf16.xpose.msra.mxu0 0
        %4019 = vmatprep.subr.bf16.mxu0 0
        %4020 = vmatpush1.bf16.xpose.msra.mxu0 0
        %4021 = vmatprep.subr.bf16.mxu0 0
        %4022 = vmatpush1.bf16.xpose.msra.mxu0 0
        %4023 = vmatprep.mubr.bf16.mxu0 0
        %4024 = vmatmul.mubr.bf16.gmra.mrb[0].mxu0 %v3990
        %v4025 = vpop.f32.mrb[0].mxu0
        %v4026 = vadd.f32 0.0, %v4025
        %v4027 = vpop.f32.mrb[0].mxu0
        %v4028 = vpop.f32.mrb[0].mxu0
        %v4029 = vpop.f32.mrb[0].mxu0
        %4030 = vdwg.mxu0
        %v4031 = vsel %vm3736, %v4026, -inf
        %4032 = vmax.xlane.f32.xlu0 %v4031
        %v4033 = vpop.xlane.xlu0 %4032
        %v4034 = vsub.f32 %v4026, %v4033
        %v4035 = vmul.f32 %v4034, 1.442695
        %v4036 = vpow.pop %v4035
        %v4037 = vsel %vm3736, %v4036, 0.0
        %4038 = vadd.xlane.f32.xlu0 %v4037
        %v4039 = vpop.xlane.xlu0 %4038
        %v4040 = vrcp.pop %v4039
        %v4041 = vmul.f32 %v4036, %v4040
        %v4042 = vpack.c.bf16 %v4041, %v4041
        %v4044 = vsel %vm3736, %v4042, 0
        %4046 = vmatprep.subr.bf16.mxu0 0
        %4047 = vmatpush1.bf16.msra.mxu0 %v3693
        %4048 = vmatprep.subr.bf16.mxu0 0
        %4049 = vmatpush1.bf16.msra.mxu0 0
        %4050 = vmatprep.subr.bf16.mxu0 0
        %4051 = vmatpush1.bf16.msra.mxu0 0
        %4052 = vmatprep.subr.bf16.mxu0 0
        %4053 = vmatpush1.bf16.msra.mxu0 0
        %4054 = vmatprep.subr.bf16.mxu0 0
        %4055 = vmatpush1.bf16.msra.mxu0 0
        %4056 = vmatprep.subr.bf16.mxu0 0
        %4057 = vmatpush1.bf16.msra.mxu0 0
        %4058 = vmatprep.subr.bf16.mxu0 0
        %4059 = vmatpush1.bf16.msra.mxu0 0
        %4060 = vmatprep.subr.bf16.mxu0 0
        %4061 = vmatpush1.bf16.msra.mxu0 0
        %4062 = vmatprep.subr.bf16.mxu0 0
        %4063 = vmatpush1.bf16.msra.mxu0 0
        %4064 = vmatprep.subr.bf16.mxu0 0
        %4065 = vmatpush1.bf16.msra.mxu0 0
        %4066 = vmatprep.subr.bf16.mxu0 0
        %4067 = vmatpush1.bf16.msra.mxu0 0
        %4068 = vmatprep.subr.bf16.mxu0 0
        %4069 = vmatpush1.bf16.msra.mxu0 0
        %4070 = vmatprep.subr.bf16.mxu0 0
        %4071 = vmatpush1.bf16.msra.mxu0 0
        %4072 = vmatprep.subr.bf16.mxu0 0
        %4073 = vmatpush1.bf16.msra.mxu0 0
        %4074 = vmatprep.subr.bf16.mxu0 0
        %4075 = vmatpush1.bf16.msra.mxu0 0
        %4076 = vmatprep.subr.bf16.mxu0 0
        %4077 = vmatpush1.bf16.msra.mxu0 0
        %4078 = vmatprep.mubr.bf16.mxu0 0
        %4079 = vmatmul.mubr.bf16.gmra.mrb[0].mxu0 %v4044
        %v4080 = vpop.f32.mrb[0].mxu0
        %v4081 = vadd.f32 0.0, %v4080
        %v4082 = vpop.f32.mrb[0].mxu0
        %v4083 = vpop.f32.mrb[0].mxu0
        %v4084 = vpop.f32.mrb[0].mxu0
        %4085 = vdwg.mxu0
        %v4086 = vsel %vm1847, %v4081, %v3988
        %v4087 = vsel %vm1947, %v3691, 0.0
        %v4088 = vpack.c.bf16 %v4087, %v4087
        %4089 = vmatprep.subr.bf16.mxu0 0
        %4090 = vmatpush1.bf16.xpose.msra.mxu0 %v3692
        %4091 = vmatprep.subr.bf16.mxu0 0
        %4092 = vmatpush1.bf16.xpose.msra.mxu0 0
        %4093 = vmatprep.subr.bf16.mxu0 0
        %4094 = vmatpush1.bf16.xpose.msra.mxu0 0
        %4095 = vmatprep.subr.bf16.mxu0 0
        %4096 = vmatpush1.bf16.xpose.msra.mxu0 0
        %4097 = vmatprep.subr.bf16.mxu0 0
        %4098 = vmatpush1.bf16.xpose.msra.mxu0 0
        %4099 = vmatprep.subr.bf16.mxu0 0
        %4100 = vmatpush1.bf16.xpose.msra.mxu0 0
        %4101 = vmatprep.subr.bf16.mxu0 0
        %4102 = vmatpush1.bf16.xpose.msra.mxu0 0
        %4103 = vmatprep.subr.bf16.mxu0 0
        %4104 = vmatpush1.bf16.xpose.msra.mxu0 0
        %4105 = vmatprep.subr.bf16.mxu0 0
        %4106 = vmatpush1.bf16.xpose.msra.mxu0 0
        %4107 = vmatprep.subr.bf16.mxu0 0
        %4108 = vmatpush1.bf16.xpose.msra.mxu0 0
        %4109 = vmatprep.subr.bf16.mxu0 0
        %4110 = vmatpush1.bf16.xpose.msra.mxu0 0
        %4111 = vmatprep.subr.bf16.mxu0 0
        %4112 = vmatpush1.bf16.xpose.msra.mxu0 0
        %4113 = vmatprep.subr.bf16.mxu0 0
        %4114 = vmatpush1.bf16.xpose.msra.mxu0 0
        %4115 = vmatprep.subr.bf16.mxu0 0
        %4116 = vmatpush1.bf16.xpose.msra.mxu0 0
        %4117 = vmatprep.subr.bf16.mxu0 0
        %4118 = vmatpush1.bf16.xpose.msra.mxu0 0
        %4119 = vmatprep.subr.bf16.mxu0 0
        %4120 = vmatpush1.bf16.xpose.msra.mxu0 0
        %4121 = vmatprep.mubr.bf16.mxu0 0
        %4122 = vmatmul.mubr.bf16.gmra.mrb[0].mxu0 %v4088
        %v4123 = vpop.f32.mrb[0].mxu0
        %v4124 = vadd.f32 0.0, %v4123
        %v4125 = vpop.f32.mrb[0].mxu0
        %v4126 = vpop.f32.mrb[0].mxu0
        %v4127 = vpop.f32.mrb[0].mxu0
        %4128 = vdwg.mxu0
        %v4129 = vsel %vm3736, %v4124, -inf
        %4130 = vmax.xlane.f32.xlu0 %v4129
        %v4131 = vpop.xlane.xlu0 %4130
        %v4132 = vsub.f32 %v4124, %v4131
        %v4133 = vmul.f32 %v4132, 1.442695
        %v4134 = vpow.pop %v4133
        %v4135 = vsel %vm3736, %v4134, 0.0
        %4136 = vadd.xlane.f32.xlu0 %v4135
        %v4137 = vpop.xlane.xlu0 %4136
        %v4138 = vrcp.pop %v4137
        %v4139 = vmul.f32 %v4134, %v4138
        %v4140 = vpack.c.bf16 %v4139, %v4139
        %v4142 = vsel %vm3736, %v4140, 0
        %4144 = vmatprep.subr.bf16.mxu0 0
        %4145 = vmatpush1.bf16.msra.mxu0 %v3693
        %4146 = vmatprep.subr.bf16.mxu0 0
        %4147 = vmatpush1.bf16.msra.mxu0 0
        %4148 = vmatprep.subr.bf16.mxu0 0
        %4149 = vmatpush1.bf16.msra.mxu0 0
        %4150 = vmatprep.subr.bf16.mxu0 0
        %4151 = vmatpush1.bf16.msra.mxu0 0
        %4152 = vmatprep.subr.bf16.mxu0 0
        %4153 = vmatpush1.bf16.msra.mxu0 0
        %4154 = vmatprep.subr.bf16.mxu0 0
        %4155 = vmatpush1.bf16.msra.mxu0 0
        %4156 = vmatprep.subr.bf16.mxu0 0
        %4157 = vmatpush1.bf16.msra.mxu0 0
        %4158 = vmatprep.subr.bf16.mxu0 0
        %4159 = vmatpush1.bf16.msra.mxu0 0
        %4160 = vmatprep.subr.bf16.mxu0 0
        %4161 = vmatpush1.bf16.msra.mxu0 0
        %4162 = vmatprep.subr.bf16.mxu0 0
        %4163 = vmatpush1.bf16.msra.mxu0 0
        %4164 = vmatprep.subr.bf16.mxu0 0
        %4165 = vmatpush1.bf16.msra.mxu0 0
        %4166 = vmatprep.subr.bf16.mxu0 0
        %4167 = vmatpush1.bf16.msra.mxu0 0
        %4168 = vmatprep.subr.bf16.mxu0 0
        %4169 = vmatpush1.bf16.msra.mxu0 0
        %4170 = vmatprep.subr.bf16.mxu0 0
        %4171 = vmatpush1.bf16.msra.mxu0 0
        %4172 = vmatprep.subr.bf16.mxu0 0
        %4173 = vmatpush1.bf16.msra.mxu0 0
        %4174 = vmatprep.subr.bf16.mxu0 0
        %4175 = vmatpush1.bf16.msra.mxu0 0
        %4176 = vmatprep.mubr.bf16.mxu0 0
        %4177 = vmatmul.mubr.bf16.gmra.mrb[0].mxu0 %v4142
        %v4178 = vpop.f32.mrb[0].mxu0
        %v4179 = vadd.f32 0.0, %v4178
        %v4180 = vpop.f32.mrb[0].mxu0
        %v4181 = vpop.f32.mrb[0].mxu0
        %v4182 = vpop.f32.mrb[0].mxu0
        %4183 = vdwg.mxu0
        %v4184 = vsel %vm1947, %v4179, %v4086
        %v4185 = vsel %vm2047, %v3691, 0.0
        %v4186 = vpack.c.bf16 %v4185, %v4185
        %4187 = vmatprep.subr.bf16.mxu0 0
        %4188 = vmatpush1.bf16.xpose.msra.mxu0 %v3692
        %4189 = vmatprep.subr.bf16.mxu0 0
        %4190 = vmatpush1.bf16.xpose.msra.mxu0 0
        %4191 = vmatprep.subr.bf16.mxu0 0
        %4192 = vmatpush1.bf16.xpose.msra.mxu0 0
        %4193 = vmatprep.subr.bf16.mxu0 0
        %4194 = vmatpush1.bf16.xpose.msra.mxu0 0
        %4195 = vmatprep.subr.bf16.mxu0 0
        %4196 = vmatpush1.bf16.xpose.msra.mxu0 0
        %4197 = vmatprep.subr.bf16.mxu0 0
        %4198 = vmatpush1.bf16.xpose.msra.mxu0 0
        %4199 = vmatprep.subr.bf16.mxu0 0
        %4200 = vmatpush1.bf16.xpose.msra.mxu0 0
        %4201 = vmatprep.subr.bf16.mxu0 0
        %4202 = vmatpush1.bf16.xpose.msra.mxu0 0
        %4203 = vmatprep.subr.bf16.mxu0 0
        %4204 = vmatpush1.bf16.xpose.msra.mxu0 0
        %4205 = vmatprep.subr.bf16.mxu0 0
        %4206 = vmatpush1.bf16.xpose.msra.mxu0 0
        %4207 = vmatprep.subr.bf16.mxu0 0
        %4208 = vmatpush1.bf16.xpose.msra.mxu0 0
        %4209 = vmatprep.subr.bf16.mxu0 0
        %4210 = vmatpush1.bf16.xpose.msra.mxu0 0
        %4211 = vmatprep.subr.bf16.mxu0 0
        %4212 = vmatpush1.bf16.xpose.msra.mxu0 0
        %4213 = vmatprep.subr.bf16.mxu0 0
        %4214 = vmatpush1.bf16.xpose.msra.mxu0 0
        %4215 = vmatprep.subr.bf16.mxu0 0
        %4216 = vmatpush1.bf16.xpose.msra.mxu0 0
        %4217 = vmatprep.subr.bf16.mxu0 0
        %4218 = vmatpush1.bf16.xpose.msra.mxu0 0
        %4219 = vmatprep.mubr.bf16.mxu0 0
        %4220 = vmatmul.mubr.bf16.gmra.mrb[0].mxu0 %v4186
        %v4221 = vpop.f32.mrb[0].mxu0
        %v4222 = vadd.f32 0.0, %v4221
        %v4223 = vpop.f32.mrb[0].mxu0
        %v4224 = vpop.f32.mrb[0].mxu0
        %v4225 = vpop.f32.mrb[0].mxu0
        %4226 = vdwg.mxu0
        %v4227 = vsel %vm3736, %v4222, -inf
        %4228 = vmax.xlane.f32.xlu0 %v4227
        %v4229 = vpop.xlane.xlu0 %4228
        %v4230 = vsub.f32 %v4222, %v4229
        %v4231 = vmul.f32 %v4230, 1.442695
        %v4232 = vpow.pop %v4231
        %v4233 = vsel %vm3736, %v4232, 0.0
        %4234 = vadd.xlane.f32.xlu0 %v4233
        %v4235 = vpop.xlane.xlu0 %4234
        %v4236 = vrcp.pop %v4235
        %v4237 = vmul.f32 %v4232, %v4236
        %v4238 = vpack.c.bf16 %v4237, %v4237
        %v4240 = vsel %vm3736, %v4238, 0
        %4242 = vmatprep.subr.bf16.mxu0 0
        %4243 = vmatpush1.bf16.msra.mxu0 %v3693
        %4244 = vmatprep.subr.bf16.mxu0 0
        %4245 = vmatpush1.bf16.msra.mxu0 0
        %4246 = vmatprep.subr.bf16.mxu0 0
        %4247 = vmatpush1.bf16.msra.mxu0 0
        %4248 = vmatprep.subr.bf16.mxu0 0
        %4249 = vmatpush1.bf16.msra.mxu0 0
        %4250 = vmatprep.subr.bf16.mxu0 0
        %4251 = vmatpush1.bf16.msra.mxu0 0
        %4252 = vmatprep.subr.bf16.mxu0 0
        %4253 = vmatpush1.bf16.msra.mxu0 0
        %4254 = vmatprep.subr.bf16.mxu0 0
        %4255 = vmatpush1.bf16.msra.mxu0 0
        %4256 = vmatprep.subr.bf16.mxu0 0
        %4257 = vmatpush1.bf16.msra.mxu0 0
        %4258 = vmatprep.subr.bf16.mxu0 0
        %4259 = vmatpush1.bf16.msra.mxu0 0
        %4260 = vmatprep.subr.bf16.mxu0 0
        %4261 = vmatpush1.bf16.msra.mxu0 0
        %4262 = vmatprep.subr.bf16.mxu0 0
        %4263 = vmatpush1.bf16.msra.mxu0 0
        %4264 = vmatprep.subr.bf16.mxu0 0
        %4265 = vmatpush1.bf16.msra.mxu0 0
        %4266 = vmatprep.subr.bf16.mxu0 0
        %4267 = vmatpush1.bf16.msra.mxu0 0
        %4268 = vmatprep.subr.bf16.mxu0 0
        %4269 = vmatpush1.bf16.msra.mxu0 0
        %4270 = vmatprep.subr.bf16.mxu0 0
        %4271 = vmatpush1.bf16.msra.mxu0 0
        %4272 = vmatprep.subr.bf16.mxu0 0
        %4273 = vmatpush1.bf16.msra.mxu0 0
        %4274 = vmatprep.mubr.bf16.mxu0 0
        %4275 = vmatmul.mubr.bf16.gmra.mrb[0].mxu0 %v4240
        %v4276 = vpop.f32.mrb[0].mxu0
        %v4277 = vadd.f32 0.0, %v4276
        %v4278 = vpop.f32.mrb[0].mxu0
        %v4279 = vpop.f32.mrb[0].mxu0
        %v4280 = vpop.f32.mrb[0].mxu0
        %4281 = vdwg.mxu0
        %v4282 = vsel %vm2047, %v4277, %v4184
        %v4283 = vsel %vm2147, %v3691, 0.0
        %v4284 = vpack.c.bf16 %v4283, %v4283
        %4285 = vmatprep.subr.bf16.mxu0 0
        %4286 = vmatpush1.bf16.xpose.msra.mxu0 %v3692
        %4287 = vmatprep.subr.bf16.mxu0 0
        %4288 = vmatpush1.bf16.xpose.msra.mxu0 0
        %4289 = vmatprep.subr.bf16.mxu0 0
        %4290 = vmatpush1.bf16.xpose.msra.mxu0 0
        %4291 = vmatprep.subr.bf16.mxu0 0
        %4292 = vmatpush1.bf16.xpose.msra.mxu0 0
        %4293 = vmatprep.subr.bf16.mxu0 0
        %4294 = vmatpush1.bf16.xpose.msra.mxu0 0
        %4295 = vmatprep.subr.bf16.mxu0 0
        %4296 = vmatpush1.bf16.xpose.msra.mxu0 0
        %4297 = vmatprep.subr.bf16.mxu0 0
        %4298 = vmatpush1.bf16.xpose.msra.mxu0 0
        %4299 = vmatprep.subr.bf16.mxu0 0
        %4300 = vmatpush1.bf16.xpose.msra.mxu0 0
        %4301 = vmatprep.subr.bf16.mxu0 0
        %4302 = vmatpush1.bf16.xpose.msra.mxu0 0
        %4303 = vmatprep.subr.bf16.mxu0 0
        %4304 = vmatpush1.bf16.xpose.msra.mxu0 0
        %4305 = vmatprep.subr.bf16.mxu0 0
        %4306 = vmatpush1.bf16.xpose.msra.mxu0 0
        %4307 = vmatprep.subr.bf16.mxu0 0
        %4308 = vmatpush1.bf16.xpose.msra.mxu0 0
        %4309 = vmatprep.subr.bf16.mxu0 0
        %4310 = vmatpush1.bf16.xpose.msra.mxu0 0
        %4311 = vmatprep.subr.bf16.mxu0 0
        %4312 = vmatpush1.bf16.xpose.msra.mxu0 0
        %4313 = vmatprep.subr.bf16.mxu0 0
        %4314 = vmatpush1.bf16.xpose.msra.mxu0 0
        %4315 = vmatprep.subr.bf16.mxu0 0
        %4316 = vmatpush1.bf16.xpose.msra.mxu0 0
        %4317 = vmatprep.mubr.bf16.mxu0 0
        %4318 = vmatmul.mubr.bf16.gmra.mrb[0].mxu0 %v4284
        %v4319 = vpop.f32.mrb[0].mxu0
        %v4320 = vadd.f32 0.0, %v4319
        %v4321 = vpop.f32.mrb[0].mxu0
        %v4322 = vpop.f32.mrb[0].mxu0
        %v4323 = vpop.f32.mrb[0].mxu0
        %4324 = vdwg.mxu0
        %v4325 = vsel %vm3736, %v4320, -inf
        %4326 = vmax.xlane.f32.xlu0 %v4325
        %v4327 = vpop.xlane.xlu0 %4326
        %v4328 = vsub.f32 %v4320, %v4327
        %v4329 = vmul.f32 %v4328, 1.442695
        %v4330 = vpow.pop %v4329
        %v4331 = vsel %vm3736, %v4330, 0.0
        %4332 = vadd.xlane.f32.xlu0 %v4331
        %v4333 = vpop.xlane.xlu0 %4332
        %v4334 = vrcp.pop %v4333
        %v4335 = vmul.f32 %v4330, %v4334
        %v4336 = vpack.c.bf16 %v4335, %v4335
        %v4338 = vsel %vm3736, %v4336, 0
        %4340 = vmatprep.subr.bf16.mxu0 0
        %4341 = vmatpush1.bf16.msra.mxu0 %v3693
        %4342 = vmatprep.subr.bf16.mxu0 0
        %4343 = vmatpush1.bf16.msra.mxu0 0
        %4344 = vmatprep.subr.bf16.mxu0 0
        %4345 = vmatpush1.bf16.msra.mxu0 0
        %4346 = vmatprep.subr.bf16.mxu0 0
        %4347 = vmatpush1.bf16.msra.mxu0 0
        %4348 = vmatprep.subr.bf16.mxu0 0
        %4349 = vmatpush1.bf16.msra.mxu0 0
        %4350 = vmatprep.subr.bf16.mxu0 0
        %4351 = vmatpush1.bf16.msra.mxu0 0
        %4352 = vmatprep.subr.bf16.mxu0 0
        %4353 = vmatpush1.bf16.msra.mxu0 0
        %4354 = vmatprep.subr.bf16.mxu0 0
        %4355 = vmatpush1.bf16.msra.mxu0 0
        %4356 = vmatprep.subr.bf16.mxu0 0
        %4357 = vmatpush1.bf16.msra.mxu0 0
        %4358 = vmatprep.subr.bf16.mxu0 0
        %4359 = vmatpush1.bf16.msra.mxu0 0
        %4360 = vmatprep.subr.bf16.mxu0 0
        %4361 = vmatpush1.bf16.msra.mxu0 0
        %4362 = vmatprep.subr.bf16.mxu0 0
        %4363 = vmatpush1.bf16.msra.mxu0 0
        %4364 = vmatprep.subr.bf16.mxu0 0
        %4365 = vmatpush1.bf16.msra.mxu0 0
        %4366 = vmatprep.subr.bf16.mxu0 0
        %4367 = vmatpush1.bf16.msra.mxu0 0
        %4368 = vmatprep.subr.bf16.mxu0 0
        %4369 = vmatpush1.bf16.msra.mxu0 0
        %4370 = vmatprep.subr.bf16.mxu0 0
        %4371 = vmatpush1.bf16.msra.mxu0 0
        %4372 = vmatprep.mubr.bf16.mxu0 0
        %4373 = vmatmul.mubr.bf16.gmra.mrb[0].mxu0 %v4338
        %v4374 = vpop.f32.mrb[0].mxu0
        %v4375 = vadd.f32 0.0, %v4374
        %v4376 = vpop.f32.mrb[0].mxu0
        %v4377 = vpop.f32.mrb[0].mxu0
        %v4378 = vpop.f32.mrb[0].mxu0
        %4379 = vdwg.mxu0
        %v4380 = vsel %vm2147, %v4375, %v4282
        %v4381 = vsel %vm2247, %v3691, 0.0
        %v4382 = vpack.c.bf16 %v4381, %v4381
        %4383 = vmatprep.subr.bf16.mxu0 0
        %4384 = vmatpush1.bf16.xpose.msra.mxu0 %v3692
        %4385 = vmatprep.subr.bf16.mxu0 0
        %4386 = vmatpush1.bf16.xpose.msra.mxu0 0
        %4387 = vmatprep.subr.bf16.mxu0 0
        %4388 = vmatpush1.bf16.xpose.msra.mxu0 0
        %4389 = vmatprep.subr.bf16.mxu0 0
        %4390 = vmatpush1.bf16.xpose.msra.mxu0 0
        %4391 = vmatprep.subr.bf16.mxu0 0
        %4392 = vmatpush1.bf16.xpose.msra.mxu0 0
        %4393 = vmatprep.subr.bf16.mxu0 0
        %4394 = vmatpush1.bf16.xpose.msra.mxu0 0
        %4395 = vmatprep.subr.bf16.mxu0 0
        %4396 = vmatpush1.bf16.xpose.msra.mxu0 0
        %4397 = vmatprep.subr.bf16.mxu0 0
        %4398 = vmatpush1.bf16.xpose.msra.mxu0 0
        %4399 = vmatprep.subr.bf16.mxu0 0
        %4400 = vmatpush1.bf16.xpose.msra.mxu0 0
        %4401 = vmatprep.subr.bf16.mxu0 0
        %4402 = vmatpush1.bf16.xpose.msra.mxu0 0
        %4403 = vmatprep.subr.bf16.mxu0 0
        %4404 = vmatpush1.bf16.xpose.msra.mxu0 0
        %4405 = vmatprep.subr.bf16.mxu0 0
        %4406 = vmatpush1.bf16.xpose.msra.mxu0 0
        %4407 = vmatprep.subr.bf16.mxu0 0
        %4408 = vmatpush1.bf16.xpose.msra.mxu0 0
        %4409 = vmatprep.subr.bf16.mxu0 0
        %4410 = vmatpush1.bf16.xpose.msra.mxu0 0
        %4411 = vmatprep.subr.bf16.mxu0 0
        %4412 = vmatpush1.bf16.xpose.msra.mxu0 0
        %4413 = vmatprep.subr.bf16.mxu0 0
        %4414 = vmatpush1.bf16.xpose.msra.mxu0 0
        %4415 = vmatprep.mubr.bf16.mxu0 0
        %4416 = vmatmul.mubr.bf16.gmra.mrb[0].mxu0 %v4382
        %v4417 = vpop.f32.mrb[0].mxu0
        %v4418 = vadd.f32 0.0, %v4417
        %v4419 = vpop.f32.mrb[0].mxu0
        %v4420 = vpop.f32.mrb[0].mxu0
        %v4421 = vpop.f32.mrb[0].mxu0
        %4422 = vdwg.mxu0
        %v4423 = vsel %vm3736, %v4418, -inf
        %4424 = vmax.xlane.f32.xlu0 %v4423
        %v4425 = vpop.xlane.xlu0 %4424
        %v4426 = vsub.f32 %v4418, %v4425
        %v4427 = vmul.f32 %v4426, 1.442695
        %v4428 = vpow.pop %v4427
        %v4429 = vsel %vm3736, %v4428, 0.0
        %4430 = vadd.xlane.f32.xlu0 %v4429
        %v4431 = vpop.xlane.xlu0 %4430
        %v4432 = vrcp.pop %v4431
        %v4433 = vmul.f32 %v4428, %v4432
        %v4434 = vpack.c.bf16 %v4433, %v4433
        %v4436 = vsel %vm3736, %v4434, 0
        %4438 = vmatprep.subr.bf16.mxu0 0
        %4439 = vmatpush1.bf16.msra.mxu0 %v3693
        %4440 = vmatprep.subr.bf16.mxu0 0
        %4441 = vmatpush1.bf16.msra.mxu0 0
        %4442 = vmatprep.subr.bf16.mxu0 0
        %4443 = vmatpush1.bf16.msra.mxu0 0
        %4444 = vmatprep.subr.bf16.mxu0 0
        %4445 = vmatpush1.bf16.msra.mxu0 0
        %4446 = vmatprep.subr.bf16.mxu0 0
        %4447 = vmatpush1.bf16.msra.mxu0 0
        %4448 = vmatprep.subr.bf16.mxu0 0
        %4449 = vmatpush1.bf16.msra.mxu0 0
        %4450 = vmatprep.subr.bf16.mxu0 0
        %4451 = vmatpush1.bf16.msra.mxu0 0
        %4452 = vmatprep.subr.bf16.mxu0 0
        %4453 = vmatpush1.bf16.msra.mxu0 0
        %4454 = vmatprep.subr.bf16.mxu0 0
        %4455 = vmatpush1.bf16.msra.mxu0 0
        %4456 = vmatprep.subr.bf16.mxu0 0
        %4457 = vmatpush1.bf16.msra.mxu0 0
        %4458 = vmatprep.subr.bf16.mxu0 0
        %4459 = vmatpush1.bf16.msra.mxu0 0
        %4460 = vmatprep.subr.bf16.mxu0 0
        %4461 = vmatpush1.bf16.msra.mxu0 0
        %4462 = vmatprep.subr.bf16.mxu0 0
        %4463 = vmatpush1.bf16.msra.mxu0 0
        %4464 = vmatprep.subr.bf16.mxu0 0
        %4465 = vmatpush1.bf16.msra.mxu0 0
        %4466 = vmatprep.subr.bf16.mxu0 0
        %4467 = vmatpush1.bf16.msra.mxu0 0
        %4468 = vmatprep.subr.bf16.mxu0 0
        %4469 = vmatpush1.bf16.msra.mxu0 0
        %4470 = vmatprep.mubr.bf16.mxu0 0
        %4471 = vmatmul.mubr.bf16.gmra.mrb[0].mxu0 %v4436
        %v4472 = vpop.f32.mrb[0].mxu0
        %v4473 = vadd.f32 0.0, %v4472
        %v4474 = vpop.f32.mrb[0].mxu0
        %v4475 = vpop.f32.mrb[0].mxu0
        %v4476 = vpop.f32.mrb[0].mxu0
        %4477 = vdwg.mxu0
        %v4478 = vsel %vm2247, %v4473, %v4380
        %v4479 = vmul.f32 %v3460, 0.25
        %v4480 = vpack.c.bf16 %v3575, %v3572
        %v4481 = vpack.c.bf16 %v3688, %v3685
        %v4482 = vsel %vm1542, %v4479, 0.0
        %v4483 = vpack.c.bf16 %v4482, %v4482
        %4484 = vmatprep.subr.bf16.mxu0 0
        %4485 = vmatpush1.bf16.xpose.msra.mxu0 %v4480
        %4486 = vmatprep.subr.bf16.mxu0 0
        %4487 = vmatpush1.bf16.xpose.msra.mxu0 0
        %4488 = vmatprep.subr.bf16.mxu0 0
        %4489 = vmatpush1.bf16.xpose.msra.mxu0 0
        %4490 = vmatprep.subr.bf16.mxu0 0
        %4491 = vmatpush1.bf16.xpose.msra.mxu0 0
        %4492 = vmatprep.subr.bf16.mxu0 0
        %4493 = vmatpush1.bf16.xpose.msra.mxu0 0
        %4494 = vmatprep.subr.bf16.mxu0 0
        %4495 = vmatpush1.bf16.xpose.msra.mxu0 0
        %4496 = vmatprep.subr.bf16.mxu0 0
        %4497 = vmatpush1.bf16.xpose.msra.mxu0 0
        %4498 = vmatprep.subr.bf16.mxu0 0
        %4499 = vmatpush1.bf16.xpose.msra.mxu0 0
        %4500 = vmatprep.subr.bf16.mxu0 0
        %4501 = vmatpush1.bf16.xpose.msra.mxu0 0
        %4502 = vmatprep.subr.bf16.mxu0 0
        %4503 = vmatpush1.bf16.xpose.msra.mxu0 0
        %4504 = vmatprep.subr.bf16.mxu0 0
        %4505 = vmatpush1.bf16.xpose.msra.mxu0 0
        %4506 = vmatprep.subr.bf16.mxu0 0
        %4507 = vmatpush1.bf16.xpose.msra.mxu0 0
        %4508 = vmatprep.subr.bf16.mxu0 0
        %4509 = vmatpush1.bf16.xpose.msra.mxu0 0
        %4510 = vmatprep.subr.bf16.mxu0 0
        %4511 = vmatpush1.bf16.xpose.msra.mxu0 0
        %4512 = vmatprep.subr.bf16.mxu0 0
        %4513 = vmatpush1.bf16.xpose.msra.mxu0 0
        %4514 = vmatprep.subr.bf16.mxu0 0
        %4515 = vmatpush1.bf16.xpose.msra.mxu0 0
        %4516 = vmatprep.mubr.bf16.mxu0 0
        %4517 = vmatmul.mubr.bf16.gmra.mrb[0].mxu0 %v4483
        %v4518 = vpop.f32.mrb[0].mxu0
        %v4519 = vadd.f32 0.0, %v4518
        %v4520 = vpop.f32.mrb[0].mxu0
        %v4521 = vpop.f32.mrb[0].mxu0
        %v4522 = vpop.f32.mrb[0].mxu0
        %4523 = vdwg.mxu0
        %v4524 = vsel %vm3736, %v4519, -inf
        %4525 = vmax.xlane.f32.xlu0 %v4524
        %v4526 = vpop.xlane.xlu0 %4525
        %v4527 = vsub.f32 %v4519, %v4526
        %v4528 = vmul.f32 %v4527, 1.442695
        %v4529 = vpow.pop %v4528
        %v4530 = vsel %vm3736, %v4529, 0.0
        %4531 = vadd.xlane.f32.xlu0 %v4530
        %v4532 = vpop.xlane.xlu0 %4531
        %v4533 = vrcp.pop %v4532
        %v4534 = vmul.f32 %v4529, %v4533
        %v4535 = vpack.c.bf16 %v4534, %v4534
        %v4537 = vsel %vm3736, %v4535, 0
        %4539 = vmatprep.subr.bf16.mxu0 0
        %4540 = vmatpush1.bf16.msra.mxu0 %v4481
        %4541 = vmatprep.subr.bf16.mxu0 0
        %4542 = vmatpush1.bf16.msra.mxu0 0
        %4543 = vmatprep.subr.bf16.mxu0 0
        %4544 = vmatpush1.bf16.msra.mxu0 0
        %4545 = vmatprep.subr.bf16.mxu0 0
        %4546 = vmatpush1.bf16.msra.mxu0 0
        %4547 = vmatprep.subr.bf16.mxu0 0
        %4548 = vmatpush1.bf16.msra.mxu0 0
        %4549 = vmatprep.subr.bf16.mxu0 0
        %4550 = vmatpush1.bf16.msra.mxu0 0
        %4551 = vmatprep.subr.bf16.mxu0 0
        %4552 = vmatpush1.bf16.msra.mxu0 0
        %4553 = vmatprep.subr.bf16.mxu0 0
        %4554 = vmatpush1.bf16.msra.mxu0 0
        %4555 = vmatprep.subr.bf16.mxu0 0
        %4556 = vmatpush1.bf16.msra.mxu0 0
        %4557 = vmatprep.subr.bf16.mxu0 0
        %4558 = vmatpush1.bf16.msra.mxu0 0
        %4559 = vmatprep.subr.bf16.mxu0 0
        %4560 = vmatpush1.bf16.msra.mxu0 0
        %4561 = vmatprep.subr.bf16.mxu0 0
        %4562 = vmatpush1.bf16.msra.mxu0 0
        %4563 = vmatprep.subr.bf16.mxu0 0
        %4564 = vmatpush1.bf16.msra.mxu0 0
        %4565 = vmatprep.subr.bf16.mxu0 0
        %4566 = vmatpush1.bf16.msra.mxu0 0
        %4567 = vmatprep.subr.bf16.mxu0 0
        %4568 = vmatpush1.bf16.msra.mxu0 0
        %4569 = vmatprep.subr.bf16.mxu0 0
        %4570 = vmatpush1.bf16.msra.mxu0 0
        %4571 = vmatprep.mubr.bf16.mxu0 0
        %4572 = vmatmul.mubr.bf16.gmra.mrb[0].mxu0 %v4537
        %v4573 = vpop.f32.mrb[0].mxu0
        %v4574 = vadd.f32 0.0, %v4573
        %v4575 = vpop.f32.mrb[0].mxu0
        %v4576 = vpop.f32.mrb[0].mxu0
        %v4577 = vpop.f32.mrb[0].mxu0
        %4578 = vdwg.mxu0
        %v4579 = vsel %vm1542, %v4574, 0.0
        %v4580 = vsel %vm1647, %v4479, 0.0
        %v4581 = vpack.c.bf16 %v4580, %v4580
        %4582 = vmatprep.subr.bf16.mxu0 0
        %4583 = vmatpush1.bf16.xpose.msra.mxu0 %v4480
        %4584 = vmatprep.subr.bf16.mxu0 0
        %4585 = vmatpush1.bf16.xpose.msra.mxu0 0
        %4586 = vmatprep.subr.bf16.mxu0 0
        %4587 = vmatpush1.bf16.xpose.msra.mxu0 0
        %4588 = vmatprep.subr.bf16.mxu0 0
        %4589 = vmatpush1.bf16.xpose.msra.mxu0 0
        %4590 = vmatprep.subr.bf16.mxu0 0
        %4591 = vmatpush1.bf16.xpose.msra.mxu0 0
        %4592 = vmatprep.subr.bf16.mxu0 0
        %4593 = vmatpush1.bf16.xpose.msra.mxu0 0
        %4594 = vmatprep.subr.bf16.mxu0 0
        %4595 = vmatpush1.bf16.xpose.msra.mxu0 0
        %4596 = vmatprep.subr.bf16.mxu0 0
        %4597 = vmatpush1.bf16.xpose.msra.mxu0 0
        %4598 = vmatprep.subr.bf16.mxu0 0
        %4599 = vmatpush1.bf16.xpose.msra.mxu0 0
        %4600 = vmatprep.subr.bf16.mxu0 0
        %4601 = vmatpush1.bf16.xpose.msra.mxu0 0
        %4602 = vmatprep.subr.bf16.mxu0 0
        %4603 = vmatpush1.bf16.xpose.msra.mxu0 0
        %4604 = vmatprep.subr.bf16.mxu0 0
        %4605 = vmatpush1.bf16.xpose.msra.mxu0 0
        %4606 = vmatprep.subr.bf16.mxu0 0
        %4607 = vmatpush1.bf16.xpose.msra.mxu0 0
        %4608 = vmatprep.subr.bf16.mxu0 0
        %4609 = vmatpush1.bf16.xpose.msra.mxu0 0
        %4610 = vmatprep.subr.bf16.mxu0 0
        %4611 = vmatpush1.bf16.xpose.msra.mxu0 0
        %4612 = vmatprep.subr.bf16.mxu0 0
        %4613 = vmatpush1.bf16.xpose.msra.mxu0 0
        %4614 = vmatprep.mubr.bf16.mxu0 0
        %4615 = vmatmul.mubr.bf16.gmra.mrb[0].mxu0 %v4581
        %v4616 = vpop.f32.mrb[0].mxu0
        %v4617 = vadd.f32 0.0, %v4616
        %v4618 = vpop.f32.mrb[0].mxu0
        %v4619 = vpop.f32.mrb[0].mxu0
        %v4620 = vpop.f32.mrb[0].mxu0
        %4621 = vdwg.mxu0
        %v4622 = vsel %vm3736, %v4617, -inf
        %4623 = vmax.xlane.f32.xlu0 %v4622
        %v4624 = vpop.xlane.xlu0 %4623
        %v4625 = vsub.f32 %v4617, %v4624
        %v4626 = vmul.f32 %v4625, 1.442695
        %v4627 = vpow.pop %v4626
        %v4628 = vsel %vm3736, %v4627, 0.0
        %4629 = vadd.xlane.f32.xlu0 %v4628
        %v4630 = vpop.xlane.xlu0 %4629
        %v4631 = vrcp.pop %v4630
        %v4632 = vmul.f32 %v4627, %v4631
        %v4633 = vpack.c.bf16 %v4632, %v4632
        %v4635 = vsel %vm3736, %v4633, 0
        %4637 = vmatprep.subr.bf16.mxu0 0
        %4638 = vmatpush1.bf16.msra.mxu0 %v4481
        %4639 = vmatprep.subr.bf16.mxu0 0
        %4640 = vmatpush1.bf16.msra.mxu0 0
        %4641 = vmatprep.subr.bf16.mxu0 0
        %4642 = vmatpush1.bf16.msra.mxu0 0
        %4643 = vmatprep.subr.bf16.mxu0 0
        %4644 = vmatpush1.bf16.msra.mxu0 0
        %4645 = vmatprep.subr.bf16.mxu0 0
        %4646 = vmatpush1.bf16.msra.mxu0 0
        %4647 = vmatprep.subr.bf16.mxu0 0
        %4648 = vmatpush1.bf16.msra.mxu0 0
        %4649 = vmatprep.subr.bf16.mxu0 0
        %4650 = vmatpush1.bf16.msra.mxu0 0
        %4651 = vmatprep.subr.bf16.mxu0 0
        %4652 = vmatpush1.bf16.msra.mxu0 0
        %4653 = vmatprep.subr.bf16.mxu0 0
        %4654 = vmatpush1.bf16.msra.mxu0 0
        %4655 = vmatprep.subr.bf16.mxu0 0
        %4656 = vmatpush1.bf16.msra.mxu0 0
        %4657 = vmatprep.subr.bf16.mxu0 0
        %4658 = vmatpush1.bf16.msra.mxu0 0
        %4659 = vmatprep.subr.bf16.mxu0 0
        %4660 = vmatpush1.bf16.msra.mxu0 0
        %4661 = vmatprep.subr.bf16.mxu0 0
        %4662 = vmatpush1.bf16.msra.mxu0 0
        %4663 = vmatprep.subr.bf16.mxu0 0
        %4664 = vmatpush1.bf16.msra.mxu0 0
        %4665 = vmatprep.subr.bf16.mxu0 0
        %4666 = vmatpush1.bf16.msra.mxu0 0
        %4667 = vmatprep.subr.bf16.mxu0 0
        %4668 = vmatpush1.bf16.msra.mxu0 0
        %4669 = vmatprep.mubr.bf16.mxu0 0
        %4670 = vmatmul.mubr.bf16.gmra.mrb[0].mxu0 %v4635
        %v4671 = vpop.f32.mrb[0].mxu0
        %v4672 = vadd.f32 0.0, %v4671
        %v4673 = vpop.f32.mrb[0].mxu0
        %v4674 = vpop.f32.mrb[0].mxu0
        %v4675 = vpop.f32.mrb[0].mxu0
        %4676 = vdwg.mxu0
        %v4677 = vsel %vm1647, %v4672, %v4579
        %v4678 = vsel %vm1747, %v4479, 0.0
        %v4679 = vpack.c.bf16 %v4678, %v4678
        %4680 = vmatprep.subr.bf16.mxu0 0
        %4681 = vmatpush1.bf16.xpose.msra.mxu0 %v4480
        %4682 = vmatprep.subr.bf16.mxu0 0
        %4683 = vmatpush1.bf16.xpose.msra.mxu0 0
        %4684 = vmatprep.subr.bf16.mxu0 0
        %4685 = vmatpush1.bf16.xpose.msra.mxu0 0
        %4686 = vmatprep.subr.bf16.mxu0 0
        %4687 = vmatpush1.bf16.xpose.msra.mxu0 0
        %4688 = vmatprep.subr.bf16.mxu0 0
        %4689 = vmatpush1.bf16.xpose.msra.mxu0 0
        %4690 = vmatprep.subr.bf16.mxu0 0
        %4691 = vmatpush1.bf16.xpose.msra.mxu0 0
        %4692 = vmatprep.subr.bf16.mxu0 0
        %4693 = vmatpush1.bf16.xpose.msra.mxu0 0
        %4694 = vmatprep.subr.bf16.mxu0 0
        %4695 = vmatpush1.bf16.xpose.msra.mxu0 0
        %4696 = vmatprep.subr.bf16.mxu0 0
        %4697 = vmatpush1.bf16.xpose.msra.mxu0 0
        %4698 = vmatprep.subr.bf16.mxu0 0
        %4699 = vmatpush1.bf16.xpose.msra.mxu0 0
        %4700 = vmatprep.subr.bf16.mxu0 0
        %4701 = vmatpush1.bf16.xpose.msra.mxu0 0
        %4702 = vmatprep.subr.bf16.mxu0 0
        %4703 = vmatpush1.bf16.xpose.msra.mxu0 0
        %4704 = vmatprep.subr.bf16.mxu0 0
        %4705 = vmatpush1.bf16.xpose.msra.mxu0 0
        %4706 = vmatprep.subr.bf16.mxu0 0
        %4707 = vmatpush1.bf16.xpose.msra.mxu0 0
        %4708 = vmatprep.subr.bf16.mxu0 0
        %4709 = vmatpush1.bf16.xpose.msra.mxu0 0
        %4710 = vmatprep.subr.bf16.mxu0 0
        %4711 = vmatpush1.bf16.xpose.msra.mxu0 0
        %4712 = vmatprep.mubr.bf16.mxu0 0
        %4713 = vmatmul.mubr.bf16.gmra.mrb[0].mxu0 %v4679
        %v4714 = vpop.f32.mrb[0].mxu0
        %v4715 = vadd.f32 0.0, %v4714
        %v4716 = vpop.f32.mrb[0].mxu0
        %v4717 = vpop.f32.mrb[0].mxu0
        %v4718 = vpop.f32.mrb[0].mxu0
        %4719 = vdwg.mxu0
        %v4720 = vsel %vm3736, %v4715, -inf
        %4721 = vmax.xlane.f32.xlu0 %v4720
        %v4722 = vpop.xlane.xlu0 %4721
        %v4723 = vsub.f32 %v4715, %v4722
        %v4724 = vmul.f32 %v4723, 1.442695
        %v4725 = vpow.pop %v4724
        %v4726 = vsel %vm3736, %v4725, 0.0
        %4727 = vadd.xlane.f32.xlu0 %v4726
        %v4728 = vpop.xlane.xlu0 %4727
        %v4729 = vrcp.pop %v4728
        %v4730 = vmul.f32 %v4725, %v4729
        %v4731 = vpack.c.bf16 %v4730, %v4730
        %v4733 = vsel %vm3736, %v4731, 0
        %4735 = vmatprep.subr.bf16.mxu0 0
        %4736 = vmatpush1.bf16.msra.mxu0 %v4481
        %4737 = vmatprep.subr.bf16.mxu0 0
        %4738 = vmatpush1.bf16.msra.mxu0 0
        %4739 = vmatprep.subr.bf16.mxu0 0
        %4740 = vmatpush1.bf16.msra.mxu0 0
        %4741 = vmatprep.subr.bf16.mxu0 0
        %4742 = vmatpush1.bf16.msra.mxu0 0
        %4743 = vmatprep.subr.bf16.mxu0 0
        %4744 = vmatpush1.bf16.msra.mxu0 0
        %4745 = vmatprep.subr.bf16.mxu0 0
        %4746 = vmatpush1.bf16.msra.mxu0 0
        %4747 = vmatprep.subr.bf16.mxu0 0
        %4748 = vmatpush1.bf16.msra.mxu0 0
        %4749 = vmatprep.subr.bf16.mxu0 0
        %4750 = vmatpush1.bf16.msra.mxu0 0
        %4751 = vmatprep.subr.bf16.mxu0 0
        %4752 = vmatpush1.bf16.msra.mxu0 0
        %4753 = vmatprep.subr.bf16.mxu0 0
        %4754 = vmatpush1.bf16.msra.mxu0 0
        %4755 = vmatprep.subr.bf16.mxu0 0
        %4756 = vmatpush1.bf16.msra.mxu0 0
        %4757 = vmatprep.subr.bf16.mxu0 0
        %4758 = vmatpush1.bf16.msra.mxu0 0
        %4759 = vmatprep.subr.bf16.mxu0 0
        %4760 = vmatpush1.bf16.msra.mxu0 0
        %4761 = vmatprep.subr.bf16.mxu0 0
        %4762 = vmatpush1.bf16.msra.mxu0 0
        %4763 = vmatprep.subr.bf16.mxu0 0
        %4764 = vmatpush1.bf16.msra.mxu0 0
        %4765 = vmatprep.subr.bf16.mxu0 0
        %4766 = vmatpush1.bf16.msra.mxu0 0
        %4767 = vmatprep.mubr.bf16.mxu0 0
        %4768 = vmatmul.mubr.bf16.gmra.mrb[0].mxu0 %v4733
        %v4769 = vpop.f32.mrb[0].mxu0
        %v4770 = vadd.f32 0.0, %v4769
        %v4771 = vpop.f32.mrb[0].mxu0
        %v4772 = vpop.f32.mrb[0].mxu0
        %v4773 = vpop.f32.mrb[0].mxu0
        %4774 = vdwg.mxu0
        %v4775 = vsel %vm1747, %v4770, %v4677
        %v4776 = vsel %vm1847, %v4479, 0.0
        %v4777 = vpack.c.bf16 %v4776, %v4776
        %4778 = vmatprep.subr.bf16.mxu0 0
        %4779 = vmatpush1.bf16.xpose.msra.mxu0 %v4480
        %4780 = vmatprep.subr.bf16.mxu0 0
        %4781 = vmatpush1.bf16.xpose.msra.mxu0 0
        %4782 = vmatprep.subr.bf16.mxu0 0
        %4783 = vmatpush1.bf16.xpose.msra.mxu0 0
        %4784 = vmatprep.subr.bf16.mxu0 0
        %4785 = vmatpush1.bf16.xpose.msra.mxu0 0
        %4786 = vmatprep.subr.bf16.mxu0 0
        %4787 = vmatpush1.bf16.xpose.msra.mxu0 0
        %4788 = vmatprep.subr.bf16.mxu0 0
        %4789 = vmatpush1.bf16.xpose.msra.mxu0 0
        %4790 = vmatprep.subr.bf16.mxu0 0
        %4791 = vmatpush1.bf16.xpose.msra.mxu0 0
        %4792 = vmatprep.subr.bf16.mxu0 0
        %4793 = vmatpush1.bf16.xpose.msra.mxu0 0
        %4794 = vmatprep.subr.bf16.mxu0 0
        %4795 = vmatpush1.bf16.xpose.msra.mxu0 0
        %4796 = vmatprep.subr.bf16.mxu0 0
        %4797 = vmatpush1.bf16.xpose.msra.mxu0 0
        %4798 = vmatprep.subr.bf16.mxu0 0
        %4799 = vmatpush1.bf16.xpose.msra.mxu0 0
        %4800 = vmatprep.subr.bf16.mxu0 0
        %4801 = vmatpush1.bf16.xpose.msra.mxu0 0
        %4802 = vmatprep.subr.bf16.mxu0 0
        %4803 = vmatpush1.bf16.xpose.msra.mxu0 0
        %4804 = vmatprep.subr.bf16.mxu0 0
        %4805 = vmatpush1.bf16.xpose.msra.mxu0 0
        %4806 = vmatprep.subr.bf16.mxu0 0
        %4807 = vmatpush1.bf16.xpose.msra.mxu0 0
        %4808 = vmatprep.subr.bf16.mxu0 0
        %4809 = vmatpush1.bf16.xpose.msra.mxu0 0
        %4810 = vmatprep.mubr.bf16.mxu0 0
        %4811 = vmatmul.mubr.bf16.gmra.mrb[0].mxu0 %v4777
        %v4812 = vpop.f32.mrb[0].mxu0
        %v4813 = vadd.f32 0.0, %v4812
        %v4814 = vpop.f32.mrb[0].mxu0
        %v4815 = vpop.f32.mrb[0].mxu0
        %v4816 = vpop.f32.mrb[0].mxu0
        %4817 = vdwg.mxu0
        %v4818 = vsel %vm3736, %v4813, -inf
        %4819 = vmax.xlane.f32.xlu0 %v4818
        %v4820 = vpop.xlane.xlu0 %4819
        %v4821 = vsub.f32 %v4813, %v4820
        %v4822 = vmul.f32 %v4821, 1.442695
        %v4823 = vpow.pop %v4822
        %v4824 = vsel %vm3736, %v4823, 0.0
        %4825 = vadd.xlane.f32.xlu0 %v4824
        %v4826 = vpop.xlane.xlu0 %4825
        %v4827 = vrcp.pop %v4826
        %v4828 = vmul.f32 %v4823, %v4827
        %v4829 = vpack.c.bf16 %v4828, %v4828
        %v4831 = vsel %vm3736, %v4829, 0
        %4833 = vmatprep.subr.bf16.mxu0 0
        %4834 = vmatpush1.bf16.msra.mxu0 %v4481
        %4835 = vmatprep.subr.bf16.mxu0 0
        %4836 = vmatpush1.bf16.msra.mxu0 0
        %4837 = vmatprep.subr.bf16.mxu0 0
        %4838 = vmatpush1.bf16.msra.mxu0 0
        %4839 = vmatprep.subr.bf16.mxu0 0
        %4840 = vmatpush1.bf16.msra.mxu0 0
        %4841 = vmatprep.subr.bf16.mxu0 0
        %4842 = vmatpush1.bf16.msra.mxu0 0
        %4843 = vmatprep.subr.bf16.mxu0 0
        %4844 = vmatpush1.bf16.msra.mxu0 0
        %4845 = vmatprep.subr.bf16.mxu0 0
        %4846 = vmatpush1.bf16.msra.mxu0 0
        %4847 = vmatprep.subr.bf16.mxu0 0
        %4848 = vmatpush1.bf16.msra.mxu0 0
        %4849 = vmatprep.subr.bf16.mxu0 0
        %4850 = vmatpush1.bf16.msra.mxu0 0
        %4851 = vmatprep.subr.bf16.mxu0 0
        %4852 = vmatpush1.bf16.msra.mxu0 0
        %4853 = vmatprep.subr.bf16.mxu0 0
        %4854 = vmatpush1.bf16.msra.mxu0 0
        %4855 = vmatprep.subr.bf16.mxu0 0
        %4856 = vmatpush1.bf16.msra.mxu0 0
        %4857 = vmatprep.subr.bf16.mxu0 0
        %4858 = vmatpush1.bf16.msra.mxu0 0
        %4859 = vmatprep.subr.bf16.mxu0 0
        %4860 = vmatpush1.bf16.msra.mxu0 0
        %4861 = vmatprep.subr.bf16.mxu0 0
        %4862 = vmatpush1.bf16.msra.mxu0 0
        %4863 = vmatprep.subr.bf16.mxu0 0
        %4864 = vmatpush1.bf16.msra.mxu0 0
        %4865 = vmatprep.mubr.bf16.mxu0 0
        %4866 = vmatmul.mubr.bf16.gmra.mrb[0].mxu0 %v4831
        %v4867 = vpop.f32.mrb[0].mxu0
        %v4868 = vadd.f32 0.0, %v4867
        %v4869 = vpop.f32.mrb[0].mxu0
        %v4870 = vpop.f32.mrb[0].mxu0
        %v4871 = vpop.f32.mrb[0].mxu0
        %4872 = vdwg.mxu0
        %v4873 = vsel %vm1847, %v4868, %v4775
        %v4874 = vsel %vm1947, %v4479, 0.0
        %v4875 = vpack.c.bf16 %v4874, %v4874
        %4876 = vmatprep.subr.bf16.mxu0 0
        %4877 = vmatpush1.bf16.xpose.msra.mxu0 %v4480
        %4878 = vmatprep.subr.bf16.mxu0 0
        %4879 = vmatpush1.bf16.xpose.msra.mxu0 0
        %4880 = vmatprep.subr.bf16.mxu0 0
        %4881 = vmatpush1.bf16.xpose.msra.mxu0 0
        %4882 = vmatprep.subr.bf16.mxu0 0
        %4883 = vmatpush1.bf16.xpose.msra.mxu0 0
        %4884 = vmatprep.subr.bf16.mxu0 0
        %4885 = vmatpush1.bf16.xpose.msra.mxu0 0
        %4886 = vmatprep.subr.bf16.mxu0 0
        %4887 = vmatpush1.bf16.xpose.msra.mxu0 0
        %4888 = vmatprep.subr.bf16.mxu0 0
        %4889 = vmatpush1.bf16.xpose.msra.mxu0 0
        %4890 = vmatprep.subr.bf16.mxu0 0
        %4891 = vmatpush1.bf16.xpose.msra.mxu0 0
        %4892 = vmatprep.subr.bf16.mxu0 0
        %4893 = vmatpush1.bf16.xpose.msra.mxu0 0
        %4894 = vmatprep.subr.bf16.mxu0 0
        %4895 = vmatpush1.bf16.xpose.msra.mxu0 0
        %4896 = vmatprep.subr.bf16.mxu0 0
        %4897 = vmatpush1.bf16.xpose.msra.mxu0 0
        %4898 = vmatprep.subr.bf16.mxu0 0
        %4899 = vmatpush1.bf16.xpose.msra.mxu0 0
        %4900 = vmatprep.subr.bf16.mxu0 0
        %4901 = vmatpush1.bf16.xpose.msra.mxu0 0
        %4902 = vmatprep.subr.bf16.mxu0 0
        %4903 = vmatpush1.bf16.xpose.msra.mxu0 0
        %4904 = vmatprep.subr.bf16.mxu0 0
        %4905 = vmatpush1.bf16.xpose.msra.mxu0 0
        %4906 = vmatprep.subr.bf16.mxu0 0
        %4907 = vmatpush1.bf16.xpose.msra.mxu0 0
        %4908 = vmatprep.mubr.bf16.mxu0 0
        %4909 = vmatmul.mubr.bf16.gmra.mrb[0].mxu0 %v4875
        %v4910 = vpop.f32.mrb[0].mxu0
        %v4911 = vadd.f32 0.0, %v4910
        %v4912 = vpop.f32.mrb[0].mxu0
        %v4913 = vpop.f32.mrb[0].mxu0
        %v4914 = vpop.f32.mrb[0].mxu0
        %4915 = vdwg.mxu0
        %v4916 = vsel %vm3736, %v4911, -inf
        %4917 = vmax.xlane.f32.xlu0 %v4916
        %v4918 = vpop.xlane.xlu0 %4917
        %v4919 = vsub.f32 %v4911, %v4918
        %v4920 = vmul.f32 %v4919, 1.442695
        %v4921 = vpow.pop %v4920
        %v4922 = vsel %vm3736, %v4921, 0.0
        %4923 = vadd.xlane.f32.xlu0 %v4922
        %v4924 = vpop.xlane.xlu0 %4923
        %v4925 = vrcp.pop %v4924
        %v4926 = vmul.f32 %v4921, %v4925
        %v4927 = vpack.c.bf16 %v4926, %v4926
        %v4929 = vsel %vm3736, %v4927, 0
        %4931 = vmatprep.subr.bf16.mxu0 0
        %4932 = vmatpush1.bf16.msra.mxu0 %v4481
        %4933 = vmatprep.subr.bf16.mxu0 0
        %4934 = vmatpush1.bf16.msra.mxu0 0
        %4935 = vmatprep.subr.bf16.mxu0 0
        %4936 = vmatpush1.bf16.msra.mxu0 0
        %4937 = vmatprep.subr.bf16.mxu0 0
        %4938 = vmatpush1.bf16.msra.mxu0 0
        %4939 = vmatprep.subr.bf16.mxu0 0
        %4940 = vmatpush1.bf16.msra.mxu0 0
        %4941 = vmatprep.subr.bf16.mxu0 0
        %4942 = vmatpush1.bf16.msra.mxu0 0
        %4943 = vmatprep.subr.bf16.mxu0 0
        %4944 = vmatpush1.bf16.msra.mxu0 0
        %4945 = vmatprep.subr.bf16.mxu0 0
        %4946 = vmatpush1.bf16.msra.mxu0 0
        %4947 = vmatprep.subr.bf16.mxu0 0
        %4948 = vmatpush1.bf16.msra.mxu0 0
        %4949 = vmatprep.subr.bf16.mxu0 0
        %4950 = vmatpush1.bf16.msra.mxu0 0
        %4951 = vmatprep.subr.bf16.mxu0 0
        %4952 = vmatpush1.bf16.msra.mxu0 0
        %4953 = vmatprep.subr.bf16.mxu0 0
        %4954 = vmatpush1.bf16.msra.mxu0 0
        %4955 = vmatprep.subr.bf16.mxu0 0
        %4956 = vmatpush1.bf16.msra.mxu0 0
        %4957 = vmatprep.subr.bf16.mxu0 0
        %4958 = vmatpush1.bf16.msra.mxu0 0
        %4959 = vmatprep.subr.bf16.mxu0 0
        %4960 = vmatpush1.bf16.msra.mxu0 0
        %4961 = vmatprep.subr.bf16.mxu0 0
        %4962 = vmatpush1.bf16.msra.mxu0 0
        %4963 = vmatprep.mubr.bf16.mxu0 0
        %4964 = vmatmul.mubr.bf16.gmra.mrb[0].mxu0 %v4929
        %v4965 = vpop.f32.mrb[0].mxu0
        %v4966 = vadd.f32 0.0, %v4965
        %v4967 = vpop.f32.mrb[0].mxu0
        %v4968 = vpop.f32.mrb[0].mxu0
        %v4969 = vpop.f32.mrb[0].mxu0
        %4970 = vdwg.mxu0
        %v4971 = vsel %vm1947, %v4966, %v4873
        %v4972 = vsel %vm2047, %v4479, 0.0
        %v4973 = vpack.c.bf16 %v4972, %v4972
        %4974 = vmatprep.subr.bf16.mxu0 0
        %4975 = vmatpush1.bf16.xpose.msra.mxu0 %v4480
        %4976 = vmatprep.subr.bf16.mxu0 0
        %4977 = vmatpush1.bf16.xpose.msra.mxu0 0
        %4978 = vmatprep.subr.bf16.mxu0 0
        %4979 = vmatpush1.bf16.xpose.msra.mxu0 0
        %4980 = vmatprep.subr.bf16.mxu0 0
        %4981 = vmatpush1.bf16.xpose.msra.mxu0 0
        %4982 = vmatprep.subr.bf16.mxu0 0
        %4983 = vmatpush1.bf16.xpose.msra.mxu0 0
        %4984 = vmatprep.subr.bf16.mxu0 0
        %4985 = vmatpush1.bf16.xpose.msra.mxu0 0
        %4986 = vmatprep.subr.bf16.mxu0 0
        %4987 = vmatpush1.bf16.xpose.msra.mxu0 0
        %4988 = vmatprep.subr.bf16.mxu0 0
        %4989 = vmatpush1.bf16.xpose.msra.mxu0 0
        %4990 = vmatprep.subr.bf16.mxu0 0
        %4991 = vmatpush1.bf16.xpose.msra.mxu0 0
        %4992 = vmatprep.subr.bf16.mxu0 0
        %4993 = vmatpush1.bf16.xpose.msra.mxu0 0
        %4994 = vmatprep.subr.bf16.mxu0 0
        %4995 = vmatpush1.bf16.xpose.msra.mxu0 0
        %4996 = vmatprep.subr.bf16.mxu0 0
        %4997 = vmatpush1.bf16.xpose.msra.mxu0 0
        %4998 = vmatprep.subr.bf16.mxu0 0
        %4999 = vmatpush1.bf16.xpose.msra.mxu0 0
        %5000 = vmatprep.subr.bf16.mxu0 0
        %5001 = vmatpush1.bf16.xpose.msra.mxu0 0
        %5002 = vmatprep.subr.bf16.mxu0 0
        %5003 = vmatpush1.bf16.xpose.msra.mxu0 0
        %5004 = vmatprep.subr.bf16.mxu0 0
        %5005 = vmatpush1.bf16.xpose.msra.mxu0 0
        %5006 = vmatprep.mubr.bf16.mxu0 0
        %5007 = vmatmul.mubr.bf16.gmra.mrb[0].mxu0 %v4973
        %v5008 = vpop.f32.mrb[0].mxu0
        %v5009 = vadd.f32 0.0, %v5008
        %v5010 = vpop.f32.mrb[0].mxu0
        %v5011 = vpop.f32.mrb[0].mxu0
        %v5012 = vpop.f32.mrb[0].mxu0
        %5013 = vdwg.mxu0
        %v5014 = vsel %vm3736, %v5009, -inf
        %5015 = vmax.xlane.f32.xlu0 %v5014
        %v5016 = vpop.xlane.xlu0 %5015
        %v5017 = vsub.f32 %v5009, %v5016
        %v5018 = vmul.f32 %v5017, 1.442695
        %v5019 = vpow.pop %v5018
        %v5020 = vsel %vm3736, %v5019, 0.0
        %5021 = vadd.xlane.f32.xlu0 %v5020
        %v5022 = vpop.xlane.xlu0 %5021
        %v5023 = vrcp.pop %v5022
        %v5024 = vmul.f32 %v5019, %v5023
        %v5025 = vpack.c.bf16 %v5024, %v5024
        %v5027 = vsel %vm3736, %v5025, 0
        %5029 = vmatprep.subr.bf16.mxu0 0
        %5030 = vmatpush1.bf16.msra.mxu0 %v4481
        %5031 = vmatprep.subr.bf16.mxu0 0
        %5032 = vmatpush1.bf16.msra.mxu0 0
        %5033 = vmatprep.subr.bf16.mxu0 0
        %5034 = vmatpush1.bf16.msra.mxu0 0
        %5035 = vmatprep.subr.bf16.mxu0 0
        %5036 = vmatpush1.bf16.msra.mxu0 0
        %5037 = vmatprep.subr.bf16.mxu0 0
        %5038 = vmatpush1.bf16.msra.mxu0 0
        %5039 = vmatprep.subr.bf16.mxu0 0
        %5040 = vmatpush1.bf16.msra.mxu0 0
        %5041 = vmatprep.subr.bf16.mxu0 0
        %5042 = vmatpush1.bf16.msra.mxu0 0
        %5043 = vmatprep.subr.bf16.mxu0 0
        %5044 = vmatpush1.bf16.msra.mxu0 0
        %5045 = vmatprep.subr.bf16.mxu0 0
        %5046 = vmatpush1.bf16.msra.mxu0 0
        %5047 = vmatprep.subr.bf16.mxu0 0
        %5048 = vmatpush1.bf16.msra.mxu0 0
        %5049 = vmatprep.subr.bf16.mxu0 0
        %5050 = vmatpush1.bf16.msra.mxu0 0
        %5051 = vmatprep.subr.bf16.mxu0 0
        %5052 = vmatpush1.bf16.msra.mxu0 0
        %5053 = vmatprep.subr.bf16.mxu0 0
        %5054 = vmatpush1.bf16.msra.mxu0 0
        %5055 = vmatprep.subr.bf16.mxu0 0
        %5056 = vmatpush1.bf16.msra.mxu0 0
        %5057 = vmatprep.subr.bf16.mxu0 0
        %5058 = vmatpush1.bf16.msra.mxu0 0
        %5059 = vmatprep.subr.bf16.mxu0 0
        %5060 = vmatpush1.bf16.msra.mxu0 0
        %5061 = vmatprep.mubr.bf16.mxu0 0
        %5062 = vmatmul.mubr.bf16.gmra.mrb[0].mxu0 %v5027
        %v5063 = vpop.f32.mrb[0].mxu0
        %v5064 = vadd.f32 0.0, %v5063
        %v5065 = vpop.f32.mrb[0].mxu0
        %v5066 = vpop.f32.mrb[0].mxu0
        %v5067 = vpop.f32.mrb[0].mxu0
        %5068 = vdwg.mxu0
        %v5069 = vsel %vm2047, %v5064, %v4971
        %v5070 = vsel %vm2147, %v4479, 0.0
        %v5071 = vpack.c.bf16 %v5070, %v5070
        %5072 = vmatprep.subr.bf16.mxu0 0
        %5073 = vmatpush1.bf16.xpose.msra.mxu0 %v4480
        %5074 = vmatprep.subr.bf16.mxu0 0
        %5075 = vmatpush1.bf16.xpose.msra.mxu0 0
        %5076 = vmatprep.subr.bf16.mxu0 0
        %5077 = vmatpush1.bf16.xpose.msra.mxu0 0
        %5078 = vmatprep.subr.bf16.mxu0 0
        %5079 = vmatpush1.bf16.xpose.msra.mxu0 0
        %5080 = vmatprep.subr.bf16.mxu0 0
        %5081 = vmatpush1.bf16.xpose.msra.mxu0 0
        %5082 = vmatprep.subr.bf16.mxu0 0
        %5083 = vmatpush1.bf16.xpose.msra.mxu0 0
        %5084 = vmatprep.subr.bf16.mxu0 0
        %5085 = vmatpush1.bf16.xpose.msra.mxu0 0
        %5086 = vmatprep.subr.bf16.mxu0 0
        %5087 = vmatpush1.bf16.xpose.msra.mxu0 0
        %5088 = vmatprep.subr.bf16.mxu0 0
        %5089 = vmatpush1.bf16.xpose.msra.mxu0 0
        %5090 = vmatprep.subr.bf16.mxu0 0
        %5091 = vmatpush1.bf16.xpose.msra.mxu0 0
        %5092 = vmatprep.subr.bf16.mxu0 0
        %5093 = vmatpush1.bf16.xpose.msra.mxu0 0
        %5094 = vmatprep.subr.bf16.mxu0 0
        %5095 = vmatpush1.bf16.xpose.msra.mxu0 0
        %5096 = vmatprep.subr.bf16.mxu0 0
        %5097 = vmatpush1.bf16.xpose.msra.mxu0 0
        %5098 = vmatprep.subr.bf16.mxu0 0
        %5099 = vmatpush1.bf16.xpose.msra.mxu0 0
        %5100 = vmatprep.subr.bf16.mxu0 0
        %5101 = vmatpush1.bf16.xpose.msra.mxu0 0
        %5102 = vmatprep.subr.bf16.mxu0 0
        %5103 = vmatpush1.bf16.xpose.msra.mxu0 0
        %5104 = vmatprep.mubr.bf16.mxu0 0
        %5105 = vmatmul.mubr.bf16.gmra.mrb[0].mxu0 %v5071
        %v5106 = vpop.f32.mrb[0].mxu0
        %v5107 = vadd.f32 0.0, %v5106
        %v5108 = vpop.f32.mrb[0].mxu0
        %v5109 = vpop.f32.mrb[0].mxu0
        %v5110 = vpop.f32.mrb[0].mxu0
        %5111 = vdwg.mxu0
        %v5112 = vsel %vm3736, %v5107, -inf
        %5113 = vmax.xlane.f32.xlu0 %v5112
        %v5114 = vpop.xlane.xlu0 %5113
        %v5115 = vsub.f32 %v5107, %v5114
        %v5116 = vmul.f32 %v5115, 1.442695
        %v5117 = vpow.pop %v5116
        %v5118 = vsel %vm3736, %v5117, 0.0
        %5119 = vadd.xlane.f32.xlu0 %v5118
        %v5120 = vpop.xlane.xlu0 %5119
        %v5121 = vrcp.pop %v5120
        %v5122 = vmul.f32 %v5117, %v5121
        %v5123 = vpack.c.bf16 %v5122, %v5122
        %v5125 = vsel %vm3736, %v5123, 0
        %5127 = vmatprep.subr.bf16.mxu0 0
        %5128 = vmatpush1.bf16.msra.mxu0 %v4481
        %5129 = vmatprep.subr.bf16.mxu0 0
        %5130 = vmatpush1.bf16.msra.mxu0 0
        %5131 = vmatprep.subr.bf16.mxu0 0
        %5132 = vmatpush1.bf16.msra.mxu0 0
        %5133 = vmatprep.subr.bf16.mxu0 0
        %5134 = vmatpush1.bf16.msra.mxu0 0
        %5135 = vmatprep.subr.bf16.mxu0 0
        %5136 = vmatpush1.bf16.msra.mxu0 0
        %5137 = vmatprep.subr.bf16.mxu0 0
        %5138 = vmatpush1.bf16.msra.mxu0 0
        %5139 = vmatprep.subr.bf16.mxu0 0
        %5140 = vmatpush1.bf16.msra.mxu0 0
        %5141 = vmatprep.subr.bf16.mxu0 0
        %5142 = vmatpush1.bf16.msra.mxu0 0
        %5143 = vmatprep.subr.bf16.mxu0 0
        %5144 = vmatpush1.bf16.msra.mxu0 0
        %5145 = vmatprep.subr.bf16.mxu0 0
        %5146 = vmatpush1.bf16.msra.mxu0 0
        %5147 = vmatprep.subr.bf16.mxu0 0
        %5148 = vmatpush1.bf16.msra.mxu0 0
        %5149 = vmatprep.subr.bf16.mxu0 0
        %5150 = vmatpush1.bf16.msra.mxu0 0
        %5151 = vmatprep.subr.bf16.mxu0 0
        %5152 = vmatpush1.bf16.msra.mxu0 0
        %5153 = vmatprep.subr.bf16.mxu0 0
        %5154 = vmatpush1.bf16.msra.mxu0 0
        %5155 = vmatprep.subr.bf16.mxu0 0
        %5156 = vmatpush1.bf16.msra.mxu0 0
        %5157 = vmatprep.subr.bf16.mxu0 0
        %5158 = vmatpush1.bf16.msra.mxu0 0
        %5159 = vmatprep.mubr.bf16.mxu0 0
        %5160 = vmatmul.mubr.bf16.gmra.mrb[0].mxu0 %v5125
        %v5161 = vpop.f32.mrb[0].mxu0
        %v5162 = vadd.f32 0.0, %v5161
        %v5163 = vpop.f32.mrb[0].mxu0
        %v5164 = vpop.f32.mrb[0].mxu0
        %v5165 = vpop.f32.mrb[0].mxu0
        %5166 = vdwg.mxu0
        %v5167 = vsel %vm2147, %v5162, %v5069
        %v5168 = vsel %vm2247, %v4479, 0.0
        %v5169 = vpack.c.bf16 %v5168, %v5168
        %5170 = vmatprep.subr.bf16.mxu0 0
        %5171 = vmatpush1.bf16.xpose.msra.mxu0 %v4480
        %5172 = vmatprep.subr.bf16.mxu0 0
        %5173 = vmatpush1.bf16.xpose.msra.mxu0 0
        %5174 = vmatprep.subr.bf16.mxu0 0
        %5175 = vmatpush1.bf16.xpose.msra.mxu0 0
        %5176 = vmatprep.subr.bf16.mxu0 0
        %5177 = vmatpush1.bf16.xpose.msra.mxu0 0
        %5178 = vmatprep.subr.bf16.mxu0 0
        %5179 = vmatpush1.bf16.xpose.msra.mxu0 0
        %5180 = vmatprep.subr.bf16.mxu0 0
        %5181 = vmatpush1.bf16.xpose.msra.mxu0 0
        %5182 = vmatprep.subr.bf16.mxu0 0
        %5183 = vmatpush1.bf16.xpose.msra.mxu0 0
        %5184 = vmatprep.subr.bf16.mxu0 0
        %5185 = vmatpush1.bf16.xpose.msra.mxu0 0
        %5186 = vmatprep.subr.bf16.mxu0 0
        %5187 = vmatpush1.bf16.xpose.msra.mxu0 0
        %5188 = vmatprep.subr.bf16.mxu0 0
        %5189 = vmatpush1.bf16.xpose.msra.mxu0 0
        %5190 = vmatprep.subr.bf16.mxu0 0
        %5191 = vmatpush1.bf16.xpose.msra.mxu0 0
        %5192 = vmatprep.subr.bf16.mxu0 0
        %5193 = vmatpush1.bf16.xpose.msra.mxu0 0
        %5194 = vmatprep.subr.bf16.mxu0 0
        %5195 = vmatpush1.bf16.xpose.msra.mxu0 0
        %5196 = vmatprep.subr.bf16.mxu0 0
        %5197 = vmatpush1.bf16.xpose.msra.mxu0 0
        %5198 = vmatprep.subr.bf16.mxu0 0
        %5199 = vmatpush1.bf16.xpose.msra.mxu0 0
        %5200 = vmatprep.subr.bf16.mxu0 0
        %5201 = vmatpush1.bf16.xpose.msra.mxu0 0
        %5202 = vmatprep.mubr.bf16.mxu0 0
        %5203 = vmatmul.mubr.bf16.gmra.mrb[0].mxu0 %v5169
        %v5204 = vpop.f32.mrb[0].mxu0
        %v5205 = vadd.f32 0.0, %v5204
        %v5206 = vpop.f32.mrb[0].mxu0
        %v5207 = vpop.f32.mrb[0].mxu0
        %v5208 = vpop.f32.mrb[0].mxu0
        %5209 = vdwg.mxu0
        %v5210 = vsel %vm3736, %v5205, -inf
        %5211 = vmax.xlane.f32.xlu0 %v5210
        %v5212 = vpop.xlane.xlu0 %5211
        %v5213 = vsub.f32 %v5205, %v5212
        %v5214 = vmul.f32 %v5213, 1.442695
        %v5215 = vpow.pop %v5214
        %v5216 = vsel %vm3736, %v5215, 0.0
        %5217 = vadd.xlane.f32.xlu0 %v5216
        %v5218 = vpop.xlane.xlu0 %5217
        %v5219 = vrcp.pop %v5218
        %v5220 = vmul.f32 %v5215, %v5219
        %v5221 = vpack.c.bf16 %v5220, %v5220
        %v5223 = vsel %vm3736, %v5221, 0
        %5225 = vmatprep.subr.bf16.mxu0 0
        %5226 = vmatpush1.bf16.msra.mxu0 %v4481
        %5227 = vmatprep.subr.bf16.mxu0 0
        %5228 = vmatpush1.bf16.msra.mxu0 0
        %5229 = vmatprep.subr.bf16.mxu0 0
        %5230 = vmatpush1.bf16.msra.mxu0 0
        %5231 = vmatprep.subr.bf16.mxu0 0
        %5232 = vmatpush1.bf16.msra.mxu0 0
        %5233 = vmatprep.subr.bf16.mxu0 0
        %5234 = vmatpush1.bf16.msra.mxu0 0
        %5235 = vmatprep.subr.bf16.mxu0 0
        %5236 = vmatpush1.bf16.msra.mxu0 0
        %5237 = vmatprep.subr.bf16.mxu0 0
        %5238 = vmatpush1.bf16.msra.mxu0 0
        %5239 = vmatprep.subr.bf16.mxu0 0
        %5240 = vmatpush1.bf16.msra.mxu0 0
        %5241 = vmatprep.subr.bf16.mxu0 0
        %5242 = vmatpush1.bf16.msra.mxu0 0
        %5243 = vmatprep.subr.bf16.mxu0 0
        %5244 = vmatpush1.bf16.msra.mxu0 0
        %5245 = vmatprep.subr.bf16.mxu0 0
        %5246 = vmatpush1.bf16.msra.mxu0 0
        %5247 = vmatprep.subr.bf16.mxu0 0
        %5248 = vmatpush1.bf16.msra.mxu0 0
        %5249 = vmatprep.subr.bf16.mxu0 0
        %5250 = vmatpush1.bf16.msra.mxu0 0
        %5251 = vmatprep.subr.bf16.mxu0 0
        %5252 = vmatpush1.bf16.msra.mxu0 0
        %5253 = vmatprep.subr.bf16.mxu0 0
        %5254 = vmatpush1.bf16.msra.mxu0 0
        %5255 = vmatprep.subr.bf16.mxu0 0
        %5256 = vmatpush1.bf16.msra.mxu0 0
        %5257 = vmatprep.mubr.bf16.mxu0 0
        %5258 = vmatmul.mubr.bf16.gmra.mrb[0].mxu0 %v5223
        %v5259 = vpop.f32.mrb[0].mxu0
        %v5260 = vadd.f32 0.0, %v5259
        %v5261 = vpop.f32.mrb[0].mxu0
        %v5262 = vpop.f32.mrb[0].mxu0
        %v5263 = vpop.f32.mrb[0].mxu0
        %5264 = vdwg.mxu0
        %v5265 = vsel %vm2247, %v5260, %v5167
        %v5266 = vpack.c.bf16 %v5265, %v4478
        %v5267 = vld [vmem:[%s1112] sm:$0xf]
        %v5268 = vld [vmem:[%s1112 + $0x4] sm:$0xf]
        %v5269 = vld [vmem:[%s1112 + $0x8] sm:$0xf]
        %v5270 = vld [vmem:[%s1112 + $0xc] sm:$0xf]
        %v5271 = vld [vmem:[%s1112 + $0x10] sm:$0xf]
        %v5272 = vld [vmem:[%s1112 + $0x14] sm:$0xf]
        %v5273 = vld [vmem:[%s1112 + $0x18] sm:$0xf]
        %v5274 = vld [vmem:[%s1112 + $0x1c] sm:$0xf]
        %v5275 = vld [vmem:[%s1112 + $0x20] sm:$0xf]
        %v5276 = vld [vmem:[%s1112 + $0x24] sm:$0xf]
        %v5277 = vld [vmem:[%s1112 + $0x28] sm:$0xf]
        %v5278 = vld [vmem:[%s1112 + $0x2c] sm:$0xf]
        %v5279 = vld [vmem:[%s1112 + $0x30] sm:$0xf]
        %v5280 = vld [vmem:[%s1112 + $0x34] sm:$0xf]
        %v5281 = vld [vmem:[%s1112 + $0x38] sm:$0xf]
        %v5282 = vld [vmem:[%s1112 + $0x3c] sm:$0xf]
        %v5283 = vld [vmem:[%s1115] sm:$0x1]
        %v5285 = vlaneseq
        %v5286 = vshrl.u32 %v5285, 7
        %v5287 = vsub.s32 0, %v5286
        %v5288 = vrot.slane %v5283, %v5287
        %v5306 = vunpack.c.l.b16 %v5267
        %v5307 = vunpack.c.l.b16 %v5268
        %v5308 = vunpack.c.l.b16 %v5269
        %v5309 = vunpack.c.l.b16 %v5270
        %v5310 = vunpack.c.l.b16 %v5271
        %v5311 = vunpack.c.l.b16 %v5272
        %v5312 = vunpack.c.l.b16 %v5273
        %v5313 = vunpack.c.l.b16 %v5274
        %v5314 = vunpack.c.l.b16 %v5275
        %v5315 = vunpack.c.l.b16 %v5276
        %v5316 = vunpack.c.l.b16 %v5277
        %v5317 = vunpack.c.l.b16 %v5278
        %v5318 = vunpack.c.l.b16 %v5279
        %v5319 = vunpack.c.l.b16 %v5280
        %v5320 = vunpack.c.l.b16 %v5281
        %v5321 = vunpack.c.l.b16 %v5282
        %v5322 = vpack.c.b16 %v5307, %v5306
        %v5323 = vpack.c.b16 %v5309, %v5308
        %v5324 = vpack.c.b16 %v5311, %v5310
        %v5325 = vpack.c.b16 %v5313, %v5312
        %v5326 = vpack.c.b16 %v5315, %v5314
        %v5327 = vpack.c.b16 %v5317, %v5316
        %v5328 = vpack.c.b16 %v5319, %v5318
        %v5329 = vpack.c.b16 %v5321, %v5320
        %5338 = vmatprep.subr.bf16.mxu0 0
        %5339 = vmatpush1.bf16.msra.mxu0 %v5322
        %5340 = vmatprep.subr.bf16.mxu0 0
        %5341 = vmatpush1.bf16.msra.mxu0 %v5323
        %5342 = vmatprep.subr.bf16.mxu0 0
        %5343 = vmatpush1.bf16.msra.mxu0 %v5324
        %5344 = vmatprep.subr.bf16.mxu0 0
        %5345 = vmatpush1.bf16.msra.mxu0 %v5325
        %5346 = vmatprep.subr.bf16.mxu0 0
        %5347 = vmatpush1.bf16.msra.mxu0 %v5326
        %5348 = vmatprep.subr.bf16.mxu0 0
        %5349 = vmatpush1.bf16.msra.mxu0 %v5327
        %5350 = vmatprep.subr.bf16.mxu0 0
        %5351 = vmatpush1.bf16.msra.mxu0 %v5328
        %5352 = vmatprep.subr.bf16.mxu0 0
        %5353 = vmatpush1.bf16.msra.mxu0 %v5329
        %5354 = vmatprep.subr.bf16.mxu0 0
        %5355 = vmatpush1.bf16.msra.mxu0 0
        %5356 = vmatprep.subr.bf16.mxu0 0
        %5357 = vmatpush1.bf16.msra.mxu0 0
        %5358 = vmatprep.subr.bf16.mxu0 0
        %5359 = vmatpush1.bf16.msra.mxu0 0
        %5360 = vmatprep.subr.bf16.mxu0 0
        %5361 = vmatpush1.bf16.msra.mxu0 0
        %5362 = vmatprep.subr.bf16.mxu0 0
        %5363 = vmatpush1.bf16.msra.mxu0 0
        %5364 = vmatprep.subr.bf16.mxu0 0
        %5365 = vmatpush1.bf16.msra.mxu0 0
        %5366 = vmatprep.subr.bf16.mxu0 0
        %5367 = vmatpush1.bf16.msra.mxu0 0
        %5368 = vmatprep.subr.bf16.mxu0 0
        %5369 = vmatpush1.bf16.msra.mxu0 0
        %5370 = vmatprep.mubr.bf16.mxu0 0
        %5371 = vmatmul.mubr.bf16.gmra.mrb[0].mxu0 %v5266
        %v5372 = vpop.f32.mrb[0].mxu0
        %v5373 = vadd.f32 %v5288, %v5372
        %v5374 = vpop.f32.mrb[0].mxu0
        %v5375 = vpop.f32.mrb[0].mxu0
        %v5376 = vadd.f32 %v5288, %v5375
        %v5377 = vpop.f32.mrb[0].mxu0
        %5378 = vdwg.mxu0
        %v5379 = vadd.f32 %v3249, %v5373
        %v5380 = vadd.f32 %v3250, %v5376
        %5381 = vadd.xlane.f32.xlu0 %v5379
        %v5382 = vpop.xlane.xlu0 %5381
        %5383 = vadd.xlane.f32.xlu0 %v5380
        %v5384 = vpop.xlane.xlu0 %5383
        %v5385 = vmul.f32 %v5382, %v1185
        %v5386 = vmul.f32 %v5384, %v1185
        %v5387 = vsub.f32 %v5379, %v5385
        %v5388 = vsub.f32 %v5380, %v5386
        %v5389 = vmul.f32 %v5387, %v5387
        %v5390 = vmul.f32 %v5388, %v5388
        %5391 = vadd.xlane.f32.xlu0 %v5389
        %v5392 = vpop.xlane.xlu0 %5391
        %5393 = vadd.xlane.f32.xlu0 %v5390
        %v5394 = vpop.xlane.xlu0 %5393
        %v5395 = vmul.f32 %v5392, %v1185
        %v5396 = vmul.f32 %v5394, %v1185
        %v5397 = vadd.f32 %v5395, 1e-05
        %v5398 = vadd.f32 %v5396, 1e-05
        %v5399 = vrsqrt.pop %v5397
        %v5400 = vrsqrt.pop %v5398
        %v5401 = vmul.f32 %v5387, %v5399
        %v5402 = vmul.f32 %v5388, %v5400
        %v5403 = vld [vmem:[%s1118] sm:$0x1]
        %v5405 = vlaneseq
        %v5406 = vshrl.u32 %v5405, 7
        %v5407 = vsub.s32 0, %v5406
        %v5408 = vrot.slane %v5403, %v5407
        %v5410 = vmul.f32 %v5401, %v5408
        %v5411 = vmul.f32 %v5402, %v5408
        %v5412 = vld [vmem:[%s1121] sm:$0x1]
        %v5414 = vlaneseq
        %v5415 = vshrl.u32 %v5414, 7
        %v5416 = vsub.s32 0, %v5415
        %v5417 = vrot.slane %v5412, %v5416
        %v5419 = vadd.f32 %v5410, %v5417
        %v5420 = vadd.f32 %v5411, %v5417
        %v5421 = vpack.c.bf16 %v5420, %v5419
        %v5422 = vld [vmem:[%s1126] sm:$0xff]
        %v5423 = vld [vmem:[%s1126 + $0x8] sm:$0xff]
        %v5424 = vld [vmem:[%s1126 + $0x10] sm:$0xff]
        %v5425 = vld [vmem:[%s1126 + $0x18] sm:$0xff]
        %v5426 = vld [vmem:[%s1126 + $0x20] sm:$0xff]
        %v5427 = vld [vmem:[%s1126 + $0x28] sm:$0xff]
        %v5428 = vld [vmem:[%s1126 + $0x30] sm:$0xff]
        %v5429 = vld [vmem:[%s1126 + $0x38] sm:$0xff]
        %v5430 = vld [vmem:[%s1126 + $0x40] sm:$0xff]
        %v5431 = vld [vmem:[%s1126 + $0x48] sm:$0xff]
        %v5432 = vld [vmem:[%s1126 + $0x50] sm:$0xff]
        %v5433 = vld [vmem:[%s1126 + $0x58] sm:$0xff]
        %v5434 = vld [vmem:[%s1126 + $0x60] sm:$0xff]
        %v5435 = vld [vmem:[%s1126 + $0x68] sm:$0xff]
        %v5436 = vld [vmem:[%s1126 + $0x70] sm:$0xff]
        %v5437 = vld [vmem:[%s1126 + $0x78] sm:$0xff]
        %v5438 = vld [vmem:[%s1126 + $0x80] sm:$0xff]
        %v5439 = vld [vmem:[%s1126 + $0x88] sm:$0xff]
        %v5440 = vld [vmem:[%s1126 + $0x90] sm:$0xff]
        %v5441 = vld [vmem:[%s1126 + $0x98] sm:$0xff]
        %v5442 = vld [vmem:[%s1126 + $0xa0] sm:$0xff]
        %v5443 = vld [vmem:[%s1126 + $0xa8] sm:$0xff]
        %v5444 = vld [vmem:[%s1126 + $0xb0] sm:$0xff]
        %v5445 = vld [vmem:[%s1126 + $0xb8] sm:$0xff]
        %v5446 = vld [vmem:[%s1126 + $0xc0] sm:$0xff]
        %v5447 = vld [vmem:[%s1126 + $0xc8] sm:$0xff]
        %v5448 = vld [vmem:[%s1126 + $0xd0] sm:$0xff]
        %v5449 = vld [vmem:[%s1126 + $0xd8] sm:$0xff]
        %v5450 = vld [vmem:[%s1126 + $0xe0] sm:$0xff]
        %v5451 = vld [vmem:[%s1126 + $0xe8] sm:$0xff]
        %v5452 = vld [vmem:[%s1126 + $0xf0] sm:$0xff]
        %v5453 = vld [vmem:[%s1126 + $0xf8] sm:$0xff]
        %v5454 = vld [vmem:[%s1130] sm:$0xf]
        %v5456 = vlaneseq
        %v5457 = vshrl.u32 %v5456, 7
        %v5458 = vsub.s32 0, %v5457
        %v5459 = vrot.slane %v5454, %v5458
        %v5460 = vlaneseq
        %v5461 = vshrl.u32 %v5460, 7
        %v5462 = vsub.s32 1, %v5461
        %v5463 = vrot.slane %v5454, %v5462
        %v5464 = vlaneseq
        %v5465 = vshrl.u32 %v5464, 7
        %v5466 = vsub.s32 2, %v5465
        %v5467 = vrot.slane %v5454, %v5466
        %v5468 = vlaneseq
        %v5469 = vshrl.u32 %v5468, 7
        %v5470 = vsub.s32 3, %v5469
        %v5471 = vrot.slane %v5454, %v5470
        %v5508 = vunpack.c.l.b16 %v5422
        %v5509 = vunpack.c.h.b16 %v5422
        %v5510 = vunpack.c.l.b16 %v5423
        %v5511 = vunpack.c.h.b16 %v5423
        %v5512 = vunpack.c.l.b16 %v5424
        %v5513 = vunpack.c.h.b16 %v5424
        %v5514 = vunpack.c.l.b16 %v5425
        %v5515 = vunpack.c.h.b16 %v5425
        %v5516 = vunpack.c.l.b16 %v5426
        %v5517 = vunpack.c.h.b16 %v5426
        %v5518 = vunpack.c.l.b16 %v5427
        %v5519 = vunpack.c.h.b16 %v5427
        %v5520 = vunpack.c.l.b16 %v5428
        %v5521 = vunpack.c.h.b16 %v5428
        %v5522 = vunpack.c.l.b16 %v5429
        %v5523 = vunpack.c.h.b16 %v5429
        %v5524 = vunpack.c.l.b16 %v5430
        %v5525 = vunpack.c.h.b16 %v5430
        %v5526 = vunpack.c.l.b16 %v5431
        %v5527 = vunpack.c.h.b16 %v5431
        %v5528 = vunpack.c.l.b16 %v5432
        %v5529 = vunpack.c.h.b16 %v5432
        %v5530 = vunpack.c.l.b16 %v5433
        %v5531 = vunpack.c.h.b16 %v5433
        %v5532 = vunpack.c.l.b16 %v5434
        %v5533 = vunpack.c.h.b16 %v5434
        %v5534 = vunpack.c.l.b16 %v5435
        %v5535 = vunpack.c.h.b16 %v5435
        %v5536 = vunpack.c.l.b16 %v5436
        %v5537 = vunpack.c.h.b16 %v5436
        %v5538 = vunpack.c.l.b16 %v5437
        %v5539 = vunpack.c.h.b16 %v5437
        %v5540 = vunpack.c.l.b16 %v5438
        %v5541 = vunpack.c.h.b16 %v5438
        %v5542 = vunpack.c.l.b16 %v5439
        %v5543 = vunpack.c.h.b16 %v5439
        %v5544 = vunpack.c.l.b16 %v5440
        %v5545 = vunpack.c.h.b16 %v5440
        %v5546 = vunpack.c.l.b16 %v5441
        %v5547 = vunpack.c.h.b16 %v5441
        %v5548 = vunpack.c.l.b16 %v5442
        %v5549 = vunpack.c.h.b16 %v5442
        %v5550 = vunpack.c.l.b16 %v5443
        %v5551 = vunpack.c.h.b16 %v5443
        %v5552 = vunpack.c.l.b16 %v5444
        %v5553 = vunpack.c.h.b16 %v5444
        %v5554 = vunpack.c.l.b16 %v5445
        %v5555 = vunpack.c.h.b16 %v5445
        %v5556 = vunpack.c.l.b16 %v5446
        %v5557 = vunpack.c.h.b16 %v5446
        %v5558 = vunpack.c.l.b16 %v5447
        %v5559 = vunpack.c.h.b16 %v5447
        %v5560 = vunpack.c.l.b16 %v5448
        %v5561 = vunpack.c.h.b16 %v5448
        %v5562 = vunpack.c.l.b16 %v5449
        %v5563 = vunpack.c.h.b16 %v5449
        %v5564 = vunpack.c.l.b16 %v5450
        %v5565 = vunpack.c.h.b16 %v5450
        %v5566 = vunpack.c.l.b16 %v5451
        %v5567 = vunpack.c.h.b16 %v5451
        %v5568 = vunpack.c.l.b16 %v5452
        %v5569 = vunpack.c.h.b16 %v5452
        %v5570 = vunpack.c.l.b16 %v5453
        %v5571 = vunpack.c.h.b16 %v5453
        %v5572 = vpack.c.b16 %v5512, %v5508
        %v5573 = vpack.c.b16 %v5513, %v5509
        %v5574 = vpack.c.b16 %v5514, %v5510
        %v5575 = vpack.c.b16 %v5515, %v5511
        %v5576 = vpack.c.b16 %v5520, %v5516
        %v5577 = vpack.c.b16 %v5521, %v5517
        %v5578 = vpack.c.b16 %v5522, %v5518
        %v5579 = vpack.c.b16 %v5523, %v5519
        %v5580 = vpack.c.b16 %v5528, %v5524
        %v5581 = vpack.c.b16 %v5529, %v5525
        %v5582 = vpack.c.b16 %v5530, %v5526
        %v5583 = vpack.c.b16 %v5531, %v5527
        %v5584 = vpack.c.b16 %v5536, %v5532
        %v5585 = vpack.c.b16 %v5537, %v5533
        %v5586 = vpack.c.b16 %v5538, %v5534
        %v5587 = vpack.c.b16 %v5539, %v5535
        %v5588 = vpack.c.b16 %v5544, %v5540
        %v5589 = vpack.c.b16 %v5545, %v5541
        %v5590 = vpack.c.b16 %v5546, %v5542
        %v5591 = vpack.c.b16 %v5547, %v5543
        %v5592 = vpack.c.b16 %v5552, %v5548
        %v5593 = vpack.c.b16 %v5553, %v5549
        %v5594 = vpack.c.b16 %v5554, %v5550
        %v5595 = vpack.c.b16 %v5555, %v5551
        %v5596 = vpack.c.b16 %v5560, %v5556
        %v5597 = vpack.c.b16 %v5561, %v5557
        %v5598 = vpack.c.b16 %v5562, %v5558
        %v5599 = vpack.c.b16 %v5563, %v5559
        %v5600 = vpack.c.b16 %v5568, %v5564
        %v5601 = vpack.c.b16 %v5569, %v5565
        %v5602 = vpack.c.b16 %v5570, %v5566
        %v5603 = vpack.c.b16 %v5571, %v5567
        %5636 = vmatprep.subr.bf16.mxu0 %v5573
        %5637 = vmatpush1.bf16.msra.mxu0 %v5572
        %5638 = vmatprep.subr.bf16.mxu0 %v5577
        %5639 = vmatpush1.bf16.msra.mxu0 %v5576
        %5640 = vmatprep.subr.bf16.mxu0 %v5581
        %5641 = vmatpush1.bf16.msra.mxu0 %v5580
        %5642 = vmatprep.subr.bf16.mxu0 %v5585
        %5643 = vmatpush1.bf16.msra.mxu0 %v5584
        %5644 = vmatprep.subr.bf16.mxu0 %v5589
        %5645 = vmatpush1.bf16.msra.mxu0 %v5588
        %5646 = vmatprep.subr.bf16.mxu0 %v5593
        %5647 = vmatpush1.bf16.msra.mxu0 %v5592
        %5648 = vmatprep.subr.bf16.mxu0 %v5597
        %5649 = vmatpush1.bf16.msra.mxu0 %v5596
        %5650 = vmatprep.subr.bf16.mxu0 %v5601
        %5651 = vmatpush1.bf16.msra.mxu0 %v5600
        %5652 = vmatprep.subr.bf16.mxu0 0
        %5653 = vmatpush1.bf16.msra.mxu0 0
        %5654 = vmatprep.subr.bf16.mxu0 0
        %5655 = vmatpush1.bf16.msra.mxu0 0
        %5656 = vmatprep.subr.bf16.mxu0 0
        %5657 = vmatpush1.bf16.msra.mxu0 0
        %5658 = vmatprep.subr.bf16.mxu0 0
        %5659 = vmatpush1.bf16.msra.mxu0 0
        %5660 = vmatprep.subr.bf16.mxu0 0
        %5661 = vmatpush1.bf16.msra.mxu0 0
        %5662 = vmatprep.subr.bf16.mxu0 0
        %5663 = vmatpush1.bf16.msra.mxu0 0
        %5664 = vmatprep.subr.bf16.mxu0 0
        %5665 = vmatpush1.bf16.msra.mxu0 0
        %5666 = vmatprep.subr.bf16.mxu0 0
        %5667 = vmatpush1.bf16.msra.mxu0 0
        %5668 = vmatprep.mubr.bf16.mxu0 0
        %5669 = vmatmul.mubr.bf16.gmra.mrb[0].mxu0 %v5421
        %v5670 = vpop.f32.mrb[0].mxu0
        %v5671 = vadd.f32 %v5459, %v5670
        %v5672 = vpop.f32.mrb[0].mxu0
        %v5673 = vadd.f32 %v5463, %v5672
        %v5674 = vpop.f32.mrb[0].mxu0
        %v5675 = vadd.f32 %v5459, %v5674
        %v5676 = vpop.f32.mrb[0].mxu0
        %v5677 = vadd.f32 %v5463, %v5676
        %5678 = vdwg.mxu0
        %5679 = vmatprep.subr.bf16.mxu0 %v5575
        %5680 = vmatpush1.bf16.msra.mxu0 %v5574
        %5681 = vmatprep.subr.bf16.mxu0 %v5579
        %5682 = vmatpush1.bf16.msra.mxu0 %v5578
        %5683 = vmatprep.subr.bf16.mxu0 %v5583
        %5684 = vmatpush1.bf16.msra.mxu0 %v5582
        %5685 = vmatprep.subr.bf16.mxu0 %v5587
        %5686 = vmatpush1.bf16.msra.mxu0 %v5586
        %5687 = vmatprep.subr.bf16.mxu0 %v5591
        %5688 = vmatpush1.bf16.msra.mxu0 %v5590
        %5689 = vmatprep.subr.bf16.mxu0 %v5595
        %5690 = vmatpush1.bf16.msra.mxu0 %v5594
        %5691 = vmatprep.subr.bf16.mxu0 %v5599
        %5692 = vmatpush1.bf16.msra.mxu0 %v5598
        %5693 = vmatprep.subr.bf16.mxu0 %v5603
        %5694 = vmatpush1.bf16.msra.mxu0 %v5602
        %5695 = vmatprep.subr.bf16.mxu0 0
        %5696 = vmatpush1.bf16.msra.mxu0 0
        %5697 = vmatprep.subr.bf16.mxu0 0
        %5698 = vmatpush1.bf16.msra.mxu0 0
        %5699 = vmatprep.subr.bf16.mxu0 0
        %5700 = vmatpush1.bf16.msra.mxu0 0
        %5701 = vmatprep.subr.bf16.mxu0 0
        %5702 = vmatpush1.bf16.msra.mxu0 0
        %5703 = vmatprep.subr.bf16.mxu0 0
        %5704 = vmatpush1.bf16.msra.mxu0 0
        %5705 = vmatprep.subr.bf16.mxu0 0
        %5706 = vmatpush1.bf16.msra.mxu0 0
        %5707 = vmatprep.subr.bf16.mxu0 0
        %5708 = vmatpush1.bf16.msra.mxu0 0
        %5709 = vmatprep.subr.bf16.mxu0 0
        %5710 = vmatpush1.bf16.msra.mxu0 0
        %5711 = vmatprep.mubr.bf16.mxu0 0
        %5712 = vmatmul.mubr.bf16.gmra.mrb[0].mxu0 %v5421
        %v5713 = vpop.f32.mrb[0].mxu0
        %v5714 = vadd.f32 %v5467, %v5713
        %v5715 = vpop.f32.mrb[0].mxu0
        %v5716 = vadd.f32 %v5471, %v5715
        %v5717 = vpop.f32.mrb[0].mxu0
        %v5718 = vadd.f32 %v5467, %v5717
        %v5719 = vpop.f32.mrb[0].mxu0
        %v5720 = vadd.f32 %v5471, %v5719
        %5721 = vdwg.mxu0
        %v5722 = vmul.f32 %v5671, 0.5
        %v5723 = vmul.f32 %v5673, 0.5
        %v5724 = vmul.f32 %v5714, 0.5
        %v5725 = vmul.f32 %v5716, 0.5
        %v5726 = vmul.f32 %v5675, 0.5
        %v5727 = vmul.f32 %v5677, 0.5
        %v5728 = vmul.f32 %v5718, 0.5
        %v5729 = vmul.f32 %v5720, 0.5
        %v5730 = vmul.f32 %v5671, 0.70710677
        %v5731 = vmul.f32 %v5673, 0.70710677
        %v5732 = vmul.f32 %v5714, 0.70710677
        %v5733 = vmul.f32 %v5716, 0.70710677
        %v5734 = vmul.f32 %v5675, 0.70710677
        %v5735 = vmul.f32 %v5677, 0.70710677
        %v5736 = vmul.f32 %v5718, 0.70710677
        %v5737 = vmul.f32 %v5720, 0.70710677
        %v5738 = vsub.f32 0.0, %v5730
        %v5739 = vsub.f32 0.0, %v5731
        %v5740 = vsub.f32 0.0, %v5732
        %v5741 = vsub.f32 0.0, %v5733
        %v5742 = vsub.f32 0.0, %v5734
        %v5743 = vsub.f32 0.0, %v5735
        %v5744 = vsub.f32 0.0, %v5736
        %v5745 = vsub.f32 0.0, %v5737
        %v5746 = vmax.f32 %v5730, %v5738
        %v5747 = vmax.f32 %v5731, %v5739
        %v5748 = vmax.f32 %v5732, %v5740
        %v5749 = vmax.f32 %v5733, %v5741
        %v5750 = vmax.f32 %v5734, %v5742
        %v5751 = vmax.f32 %v5735, %v5743
        %v5752 = vmax.f32 %v5736, %v5744
        %v5753 = vmax.f32 %v5737, %v5745
        %v5754 = vmul.f32 %v5746, 0.3275911
        %v5755 = vmul.f32 %v5747, 0.3275911
        %v5756 = vmul.f32 %v5748, 0.3275911
        %v5757 = vmul.f32 %v5749, 0.3275911
        %v5758 = vmul.f32 %v5750, 0.3275911
        %v5759 = vmul.f32 %v5751, 0.3275911
        %v5760 = vmul.f32 %v5752, 0.3275911
        %v5761 = vmul.f32 %v5753, 0.3275911
        %v5762 = vadd.f32 %v5754, 1.0
        %v5763 = vadd.f32 %v5755, 1.0
        %v5764 = vadd.f32 %v5756, 1.0
        %v5765 = vadd.f32 %v5757, 1.0
        %v5766 = vadd.f32 %v5758, 1.0
        %v5767 = vadd.f32 %v5759, 1.0
        %v5768 = vadd.f32 %v5760, 1.0
        %v5769 = vadd.f32 %v5761, 1.0
        %v5770 = vrcp.pop %v5762
        %v5771 = vmul.f32 1.0, %v5770
        %v5772 = vrcp.pop %v5763
        %v5773 = vmul.f32 1.0, %v5772
        %v5774 = vrcp.pop %v5764
        %v5775 = vmul.f32 1.0, %v5774
        %v5776 = vrcp.pop %v5765
        %v5777 = vmul.f32 1.0, %v5776
        %v5778 = vrcp.pop %v5766
        %v5779 = vmul.f32 1.0, %v5778
        %v5780 = vrcp.pop %v5767
        %v5781 = vmul.f32 1.0, %v5780
        %v5782 = vrcp.pop %v5768
        %v5783 = vmul.f32 1.0, %v5782
        %v5784 = vrcp.pop %v5769
        %v5785 = vmul.f32 1.0, %v5784
        %v5786 = vmul.f32 %v5771, 1.0614054
        %v5787 = vmul.f32 %v5773, 1.0614054
        %v5788 = vmul.f32 %v5775, 1.0614054
        %v5789 = vmul.f32 %v5777, 1.0614054
        %v5790 = vmul.f32 %v5779, 1.0614054
        %v5791 = vmul.f32 %v5781, 1.0614054
        %v5792 = vmul.f32 %v5783, 1.0614054
        %v5793 = vmul.f32 %v5785, 1.0614054
        %v5794 = vsub.f32 %v5786, 1.4531521
        %v5795 = vsub.f32 %v5787, 1.4531521
        %v5796 = vsub.f32 %v5788, 1.4531521
        %v5797 = vsub.f32 %v5789, 1.4531521
        %v5798 = vsub.f32 %v5790, 1.4531521
        %v5799 = vsub.f32 %v5791, 1.4531521
        %v5800 = vsub.f32 %v5792, 1.4531521
        %v5801 = vsub.f32 %v5793, 1.4531521
        %v5802 = vmul.f32 %v5794, %v5771
        %v5803 = vmul.f32 %v5795, %v5773
        %v5804 = vmul.f32 %v5796, %v5775
        %v5805 = vmul.f32 %v5797, %v5777
        %v5806 = vmul.f32 %v5798, %v5779
        %v5807 = vmul.f32 %v5799, %v5781
        %v5808 = vmul.f32 %v5800, %v5783
        %v5809 = vmul.f32 %v5801, %v5785
        %v5810 = vadd.f32 %v5802, 1.4214138
        %v5811 = vadd.f32 %v5803, 1.4214138
        %v5812 = vadd.f32 %v5804, 1.4214138
        %v5813 = vadd.f32 %v5805, 1.4214138
        %v5814 = vadd.f32 %v5806, 1.4214138
        %v5815 = vadd.f32 %v5807, 1.4214138
        %v5816 = vadd.f32 %v5808, 1.4214138
        %v5817 = vadd.f32 %v5809, 1.4214138
        %v5818 = vmul.f32 %v5810, %v5771
        %v5819 = vmul.f32 %v5811, %v5773
        %v5820 = vmul.f32 %v5812, %v5775
        %v5821 = vmul.f32 %v5813, %v5777
        %v5822 = vmul.f32 %v5814, %v5779
        %v5823 = vmul.f32 %v5815, %v5781
        %v5824 = vmul.f32 %v5816, %v5783
        %v5825 = vmul.f32 %v5817, %v5785
        %v5826 = vsub.f32 %v5818, 0.28449672
        %v5827 = vsub.f32 %v5819, 0.28449672
        %v5828 = vsub.f32 %v5820, 0.28449672
        %v5829 = vsub.f32 %v5821, 0.28449672
        %v5830 = vsub.f32 %v5822, 0.28449672
        %v5831 = vsub.f32 %v5823, 0.28449672
        %v5832 = vsub.f32 %v5824, 0.28449672
        %v5833 = vsub.f32 %v5825, 0.28449672
        %v5834 = vmul.f32 %v5826, %v5771
        %v5835 = vmul.f32 %v5827, %v5773
        %v5836 = vmul.f32 %v5828, %v5775
        %v5837 = vmul.f32 %v5829, %v5777
        %v5838 = vmul.f32 %v5830, %v5779
        %v5839 = vmul.f32 %v5831, %v5781
        %v5840 = vmul.f32 %v5832, %v5783
        %v5841 = vmul.f32 %v5833, %v5785
        %v5842 = vadd.f32 %v5834, 0.2548296
        %v5843 = vadd.f32 %v5835, 0.2548296
        %v5844 = vadd.f32 %v5836, 0.2548296
        %v5845 = vadd.f32 %v5837, 0.2548296
        %v5846 = vadd.f32 %v5838, 0.2548296
        %v5847 = vadd.f32 %v5839, 0.2548296
        %v5848 = vadd.f32 %v5840, 0.2548296
        %v5849 = vadd.f32 %v5841, 0.2548296
        %v5850 = vmul.f32 %v5842, %v5771
        %v5851 = vmul.f32 %v5843, %v5773
        %v5852 = vmul.f32 %v5844, %v5775
        %v5853 = vmul.f32 %v5845, %v5777
        %v5854 = vmul.f32 %v5846, %v5779
        %v5855 = vmul.f32 %v5847, %v5781
        %v5856 = vmul.f32 %v5848, %v5783
        %v5857 = vmul.f32 %v5849, %v5785
        %v5858 = vsub.f32 0.0, %v5746
        %v5859 = vsub.f32 0.0, %v5747
        %v5860 = vsub.f32 0.0, %v5748
        %v5861 = vsub.f32 0.0, %v5749
        %v5862 = vsub.f32 0.0, %v5750
        %v5863 = vsub.f32 0.0, %v5751
        %v5864 = vsub.f32 0.0, %v5752
        %v5865 = vsub.f32 0.0, %v5753
        %v5866 = vmul.f32 %v5858, %v5746
        %v5867 = vmul.f32 %v5859, %v5747
        %v5868 = vmul.f32 %v5860, %v5748
        %v5869 = vmul.f32 %v5861, %v5749
        %v5870 = vmul.f32 %v5862, %v5750
        %v5871 = vmul.f32 %v5863, %v5751
        %v5872 = vmul.f32 %v5864, %v5752
        %v5873 = vmul.f32 %v5865, %v5753
        %v5874 = vmul.f32 %v5866, 1.442695
        %v5875 = vpow.pop %v5874
        %v5876 = vmul.f32 %v5867, 1.442695
        %v5877 = vpow.pop %v5876
        %v5878 = vmul.f32 %v5868, 1.442695
        %v5879 = vpow.pop %v5878
        %v5880 = vmul.f32 %v5869, 1.442695
        %v5881 = vpow.pop %v5880
        %v5882 = vmul.f32 %v5870, 1.442695
        %v5883 = vpow.pop %v5882
        %v5884 = vmul.f32 %v5871, 1.442695
        %v5885 = vpow.pop %v5884
        %v5886 = vmul.f32 %v5872, 1.442695
        %v5887 = vpow.pop %v5886
        %v5888 = vmul.f32 %v5873, 1.442695
        %v5889 = vpow.pop %v5888
        %v5890 = vmul.f32 %v5850, %v5875
        %v5891 = vmul.f32 %v5851, %v5877
        %v5892 = vmul.f32 %v5852, %v5879
        %v5893 = vmul.f32 %v5853, %v5881
        %v5894 = vmul.f32 %v5854, %v5883
        %v5895 = vmul.f32 %v5855, %v5885
        %v5896 = vmul.f32 %v5856, %v5887
        %v5897 = vmul.f32 %v5857, %v5889
        %v5898 = vsub.f32 1.0, %v5890
        %v5899 = vsub.f32 1.0, %v5891
        %v5900 = vsub.f32 1.0, %v5892
        %v5901 = vsub.f32 1.0, %v5893
        %v5902 = vsub.f32 1.0, %v5894
        %v5903 = vsub.f32 1.0, %v5895
        %v5904 = vsub.f32 1.0, %v5896
        %v5905 = vsub.f32 1.0, %v5897
        %vm5906 = vcmp.lt.f32.partialorder %v5730, 0.0
        %vm5907 = vcmp.lt.f32.partialorder %v5731, 0.0
        %vm5908 = vcmp.lt.f32.partialorder %v5732, 0.0
        %vm5909 = vcmp.lt.f32.partialorder %v5733, 0.0
        %vm5910 = vcmp.lt.f32.partialorder %v5734, 0.0
        %vm5911 = vcmp.lt.f32.partialorder %v5735, 0.0
        %vm5912 = vcmp.lt.f32.partialorder %v5736, 0.0
        %vm5913 = vcmp.lt.f32.partialorder %v5737, 0.0
        %v5914 = vsub.f32 0.0, %v5898
        %v5915 = vsub.f32 0.0, %v5899
        %v5916 = vsub.f32 0.0, %v5900
        %v5917 = vsub.f32 0.0, %v5901
        %v5918 = vsub.f32 0.0, %v5902
        %v5919 = vsub.f32 0.0, %v5903
        %v5920 = vsub.f32 0.0, %v5904
        %v5921 = vsub.f32 0.0, %v5905
        %v5922 = vsel %vm5906, %v5914, %v5898
        %v5923 = vsel %vm5907, %v5915, %v5899
        %v5924 = vsel %vm5908, %v5916, %v5900
        %v5925 = vsel %vm5909, %v5917, %v5901
        %v5926 = vsel %vm5910, %v5918, %v5902
        %v5927 = vsel %vm5911, %v5919, %v5903
        %v5928 = vsel %vm5912, %v5920, %v5904
        %v5929 = vsel %vm5913, %v5921, %v5905
        %v5930 = vadd.f32 %v5922, 1.0
        %v5931 = vadd.f32 %v5923, 1.0
        %v5932 = vadd.f32 %v5924, 1.0
        %v5933 = vadd.f32 %v5925, 1.0
        %v5934 = vadd.f32 %v5926, 1.0
        %v5935 = vadd.f32 %v5927, 1.0
        %v5936 = vadd.f32 %v5928, 1.0
        %v5937 = vadd.f32 %v5929, 1.0
        %v5938 = vmul.f32 %v5722, %v5930
        %v5939 = vmul.f32 %v5723, %v5931
        %v5940 = vmul.f32 %v5724, %v5932
        %v5941 = vmul.f32 %v5725, %v5933
        %v5942 = vmul.f32 %v5726, %v5934
        %v5943 = vmul.f32 %v5727, %v5935
        %v5944 = vmul.f32 %v5728, %v5936
        %v5945 = vmul.f32 %v5729, %v5937
        %v5946 = vpack.c.bf16 %v5942, %v5938
        %v5947 = vpack.c.bf16 %v5943, %v5939
        %v5948 = vpack.c.bf16 %v5944, %v5940
        %v5949 = vpack.c.bf16 %v5945, %v5941
        %v5950 = vld [vmem:[%s1135] sm:$0xf]
        %v5951 = vld [vmem:[%s1135 + $0x4] sm:$0xf]
        %v5952 = vld [vmem:[%s1135 + $0x8] sm:$0xf]
        %v5953 = vld [vmem:[%s1135 + $0xc] sm:$0xf]
        %v5954 = vld [vmem:[%s1135 + $0x10] sm:$0xf]
        %v5955 = vld [vmem:[%s1135 + $0x14] sm:$0xf]
        %v5956 = vld [vmem:[%s1135 + $0x18] sm:$0xf]
        %v5957 = vld [vmem:[%s1135 + $0x1c] sm:$0xf]
        %v5958 = vld [vmem:[%s1135 + $0x20] sm:$0xf]
        %v5959 = vld [vmem:[%s1135 + $0x24] sm:$0xf]
        %v5960 = vld [vmem:[%s1135 + $0x28] sm:$0xf]
        %v5961 = vld [vmem:[%s1135 + $0x2c] sm:$0xf]
        %v5962 = vld [vmem:[%s1135 + $0x30] sm:$0xf]
        %v5963 = vld [vmem:[%s1135 + $0x34] sm:$0xf]
        %v5964 = vld [vmem:[%s1135 + $0x38] sm:$0xf]
        %v5965 = vld [vmem:[%s1135 + $0x3c] sm:$0xf]
        %v5966 = vld [vmem:[%s1135 + $0x40] sm:$0xf]
        %v5967 = vld [vmem:[%s1135 + $0x44] sm:$0xf]
        %v5968 = vld [vmem:[%s1135 + $0x48] sm:$0xf]
        %v5969 = vld [vmem:[%s1135 + $0x4c] sm:$0xf]
        %v5970 = vld [vmem:[%s1135 + $0x50] sm:$0xf]
        %v5971 = vld [vmem:[%s1135 + $0x54] sm:$0xf]
        %v5972 = vld [vmem:[%s1135 + $0x58] sm:$0xf]
        %v5973 = vld [vmem:[%s1135 + $0x5c] sm:$0xf]
        %v5974 = vld [vmem:[%s1135 + $0x60] sm:$0xf]
        %v5975 = vld [vmem:[%s1135 + $0x64] sm:$0xf]
        %v5976 = vld [vmem:[%s1135 + $0x68] sm:$0xf]
        %v5977 = vld [vmem:[%s1135 + $0x6c] sm:$0xf]
        %v5978 = vld [vmem:[%s1135 + $0x70] sm:$0xf]
        %v5979 = vld [vmem:[%s1135 + $0x74] sm:$0xf]
        %v5980 = vld [vmem:[%s1135 + $0x78] sm:$0xf]
        %v5981 = vld [vmem:[%s1135 + $0x7c] sm:$0xf]
        %v5982 = vld [vmem:[%s1135 + $0x80] sm:$0xf]
        %v5983 = vld [vmem:[%s1135 + $0x84] sm:$0xf]
        %v5984 = vld [vmem:[%s1135 + $0x88] sm:$0xf]
        %v5985 = vld [vmem:[%s1135 + $0x8c] sm:$0xf]
        %v5986 = vld [vmem:[%s1135 + $0x90] sm:$0xf]
        %v5987 = vld [vmem:[%s1135 + $0x94] sm:$0xf]
        %v5988 = vld [vmem:[%s1135 + $0x98] sm:$0xf]
        %v5989 = vld [vmem:[%s1135 + $0x9c] sm:$0xf]
        %v5990 = vld [vmem:[%s1135 + $0xa0] sm:$0xf]
        %v5991 = vld [vmem:[%s1135 + $0xa4] sm:$0xf]
        %v5992 = vld [vmem:[%s1135 + $0xa8] sm:$0xf]
        %v5993 = vld [vmem:[%s1135 + $0xac] sm:$0xf]
        %v5994 = vld [vmem:[%s1135 + $0xb0] sm:$0xf]
        %v5995 = vld [vmem:[%s1135 + $0xb4] sm:$0xf]
        %v5996 = vld [vmem:[%s1135 + $0xb8] sm:$0xf]
        %v5997 = vld [vmem:[%s1135 + $0xbc] sm:$0xf]
        %v5998 = vld [vmem:[%s1135 + $0xc0] sm:$0xf]
        %v5999 = vld [vmem:[%s1135 + $0xc4] sm:$0xf]
        %v6000 = vld [vmem:[%s1135 + $0xc8] sm:$0xf]
        %v6001 = vld [vmem:[%s1135 + $0xcc] sm:$0xf]
        %v6002 = vld [vmem:[%s1135 + $0xd0] sm:$0xf]
        %v6003 = vld [vmem:[%s1135 + $0xd4] sm:$0xf]
        %v6004 = vld [vmem:[%s1135 + $0xd8] sm:$0xf]
        %v6005 = vld [vmem:[%s1135 + $0xdc] sm:$0xf]
        %v6006 = vld [vmem:[%s1135 + $0xe0] sm:$0xf]
        %v6007 = vld [vmem:[%s1135 + $0xe4] sm:$0xf]
        %v6008 = vld [vmem:[%s1135 + $0xe8] sm:$0xf]
        %v6009 = vld [vmem:[%s1135 + $0xec] sm:$0xf]
        %v6010 = vld [vmem:[%s1135 + $0xf0] sm:$0xf]
        %v6011 = vld [vmem:[%s1135 + $0xf4] sm:$0xf]
        %v6012 = vld [vmem:[%s1135 + $0xf8] sm:$0xf]
        %v6013 = vld [vmem:[%s1135 + $0xfc] sm:$0xf]
        %v6014 = vld [vmem:[%s1138] sm:$0x1]
        %v6016 = vlaneseq
        %v6017 = vshrl.u32 %v6016, 7
        %v6018 = vsub.s32 0, %v6017
        %v6019 = vrot.slane %v6014, %v6018
        %v6085 = vunpack.c.l.b16 %v5950
        %v6086 = vunpack.c.l.b16 %v5951
        %v6087 = vunpack.c.l.b16 %v5952
        %v6088 = vunpack.c.l.b16 %v5953
        %v6089 = vunpack.c.l.b16 %v5954
        %v6090 = vunpack.c.l.b16 %v5955
        %v6091 = vunpack.c.l.b16 %v5956
        %v6092 = vunpack.c.l.b16 %v5957
        %v6093 = vunpack.c.l.b16 %v5958
        %v6094 = vunpack.c.l.b16 %v5959
        %v6095 = vunpack.c.l.b16 %v5960
        %v6096 = vunpack.c.l.b16 %v5961
        %v6097 = vunpack.c.l.b16 %v5962
        %v6098 = vunpack.c.l.b16 %v5963
        %v6099 = vunpack.c.l.b16 %v5964
        %v6100 = vunpack.c.l.b16 %v5965
        %v6101 = vunpack.c.l.b16 %v5966
        %v6102 = vunpack.c.l.b16 %v5967
        %v6103 = vunpack.c.l.b16 %v5968
        %v6104 = vunpack.c.l.b16 %v5969
        %v6105 = vunpack.c.l.b16 %v5970
        %v6106 = vunpack.c.l.b16 %v5971
        %v6107 = vunpack.c.l.b16 %v5972
        %v6108 = vunpack.c.l.b16 %v5973
        %v6109 = vunpack.c.l.b16 %v5974
        %v6110 = vunpack.c.l.b16 %v5975
        %v6111 = vunpack.c.l.b16 %v5976
        %v6112 = vunpack.c.l.b16 %v5977
        %v6113 = vunpack.c.l.b16 %v5978
        %v6114 = vunpack.c.l.b16 %v5979
        %v6115 = vunpack.c.l.b16 %v5980
        %v6116 = vunpack.c.l.b16 %v5981
        %v6117 = vunpack.c.l.b16 %v5982
        %v6118 = vunpack.c.l.b16 %v5983
        %v6119 = vunpack.c.l.b16 %v5984
        %v6120 = vunpack.c.l.b16 %v5985
        %v6121 = vunpack.c.l.b16 %v5986
        %v6122 = vunpack.c.l.b16 %v5987
        %v6123 = vunpack.c.l.b16 %v5988
        %v6124 = vunpack.c.l.b16 %v5989
        %v6125 = vunpack.c.l.b16 %v5990
        %v6126 = vunpack.c.l.b16 %v5991
        %v6127 = vunpack.c.l.b16 %v5992
        %v6128 = vunpack.c.l.b16 %v5993
        %v6129 = vunpack.c.l.b16 %v5994
        %v6130 = vunpack.c.l.b16 %v5995
        %v6131 = vunpack.c.l.b16 %v5996
        %v6132 = vunpack.c.l.b16 %v5997
        %v6133 = vunpack.c.l.b16 %v5998
        %v6134 = vunpack.c.l.b16 %v5999
        %v6135 = vunpack.c.l.b16 %v6000
        %v6136 = vunpack.c.l.b16 %v6001
        %v6137 = vunpack.c.l.b16 %v6002
        %v6138 = vunpack.c.l.b16 %v6003
        %v6139 = vunpack.c.l.b16 %v6004
        %v6140 = vunpack.c.l.b16 %v6005
        %v6141 = vunpack.c.l.b16 %v6006
        %v6142 = vunpack.c.l.b16 %v6007
        %v6143 = vunpack.c.l.b16 %v6008
        %v6144 = vunpack.c.l.b16 %v6009
        %v6145 = vunpack.c.l.b16 %v6010
        %v6146 = vunpack.c.l.b16 %v6011
        %v6147 = vunpack.c.l.b16 %v6012
        %v6148 = vunpack.c.l.b16 %v6013
        %v6149 = vpack.c.b16 %v6086, %v6085
        %v6150 = vpack.c.b16 %v6088, %v6087
        %v6151 = vpack.c.b16 %v6090, %v6089
        %v6152 = vpack.c.b16 %v6092, %v6091
        %v6153 = vpack.c.b16 %v6094, %v6093
        %v6154 = vpack.c.b16 %v6096, %v6095
        %v6155 = vpack.c.b16 %v6098, %v6097
        %v6156 = vpack.c.b16 %v6100, %v6099
        %v6157 = vpack.c.b16 %v6102, %v6101
        %v6158 = vpack.c.b16 %v6104, %v6103
        %v6159 = vpack.c.b16 %v6106, %v6105
        %v6160 = vpack.c.b16 %v6108, %v6107
        %v6161 = vpack.c.b16 %v6110, %v6109
        %v6162 = vpack.c.b16 %v6112, %v6111
        %v6163 = vpack.c.b16 %v6114, %v6113
        %v6164 = vpack.c.b16 %v6116, %v6115
        %v6165 = vpack.c.b16 %v6118, %v6117
        %v6166 = vpack.c.b16 %v6120, %v6119
        %v6167 = vpack.c.b16 %v6122, %v6121
        %v6168 = vpack.c.b16 %v6124, %v6123
        %v6169 = vpack.c.b16 %v6126, %v6125
        %v6170 = vpack.c.b16 %v6128, %v6127
        %v6171 = vpack.c.b16 %v6130, %v6129
        %v6172 = vpack.c.b16 %v6132, %v6131
        %v6173 = vpack.c.b16 %v6134, %v6133
        %v6174 = vpack.c.b16 %v6136, %v6135
        %v6175 = vpack.c.b16 %v6138, %v6137
        %v6176 = vpack.c.b16 %v6140, %v6139
        %v6177 = vpack.c.b16 %v6142, %v6141
        %v6178 = vpack.c.b16 %v6144, %v6143
        %v6179 = vpack.c.b16 %v6146, %v6145
        %v6180 = vpack.c.b16 %v6148, %v6147
        %6213 = vmatprep.subr.bf16.mxu0 0
        %6214 = vmatpush1.bf16.msra.mxu0 %v6149
        %6215 = vmatprep.subr.bf16.mxu0 0
        %6216 = vmatpush1.bf16.msra.mxu0 %v6150
        %6217 = vmatprep.subr.bf16.mxu0 0
        %6218 = vmatpush1.bf16.msra.mxu0 %v6151
        %6219 = vmatprep.subr.bf16.mxu0 0
        %6220 = vmatpush1.bf16.msra.mxu0 %v6152
        %6221 = vmatprep.subr.bf16.mxu0 0
        %6222 = vmatpush1.bf16.msra.mxu0 %v6153
        %6223 = vmatprep.subr.bf16.mxu0 0
        %6224 = vmatpush1.bf16.msra.mxu0 %v6154
        %6225 = vmatprep.subr.bf16.mxu0 0
        %6226 = vmatpush1.bf16.msra.mxu0 %v6155
        %6227 = vmatprep.subr.bf16.mxu0 0
        %6228 = vmatpush1.bf16.msra.mxu0 %v6156
        %6229 = vmatprep.subr.bf16.mxu0 0
        %6230 = vmatpush1.bf16.msra.mxu0 %v6157
        %6231 = vmatprep.subr.bf16.mxu0 0
        %6232 = vmatpush1.bf16.msra.mxu0 %v6158
        %6233 = vmatprep.subr.bf16.mxu0 0
        %6234 = vmatpush1.bf16.msra.mxu0 %v6159
        %6235 = vmatprep.subr.bf16.mxu0 0
        %6236 = vmatpush1.bf16.msra.mxu0 %v6160
        %6237 = vmatprep.subr.bf16.mxu0 0
        %6238 = vmatpush1.bf16.msra.mxu0 %v6161
        %6239 = vmatprep.subr.bf16.mxu0 0
        %6240 = vmatpush1.bf16.msra.mxu0 %v6162
        %6241 = vmatprep.subr.bf16.mxu0 0
        %6242 = vmatpush1.bf16.msra.mxu0 %v6163
        %6243 = vmatprep.subr.bf16.mxu0 0
        %6244 = vmatpush1.bf16.msra.mxu0 %v6164
        %6245 = vmatprep.mubr.bf16.mxu0 %v5947
        %6246 = vmatmul.mubr.bf16.gmra.mrb[0].mxu0 %v5946
        %v6247 = vpop.f32.mrb[0].mxu0
        %v6248 = vadd.f32 %v6019, %v6247
        %v6249 = vpop.f32.mrb[0].mxu0
        %v6250 = vpop.f32.mrb[0].mxu0
        %v6251 = vadd.f32 %v6019, %v6250
        %v6252 = vpop.f32.mrb[0].mxu0
        %6253 = vdwg.mxu0
        %6254 = vmatprep.subr.bf16.mxu0 0
        %6255 = vmatpush1.bf16.msra.mxu0 %v6165
        %6256 = vmatprep.subr.bf16.mxu0 0
        %6257 = vmatpush1.bf16.msra.mxu0 %v6166
        %6258 = vmatprep.subr.bf16.mxu0 0
        %6259 = vmatpush1.bf16.msra.mxu0 %v6167
        %6260 = vmatprep.subr.bf16.mxu0 0
        %6261 = vmatpush1.bf16.msra.mxu0 %v6168
        %6262 = vmatprep.subr.bf16.mxu0 0
        %6263 = vmatpush1.bf16.msra.mxu0 %v6169
        %6264 = vmatprep.subr.bf16.mxu0 0
        %6265 = vmatpush1.bf16.msra.mxu0 %v6170
        %6266 = vmatprep.subr.bf16.mxu0 0
        %6267 = vmatpush1.bf16.msra.mxu0 %v6171
        %6268 = vmatprep.subr.bf16.mxu0 0
        %6269 = vmatpush1.bf16.msra.mxu0 %v6172
        %6270 = vmatprep.subr.bf16.mxu0 0
        %6271 = vmatpush1.bf16.msra.mxu0 %v6173
        %6272 = vmatprep.subr.bf16.mxu0 0
        %6273 = vmatpush1.bf16.msra.mxu0 %v6174
        %6274 = vmatprep.subr.bf16.mxu0 0
        %6275 = vmatpush1.bf16.msra.mxu0 %v6175
        %6276 = vmatprep.subr.bf16.mxu0 0
        %6277 = vmatpush1.bf16.msra.mxu0 %v6176
        %6278 = vmatprep.subr.bf16.mxu0 0
        %6279 = vmatpush1.bf16.msra.mxu0 %v6177
        %6280 = vmatprep.subr.bf16.mxu0 0
        %6281 = vmatpush1.bf16.msra.mxu0 %v6178
        %6282 = vmatprep.subr.bf16.mxu0 0
        %6283 = vmatpush1.bf16.msra.mxu0 %v6179
        %6284 = vmatprep.subr.bf16.mxu0 0
        %6285 = vmatpush1.bf16.msra.mxu0 %v6180
        %6286 = vmatprep.mubr.bf16.mxu0 %v5949
        %6287 = vmatmul.mubr.bf16.gmra.mrb[0].mxu0 %v5948
        %v6288 = vpop.f32.mrb[0].mxu0
        %v6289 = vadd.f32 %v6248, %v6288
        %v6290 = vpop.f32.mrb[0].mxu0
        %v6291 = vpop.f32.mrb[0].mxu0
        %v6292 = vadd.f32 %v6251, %v6291
        %v6293 = vpop.f32.mrb[0].mxu0
        %6294 = vdwg.mxu0
        %v6295 = vadd.f32 %v5379, %v6289
        %v6296 = vadd.f32 %v5380, %v6292
        %6297 = vst [vmem:[#allocation2] sm:$0xff] %v6295
        %6298 = vst [vmem:[#allocation2 + $0x8] sm:$0xff] %v6296
        %p6299 = scmp.eq.s32.totalorder %s41, 1
        // Predicated region
        $region121: #{stacked_cross_attention_fwd.1} parent=115 // pred_check
          %p6300 = pneg %p6299
        $region122: #{stacked_cross_attention_fwd.1} parent=115 // pred_check_branch
          %6302 = sbr.rel (%p6300) target = $region124
        $region123: #{stacked_cross_attention_fwd.1} parent=115 // pred_region
          %6303 = vst [vmem:[#allocation3] sm:$0xff] %v6295
          %6304 = vst [vmem:[#allocation3 + $0x8] sm:$0xff] %v6296
        $region124: #{stacked_cross_attention_fwd.1} parent=115 // pred_fallthru
          _
        // Predicated region
        $region125: #{stacked_cross_attention_fwd.1} parent=115 // pred_check
          %p6305 = pneg %p690
        $region126: #{stacked_cross_attention_fwd.1} parent=115 // pred_check_branch
          %6307 = sbr.rel (%p6305) target = $region128
        $region127: #{stacked_cross_attention_fwd.1} parent=115 // pred_region
          %s6308 = smul.u32 2, %s40
          %s6310 = ssub.s32 256, 256
          %6311 = vsyncadd [#allocation4], %s6310
          %s6312 = smul.addr %s6308, 128
          %s6313 = scalar_lea.hbm %s24, %s6312
          %s6314 = sshll.u32 [#allocation3], 4
          %s6315 = int_to_ptr.vmem [resolvable:$true] %s6314
          %6320 = dma.vmem_to_hbm [thread:$0]  %s6315, 256, %s6313, [#allocation4], 128, 128, 8
        $region128: #{stacked_cross_attention_fwd.1} parent=115 // pred_fallthru
          _
        // Predicated region
        $region129: #{stacked_cross_attention_fwd.1} parent=115 // pred_check
          %p6321 = pneg %p690
        $region130: #{stacked_cross_attention_fwd.1} parent=115 // pred_check_branch
          %6323 = sbr.rel (%p6321) target = $region132
        $region131: #{stacked_cross_attention_fwd.1} parent=115 // pred_region
          %6324 = dma.done [#allocation4], 256
        $region132: #{stacked_cross_attention_fwd.1} parent=115 // pred_fallthru
          _
      $region116: #{stacked_cross_attention_fwd.1} parent=5 // pred_fallthru
        _
      %p6325 = scmp.le.s32.totalorder 2, %s31
      // Predicated region
      $region133: #{stacked_cross_attention_fwd.1} parent=5 // pred_check
        %p6326 = pneg %p6325
      $region134: #{stacked_cross_attention_fwd.1} parent=5 // pred_check_branch
        %6328 = sbr.rel (%p6326) target = $region136
      $region135: #{stacked_cross_attention_fwd.1} parent=5 // pred_region
        %s6329 = ssub.s32 %s31, 2
      $region136: #{stacked_cross_attention_fwd.1} parent=5 // pred_fallthru
        _
    $region6: #{stacked_cross_attention_fwd.1} parent=1 // loop_footer
      %s35 = sadd.s32 1, %s31
    $region7: #{stacked_cross_attention_fwd.1} parent=1 // loop_footer_branch
      %30 = sbr.rel target = $region3
    $region8: #{stacked_cross_attention_fwd.1} parent=1 // loop_exit
      _
    %6330 = vsyncpa [#allocation4], 1
    %s6331 = scalar_lea.sflag [#allocation4], 1
    %6332 = vsyncpa %s6331, 1

</llo_original>
